<compile_context>
chip_gen: v7x
topology: tpu7x:2x2x1
jax: 0.10.0
libtpu: 0.0.40
codegen_flags: <defaults>
</compile_context>

<pallas_src>
import jax
import jax.numpy as jnp
from jax.experimental import pallas as pl
from jax.experimental.pallas import tpu as pltpu
import numpy as np

# ---------------- configuration (synthetic, deterministic) -----------------
IN_CHANNELS = 3
OUT_CHANNELS = 3
HIDDEN = 32
FIRST_OMEGA_0 = 30.0
HIDDEN_OMEGA_0 = 30.0
TM = 1024                     # row tile on the lane axis (multiple of 128)


# ------------------------------- kernel ------------------------------------
def siren_kernel(x_ref, w0_ref, b0_ref, w1_ref, b1_ref, wf_ref, bf_ref, o_ref):
    # x_ref: (IN_CHANNELS, TM) — rows on the lane axis (lane-dense).
    # Weights in PyTorch (out_features, in_features) layout; omega_0 already
    # folded into w0/b0 and w1/b1 by the wrapper. Biases are (out, 1).
    xT = x_ref[...]

    # encoding1: SineLayer(is_first=True, omega_0=30)  [omega folded]
    h = jnp.dot(w0_ref[...], xT, preferred_element_type=jnp.float32) + b0_ref[...]
    h = jnp.sin(h)

    # encoding2: SineLayer(omega_0=30)  [omega folded]
    h = jnp.dot(w1_ref[...], h, preferred_element_type=jnp.float32) + b1_ref[...]
    h = jnp.sin(h)

    # final_layer: plain Linear (outermost_linear=True), identity activation
    y = jnp.dot(wf_ref[...], h, preferred_element_type=jnp.float32) + bf_ref[...]
    o_ref[...] = y.astype(o_ref.dtype)


# ------------------------------ wrapper -------------------------------------
def siren_forward(x, params, *, tm=TM):
    """x: (B, R, C) float32, channels last. Returns (B, R, OUT_CHANNELS)."""
    B, R, C = x.shape
    # slice semantics of Siren.forward (start_channel=0, latent_dim=0)
    x = x[..., :IN_CHANNELS]
    N = B * R

    # Lane-dense layout: rows on the lane axis -> (IN_CHANNELS, N).
    xT = x.reshape(N, IN_CHANNELS).T

    # Pad rows up to a multiple of the tile (padded rows are discarded below).
    n_tiles = pl.cdiv(N, tm)
    Np = n_tiles * tm
    if Np != N:
        xT = jnp.pad(xT, ((0, 0), (0, Np - N)))

    w0, b0, w1, b1, wf, bf = params
    # Fold omega_0 into the sine-layer weights/biases (algebraically exact).
    w0s = jnp.asarray(w0) * FIRST_OMEGA_0               # (HIDDEN, IN_CHANNELS)
    b0s = (jnp.asarray(b0) * FIRST_OMEGA_0).reshape(-1, 1)
    w1s = jnp.asarray(w1) * HIDDEN_OMEGA_0              # (HIDDEN, HIDDEN)
    b1s = (jnp.asarray(b1) * HIDDEN_OMEGA_0).reshape(-1, 1)
    wff = jnp.asarray(wf)                               # (OUT_CHANNELS, HIDDEN)
    bff = jnp.asarray(bf).reshape(-1, 1)

    full = lambda shape: pl.BlockSpec(shape, lambda i: (0, 0))

    outT = pl.pallas_call(
        siren_kernel,
        out_shape=jax.ShapeDtypeStruct((OUT_CHANNELS, Np), jnp.float32),
        grid_spec=pltpu.PrefetchScalarGridSpec(
            num_scalar_prefetch=0,
            grid=(n_tiles,),
            in_specs=[
                pl.BlockSpec((IN_CHANNELS, tm), lambda i: (0, i)),   # x tile
                full((HIDDEN, IN_CHANNELS)),                         # W0 * omega
                full((HIDDEN, 1)),                                   # b0 * omega
                full((HIDDEN, HIDDEN)),                              # W1 * omega
                full((HIDDEN, 1)),                                   # b1 * omega
                full((OUT_CHANNELS, HIDDEN)),                        # Wf
                full((OUT_CHANNELS, 1)),                             # bf
            ],
            out_specs=pl.BlockSpec((OUT_CHANNELS, tm), lambda i: (0, i)),
        ),
        compiler_params=pltpu.CompilerParams(
            dimension_semantics=("parallel",)),
    )(xT, w0s, b0s, w1s, b1s, wff, bff)

    # Drop padded rows, back to channels-last (B, R, OUT_CHANNELS).
    out = outT[:, :N].T
    return out.reshape(B, R, OUT_CHANNELS)


# --------------------- deterministic parameter init -------------------------
def init_params(key):
    k = jax.random.split(key, 6)

    def uniform(key, shape, bound):
        return jax.random.uniform(key, shape, jnp.float32, -bound, bound)

    # SineLayer #1 (is_first): weight ~ U(-1/in, 1/in); bias: torch Linear default
    w0 = uniform(k[0], (HIDDEN, IN_CHANNELS), 1.0 / IN_CHANNELS)
    b0 = uniform(k[1], (HIDDEN,), 1.0 / np.sqrt(IN_CHANNELS))

    # SineLayer #2 (hidden): weight ~ U(-sqrt(6/in)/omega, sqrt(6/in)/omega)
    bound_h = np.sqrt(6.0 / HIDDEN) / HIDDEN_OMEGA_0
    w1 = uniform(k[2], (HIDDEN, HIDDEN), bound_h)
    b1 = uniform(k[3], (HIDDEN,), 1.0 / np.sqrt(HIDDEN))

    # final Linear: weight ~ U(-sqrt(6/hidden)/omega, sqrt(6/hidden)/omega)
    wf = uniform(k[4], (OUT_CHANNELS, HIDDEN), bound_h)
    bf = uniform(k[5], (OUT_CHANNELS,), 1.0 / np.sqrt(HIDDEN))

    return (w0, b0, w1, b1, wf, bf)


# ------------------------------ reference -----------------------------------
def siren_reference(x, params):
    w0, b0, w1, b1, wf, bf = params
    x = x[..., :IN_CHANNELS]
    h = jnp.sin(FIRST_OMEGA_0 * (x @ w0.T + b0))
    h = jnp.sin(HIDDEN_OMEGA_0 * (h @ w1.T + b1))
    return h @ wf.T + bf


# --------------------------------- main --------------------------------------
if __name__ == "__main__":
    key = jax.random.PRNGKey(0)
    kx, kp = jax.random.split(key)

    # 2 * 1024 = 2048 rows -> 2 grid steps at TM=1024 (keeps both v7x TCs busy).
    B, R = 2, 1024
    x = jax.random.uniform(kx, (B, R, IN_CHANNELS), jnp.float32, -1.0, 1.0)
    params = init_params(kp)

    y = siren_forward(x, params)
    y = jax.block_until_ready(y)

    y_ref = siren_reference(x, params)
    np.testing.assert_allclose(np.asarray(y), np.asarray(y_ref),
                               rtol=1e-5, atol=1e-5)

    # Also exercise the non-divisible-row (padded tail) path.
    x2 = jax.random.uniform(jax.random.PRNGKey(1), (1, 300, IN_CHANNELS),
                            jnp.float32, -1.0, 1.0)
    y2 = jax.block_until_ready(siren_forward(x2, params))
    np.testing.assert_allclose(np.asarray(y2),
                               np.asarray(siren_reference(x2, params)),
                               rtol=1e-5, atol=1e-5)

    print("KERNEL_OK")
</pallas_src>

<mosaic_0001>
module attributes {stable_mosaic.version = 11 : i64} {
  func.func @siren_kernel(%arg0: i32, %arg1: memref<3x1024xf32, #tpu.memory_space<vmem>>, %arg2: memref<32x3xf32, #tpu.memory_space<vmem>>, %arg3: memref<32x1xf32, #tpu.memory_space<vmem>>, %arg4: memref<32x32xf32, #tpu.memory_space<vmem>>, %arg5: memref<32x1xf32, #tpu.memory_space<vmem>>, %arg6: memref<3x32xf32, #tpu.memory_space<vmem>>, %arg7: memref<3x1xf32, #tpu.memory_space<vmem>>, %arg8: memref<3x1024xf32, #tpu.memory_space<vmem>>) attributes {dimension_semantics = [#tpu.dimension_semantics<parallel>], iteration_bounds = array<i64: 2>, scalar_prefetch = 0 : i64, scratch_operands = 0 : i64, tpu.core_type = #tpu.core_type<tc>, window_params = [{transform_indices = @transform_0, window_bounds = array<i64: 3, 1024>}, {pipeline_mode = #tpu.pipeline_mode<synchronous>, transform_indices = @transform_1, window_bounds = array<i64: 32, 3>}, {pipeline_mode = #tpu.pipeline_mode<synchronous>, transform_indices = @transform_2, window_bounds = array<i64: 32, 1>}, {pipeline_mode = #tpu.pipeline_mode<synchronous>, transform_indices = @transform_3, window_bounds = array<i64: 32, 32>}, {pipeline_mode = #tpu.pipeline_mode<synchronous>, transform_indices = @transform_4, window_bounds = array<i64: 32, 1>}, {pipeline_mode = #tpu.pipeline_mode<synchronous>, transform_indices = @transform_5, window_bounds = array<i64: 3, 32>}, {pipeline_mode = #tpu.pipeline_mode<synchronous>, transform_indices = @transform_6, window_bounds = array<i64: 3, 1>}, {transform_indices = @transform_7, window_bounds = array<i64: 3, 1024>}]} {
    %c0 = arith.constant 0 : index
    %c0_0 = arith.constant 0 : index
    %0 = vector.load %arg1[%c0, %c0_0] : memref<3x1024xf32, #tpu.memory_space<vmem>>, vector<3x1024xf32>
    %c0_1 = arith.constant 0 : index
    %c0_2 = arith.constant 0 : index
    %1 = vector.load %arg2[%c0_1, %c0_2] : memref<32x3xf32, #tpu.memory_space<vmem>>, vector<32x3xf32>
    %cst = arith.constant dense<0.000000e+00> : vector<32x1024xf32>
    %2 = tpu.matmul %1, %0, %cst {dimension_numbers = #tpu.dot_dimension_numbers<[1], [0], [0], [1], [0, 0, 1, 1], [], []>} : vector<32x3xf32>, vector<3x1024xf32>, vector<32x1024xf32> -> vector<32x1024xf32>
    %c0_3 = arith.constant 0 : index
    %c0_4 = arith.constant 0 : index
    %3 = vector.load %arg3[%c0_3, %c0_4] : memref<32x1xf32, #tpu.memory_space<vmem>>, vector<32x1xf32>
    %4 = vector.broadcast %3 : vector<32x1xf32> to vector<32x1024xf32>
    %5 = arith.addf %2, %4 : vector<32x1024xf32>
    %6 = math.sin %5 : vector<32x1024xf32>
    %c0_5 = arith.constant 0 : index
    %c0_6 = arith.constant 0 : index
    %7 = vector.load %arg4[%c0_5, %c0_6] : memref<32x32xf32, #tpu.memory_space<vmem>>, vector<32x32xf32>
    %cst_7 = arith.constant dense<0.000000e+00> : vector<32x1024xf32>
    %8 = tpu.matmul %7, %6, %cst_7 {dimension_numbers = #tpu.dot_dimension_numbers<[1], [0], [0], [1], [0, 0, 1, 1], [], []>} : vector<32x32xf32>, vector<32x1024xf32>, vector<32x1024xf32> -> vector<32x1024xf32>
    %c0_8 = arith.constant 0 : index
    %c0_9 = arith.constant 0 : index
    %9 = vector.load %arg5[%c0_8, %c0_9] : memref<32x1xf32, #tpu.memory_space<vmem>>, vector<32x1xf32>
    %10 = vector.broadcast %9 : vector<32x1xf32> to vector<32x1024xf32>
    %11 = arith.addf %8, %10 : vector<32x1024xf32>
    %12 = math.sin %11 : vector<32x1024xf32>
    %c0_10 = arith.constant 0 : index
    %c0_11 = arith.constant 0 : index
    %13 = vector.load %arg6[%c0_10, %c0_11] : memref<3x32xf32, #tpu.memory_space<vmem>>, vector<3x32xf32>
    %cst_12 = arith.constant dense<0.000000e+00> : vector<3x1024xf32>
    %14 = tpu.matmul %13, %12, %cst_12 {dimension_numbers = #tpu.dot_dimension_numbers<[1], [0], [0], [1], [0, 0, 1, 1], [], []>} : vector<3x32xf32>, vector<32x1024xf32>, vector<3x1024xf32> -> vector<3x1024xf32>
    %c0_13 = arith.constant 0 : index
    %c0_14 = arith.constant 0 : index
    %15 = vector.load %arg7[%c0_13, %c0_14] : memref<3x1xf32, #tpu.memory_space<vmem>>, vector<3x1xf32>
    %16 = vector.broadcast %15 : vector<3x1xf32> to vector<3x1024xf32>
    %17 = arith.addf %14, %16 : vector<3x1024xf32>
    %c0_15 = arith.constant 0 : index
    %c0_16 = arith.constant 0 : index
    %18 = vector.load %arg8[%c0_15, %c0_16] : memref<3x1024xf32, #tpu.memory_space<vmem>>, vector<3x1024xf32>
    tpu.vector_store %arg8[%c0_15, %c0_16], %17 {strides = array<i32>} : memref<3x1024xf32, #tpu.memory_space<vmem>>, vector<3x1024xf32>,
    return
  }
  func.func @transform_0(%arg0: i32) -> (i32, i32) {
    %c0_i32 = arith.constant 0 : i32
    %c0_i32_0 = arith.constant 0 : i32
    return %c0_i32, %arg0 : i32, i32
  }
  func.func @transform_1(%arg0: i32) -> (i32, i32) {
    %c0_i32 = arith.constant 0 : i32
    %c0_i32_0 = arith.constant 0 : i32
    %c0_i32_1 = arith.constant 0 : i32
    return %c0_i32, %c0_i32_0 : i32, i32
  }
  func.func @transform_2(%arg0: i32) -> (i32, i32) {
    %c0_i32 = arith.constant 0 : i32
    %c0_i32_0 = arith.constant 0 : i32
    %c0_i32_1 = arith.constant 0 : i32
    return %c0_i32, %c0_i32_0 : i32, i32
  }
  func.func @transform_3(%arg0: i32) -> (i32, i32) {
    %c0_i32 = arith.constant 0 : i32
    %c0_i32_0 = arith.constant 0 : i32
    %c0_i32_1 = arith.constant 0 : i32
    return %c0_i32, %c0_i32_0 : i32, i32
  }
  func.func @transform_4(%arg0: i32) -> (i32, i32) {
    %c0_i32 = arith.constant 0 : i32
    %c0_i32_0 = arith.constant 0 : i32
    %c0_i32_1 = arith.constant 0 : i32
    return %c0_i32, %c0_i32_0 : i32, i32
  }
  func.func @transform_5(%arg0: i32) -> (i32, i32) {
    %c0_i32 = arith.constant 0 : i32
    %c0_i32_0 = arith.constant 0 : i32
    %c0_i32_1 = arith.constant 0 : i32
    return %c0_i32, %c0_i32_0 : i32, i32
  }
  func.func @transform_6(%arg0: i32) -> (i32, i32) {
    %c0_i32 = arith.constant 0 : i32
    %c0_i32_0 = arith.constant 0 : i32
    %c0_i32_1 = arith.constant 0 : i32
    return %c0_i32, %c0_i32_0 : i32, i32
  }
  func.func @transform_7(%arg0: i32) -> (i32, i32) {
    %c0_i32 = arith.constant 0 : i32
    %c0_i32_0 = arith.constant 0 : i32
    return %c0_i32, %arg0 : i32, i32
  }
}

</mosaic_0001>

<llo_original>
// kernel: tpu_custom_call.1
$region0: #{tpu_custom_call.1}
  #allocation0 [shape = 'u32[]', space=smem, size = 0x4, offset = 0x4, fixed_abs, tag = 'smem constant byte address 0x4 - core index']
  #allocation1 [shape = 'u32[144,128]{1,0:T(1,128)}', space=vmem, size = 0x12000, scoped, tag = 'internal scratch']
  %s0 = inlined_call_operand.vmem [shape: f32[3,2048], index: 0, kind: input, shape index: {}]
  %s1 = inlined_call_operand.vmem [shape: f32[32,3], index: 1, kind: input, shape index: {}]
  %s2 = inlined_call_operand.vmem [shape: f32[32,1], index: 2, kind: input, shape index: {}]
  %s3 = inlined_call_operand.vmem [shape: f32[32,32], index: 3, kind: input, shape index: {}]
  %s4 = inlined_call_operand.vmem [shape: f32[32,1], index: 4, kind: input, shape index: {}]
  %s5 = inlined_call_operand.vmem [shape: f32[3,32], index: 5, kind: input, shape index: {}]
  %s6 = inlined_call_operand.vmem [shape: f32[3,1], index: 6, kind: input, shape index: {}]
  %s7 = inlined_call_operand.hbm [shape: f32[3,2048], index: 7, kind: output, shape index: {}]
  %s8 = sld [smem:[#allocation0]]
  $region61: #{tpu_custom_call.1} parent=0
    _
  %s10 = ssub.s32 1, %s8
  %s11 = scalar_select 0, %s10, %s8
  $region1: #{tpu_custom_call.1} parent=0
    #allocation2 [shape = 'u8[32768]{0}', space=vmem, size = 0x8000, scoped, tag = 'output window, operand 0']
    #allocation3 [shape = 's32[2]{0}', space=sflag, size = 0x8, scoped, tag = 'scoped memory for tpu_custom_call.1']
    %12 = vsyncpa [#allocation3], 0
    %s13 = scalar_lea.sflag [#allocation3], 1
    %14 = vsyncpa %s13, 0
    loop: start=0, step=1, limit=4
    $region2: #{tpu_custom_call.1} parent=1 // loop_pre_header
      _
    $region3: #{tpu_custom_call.1} parent=1 // loop_header
      %s16 = sphi 0, %s20
      %p17 = scmp.ge.s32.totalorder %s16, 4
      %s26 = sphi 0, %s28
      %s29 = sphi 0, %s26
      %s30 = sphi 0, %s29
      %s46 = sphi 0, %s30
      %s50 = sphi 0, %s50
      %s52 = sphi 0, %s50
      %s53 = sphi 0, %s52
      %s67 = sphi 0, %s53
      %s71 = sphi 0, %s71
      %s73 = sphi 0, %s71
      %s74 = sphi 0, %s73
      %s88 = sphi 0, %s74
      %s92 = sphi 0, %s92
      %s94 = sphi 0, %s92
      %s95 = sphi 0, %s94
      %s109 = sphi 0, %s95
      %s113 = sphi 0, %s113
      %s115 = sphi 0, %s113
      %s116 = sphi 0, %s115
      %s130 = sphi 0, %s116
      %s134 = sphi 0, %s134
      %s136 = sphi 0, %s134
      %s137 = sphi 0, %s136
      %s151 = sphi 0, %s137
      %s155 = sphi 0, %s155
      %s157 = sphi 0, %s155
      %s158 = sphi 0, %s157
      %s172 = sphi 0, %s158
      %s178 = sphi 0, %s180
      %s181 = sphi 0, %s178
      %s182 = sphi 0, %s181
      %s198 = sphi 0, %s182
    $region4: #{tpu_custom_call.1} parent=1 // loop_header_branch
      %19 = sbr.rel (%p17) target = $region8
    $region5: #{tpu_custom_call.1} parent=1 // loop_body
      %s21 = ssub.s32 %s16, 1
      %s22 = ssub.s32 %s16, 2
      %s23 = sadd.s32 %s16, 1
      %s24 = ssub.s32 %s16, %s23
      %p25 = scmp.eq.s32.totalorder %s24, 0
      %s27 = sadd.s32 %s26, 1
      %s28 = scalar_select %p25, %s26, %s27
      %p31 = pneg %p25
      %p32 = scmp.eq.s32.totalorder %s16, 1
      %p33 = por %p31, %p32
      %p34 = scmp.ne.s32.totalorder %s26, %s29
      %p35 = scmp.eq.s32.totalorder %s16, 0
      %p36 = por %p34, %p35
      %p37 = scmp.ne.s32.totalorder %s26, %s29
      %p38 = scmp.eq.s32.totalorder %s21, 1
      %p39 = por %p37, %p38
      %p40 = scmp.ne.s32.totalorder %s29, %s30
      %p41 = scmp.eq.s32.totalorder %s21, 0
      %p42 = por %p40, %p41
      %p43 = scmp.ne.s32.totalorder %s29, %s30
      %p44 = scmp.eq.s32.totalorder %s22, 1
      %p45 = por %p43, %p44
      %p47 = scmp.ne.s32.totalorder %s30, %s46
      %p48 = scmp.eq.s32.totalorder %s22, 0
      %p49 = por %p47, %p48
      %s51 = sadd.s32 %s50, 1
      %p54 = scmp.eq.s32.totalorder %s16, 1
      %p55 = scmp.ne.s32.totalorder %s50, %s52
      %p56 = scmp.eq.s32.totalorder %s16, 0
      %p57 = por %p55, %p56
      %p58 = scmp.ne.s32.totalorder %s50, %s52
      %p59 = scmp.eq.s32.totalorder %s21, 1
      %p60 = por %p58, %p59
      %p61 = scmp.ne.s32.totalorder %s52, %s53
      %p62 = scmp.eq.s32.totalorder %s21, 0
      %p63 = por %p61, %p62
      %p64 = scmp.ne.s32.totalorder %s52, %s53
      %p65 = scmp.eq.s32.totalorder %s22, 1
      %p66 = por %p64, %p65
      %p68 = scmp.ne.s32.totalorder %s53, %s67
      %p69 = scmp.eq.s32.totalorder %s22, 0
      %p70 = por %p68, %p69
      %s72 = sadd.s32 %s71, 1
      %p75 = scmp.eq.s32.totalorder %s16, 1
      %p76 = scmp.ne.s32.totalorder %s71, %s73
      %p77 = scmp.eq.s32.totalorder %s16, 0
      %p78 = por %p76, %p77
      %p79 = scmp.ne.s32.totalorder %s71, %s73
      %p80 = scmp.eq.s32.totalorder %s21, 1
      %p81 = por %p79, %p80
      %p82 = scmp.ne.s32.totalorder %s73, %s74
      %p83 = scmp.eq.s32.totalorder %s21, 0
      %p84 = por %p82, %p83
      %p85 = scmp.ne.s32.totalorder %s73, %s74
      %p86 = scmp.eq.s32.totalorder %s22, 1
      %p87 = por %p85, %p86
      %p89 = scmp.ne.s32.totalorder %s74, %s88
      %p90 = scmp.eq.s32.totalorder %s22, 0
      %p91 = por %p89, %p90
      %s93 = sadd.s32 %s92, 1
      %p96 = scmp.eq.s32.totalorder %s16, 1
      %p97 = scmp.ne.s32.totalorder %s92, %s94
      %p98 = scmp.eq.s32.totalorder %s16, 0
      %p99 = por %p97, %p98
      %p100 = scmp.ne.s32.totalorder %s92, %s94
      %p101 = scmp.eq.s32.totalorder %s21, 1
      %p102 = por %p100, %p101
      %p103 = scmp.ne.s32.totalorder %s94, %s95
      %p104 = scmp.eq.s32.totalorder %s21, 0
      %p105 = por %p103, %p104
      %p106 = scmp.ne.s32.totalorder %s94, %s95
      %p107 = scmp.eq.s32.totalorder %s22, 1
      %p108 = por %p106, %p107
      %p110 = scmp.ne.s32.totalorder %s95, %s109
      %p111 = scmp.eq.s32.totalorder %s22, 0
      %p112 = por %p110, %p111
      %s114 = sadd.s32 %s113, 1
      %p117 = scmp.eq.s32.totalorder %s16, 1
      %p118 = scmp.ne.s32.totalorder %s113, %s115
      %p119 = scmp.eq.s32.totalorder %s16, 0
      %p120 = por %p118, %p119
      %p121 = scmp.ne.s32.totalorder %s113, %s115
      %p122 = scmp.eq.s32.totalorder %s21, 1
      %p123 = por %p121, %p122
      %p124 = scmp.ne.s32.totalorder %s115, %s116
      %p125 = scmp.eq.s32.totalorder %s21, 0
      %p126 = por %p124, %p125
      %p127 = scmp.ne.s32.totalorder %s115, %s116
      %p128 = scmp.eq.s32.totalorder %s22, 1
      %p129 = por %p127, %p128
      %p131 = scmp.ne.s32.totalorder %s116, %s130
      %p132 = scmp.eq.s32.totalorder %s22, 0
      %p133 = por %p131, %p132
      %s135 = sadd.s32 %s134, 1
      %p138 = scmp.eq.s32.totalorder %s16, 1
      %p139 = scmp.ne.s32.totalorder %s134, %s136
      %p140 = scmp.eq.s32.totalorder %s16, 0
      %p141 = por %p139, %p140
      %p142 = scmp.ne.s32.totalorder %s134, %s136
      %p143 = scmp.eq.s32.totalorder %s21, 1
      %p144 = por %p142, %p143
      %p145 = scmp.ne.s32.totalorder %s136, %s137
      %p146 = scmp.eq.s32.totalorder %s21, 0
      %p147 = por %p145, %p146
      %p148 = scmp.ne.s32.totalorder %s136, %s137
      %p149 = scmp.eq.s32.totalorder %s22, 1
      %p150 = por %p148, %p149
      %p152 = scmp.ne.s32.totalorder %s137, %s151
      %p153 = scmp.eq.s32.totalorder %s22, 0
      %p154 = por %p152, %p153
      %s156 = sadd.s32 %s155, 1
      %p159 = scmp.eq.s32.totalorder %s16, 1
      %p160 = scmp.ne.s32.totalorder %s155, %s157
      %p161 = scmp.eq.s32.totalorder %s16, 0
      %p162 = por %p160, %p161
      %p163 = scmp.ne.s32.totalorder %s155, %s157
      %p164 = scmp.eq.s32.totalorder %s21, 1
      %p165 = por %p163, %p164
      %p166 = scmp.ne.s32.totalorder %s157, %s158
      %p167 = scmp.eq.s32.totalorder %s21, 0
      %p168 = por %p166, %p167
      %p169 = scmp.ne.s32.totalorder %s157, %s158
      %p170 = scmp.eq.s32.totalorder %s22, 1
      %p171 = por %p169, %p170
      %p173 = scmp.ne.s32.totalorder %s158, %s172
      %p174 = scmp.eq.s32.totalorder %s22, 0
      %p175 = por %p173, %p174
      %s176 = ssub.s32 %s16, %s23
      %p177 = scmp.eq.s32.totalorder %s176, 0
      %s179 = sadd.s32 %s178, 1
      %s180 = scalar_select %p177, %s178, %s179
      %p183 = pneg %p177
      %p184 = scmp.eq.s32.totalorder %s16, 1
      %p185 = por %p183, %p184
      %p186 = scmp.ne.s32.totalorder %s178, %s181
      %p187 = scmp.eq.s32.totalorder %s16, 0
      %p188 = por %p186, %p187
      %p189 = scmp.ne.s32.totalorder %s178, %s181
      %p190 = scmp.eq.s32.totalorder %s21, 1
      %p191 = por %p189, %p190
      %p192 = scmp.ne.s32.totalorder %s181, %s182
      %p193 = scmp.eq.s32.totalorder %s21, 0
      %p194 = por %p192, %p193
      %p195 = scmp.ne.s32.totalorder %s181, %s182
      %p196 = scmp.eq.s32.totalorder %s22, 1
      %p197 = por %p195, %p196
      %p199 = scmp.ne.s32.totalorder %s182, %s198
      %p200 = scmp.eq.s32.totalorder %s22, 0
      %p201 = por %p199, %p200
      %p202 = scmp.le.s32.totalorder 1, %s16
      %p203 = scmp.lt.s32.totalorder %s16, 3
      %p204 = pnand %p202, %p203
      %p205 = pneg %p204
      // Predicated region
      $region9: #{tpu_custom_call.1} parent=5 // pred_check
        _
      $region10: #{tpu_custom_call.1} parent=5 // pred_check_branch
        %207 = sbr.rel (%p204) target = $region12
      $region11: #{tpu_custom_call.1} parent=5 // pred_region
        %s208 = ssub.s32 %s16, 1
        // Predicated region
        $region13: #{tpu_custom_call.1} parent=11 // pred_check
          %p209 = pneg %p63
        $region14: #{tpu_custom_call.1} parent=11 // pred_check_branch
          %211 = sbr.rel (%p209) target = $region16
        $region15: #{tpu_custom_call.1} parent=11 // pred_region
          _
        $region16: #{tpu_custom_call.1} parent=11 // pred_fallthru
          _
        // Predicated region
        $region17: #{tpu_custom_call.1} parent=11 // pred_check
          %p212 = pneg %p84
        $region18: #{tpu_custom_call.1} parent=11 // pred_check_branch
          %214 = sbr.rel (%p212) target = $region20
        $region19: #{tpu_custom_call.1} parent=11 // pred_region
          _
        $region20: #{tpu_custom_call.1} parent=11 // pred_fallthru
          _
        // Predicated region
        $region21: #{tpu_custom_call.1} parent=11 // pred_check
          %p215 = pneg %p105
        $region22: #{tpu_custom_call.1} parent=11 // pred_check_branch
          %217 = sbr.rel (%p215) target = $region24
        $region23: #{tpu_custom_call.1} parent=11 // pred_region
          _
        $region24: #{tpu_custom_call.1} parent=11 // pred_fallthru
          _
        // Predicated region
        $region25: #{tpu_custom_call.1} parent=11 // pred_check
          %p218 = pneg %p126
        $region26: #{tpu_custom_call.1} parent=11 // pred_check_branch
          %220 = sbr.rel (%p218) target = $region28
        $region27: #{tpu_custom_call.1} parent=11 // pred_region
          _
        $region28: #{tpu_custom_call.1} parent=11 // pred_fallthru
          _
        // Predicated region
        $region29: #{tpu_custom_call.1} parent=11 // pred_check
          %p221 = pneg %p147
        $region30: #{tpu_custom_call.1} parent=11 // pred_check_branch
          %223 = sbr.rel (%p221) target = $region32
        $region31: #{tpu_custom_call.1} parent=11 // pred_region
          _
        $region32: #{tpu_custom_call.1} parent=11 // pred_fallthru
          _
        // Predicated region
        $region33: #{tpu_custom_call.1} parent=11 // pred_check
          %p224 = pneg %p168
        $region34: #{tpu_custom_call.1} parent=11 // pred_check_branch
          %226 = sbr.rel (%p224) target = $region36
        $region35: #{tpu_custom_call.1} parent=11 // pred_region
          _
        $region36: #{tpu_custom_call.1} parent=11 // pred_fallthru
          _
      $region12: #{tpu_custom_call.1} parent=5 // pred_fallthru
        _
      %p227 = scmp.lt.s32.totalorder %s16, 2
      // Predicated region
      $region37: #{tpu_custom_call.1} parent=5 // pred_check
        %p228 = pneg %p227
      $region38: #{tpu_custom_call.1} parent=5 // pred_check_branch
        %230 = sbr.rel (%p228) target = $region40
      $region39: #{tpu_custom_call.1} parent=5 // pred_region
        // Predicated region
        $region41: #{tpu_custom_call.1} parent=39 // pred_check
          %p231 = pneg %p36
        $region42: #{tpu_custom_call.1} parent=39 // pred_check_branch
          %233 = sbr.rel (%p231) target = $region44
        $region43: #{tpu_custom_call.1} parent=39 // pred_region
          %s234 = smul.u32 8, %s16
          %p235 = scmp.lt.s32.totalorder %s234, 15
          %s236 = scalar_select %p235, %s234, 15
          %s237 = smul.addr %s236, 4
          %s238 = scalar_lea.vmem %s0, %s237
          %s239 = smul.u32 8, %s16
        $region44: #{tpu_custom_call.1} parent=39 // pred_fallthru
          _
      $region40: #{tpu_custom_call.1} parent=5 // pred_fallthru
        _
      %p240 = scmp.le.s32.totalorder 1, %s16
      %p241 = scmp.lt.s32.totalorder %s16, 3
      %p242 = pnand %p240, %p241
      %p243 = pneg %p242
      // Predicated region
      $region45: #{tpu_custom_call.1} parent=5 // pred_check
        _
      $region46: #{tpu_custom_call.1} parent=5 // pred_check_branch
        %245 = sbr.rel (%p242) target = $region48
      $region47: #{tpu_custom_call.1} parent=5 // pred_region
        %s246 = ssub.s32 %s16, 1
        %s247 = smul.u32 8, %s21
        %p248 = scmp.lt.s32.totalorder %s247, 15
        %s249 = scalar_select %p248, %s247, 15
        %s250 = smul.addr %s249, 4
        %s251 = scalar_lea.vmem %s0, %s250
        %p252 = pneg %p42
        %p253 = pneg %p39
        %p254 = pneg %p63
        %p255 = pneg %p60
        %p256 = pneg %p84
        %p257 = pneg %p81
        %p258 = pneg %p105
        %p259 = pneg %p102
        %p260 = pneg %p126
        %p261 = pneg %p123
        %p262 = pneg %p147
        %p263 = pneg %p144
        %p264 = pneg %p168
        %p265 = pneg %p165
        %p266 = pneg %p194
        %p267 = pneg %p191
        %s268 = sand.u32 %s181, 1
        %s269 = scalar_lea.sflag [#allocation3], %s268
        %s270 = sand.u32 %s181, 1
        %s271 = smul.addr %s270, 32
        %s272 = scalar_lea.vmem [#allocation2], %s271
        %s273 = smul.u32 8, %s21
        %p274 = scmp.lt.s32.totalorder %s273, 15
        %s275 = scalar_select %p274, %s273, 15
        %s276 = smul.addr %s275, 4
        %s277 = scalar_lea.vmem %s0, %s276
        %s278 = smul.u32 8, %s21
        %s279 = smul.u32 8, %s21
        %v280 = vld [vmem:[%s277] sm:$0x77]
        %v281 = vld [vmem:[%s277 + $0x8] sm:$0x77]
        %v282 = vld [vmem:[%s277 + $0x10] sm:$0x77]
        %v283 = vld [vmem:[%s277 + $0x18] sm:$0x77]
        %v284 = vld [vmem:[%s1] sm:$0xff]
        %v285 = vld [vmem:[%s1 + $0x8] sm:$0xff]
        %v286 = vld [vmem:[%s1 + $0x10] sm:$0xff]
        %v287 = vld [vmem:[%s1 + $0x18] sm:$0xff]
        %v288 = vld [vmem:[%s2] sm:$0xff]
        %v289 = vld [vmem:[%s2 + $0x8] sm:$0xff]
        %v290 = vld [vmem:[%s2 + $0x10] sm:$0xff]
        %v291 = vld [vmem:[%s2 + $0x18] sm:$0xff]
        %293 = vset.pattern.permute.xlu0 0
        %294 = vperm.xlu0 %293, %v288
        %v295 = vpop.permute.xlu0 %294
        %298 = vset.pattern.permute.xlu0 0
        %299 = vperm.xlu0 %298, %v289
        %v300 = vpop.permute.xlu0 %299
        %303 = vset.pattern.permute.xlu0 0
        %304 = vperm.xlu0 %303, %v290
        %v305 = vpop.permute.xlu0 %304
        %308 = vset.pattern.permute.xlu0 0
        %309 = vperm.xlu0 %308, %v291
        %v310 = vpop.permute.xlu0 %309
        %v316 = vcombine.high %v280, %v280
        %v317 = vcombine.high %v281, %v281
        %v318 = vcombine.high %v282, %v282
        %v319 = vcombine.high %v283, %v283
        %vm320 = vcmask 23552
        %v322 = vsel %vm320, %v284, 0
        %v325 = vsel %vm320, %v285, 0
        %v328 = vsel %vm320, %v286, 0
        %v331 = vsel %vm320, %v287, 0
        %vm333 = vcmask 1042432
        %v334 = vsel %vm333, %v280, 0
        %v336 = vsel %vm333, %v316, 0
        %v338 = vsel %vm333, %v281, 0
        %v340 = vsel %vm333, %v317, 0
        %v342 = vsel %vm333, %v282, 0
        %v344 = vsel %vm333, %v318, 0
        %v346 = vsel %vm333, %v283, 0
        %v348 = vsel %vm333, %v319, 0
        %350 = vmatprep.subr.mxu0 %v336
        %351 = vmatpush1.msra.mxu0 %v334
        %352 = vmatprep.subr.mxu0 0.0
        %353 = vmatpush1.msra.mxu0 0.0
        %354 = vmatprep.subr.mxu0 0.0
        %355 = vmatpush1.msra.mxu0 0.0
        %356 = vmatprep.subr.mxu0 0.0
        %357 = vmatpush1.msra.mxu0 0.0
        %358 = vmatprep.subr.mxu0 0.0
        %359 = vmatpush1.msra.mxu0 0.0
        %360 = vmatprep.subr.mxu0 0.0
        %361 = vmatpush1.msra.mxu0 0.0
        %362 = vmatprep.subr.mxu0 0.0
        %363 = vmatpush1.msra.mxu0 0.0
        %364 = vmatprep.subr.mxu0 0.0
        %365 = vmatpush1.msra.mxu0 0.0
        %366 = vmatprep.subr.mxu0 0.0
        %367 = vmatpush1.msra.mxu0 0.0
        %368 = vmatprep.subr.mxu0 0.0
        %369 = vmatpush1.msra.mxu0 0.0
        %370 = vmatprep.subr.mxu0 0.0
        %371 = vmatpush1.msra.mxu0 0.0
        %372 = vmatprep.subr.mxu0 0.0
        %373 = vmatpush1.msra.mxu0 0.0
        %374 = vmatprep.subr.mxu0 0.0
        %375 = vmatpush1.msra.mxu0 0.0
        %376 = vmatprep.subr.mxu0 0.0
        %377 = vmatpush1.msra.mxu0 0.0
        %378 = vmatprep.subr.mxu0 0.0
        %379 = vmatpush1.msra.mxu0 0.0
        %380 = vmatprep.subr.mxu0 0.0
        %381 = vmatpush1.msra.mxu0 0.0
        %382 = vmatprep.subr.mxu0 0.0
        %383 = vmatpush1.msra.mxu0 0.0
        %384 = vmatprep.subr.mxu0 0.0
        %385 = vmatpush1.msra.mxu0 0.0
        %386 = vmatprep.subr.mxu0 0.0
        %387 = vmatpush1.msra.mxu0 0.0
        %388 = vmatprep.subr.mxu0 0.0
        %389 = vmatpush1.msra.mxu0 0.0
        %390 = vmatprep.subr.mxu0 0.0
        %391 = vmatpush1.msra.mxu0 0.0
        %392 = vmatprep.subr.mxu0 0.0
        %393 = vmatpush1.msra.mxu0 0.0
        %394 = vmatprep.subr.mxu0 0.0
        %395 = vmatpush1.msra.mxu0 0.0
        %396 = vmatprep.subr.mxu0 0.0
        %397 = vmatpush1.msra.mxu0 0.0
        %398 = vmatprep.subr.mxu0 0.0
        %399 = vmatpush1.msra.mxu0 0.0
        %400 = vmatprep.subr.mxu0 0.0
        %401 = vmatpush1.msra.mxu0 0.0
        %402 = vmatprep.subr.mxu0 0.0
        %403 = vmatpush1.msra.mxu0 0.0
        %404 = vmatprep.subr.mxu0 0.0
        %405 = vmatpush1.msra.mxu0 0.0
        %406 = vmatprep.subr.mxu0 0.0
        %407 = vmatpush1.msra.mxu0 0.0
        %408 = vmatprep.subr.mxu0 0.0
        %409 = vmatpush1.msra.mxu0 0.0
        %410 = vmatprep.subr.mxu0 0.0
        %411 = vmatpush1.msra.mxu0 0.0
        %412 = vmatprep.subr.mxu0 0.0
        %413 = vmatpush1.msra.mxu0 0.0
        %414 = vmatprep.mubr.f32.mxu0 0.0
        %415 = vmatmul.mubr.f32.gmra.mrb[0].mxu0 %v322
        %v416 = vpop.f32.mrb[0].mxu0
        %v417 = vadd.f32 %v295, %v416
        %v418 = vpop.f32.mrb[0].mxu0
        %v419 = vadd.f32 %v295, %v418
        %420 = vmatprep.mubr.f32.mxu0 0.0
        %421 = vmatmul.mubr.f32.gmra.mrb[0].mxu0 %v325
        %v422 = vpop.f32.mrb[0].mxu0
        %v423 = vadd.f32 %v300, %v422
        %v424 = vpop.f32.mrb[0].mxu0
        %v425 = vadd.f32 %v300, %v424
        %426 = vmatprep.mubr.f32.mxu0 0.0
        %427 = vmatmul.mubr.f32.gmra.mrb[0].mxu0 %v328
        %v428 = vpop.f32.mrb[0].mxu0
        %v429 = vadd.f32 %v305, %v428
        %v430 = vpop.f32.mrb[0].mxu0
        %v431 = vadd.f32 %v305, %v430
        %432 = vmatprep.mubr.f32.mxu0 0.0
        %433 = vmatmul.mubr.f32.gmra.mrb[0].mxu0 %v331
        %v434 = vpop.f32.mrb[0].mxu0
        %v435 = vadd.f32 %v310, %v434
        %v436 = vpop.f32.mrb[0].mxu0
        %v437 = vadd.f32 %v310, %v436
        %438 = vdwg.mxu0
        %439 = vmatprep.subr.mxu0 %v340
        %440 = vmatpush1.msra.mxu0 %v338
        %441 = vmatprep.subr.mxu0 0.0
        %442 = vmatpush1.msra.mxu0 0.0
        %443 = vmatprep.subr.mxu0 0.0
        %444 = vmatpush1.msra.mxu0 0.0
        %445 = vmatprep.subr.mxu0 0.0
        %446 = vmatpush1.msra.mxu0 0.0
        %447 = vmatprep.subr.mxu0 0.0
        %448 = vmatpush1.msra.mxu0 0.0
        %449 = vmatprep.subr.mxu0 0.0
        %450 = vmatpush1.msra.mxu0 0.0
        %451 = vmatprep.subr.mxu0 0.0
        %452 = vmatpush1.msra.mxu0 0.0
        %453 = vmatprep.subr.mxu0 0.0
        %454 = vmatpush1.msra.mxu0 0.0
        %455 = vmatprep.subr.mxu0 0.0
        %456 = vmatpush1.msra.mxu0 0.0
        %457 = vmatprep.subr.mxu0 0.0
        %458 = vmatpush1.msra.mxu0 0.0
        %459 = vmatprep.subr.mxu0 0.0
        %460 = vmatpush1.msra.mxu0 0.0
        %461 = vmatprep.subr.mxu0 0.0
        %462 = vmatpush1.msra.mxu0 0.0
        %463 = vmatprep.subr.mxu0 0.0
        %464 = vmatpush1.msra.mxu0 0.0
        %465 = vmatprep.subr.mxu0 0.0
        %466 = vmatpush1.msra.mxu0 0.0
        %467 = vmatprep.subr.mxu0 0.0
        %468 = vmatpush1.msra.mxu0 0.0
        %469 = vmatprep.subr.mxu0 0.0
        %470 = vmatpush1.msra.mxu0 0.0
        %471 = vmatprep.subr.mxu0 0.0
        %472 = vmatpush1.msra.mxu0 0.0
        %473 = vmatprep.subr.mxu0 0.0
        %474 = vmatpush1.msra.mxu0 0.0
        %475 = vmatprep.subr.mxu0 0.0
        %476 = vmatpush1.msra.mxu0 0.0
        %477 = vmatprep.subr.mxu0 0.0
        %478 = vmatpush1.msra.mxu0 0.0
        %479 = vmatprep.subr.mxu0 0.0
        %480 = vmatpush1.msra.mxu0 0.0
        %481 = vmatprep.subr.mxu0 0.0
        %482 = vmatpush1.msra.mxu0 0.0
        %483 = vmatprep.subr.mxu0 0.0
        %484 = vmatpush1.msra.mxu0 0.0
        %485 = vmatprep.subr.mxu0 0.0
        %486 = vmatpush1.msra.mxu0 0.0
        %487 = vmatprep.subr.mxu0 0.0
        %488 = vmatpush1.msra.mxu0 0.0
        %489 = vmatprep.subr.mxu0 0.0
        %490 = vmatpush1.msra.mxu0 0.0
        %491 = vmatprep.subr.mxu0 0.0
        %492 = vmatpush1.msra.mxu0 0.0
        %493 = vmatprep.subr.mxu0 0.0
        %494 = vmatpush1.msra.mxu0 0.0
        %495 = vmatprep.subr.mxu0 0.0
        %496 = vmatpush1.msra.mxu0 0.0
        %497 = vmatprep.subr.mxu0 0.0
        %498 = vmatpush1.msra.mxu0 0.0
        %499 = vmatprep.subr.mxu0 0.0
        %500 = vmatpush1.msra.mxu0 0.0
        %501 = vmatprep.subr.mxu0 0.0
        %502 = vmatpush1.msra.mxu0 0.0
        %503 = vmatprep.mubr.f32.mxu0 0.0
        %504 = vmatmul.mubr.f32.gmra.mrb[0].mxu0 %v322
        %v505 = vpop.f32.mrb[0].mxu0
        %v506 = vadd.f32 %v295, %v505
        %v507 = vpop.f32.mrb[0].mxu0
        %v508 = vadd.f32 %v295, %v507
        %509 = vmatprep.mubr.f32.mxu0 0.0
        %510 = vmatmul.mubr.f32.gmra.mrb[0].mxu0 %v325
        %v511 = vpop.f32.mrb[0].mxu0
        %v512 = vadd.f32 %v300, %v511
        %v513 = vpop.f32.mrb[0].mxu0
        %v514 = vadd.f32 %v300, %v513
        %515 = vmatprep.mubr.f32.mxu0 0.0
        %516 = vmatmul.mubr.f32.gmra.mrb[0].mxu0 %v328
        %v517 = vpop.f32.mrb[0].mxu0
        %v518 = vadd.f32 %v305, %v517
        %v519 = vpop.f32.mrb[0].mxu0
        %v520 = vadd.f32 %v305, %v519
        %521 = vmatprep.mubr.f32.mxu0 0.0
        %522 = vmatmul.mubr.f32.gmra.mrb[0].mxu0 %v331
        %v523 = vpop.f32.mrb[0].mxu0
        %v524 = vadd.f32 %v310, %v523
        %v525 = vpop.f32.mrb[0].mxu0
        %v526 = vadd.f32 %v310, %v525
        %527 = vdwg.mxu0
        %528 = vmatprep.subr.mxu0 %v344
        %529 = vmatpush1.msra.mxu0 %v342
        %530 = vmatprep.subr.mxu0 0.0
        %531 = vmatpush1.msra.mxu0 0.0
        %532 = vmatprep.subr.mxu0 0.0
        %533 = vmatpush1.msra.mxu0 0.0
        %534 = vmatprep.subr.mxu0 0.0
        %535 = vmatpush1.msra.mxu0 0.0
        %536 = vmatprep.subr.mxu0 0.0
        %537 = vmatpush1.msra.mxu0 0.0
        %538 = vmatprep.subr.mxu0 0.0
        %539 = vmatpush1.msra.mxu0 0.0
        %540 = vmatprep.subr.mxu0 0.0
        %541 = vmatpush1.msra.mxu0 0.0
        %542 = vmatprep.subr.mxu0 0.0
        %543 = vmatpush1.msra.mxu0 0.0
        %544 = vmatprep.subr.mxu0 0.0
        %545 = vmatpush1.msra.mxu0 0.0
        %546 = vmatprep.subr.mxu0 0.0
        %547 = vmatpush1.msra.mxu0 0.0
        %548 = vmatprep.subr.mxu0 0.0
        %549 = vmatpush1.msra.mxu0 0.0
        %550 = vmatprep.subr.mxu0 0.0
        %551 = vmatpush1.msra.mxu0 0.0
        %552 = vmatprep.subr.mxu0 0.0
        %553 = vmatpush1.msra.mxu0 0.0
        %554 = vmatprep.subr.mxu0 0.0
        %555 = vmatpush1.msra.mxu0 0.0
        %556 = vmatprep.subr.mxu0 0.0
        %557 = vmatpush1.msra.mxu0 0.0
        %558 = vmatprep.subr.mxu0 0.0
        %559 = vmatpush1.msra.mxu0 0.0
        %560 = vmatprep.subr.mxu0 0.0
        %561 = vmatpush1.msra.mxu0 0.0
        %562 = vmatprep.subr.mxu0 0.0
        %563 = vmatpush1.msra.mxu0 0.0
        %564 = vmatprep.subr.mxu0 0.0
        %565 = vmatpush1.msra.mxu0 0.0
        %566 = vmatprep.subr.mxu0 0.0
        %567 = vmatpush1.msra.mxu0 0.0
        %568 = vmatprep.subr.mxu0 0.0
        %569 = vmatpush1.msra.mxu0 0.0
        %570 = vmatprep.subr.mxu0 0.0
        %571 = vmatpush1.msra.mxu0 0.0
        %572 = vmatprep.subr.mxu0 0.0
        %573 = vmatpush1.msra.mxu0 0.0
        %574 = vmatprep.subr.mxu0 0.0
        %575 = vmatpush1.msra.mxu0 0.0
        %576 = vmatprep.subr.mxu0 0.0
        %577 = vmatpush1.msra.mxu0 0.0
        %578 = vmatprep.subr.mxu0 0.0
        %579 = vmatpush1.msra.mxu0 0.0
        %580 = vmatprep.subr.mxu0 0.0
        %581 = vmatpush1.msra.mxu0 0.0
        %582 = vmatprep.subr.mxu0 0.0
        %583 = vmatpush1.msra.mxu0 0.0
        %584 = vmatprep.subr.mxu0 0.0
        %585 = vmatpush1.msra.mxu0 0.0
        %586 = vmatprep.subr.mxu0 0.0
        %587 = vmatpush1.msra.mxu0 0.0
        %588 = vmatprep.subr.mxu0 0.0
        %589 = vmatpush1.msra.mxu0 0.0
        %590 = vmatprep.subr.mxu0 0.0
        %591 = vmatpush1.msra.mxu0 0.0
        %592 = vmatprep.mubr.f32.mxu0 0.0
        %593 = vmatmul.mubr.f32.gmra.mrb[0].mxu0 %v322
        %v594 = vpop.f32.mrb[0].mxu0
        %v595 = vadd.f32 %v295, %v594
        %v596 = vpop.f32.mrb[0].mxu0
        %v597 = vadd.f32 %v295, %v596
        %598 = vmatprep.mubr.f32.mxu0 0.0
        %599 = vmatmul.mubr.f32.gmra.mrb[0].mxu0 %v325
        %v600 = vpop.f32.mrb[0].mxu0
        %v601 = vadd.f32 %v300, %v600
        %v602 = vpop.f32.mrb[0].mxu0
        %v603 = vadd.f32 %v300, %v602
        %604 = vmatprep.mubr.f32.mxu0 0.0
        %605 = vmatmul.mubr.f32.gmra.mrb[0].mxu0 %v328
        %v606 = vpop.f32.mrb[0].mxu0
        %v607 = vadd.f32 %v305, %v606
        %v608 = vpop.f32.mrb[0].mxu0
        %v609 = vadd.f32 %v305, %v608
        %610 = vmatprep.mubr.f32.mxu0 0.0
        %611 = vmatmul.mubr.f32.gmra.mrb[0].mxu0 %v331
        %v612 = vpop.f32.mrb[0].mxu0
        %v613 = vadd.f32 %v310, %v612
        %v614 = vpop.f32.mrb[0].mxu0
        %v615 = vadd.f32 %v310, %v614
        %616 = vdwg.mxu0
        %617 = vmatprep.subr.mxu0 %v348
        %618 = vmatpush1.msra.mxu0 %v346
        %619 = vmatprep.subr.mxu0 0.0
        %620 = vmatpush1.msra.mxu0 0.0
        %621 = vmatprep.subr.mxu0 0.0
        %622 = vmatpush1.msra.mxu0 0.0
        %623 = vmatprep.subr.mxu0 0.0
        %624 = vmatpush1.msra.mxu0 0.0
        %625 = vmatprep.subr.mxu0 0.0
        %626 = vmatpush1.msra.mxu0 0.0
        %627 = vmatprep.subr.mxu0 0.0
        %628 = vmatpush1.msra.mxu0 0.0
        %629 = vmatprep.subr.mxu0 0.0
        %630 = vmatpush1.msra.mxu0 0.0
        %631 = vmatprep.subr.mxu0 0.0
        %632 = vmatpush1.msra.mxu0 0.0
        %633 = vmatprep.subr.mxu0 0.0
        %634 = vmatpush1.msra.mxu0 0.0
        %635 = vmatprep.subr.mxu0 0.0
        %636 = vmatpush1.msra.mxu0 0.0
        %637 = vmatprep.subr.mxu0 0.0
        %638 = vmatpush1.msra.mxu0 0.0
        %639 = vmatprep.subr.mxu0 0.0
        %640 = vmatpush1.msra.mxu0 0.0
        %641 = vmatprep.subr.mxu0 0.0
        %642 = vmatpush1.msra.mxu0 0.0
        %643 = vmatprep.subr.mxu0 0.0
        %644 = vmatpush1.msra.mxu0 0.0
        %645 = vmatprep.subr.mxu0 0.0
        %646 = vmatpush1.msra.mxu0 0.0
        %647 = vmatprep.subr.mxu0 0.0
        %648 = vmatpush1.msra.mxu0 0.0
        %649 = vmatprep.subr.mxu0 0.0
        %650 = vmatpush1.msra.mxu0 0.0
        %651 = vmatprep.subr.mxu0 0.0
        %652 = vmatpush1.msra.mxu0 0.0
        %653 = vmatprep.subr.mxu0 0.0
        %654 = vmatpush1.msra.mxu0 0.0
        %655 = vmatprep.subr.mxu0 0.0
        %656 = vmatpush1.msra.mxu0 0.0
        %657 = vmatprep.subr.mxu0 0.0
        %658 = vmatpush1.msra.mxu0 0.0
        %659 = vmatprep.subr.mxu0 0.0
        %660 = vmatpush1.msra.mxu0 0.0
        %661 = vmatprep.subr.mxu0 0.0
        %662 = vmatpush1.msra.mxu0 0.0
        %663 = vmatprep.subr.mxu0 0.0
        %664 = vmatpush1.msra.mxu0 0.0
        %665 = vmatprep.subr.mxu0 0.0
        %666 = vmatpush1.msra.mxu0 0.0
        %667 = vmatprep.subr.mxu0 0.0
        %668 = vmatpush1.msra.mxu0 0.0
        %669 = vmatprep.subr.mxu0 0.0
        %670 = vmatpush1.msra.mxu0 0.0
        %671 = vmatprep.subr.mxu0 0.0
        %672 = vmatpush1.msra.mxu0 0.0
        %673 = vmatprep.subr.mxu0 0.0
        %674 = vmatpush1.msra.mxu0 0.0
        %675 = vmatprep.subr.mxu0 0.0
        %676 = vmatpush1.msra.mxu0 0.0
        %677 = vmatprep.subr.mxu0 0.0
        %678 = vmatpush1.msra.mxu0 0.0
        %679 = vmatprep.subr.mxu0 0.0
        %680 = vmatpush1.msra.mxu0 0.0
        %681 = vmatprep.mubr.f32.mxu0 0.0
        %682 = vmatmul.mubr.f32.gmra.mrb[0].mxu0 %v322
        %v683 = vpop.f32.mrb[0].mxu0
        %v684 = vadd.f32 %v295, %v683
        %v685 = vpop.f32.mrb[0].mxu0
        %v686 = vadd.f32 %v295, %v685
        %687 = vmatprep.mubr.f32.mxu0 0.0
        %688 = vmatmul.mubr.f32.gmra.mrb[0].mxu0 %v325
        %v689 = vpop.f32.mrb[0].mxu0
        %v690 = vadd.f32 %v300, %v689
        %v691 = vpop.f32.mrb[0].mxu0
        %v692 = vadd.f32 %v300, %v691
        %693 = vmatprep.mubr.f32.mxu0 0.0
        %694 = vmatmul.mubr.f32.gmra.mrb[0].mxu0 %v328
        %v695 = vpop.f32.mrb[0].mxu0
        %v696 = vadd.f32 %v305, %v695
        %v697 = vpop.f32.mrb[0].mxu0
        %v698 = vadd.f32 %v305, %v697
        %699 = vmatprep.mubr.f32.mxu0 0.0
        %700 = vmatmul.mubr.f32.gmra.mrb[0].mxu0 %v331
        %v701 = vpop.f32.mrb[0].mxu0
        %v702 = vadd.f32 %v310, %v701
        %v703 = vpop.f32.mrb[0].mxu0
        %v704 = vadd.f32 %v310, %v703
        %705 = vdwg.mxu0
        %v706 = vand.u32 2147483647, %v417
        %vm707 = vcmp.le.f32.partialorder %v706, 0.7853982
        %vm708 = vcmp.lt.s32.totalorder %v417, 0
        %v709 = vand.u32 %v417, 2139095040
        %v710 = vshrl.u32 %v709, 23
        %v711 = vsub.s32 %v710, 127
        %v712 = vand.u32 2147483647, %v417
        %v713 = vand.u32 %v712, 8388607
        %v714 = vor.u32 %v713, 8388608
        %v715 = vsub.s32 0, %v714
        %v716 = vadd.s32 %v711, 1
        %vm717 = vcmp.gt.s32.totalorder %v716, 0
        %v718 = vsel %vm717, %v716, 0
        %v719 = vshrl.u32 %v718, 5
        %v720 = vand.u32 %v718, 31
        %v721 = vsub.s32 32, %v720
        %v722 = vshrl.u32 683565275, %v721
        %v723 = vshll.u32 683565275, %v720
        %v724 = vshrl.u32 2475754826, %v721
        %v725 = vor.u32 %v723, %v724
        %v726 = vshll.u32 2475754826, %v720
        %v727 = vshrl.u32 2131351028, %v721
        %v728 = vor.u32 %v726, %v727
        %v729 = vshll.u32 2131351028, %v720
        %v730 = vshrl.u32 2102212464, %v721
        %v731 = vor.u32 %v729, %v730
        %v732 = vshll.u32 2102212464, %v720
        %v733 = vshrl.u32 920167782, %v721
        %v734 = vor.u32 %v732, %v733
        %v735 = vshll.u32 920167782, %v720
        %v736 = vshrl.u32 1326507024, %v721
        %v737 = vor.u32 %v735, %v736
        %vm738 = vcmp.lt.s32.totalorder %v719, 1
        %vm739 = vcmp.lt.s32.totalorder %v719, 2
        %vm740 = vcmp.lt.s32.totalorder %v719, 3
        %vm741 = vcmp.lt.s32.totalorder %v719, 4
        %v742 = vsel %vm738, %v722, %v725
        %v743 = vsel %vm741, %v731, 2102212464
        %v744 = vsel %vm740, %v728, %v743
        %v745 = vsel %vm739, %v742, %v744
        %v746 = vsel %vm738, %v725, %v728
        %v747 = vsel %vm741, %v734, 920167782
        %v748 = vsel %vm740, %v731, %v747
        %v749 = vsel %vm739, %v746, %v748
        %v750 = vsel %vm738, %v728, %v731
        %v751 = vsel %vm741, %v737, 1326507024
        %v752 = vsel %vm740, %v734, %v751
        %v753 = vsel %vm739, %v750, %v752
        %v754 = vshll.u32 %v714, 8
        %v755 = vmul.u32.u64.compose %v754, %v753
        %v756 = vextract.low.u32 %v755
        %v757 = vextract.high.u32 %v755
        %v758 = vmul.u32.u64.compose %v754, %v749
        %v759 = vextract.low.u32 %v758
        %v760 = vextract.high.u32 %v758
        %v761 = vmul.u32 %v754, %v745
        %v762 = vadd.s32 %v757, %v759
        %vm763 = vc.u32 %v757, %v759
        %v764 = vadd.s32 %v760, 1
        %v765 = vsel %vm763, %v764, %v760
        %v766 = vadd.s32 %v761, %v765
        %v767 = vadd.s32 %v766, 536870912
        %v768 = vshrl.u32 %v767, 30
        %v769 = vshll.u32 %v768, 30
        %v770 = vsub.s32 %v766, %v769
        %vm771 = vcmp.lt.s32.totalorder %v770, 0
        %v772 = vsub.s32 0, %v770
        %v773 = vsel %vm771, %v772, %v770
        %v774 = vclz %v773
        %v775 = vsub.s32 %v774, 2
        %vm776 = vcmp.gt.s32.totalorder 0, %v775
        %v777 = vsel %vm776, 0, %v775
        %v778 = vsub.s32 32, %v777
        %v779 = vshll.u32 %v770, %v777
        %v780 = vshrl.u32 %v762, %v778
        %v781 = vor.u32 %v779, %v780
        %v782 = vsub.s32 4294967266, %v777
        %v783 = vadd.s32 %v782, 127
        %v784 = vshll.u32 %v783, 23
        %v785 = vor.u32 4788187, %v784
        %v786 = vand.u32 2147483647, %v785
        %v788 = vcvt.s32.f32 %v781
        %v789 = vmul.f32 %v788, %v786
        %v790 = vxor.u32 %v789, 2147483648
        %v791 = vsel %vm708, %v790, %v789
        %v792 = vsub.s32 4, %v768
        %v793 = vsel %vm708, %v792, %v768
        %v794 = vsel %vm707, %v417, %v791
        %v795 = vsel %vm707, 0, %v793
        %v796 = vcosq.f32.pop %v794
        %v797 = vsinq.f32.pop %v794
        %vm798 = vweird.f32 %v417
        %v799 = vadd.s32 %v795, 3
        %v800 = vand.u32 %v799, 3
        %vm801 = vcmp.lt.s32.totalorder %v800, 2
        %vm802 = vcmp.eq.s32.totalorder %v800, 0
        %v803 = vxor.u32 %v797, 2147483648
        %v804 = vsel %vm802, %v796, %v803
        %vm805 = vcmp.eq.s32.totalorder %v800, 2
        %v806 = vxor.u32 %v796, 2147483648
        %v807 = vsel %vm805, %v806, %v797
        %v808 = vsel %vm801, %v804, %v807
        %v809 = vsel %vm798, nan, %v808
        %v810 = vand.u32 2147483647, %v419
        %vm811 = vcmp.le.f32.partialorder %v810, 0.7853982
        %vm812 = vcmp.lt.s32.totalorder %v419, 0
        %v813 = vand.u32 %v419, 2139095040
        %v814 = vshrl.u32 %v813, 23
        %v815 = vsub.s32 %v814, 127
        %v816 = vand.u32 2147483647, %v419
        %v817 = vand.u32 %v816, 8388607
        %v818 = vor.u32 %v817, 8388608
        %v819 = vsub.s32 0, %v818
        %v820 = vadd.s32 %v815, 1
        %vm821 = vcmp.gt.s32.totalorder %v820, 0
        %v822 = vsel %vm821, %v820, 0
        %v823 = vshrl.u32 %v822, 5
        %v824 = vand.u32 %v822, 31
        %v825 = vsub.s32 32, %v824
        %v826 = vshrl.u32 683565275, %v825
        %v827 = vshll.u32 683565275, %v824
        %v828 = vshrl.u32 2475754826, %v825
        %v829 = vor.u32 %v827, %v828
        %v830 = vshll.u32 2475754826, %v824
        %v831 = vshrl.u32 2131351028, %v825
        %v832 = vor.u32 %v830, %v831
        %v833 = vshll.u32 2131351028, %v824
        %v834 = vshrl.u32 2102212464, %v825
        %v835 = vor.u32 %v833, %v834
        %v836 = vshll.u32 2102212464, %v824
        %v837 = vshrl.u32 920167782, %v825
        %v838 = vor.u32 %v836, %v837
        %v839 = vshll.u32 920167782, %v824
        %v840 = vshrl.u32 1326507024, %v825
        %v841 = vor.u32 %v839, %v840
        %vm842 = vcmp.lt.s32.totalorder %v823, 1
        %vm843 = vcmp.lt.s32.totalorder %v823, 2
        %vm844 = vcmp.lt.s32.totalorder %v823, 3
        %vm845 = vcmp.lt.s32.totalorder %v823, 4
        %v846 = vsel %vm842, %v826, %v829
        %v847 = vsel %vm845, %v835, 2102212464
        %v848 = vsel %vm844, %v832, %v847
        %v849 = vsel %vm843, %v846, %v848
        %v850 = vsel %vm842, %v829, %v832
        %v851 = vsel %vm845, %v838, 920167782
        %v852 = vsel %vm844, %v835, %v851
        %v853 = vsel %vm843, %v850, %v852
        %v854 = vsel %vm842, %v832, %v835
        %v855 = vsel %vm845, %v841, 1326507024
        %v856 = vsel %vm844, %v838, %v855
        %v857 = vsel %vm843, %v854, %v856
        %v858 = vshll.u32 %v818, 8
        %v859 = vmul.u32.u64.compose %v858, %v857
        %v860 = vextract.low.u32 %v859
        %v861 = vextract.high.u32 %v859
        %v862 = vmul.u32.u64.compose %v858, %v853
        %v863 = vextract.low.u32 %v862
        %v864 = vextract.high.u32 %v862
        %v865 = vmul.u32 %v858, %v849
        %v866 = vadd.s32 %v861, %v863
        %vm867 = vc.u32 %v861, %v863
        %v868 = vadd.s32 %v864, 1
        %v869 = vsel %vm867, %v868, %v864
        %v870 = vadd.s32 %v865, %v869
        %v871 = vadd.s32 %v870, 536870912
        %v872 = vshrl.u32 %v871, 30
        %v873 = vshll.u32 %v872, 30
        %v874 = vsub.s32 %v870, %v873
        %vm875 = vcmp.lt.s32.totalorder %v874, 0
        %v876 = vsub.s32 0, %v874
        %v877 = vsel %vm875, %v876, %v874
        %v878 = vclz %v877
        %v879 = vsub.s32 %v878, 2
        %vm880 = vcmp.gt.s32.totalorder 0, %v879
        %v881 = vsel %vm880, 0, %v879
        %v882 = vsub.s32 32, %v881
        %v883 = vshll.u32 %v874, %v881
        %v884 = vshrl.u32 %v866, %v882
        %v885 = vor.u32 %v883, %v884
        %v886 = vsub.s32 4294967266, %v881
        %v887 = vadd.s32 %v886, 127
        %v888 = vshll.u32 %v887, 23
        %v889 = vor.u32 4788187, %v888
        %v890 = vand.u32 2147483647, %v889
        %v892 = vcvt.s32.f32 %v885
        %v893 = vmul.f32 %v892, %v890
        %v894 = vxor.u32 %v893, 2147483648
        %v895 = vsel %vm812, %v894, %v893
        %v896 = vsub.s32 4, %v872
        %v897 = vsel %vm812, %v896, %v872
        %v898 = vsel %vm811, %v419, %v895
        %v899 = vsel %vm811, 0, %v897
        %v900 = vcosq.f32.pop %v898
        %v901 = vsinq.f32.pop %v898
        %vm902 = vweird.f32 %v419
        %v903 = vadd.s32 %v899, 3
        %v904 = vand.u32 %v903, 3
        %vm905 = vcmp.lt.s32.totalorder %v904, 2
        %vm906 = vcmp.eq.s32.totalorder %v904, 0
        %v907 = vxor.u32 %v901, 2147483648
        %v908 = vsel %vm906, %v900, %v907
        %vm909 = vcmp.eq.s32.totalorder %v904, 2
        %v910 = vxor.u32 %v900, 2147483648
        %v911 = vsel %vm909, %v910, %v901
        %v912 = vsel %vm905, %v908, %v911
        %v913 = vsel %vm902, nan, %v912
        %v914 = vand.u32 2147483647, %v506
        %vm915 = vcmp.le.f32.partialorder %v914, 0.7853982
        %vm916 = vcmp.lt.s32.totalorder %v506, 0
        %v917 = vand.u32 %v506, 2139095040
        %v918 = vshrl.u32 %v917, 23
        %v919 = vsub.s32 %v918, 127
        %v920 = vand.u32 2147483647, %v506
        %v921 = vand.u32 %v920, 8388607
        %v922 = vor.u32 %v921, 8388608
        %v923 = vsub.s32 0, %v922
        %v924 = vadd.s32 %v919, 1
        %vm925 = vcmp.gt.s32.totalorder %v924, 0
        %v926 = vsel %vm925, %v924, 0
        %v927 = vshrl.u32 %v926, 5
        %v928 = vand.u32 %v926, 31
        %v929 = vsub.s32 32, %v928
        %v930 = vshrl.u32 683565275, %v929
        %v931 = vshll.u32 683565275, %v928
        %v932 = vshrl.u32 2475754826, %v929
        %v933 = vor.u32 %v931, %v932
        %v934 = vshll.u32 2475754826, %v928
        %v935 = vshrl.u32 2131351028, %v929
        %v936 = vor.u32 %v934, %v935
        %v937 = vshll.u32 2131351028, %v928
        %v938 = vshrl.u32 2102212464, %v929
        %v939 = vor.u32 %v937, %v938
        %v940 = vshll.u32 2102212464, %v928
        %v941 = vshrl.u32 920167782, %v929
        %v942 = vor.u32 %v940, %v941
        %v943 = vshll.u32 920167782, %v928
        %v944 = vshrl.u32 1326507024, %v929
        %v945 = vor.u32 %v943, %v944
        %vm946 = vcmp.lt.s32.totalorder %v927, 1
        %vm947 = vcmp.lt.s32.totalorder %v927, 2
        %vm948 = vcmp.lt.s32.totalorder %v927, 3
        %vm949 = vcmp.lt.s32.totalorder %v927, 4
        %v950 = vsel %vm946, %v930, %v933
        %v951 = vsel %vm949, %v939, 2102212464
        %v952 = vsel %vm948, %v936, %v951
        %v953 = vsel %vm947, %v950, %v952
        %v954 = vsel %vm946, %v933, %v936
        %v955 = vsel %vm949, %v942, 920167782
        %v956 = vsel %vm948, %v939, %v955
        %v957 = vsel %vm947, %v954, %v956
        %v958 = vsel %vm946, %v936, %v939
        %v959 = vsel %vm949, %v945, 1326507024
        %v960 = vsel %vm948, %v942, %v959
        %v961 = vsel %vm947, %v958, %v960
        %v962 = vshll.u32 %v922, 8
        %v963 = vmul.u32.u64.compose %v962, %v961
        %v964 = vextract.low.u32 %v963
        %v965 = vextract.high.u32 %v963
        %v966 = vmul.u32.u64.compose %v962, %v957
        %v967 = vextract.low.u32 %v966
        %v968 = vextract.high.u32 %v966
        %v969 = vmul.u32 %v962, %v953
        %v970 = vadd.s32 %v965, %v967
        %vm971 = vc.u32 %v965, %v967
        %v972 = vadd.s32 %v968, 1
        %v973 = vsel %vm971, %v972, %v968
        %v974 = vadd.s32 %v969, %v973
        %v975 = vadd.s32 %v974, 536870912
        %v976 = vshrl.u32 %v975, 30
        %v977 = vshll.u32 %v976, 30
        %v978 = vsub.s32 %v974, %v977
        %vm979 = vcmp.lt.s32.totalorder %v978, 0
        %v980 = vsub.s32 0, %v978
        %v981 = vsel %vm979, %v980, %v978
        %v982 = vclz %v981
        %v983 = vsub.s32 %v982, 2
        %vm984 = vcmp.gt.s32.totalorder 0, %v983
        %v985 = vsel %vm984, 0, %v983
        %v986 = vsub.s32 32, %v985
        %v987 = vshll.u32 %v978, %v985
        %v988 = vshrl.u32 %v970, %v986
        %v989 = vor.u32 %v987, %v988
        %v990 = vsub.s32 4294967266, %v985
        %v991 = vadd.s32 %v990, 127
        %v992 = vshll.u32 %v991, 23
        %v993 = vor.u32 4788187, %v992
        %v994 = vand.u32 2147483647, %v993
        %v996 = vcvt.s32.f32 %v989
        %v997 = vmul.f32 %v996, %v994
        %v998 = vxor.u32 %v997, 2147483648
        %v999 = vsel %vm916, %v998, %v997
        %v1000 = vsub.s32 4, %v976
        %v1001 = vsel %vm916, %v1000, %v976
        %v1002 = vsel %vm915, %v506, %v999
        %v1003 = vsel %vm915, 0, %v1001
        %v1004 = vcosq.f32.pop %v1002
        %v1005 = vsinq.f32.pop %v1002
        %vm1006 = vweird.f32 %v506
        %v1007 = vadd.s32 %v1003, 3
        %v1008 = vand.u32 %v1007, 3
        %vm1009 = vcmp.lt.s32.totalorder %v1008, 2
        %vm1010 = vcmp.eq.s32.totalorder %v1008, 0
        %v1011 = vxor.u32 %v1005, 2147483648
        %v1012 = vsel %vm1010, %v1004, %v1011
        %vm1013 = vcmp.eq.s32.totalorder %v1008, 2
        %v1014 = vxor.u32 %v1004, 2147483648
        %v1015 = vsel %vm1013, %v1014, %v1005
        %v1016 = vsel %vm1009, %v1012, %v1015
        %v1017 = vsel %vm1006, nan, %v1016
        %v1018 = vand.u32 2147483647, %v508
        %vm1019 = vcmp.le.f32.partialorder %v1018, 0.7853982
        %vm1020 = vcmp.lt.s32.totalorder %v508, 0
        %v1021 = vand.u32 %v508, 2139095040
        %v1022 = vshrl.u32 %v1021, 23
        %v1023 = vsub.s32 %v1022, 127
        %v1024 = vand.u32 2147483647, %v508
        %v1025 = vand.u32 %v1024, 8388607
        %v1026 = vor.u32 %v1025, 8388608
        %v1027 = vsub.s32 0, %v1026
        %v1028 = vadd.s32 %v1023, 1
        %vm1029 = vcmp.gt.s32.totalorder %v1028, 0
        %v1030 = vsel %vm1029, %v1028, 0
        %v1031 = vshrl.u32 %v1030, 5
        %v1032 = vand.u32 %v1030, 31
        %v1033 = vsub.s32 32, %v1032
        %v1034 = vshrl.u32 683565275, %v1033
        %v1035 = vshll.u32 683565275, %v1032
        %v1036 = vshrl.u32 2475754826, %v1033
        %v1037 = vor.u32 %v1035, %v1036
        %v1038 = vshll.u32 2475754826, %v1032
        %v1039 = vshrl.u32 2131351028, %v1033
        %v1040 = vor.u32 %v1038, %v1039
        %v1041 = vshll.u32 2131351028, %v1032
        %v1042 = vshrl.u32 2102212464, %v1033
        %v1043 = vor.u32 %v1041, %v1042
        %v1044 = vshll.u32 2102212464, %v1032
        %v1045 = vshrl.u32 920167782, %v1033
        %v1046 = vor.u32 %v1044, %v1045
        %v1047 = vshll.u32 920167782, %v1032
        %v1048 = vshrl.u32 1326507024, %v1033
        %v1049 = vor.u32 %v1047, %v1048
        %vm1050 = vcmp.lt.s32.totalorder %v1031, 1
        %vm1051 = vcmp.lt.s32.totalorder %v1031, 2
        %vm1052 = vcmp.lt.s32.totalorder %v1031, 3
        %vm1053 = vcmp.lt.s32.totalorder %v1031, 4
        %v1054 = vsel %vm1050, %v1034, %v1037
        %v1055 = vsel %vm1053, %v1043, 2102212464
        %v1056 = vsel %vm1052, %v1040, %v1055
        %v1057 = vsel %vm1051, %v1054, %v1056
        %v1058 = vsel %vm1050, %v1037, %v1040
        %v1059 = vsel %vm1053, %v1046, 920167782
        %v1060 = vsel %vm1052, %v1043, %v1059
        %v1061 = vsel %vm1051, %v1058, %v1060
        %v1062 = vsel %vm1050, %v1040, %v1043
        %v1063 = vsel %vm1053, %v1049, 1326507024
        %v1064 = vsel %vm1052, %v1046, %v1063
        %v1065 = vsel %vm1051, %v1062, %v1064
        %v1066 = vshll.u32 %v1026, 8
        %v1067 = vmul.u32.u64.compose %v1066, %v1065
        %v1068 = vextract.low.u32 %v1067
        %v1069 = vextract.high.u32 %v1067
        %v1070 = vmul.u32.u64.compose %v1066, %v1061
        %v1071 = vextract.low.u32 %v1070
        %v1072 = vextract.high.u32 %v1070
        %v1073 = vmul.u32 %v1066, %v1057
        %v1074 = vadd.s32 %v1069, %v1071
        %vm1075 = vc.u32 %v1069, %v1071
        %v1076 = vadd.s32 %v1072, 1
        %v1077 = vsel %vm1075, %v1076, %v1072
        %v1078 = vadd.s32 %v1073, %v1077
        %v1079 = vadd.s32 %v1078, 536870912
        %v1080 = vshrl.u32 %v1079, 30
        %v1081 = vshll.u32 %v1080, 30
        %v1082 = vsub.s32 %v1078, %v1081
        %vm1083 = vcmp.lt.s32.totalorder %v1082, 0
        %v1084 = vsub.s32 0, %v1082
        %v1085 = vsel %vm1083, %v1084, %v1082
        %v1086 = vclz %v1085
        %v1087 = vsub.s32 %v1086, 2
        %vm1088 = vcmp.gt.s32.totalorder 0, %v1087
        %v1089 = vsel %vm1088, 0, %v1087
        %v1090 = vsub.s32 32, %v1089
        %v1091 = vshll.u32 %v1082, %v1089
        %v1092 = vshrl.u32 %v1074, %v1090
        %v1093 = vor.u32 %v1091, %v1092
        %v1094 = vsub.s32 4294967266, %v1089
        %v1095 = vadd.s32 %v1094, 127
        %v1096 = vshll.u32 %v1095, 23
        %v1097 = vor.u32 4788187, %v1096
        %v1098 = vand.u32 2147483647, %v1097
        %v1100 = vcvt.s32.f32 %v1093
        %v1101 = vmul.f32 %v1100, %v1098
        %v1102 = vxor.u32 %v1101, 2147483648
        %v1103 = vsel %vm1020, %v1102, %v1101
        %v1104 = vsub.s32 4, %v1080
        %v1105 = vsel %vm1020, %v1104, %v1080
        %v1106 = vsel %vm1019, %v508, %v1103
        %v1107 = vsel %vm1019, 0, %v1105
        %v1108 = vcosq.f32.pop %v1106
        %v1109 = vsinq.f32.pop %v1106
        %vm1110 = vweird.f32 %v508
        %v1111 = vadd.s32 %v1107, 3
        %v1112 = vand.u32 %v1111, 3
        %vm1113 = vcmp.lt.s32.totalorder %v1112, 2
        %vm1114 = vcmp.eq.s32.totalorder %v1112, 0
        %v1115 = vxor.u32 %v1109, 2147483648
        %v1116 = vsel %vm1114, %v1108, %v1115
        %vm1117 = vcmp.eq.s32.totalorder %v1112, 2
        %v1118 = vxor.u32 %v1108, 2147483648
        %v1119 = vsel %vm1117, %v1118, %v1109
        %v1120 = vsel %vm1113, %v1116, %v1119
        %v1121 = vsel %vm1110, nan, %v1120
        %v1122 = vand.u32 2147483647, %v595
        %vm1123 = vcmp.le.f32.partialorder %v1122, 0.7853982
        %vm1124 = vcmp.lt.s32.totalorder %v595, 0
        %v1125 = vand.u32 %v595, 2139095040
        %v1126 = vshrl.u32 %v1125, 23
        %v1127 = vsub.s32 %v1126, 127
        %v1128 = vand.u32 2147483647, %v595
        %v1129 = vand.u32 %v1128, 8388607
        %v1130 = vor.u32 %v1129, 8388608
        %v1131 = vsub.s32 0, %v1130
        %v1132 = vadd.s32 %v1127, 1
        %vm1133 = vcmp.gt.s32.totalorder %v1132, 0
        %v1134 = vsel %vm1133, %v1132, 0
        %v1135 = vshrl.u32 %v1134, 5
        %v1136 = vand.u32 %v1134, 31
        %v1137 = vsub.s32 32, %v1136
        %v1138 = vshrl.u32 683565275, %v1137
        %v1139 = vshll.u32 683565275, %v1136
        %v1140 = vshrl.u32 2475754826, %v1137
        %v1141 = vor.u32 %v1139, %v1140
        %v1142 = vshll.u32 2475754826, %v1136
        %v1143 = vshrl.u32 2131351028, %v1137
        %v1144 = vor.u32 %v1142, %v1143
        %v1145 = vshll.u32 2131351028, %v1136
        %v1146 = vshrl.u32 2102212464, %v1137
        %v1147 = vor.u32 %v1145, %v1146
        %v1148 = vshll.u32 2102212464, %v1136
        %v1149 = vshrl.u32 920167782, %v1137
        %v1150 = vor.u32 %v1148, %v1149
        %v1151 = vshll.u32 920167782, %v1136
        %v1152 = vshrl.u32 1326507024, %v1137
        %v1153 = vor.u32 %v1151, %v1152
        %vm1154 = vcmp.lt.s32.totalorder %v1135, 1
        %vm1155 = vcmp.lt.s32.totalorder %v1135, 2
        %vm1156 = vcmp.lt.s32.totalorder %v1135, 3
        %vm1157 = vcmp.lt.s32.totalorder %v1135, 4
        %v1158 = vsel %vm1154, %v1138, %v1141
        %v1159 = vsel %vm1157, %v1147, 2102212464
        %v1160 = vsel %vm1156, %v1144, %v1159
        %v1161 = vsel %vm1155, %v1158, %v1160
        %v1162 = vsel %vm1154, %v1141, %v1144
        %v1163 = vsel %vm1157, %v1150, 920167782
        %v1164 = vsel %vm1156, %v1147, %v1163
        %v1165 = vsel %vm1155, %v1162, %v1164
        %v1166 = vsel %vm1154, %v1144, %v1147
        %v1167 = vsel %vm1157, %v1153, 1326507024
        %v1168 = vsel %vm1156, %v1150, %v1167
        %v1169 = vsel %vm1155, %v1166, %v1168
        %v1170 = vshll.u32 %v1130, 8
        %v1171 = vmul.u32.u64.compose %v1170, %v1169
        %v1172 = vextract.low.u32 %v1171
        %v1173 = vextract.high.u32 %v1171
        %v1174 = vmul.u32.u64.compose %v1170, %v1165
        %v1175 = vextract.low.u32 %v1174
        %v1176 = vextract.high.u32 %v1174
        %v1177 = vmul.u32 %v1170, %v1161
        %v1178 = vadd.s32 %v1173, %v1175
        %vm1179 = vc.u32 %v1173, %v1175
        %v1180 = vadd.s32 %v1176, 1
        %v1181 = vsel %vm1179, %v1180, %v1176
        %v1182 = vadd.s32 %v1177, %v1181
        %v1183 = vadd.s32 %v1182, 536870912
        %v1184 = vshrl.u32 %v1183, 30
        %v1185 = vshll.u32 %v1184, 30
        %v1186 = vsub.s32 %v1182, %v1185
        %vm1187 = vcmp.lt.s32.totalorder %v1186, 0
        %v1188 = vsub.s32 0, %v1186
        %v1189 = vsel %vm1187, %v1188, %v1186
        %v1190 = vclz %v1189
        %v1191 = vsub.s32 %v1190, 2
        %vm1192 = vcmp.gt.s32.totalorder 0, %v1191
        %v1193 = vsel %vm1192, 0, %v1191
        %v1194 = vsub.s32 32, %v1193
        %v1195 = vshll.u32 %v1186, %v1193
        %v1196 = vshrl.u32 %v1178, %v1194
        %v1197 = vor.u32 %v1195, %v1196
        %v1198 = vsub.s32 4294967266, %v1193
        %v1199 = vadd.s32 %v1198, 127
        %v1200 = vshll.u32 %v1199, 23
        %v1201 = vor.u32 4788187, %v1200
        %v1202 = vand.u32 2147483647, %v1201
        %v1204 = vcvt.s32.f32 %v1197
        %v1205 = vmul.f32 %v1204, %v1202
        %v1206 = vxor.u32 %v1205, 2147483648
        %v1207 = vsel %vm1124, %v1206, %v1205
        %v1208 = vsub.s32 4, %v1184
        %v1209 = vsel %vm1124, %v1208, %v1184
        %v1210 = vsel %vm1123, %v595, %v1207
        %v1211 = vsel %vm1123, 0, %v1209
        %v1212 = vcosq.f32.pop %v1210
        %v1213 = vsinq.f32.pop %v1210
        %vm1214 = vweird.f32 %v595
        %v1215 = vadd.s32 %v1211, 3
        %v1216 = vand.u32 %v1215, 3
        %vm1217 = vcmp.lt.s32.totalorder %v1216, 2
        %vm1218 = vcmp.eq.s32.totalorder %v1216, 0
        %v1219 = vxor.u32 %v1213, 2147483648
        %v1220 = vsel %vm1218, %v1212, %v1219
        %vm1221 = vcmp.eq.s32.totalorder %v1216, 2
        %v1222 = vxor.u32 %v1212, 2147483648
        %v1223 = vsel %vm1221, %v1222, %v1213
        %v1224 = vsel %vm1217, %v1220, %v1223
        %v1225 = vsel %vm1214, nan, %v1224
        %v1226 = vand.u32 2147483647, %v597
        %vm1227 = vcmp.le.f32.partialorder %v1226, 0.7853982
        %vm1228 = vcmp.lt.s32.totalorder %v597, 0
        %v1229 = vand.u32 %v597, 2139095040
        %v1230 = vshrl.u32 %v1229, 23
        %v1231 = vsub.s32 %v1230, 127
        %v1232 = vand.u32 2147483647, %v597
        %v1233 = vand.u32 %v1232, 8388607
        %v1234 = vor.u32 %v1233, 8388608
        %v1235 = vsub.s32 0, %v1234
        %v1236 = vadd.s32 %v1231, 1
        %vm1237 = vcmp.gt.s32.totalorder %v1236, 0
        %v1238 = vsel %vm1237, %v1236, 0
        %v1239 = vshrl.u32 %v1238, 5
        %v1240 = vand.u32 %v1238, 31
        %v1241 = vsub.s32 32, %v1240
        %v1242 = vshrl.u32 683565275, %v1241
        %v1243 = vshll.u32 683565275, %v1240
        %v1244 = vshrl.u32 2475754826, %v1241
        %v1245 = vor.u32 %v1243, %v1244
        %v1246 = vshll.u32 2475754826, %v1240
        %v1247 = vshrl.u32 2131351028, %v1241
        %v1248 = vor.u32 %v1246, %v1247
        %v1249 = vshll.u32 2131351028, %v1240
        %v1250 = vshrl.u32 2102212464, %v1241
        %v1251 = vor.u32 %v1249, %v1250
        %v1252 = vshll.u32 2102212464, %v1240
        %v1253 = vshrl.u32 920167782, %v1241
        %v1254 = vor.u32 %v1252, %v1253
        %v1255 = vshll.u32 920167782, %v1240
        %v1256 = vshrl.u32 1326507024, %v1241
        %v1257 = vor.u32 %v1255, %v1256
        %vm1258 = vcmp.lt.s32.totalorder %v1239, 1
        %vm1259 = vcmp.lt.s32.totalorder %v1239, 2
        %vm1260 = vcmp.lt.s32.totalorder %v1239, 3
        %vm1261 = vcmp.lt.s32.totalorder %v1239, 4
        %v1262 = vsel %vm1258, %v1242, %v1245
        %v1263 = vsel %vm1261, %v1251, 2102212464
        %v1264 = vsel %vm1260, %v1248, %v1263
        %v1265 = vsel %vm1259, %v1262, %v1264
        %v1266 = vsel %vm1258, %v1245, %v1248
        %v1267 = vsel %vm1261, %v1254, 920167782
        %v1268 = vsel %vm1260, %v1251, %v1267
        %v1269 = vsel %vm1259, %v1266, %v1268
        %v1270 = vsel %vm1258, %v1248, %v1251
        %v1271 = vsel %vm1261, %v1257, 1326507024
        %v1272 = vsel %vm1260, %v1254, %v1271
        %v1273 = vsel %vm1259, %v1270, %v1272
        %v1274 = vshll.u32 %v1234, 8
        %v1275 = vmul.u32.u64.compose %v1274, %v1273
        %v1276 = vextract.low.u32 %v1275
        %v1277 = vextract.high.u32 %v1275
        %v1278 = vmul.u32.u64.compose %v1274, %v1269
        %v1279 = vextract.low.u32 %v1278
        %v1280 = vextract.high.u32 %v1278
        %v1281 = vmul.u32 %v1274, %v1265
        %v1282 = vadd.s32 %v1277, %v1279
        %vm1283 = vc.u32 %v1277, %v1279
        %v1284 = vadd.s32 %v1280, 1
        %v1285 = vsel %vm1283, %v1284, %v1280
        %v1286 = vadd.s32 %v1281, %v1285
        %v1287 = vadd.s32 %v1286, 536870912
        %v1288 = vshrl.u32 %v1287, 30
        %v1289 = vshll.u32 %v1288, 30
        %v1290 = vsub.s32 %v1286, %v1289
        %vm1291 = vcmp.lt.s32.totalorder %v1290, 0
        %v1292 = vsub.s32 0, %v1290
        %v1293 = vsel %vm1291, %v1292, %v1290
        %v1294 = vclz %v1293
        %v1295 = vsub.s32 %v1294, 2
        %vm1296 = vcmp.gt.s32.totalorder 0, %v1295
        %v1297 = vsel %vm1296, 0, %v1295
        %v1298 = vsub.s32 32, %v1297
        %v1299 = vshll.u32 %v1290, %v1297
        %v1300 = vshrl.u32 %v1282, %v1298
        %v1301 = vor.u32 %v1299, %v1300
        %v1302 = vsub.s32 4294967266, %v1297
        %v1303 = vadd.s32 %v1302, 127
        %v1304 = vshll.u32 %v1303, 23
        %v1305 = vor.u32 4788187, %v1304
        %v1306 = vand.u32 2147483647, %v1305
        %v1308 = vcvt.s32.f32 %v1301
        %v1309 = vmul.f32 %v1308, %v1306
        %v1310 = vxor.u32 %v1309, 2147483648
        %v1311 = vsel %vm1228, %v1310, %v1309
        %v1312 = vsub.s32 4, %v1288
        %v1313 = vsel %vm1228, %v1312, %v1288
        %v1314 = vsel %vm1227, %v597, %v1311
        %v1315 = vsel %vm1227, 0, %v1313
        %v1316 = vcosq.f32.pop %v1314
        %v1317 = vsinq.f32.pop %v1314
        %vm1318 = vweird.f32 %v597
        %v1319 = vadd.s32 %v1315, 3
        %v1320 = vand.u32 %v1319, 3
        %vm1321 = vcmp.lt.s32.totalorder %v1320, 2
        %vm1322 = vcmp.eq.s32.totalorder %v1320, 0
        %v1323 = vxor.u32 %v1317, 2147483648
        %v1324 = vsel %vm1322, %v1316, %v1323
        %vm1325 = vcmp.eq.s32.totalorder %v1320, 2
        %v1326 = vxor.u32 %v1316, 2147483648
        %v1327 = vsel %vm1325, %v1326, %v1317
        %v1328 = vsel %vm1321, %v1324, %v1327
        %v1329 = vsel %vm1318, nan, %v1328
        %v1330 = vand.u32 2147483647, %v684
        %vm1331 = vcmp.le.f32.partialorder %v1330, 0.7853982
        %vm1332 = vcmp.lt.s32.totalorder %v684, 0
        %v1333 = vand.u32 %v684, 2139095040
        %v1334 = vshrl.u32 %v1333, 23
        %v1335 = vsub.s32 %v1334, 127
        %v1336 = vand.u32 2147483647, %v684
        %v1337 = vand.u32 %v1336, 8388607
        %v1338 = vor.u32 %v1337, 8388608
        %v1339 = vsub.s32 0, %v1338
        %v1340 = vadd.s32 %v1335, 1
        %vm1341 = vcmp.gt.s32.totalorder %v1340, 0
        %v1342 = vsel %vm1341, %v1340, 0
        %v1343 = vshrl.u32 %v1342, 5
        %v1344 = vand.u32 %v1342, 31
        %v1345 = vsub.s32 32, %v1344
        %v1346 = vshrl.u32 683565275, %v1345
        %v1347 = vshll.u32 683565275, %v1344
        %v1348 = vshrl.u32 2475754826, %v1345
        %v1349 = vor.u32 %v1347, %v1348
        %v1350 = vshll.u32 2475754826, %v1344
        %v1351 = vshrl.u32 2131351028, %v1345
        %v1352 = vor.u32 %v1350, %v1351
        %v1353 = vshll.u32 2131351028, %v1344
        %v1354 = vshrl.u32 2102212464, %v1345
        %v1355 = vor.u32 %v1353, %v1354
        %v1356 = vshll.u32 2102212464, %v1344
        %v1357 = vshrl.u32 920167782, %v1345
        %v1358 = vor.u32 %v1356, %v1357
        %v1359 = vshll.u32 920167782, %v1344
        %v1360 = vshrl.u32 1326507024, %v1345
        %v1361 = vor.u32 %v1359, %v1360
        %vm1362 = vcmp.lt.s32.totalorder %v1343, 1
        %vm1363 = vcmp.lt.s32.totalorder %v1343, 2
        %vm1364 = vcmp.lt.s32.totalorder %v1343, 3
        %vm1365 = vcmp.lt.s32.totalorder %v1343, 4
        %v1366 = vsel %vm1362, %v1346, %v1349
        %v1367 = vsel %vm1365, %v1355, 2102212464
        %v1368 = vsel %vm1364, %v1352, %v1367
        %v1369 = vsel %vm1363, %v1366, %v1368
        %v1370 = vsel %vm1362, %v1349, %v1352
        %v1371 = vsel %vm1365, %v1358, 920167782
        %v1372 = vsel %vm1364, %v1355, %v1371
        %v1373 = vsel %vm1363, %v1370, %v1372
        %v1374 = vsel %vm1362, %v1352, %v1355
        %v1375 = vsel %vm1365, %v1361, 1326507024
        %v1376 = vsel %vm1364, %v1358, %v1375
        %v1377 = vsel %vm1363, %v1374, %v1376
        %v1378 = vshll.u32 %v1338, 8
        %v1379 = vmul.u32.u64.compose %v1378, %v1377
        %v1380 = vextract.low.u32 %v1379
        %v1381 = vextract.high.u32 %v1379
        %v1382 = vmul.u32.u64.compose %v1378, %v1373
        %v1383 = vextract.low.u32 %v1382
        %v1384 = vextract.high.u32 %v1382
        %v1385 = vmul.u32 %v1378, %v1369
        %v1386 = vadd.s32 %v1381, %v1383
        %vm1387 = vc.u32 %v1381, %v1383
        %v1388 = vadd.s32 %v1384, 1
        %v1389 = vsel %vm1387, %v1388, %v1384
        %v1390 = vadd.s32 %v1385, %v1389
        %v1391 = vadd.s32 %v1390, 536870912
        %v1392 = vshrl.u32 %v1391, 30
        %v1393 = vshll.u32 %v1392, 30
        %v1394 = vsub.s32 %v1390, %v1393
        %vm1395 = vcmp.lt.s32.totalorder %v1394, 0
        %v1396 = vsub.s32 0, %v1394
        %v1397 = vsel %vm1395, %v1396, %v1394
        %v1398 = vclz %v1397
        %v1399 = vsub.s32 %v1398, 2
        %vm1400 = vcmp.gt.s32.totalorder 0, %v1399
        %v1401 = vsel %vm1400, 0, %v1399
        %v1402 = vsub.s32 32, %v1401
        %v1403 = vshll.u32 %v1394, %v1401
        %v1404 = vshrl.u32 %v1386, %v1402
        %v1405 = vor.u32 %v1403, %v1404
        %v1406 = vsub.s32 4294967266, %v1401
        %v1407 = vadd.s32 %v1406, 127
        %v1408 = vshll.u32 %v1407, 23
        %v1409 = vor.u32 4788187, %v1408
        %v1410 = vand.u32 2147483647, %v1409
        %v1412 = vcvt.s32.f32 %v1405
        %v1413 = vmul.f32 %v1412, %v1410
        %v1414 = vxor.u32 %v1413, 2147483648
        %v1415 = vsel %vm1332, %v1414, %v1413
        %v1416 = vsub.s32 4, %v1392
        %v1417 = vsel %vm1332, %v1416, %v1392
        %v1418 = vsel %vm1331, %v684, %v1415
        %v1419 = vsel %vm1331, 0, %v1417
        %v1420 = vcosq.f32.pop %v1418
        %v1421 = vsinq.f32.pop %v1418
        %vm1422 = vweird.f32 %v684
        %v1423 = vadd.s32 %v1419, 3
        %v1424 = vand.u32 %v1423, 3
        %vm1425 = vcmp.lt.s32.totalorder %v1424, 2
        %vm1426 = vcmp.eq.s32.totalorder %v1424, 0
        %v1427 = vxor.u32 %v1421, 2147483648
        %v1428 = vsel %vm1426, %v1420, %v1427
        %vm1429 = vcmp.eq.s32.totalorder %v1424, 2
        %v1430 = vxor.u32 %v1420, 2147483648
        %v1431 = vsel %vm1429, %v1430, %v1421
        %v1432 = vsel %vm1425, %v1428, %v1431
        %v1433 = vsel %vm1422, nan, %v1432
        %v1434 = vand.u32 2147483647, %v686
        %vm1435 = vcmp.le.f32.partialorder %v1434, 0.7853982
        %vm1436 = vcmp.lt.s32.totalorder %v686, 0
        %v1437 = vand.u32 %v686, 2139095040
        %v1438 = vshrl.u32 %v1437, 23
        %v1439 = vsub.s32 %v1438, 127
        %v1440 = vand.u32 2147483647, %v686
        %v1441 = vand.u32 %v1440, 8388607
        %v1442 = vor.u32 %v1441, 8388608
        %v1443 = vsub.s32 0, %v1442
        %v1444 = vadd.s32 %v1439, 1
        %vm1445 = vcmp.gt.s32.totalorder %v1444, 0
        %v1446 = vsel %vm1445, %v1444, 0
        %v1447 = vshrl.u32 %v1446, 5
        %v1448 = vand.u32 %v1446, 31
        %v1449 = vsub.s32 32, %v1448
        %v1450 = vshrl.u32 683565275, %v1449
        %v1451 = vshll.u32 683565275, %v1448
        %v1452 = vshrl.u32 2475754826, %v1449
        %v1453 = vor.u32 %v1451, %v1452
        %v1454 = vshll.u32 2475754826, %v1448
        %v1455 = vshrl.u32 2131351028, %v1449
        %v1456 = vor.u32 %v1454, %v1455
        %v1457 = vshll.u32 2131351028, %v1448
        %v1458 = vshrl.u32 2102212464, %v1449
        %v1459 = vor.u32 %v1457, %v1458
        %v1460 = vshll.u32 2102212464, %v1448
        %v1461 = vshrl.u32 920167782, %v1449
        %v1462 = vor.u32 %v1460, %v1461
        %v1463 = vshll.u32 920167782, %v1448
        %v1464 = vshrl.u32 1326507024, %v1449
        %v1465 = vor.u32 %v1463, %v1464
        %vm1466 = vcmp.lt.s32.totalorder %v1447, 1
        %vm1467 = vcmp.lt.s32.totalorder %v1447, 2
        %vm1468 = vcmp.lt.s32.totalorder %v1447, 3
        %vm1469 = vcmp.lt.s32.totalorder %v1447, 4
        %v1470 = vsel %vm1466, %v1450, %v1453
        %v1471 = vsel %vm1469, %v1459, 2102212464
        %v1472 = vsel %vm1468, %v1456, %v1471
        %v1473 = vsel %vm1467, %v1470, %v1472
        %v1474 = vsel %vm1466, %v1453, %v1456
        %v1475 = vsel %vm1469, %v1462, 920167782
        %v1476 = vsel %vm1468, %v1459, %v1475
        %v1477 = vsel %vm1467, %v1474, %v1476
        %v1478 = vsel %vm1466, %v1456, %v1459
        %v1479 = vsel %vm1469, %v1465, 1326507024
        %v1480 = vsel %vm1468, %v1462, %v1479
        %v1481 = vsel %vm1467, %v1478, %v1480
        %v1482 = vshll.u32 %v1442, 8
        %v1483 = vmul.u32.u64.compose %v1482, %v1481
        %v1484 = vextract.low.u32 %v1483
        %v1485 = vextract.high.u32 %v1483
        %v1486 = vmul.u32.u64.compose %v1482, %v1477
        %v1487 = vextract.low.u32 %v1486
        %v1488 = vextract.high.u32 %v1486
        %v1489 = vmul.u32 %v1482, %v1473
        %v1490 = vadd.s32 %v1485, %v1487
        %vm1491 = vc.u32 %v1485, %v1487
        %v1492 = vadd.s32 %v1488, 1
        %v1493 = vsel %vm1491, %v1492, %v1488
        %v1494 = vadd.s32 %v1489, %v1493
        %v1495 = vadd.s32 %v1494, 536870912
        %v1496 = vshrl.u32 %v1495, 30
        %v1497 = vshll.u32 %v1496, 30
        %v1498 = vsub.s32 %v1494, %v1497
        %vm1499 = vcmp.lt.s32.totalorder %v1498, 0
        %v1500 = vsub.s32 0, %v1498
        %v1501 = vsel %vm1499, %v1500, %v1498
        %v1502 = vclz %v1501
        %v1503 = vsub.s32 %v1502, 2
        %vm1504 = vcmp.gt.s32.totalorder 0, %v1503
        %v1505 = vsel %vm1504, 0, %v1503
        %v1506 = vsub.s32 32, %v1505
        %v1507 = vshll.u32 %v1498, %v1505
        %v1508 = vshrl.u32 %v1490, %v1506
        %v1509 = vor.u32 %v1507, %v1508
        %v1510 = vsub.s32 4294967266, %v1505
        %v1511 = vadd.s32 %v1510, 127
        %v1512 = vshll.u32 %v1511, 23
        %v1513 = vor.u32 4788187, %v1512
        %v1514 = vand.u32 2147483647, %v1513
        %v1516 = vcvt.s32.f32 %v1509
        %v1517 = vmul.f32 %v1516, %v1514
        %v1518 = vxor.u32 %v1517, 2147483648
        %v1519 = vsel %vm1436, %v1518, %v1517
        %v1520 = vsub.s32 4, %v1496
        %v1521 = vsel %vm1436, %v1520, %v1496
        %v1522 = vsel %vm1435, %v686, %v1519
        %v1523 = vsel %vm1435, 0, %v1521
        %v1524 = vcosq.f32.pop %v1522
        %v1525 = vsinq.f32.pop %v1522
        %vm1526 = vweird.f32 %v686
        %v1527 = vadd.s32 %v1523, 3
        %v1528 = vand.u32 %v1527, 3
        %vm1529 = vcmp.lt.s32.totalorder %v1528, 2
        %vm1530 = vcmp.eq.s32.totalorder %v1528, 0
        %v1531 = vxor.u32 %v1525, 2147483648
        %v1532 = vsel %vm1530, %v1524, %v1531
        %vm1533 = vcmp.eq.s32.totalorder %v1528, 2
        %v1534 = vxor.u32 %v1524, 2147483648
        %v1535 = vsel %vm1533, %v1534, %v1525
        %v1536 = vsel %vm1529, %v1532, %v1535
        %v1537 = vsel %vm1526, nan, %v1536
        %v1538 = vand.u32 2147483647, %v423
        %vm1539 = vcmp.le.f32.partialorder %v1538, 0.7853982
        %vm1540 = vcmp.lt.s32.totalorder %v423, 0
        %v1541 = vand.u32 %v423, 2139095040
        %v1542 = vshrl.u32 %v1541, 23
        %v1543 = vsub.s32 %v1542, 127
        %v1544 = vand.u32 2147483647, %v423
        %v1545 = vand.u32 %v1544, 8388607
        %v1546 = vor.u32 %v1545, 8388608
        %v1547 = vsub.s32 0, %v1546
        %v1548 = vadd.s32 %v1543, 1
        %vm1549 = vcmp.gt.s32.totalorder %v1548, 0
        %v1550 = vsel %vm1549, %v1548, 0
        %v1551 = vshrl.u32 %v1550, 5
        %v1552 = vand.u32 %v1550, 31
        %v1553 = vsub.s32 32, %v1552
        %v1554 = vshrl.u32 683565275, %v1553
        %v1555 = vshll.u32 683565275, %v1552
        %v1556 = vshrl.u32 2475754826, %v1553
        %v1557 = vor.u32 %v1555, %v1556
        %v1558 = vshll.u32 2475754826, %v1552
        %v1559 = vshrl.u32 2131351028, %v1553
        %v1560 = vor.u32 %v1558, %v1559
        %v1561 = vshll.u32 2131351028, %v1552
        %v1562 = vshrl.u32 2102212464, %v1553
        %v1563 = vor.u32 %v1561, %v1562
        %v1564 = vshll.u32 2102212464, %v1552
        %v1565 = vshrl.u32 920167782, %v1553
        %v1566 = vor.u32 %v1564, %v1565
        %v1567 = vshll.u32 920167782, %v1552
        %v1568 = vshrl.u32 1326507024, %v1553
        %v1569 = vor.u32 %v1567, %v1568
        %vm1570 = vcmp.lt.s32.totalorder %v1551, 1
        %vm1571 = vcmp.lt.s32.totalorder %v1551, 2
        %vm1572 = vcmp.lt.s32.totalorder %v1551, 3
        %vm1573 = vcmp.lt.s32.totalorder %v1551, 4
        %v1574 = vsel %vm1570, %v1554, %v1557
        %v1575 = vsel %vm1573, %v1563, 2102212464
        %v1576 = vsel %vm1572, %v1560, %v1575
        %v1577 = vsel %vm1571, %v1574, %v1576
        %v1578 = vsel %vm1570, %v1557, %v1560
        %v1579 = vsel %vm1573, %v1566, 920167782
        %v1580 = vsel %vm1572, %v1563, %v1579
        %v1581 = vsel %vm1571, %v1578, %v1580
        %v1582 = vsel %vm1570, %v1560, %v1563
        %v1583 = vsel %vm1573, %v1569, 1326507024
        %v1584 = vsel %vm1572, %v1566, %v1583
        %v1585 = vsel %vm1571, %v1582, %v1584
        %v1586 = vshll.u32 %v1546, 8
        %v1587 = vmul.u32.u64.compose %v1586, %v1585
        %v1588 = vextract.low.u32 %v1587
        %v1589 = vextract.high.u32 %v1587
        %v1590 = vmul.u32.u64.compose %v1586, %v1581
        %v1591 = vextract.low.u32 %v1590
        %v1592 = vextract.high.u32 %v1590
        %v1593 = vmul.u32 %v1586, %v1577
        %v1594 = vadd.s32 %v1589, %v1591
        %vm1595 = vc.u32 %v1589, %v1591
        %v1596 = vadd.s32 %v1592, 1
        %v1597 = vsel %vm1595, %v1596, %v1592
        %v1598 = vadd.s32 %v1593, %v1597
        %v1599 = vadd.s32 %v1598, 536870912
        %v1600 = vshrl.u32 %v1599, 30
        %v1601 = vshll.u32 %v1600, 30
        %v1602 = vsub.s32 %v1598, %v1601
        %vm1603 = vcmp.lt.s32.totalorder %v1602, 0
        %v1604 = vsub.s32 0, %v1602
        %v1605 = vsel %vm1603, %v1604, %v1602
        %v1606 = vclz %v1605
        %v1607 = vsub.s32 %v1606, 2
        %vm1608 = vcmp.gt.s32.totalorder 0, %v1607
        %v1609 = vsel %vm1608, 0, %v1607
        %v1610 = vsub.s32 32, %v1609
        %v1611 = vshll.u32 %v1602, %v1609
        %v1612 = vshrl.u32 %v1594, %v1610
        %v1613 = vor.u32 %v1611, %v1612
        %v1614 = vsub.s32 4294967266, %v1609
        %v1615 = vadd.s32 %v1614, 127
        %v1616 = vshll.u32 %v1615, 23
        %v1617 = vor.u32 4788187, %v1616
        %v1618 = vand.u32 2147483647, %v1617
        %v1620 = vcvt.s32.f32 %v1613
        %v1621 = vmul.f32 %v1620, %v1618
        %v1622 = vxor.u32 %v1621, 2147483648
        %v1623 = vsel %vm1540, %v1622, %v1621
        %v1624 = vsub.s32 4, %v1600
        %v1625 = vsel %vm1540, %v1624, %v1600
        %v1626 = vsel %vm1539, %v423, %v1623
        %v1627 = vsel %vm1539, 0, %v1625
        %v1628 = vcosq.f32.pop %v1626
        %v1629 = vsinq.f32.pop %v1626
        %vm1630 = vweird.f32 %v423
        %v1631 = vadd.s32 %v1627, 3
        %v1632 = vand.u32 %v1631, 3
        %vm1633 = vcmp.lt.s32.totalorder %v1632, 2
        %vm1634 = vcmp.eq.s32.totalorder %v1632, 0
        %v1635 = vxor.u32 %v1629, 2147483648
        %v1636 = vsel %vm1634, %v1628, %v1635
        %vm1637 = vcmp.eq.s32.totalorder %v1632, 2
        %v1638 = vxor.u32 %v1628, 2147483648
        %v1639 = vsel %vm1637, %v1638, %v1629
        %v1640 = vsel %vm1633, %v1636, %v1639
        %v1641 = vsel %vm1630, nan, %v1640
        %v1642 = vand.u32 2147483647, %v425
        %vm1643 = vcmp.le.f32.partialorder %v1642, 0.7853982
        %vm1644 = vcmp.lt.s32.totalorder %v425, 0
        %v1645 = vand.u32 %v425, 2139095040
        %v1646 = vshrl.u32 %v1645, 23
        %v1647 = vsub.s32 %v1646, 127
        %v1648 = vand.u32 2147483647, %v425
        %v1649 = vand.u32 %v1648, 8388607
        %v1650 = vor.u32 %v1649, 8388608
        %v1651 = vsub.s32 0, %v1650
        %v1652 = vadd.s32 %v1647, 1
        %vm1653 = vcmp.gt.s32.totalorder %v1652, 0
        %v1654 = vsel %vm1653, %v1652, 0
        %v1655 = vshrl.u32 %v1654, 5
        %v1656 = vand.u32 %v1654, 31
        %v1657 = vsub.s32 32, %v1656
        %v1658 = vshrl.u32 683565275, %v1657
        %v1659 = vshll.u32 683565275, %v1656
        %v1660 = vshrl.u32 2475754826, %v1657
        %v1661 = vor.u32 %v1659, %v1660
        %v1662 = vshll.u32 2475754826, %v1656
        %v1663 = vshrl.u32 2131351028, %v1657
        %v1664 = vor.u32 %v1662, %v1663
        %v1665 = vshll.u32 2131351028, %v1656
        %v1666 = vshrl.u32 2102212464, %v1657
        %v1667 = vor.u32 %v1665, %v1666
        %v1668 = vshll.u32 2102212464, %v1656
        %v1669 = vshrl.u32 920167782, %v1657
        %v1670 = vor.u32 %v1668, %v1669
        %v1671 = vshll.u32 920167782, %v1656
        %v1672 = vshrl.u32 1326507024, %v1657
        %v1673 = vor.u32 %v1671, %v1672
        %vm1674 = vcmp.lt.s32.totalorder %v1655, 1
        %vm1675 = vcmp.lt.s32.totalorder %v1655, 2
        %vm1676 = vcmp.lt.s32.totalorder %v1655, 3
        %vm1677 = vcmp.lt.s32.totalorder %v1655, 4
        %v1678 = vsel %vm1674, %v1658, %v1661
        %v1679 = vsel %vm1677, %v1667, 2102212464
        %v1680 = vsel %vm1676, %v1664, %v1679
        %v1681 = vsel %vm1675, %v1678, %v1680
        %v1682 = vsel %vm1674, %v1661, %v1664
        %v1683 = vsel %vm1677, %v1670, 920167782
        %v1684 = vsel %vm1676, %v1667, %v1683
        %v1685 = vsel %vm1675, %v1682, %v1684
        %v1686 = vsel %vm1674, %v1664, %v1667
        %v1687 = vsel %vm1677, %v1673, 1326507024
        %v1688 = vsel %vm1676, %v1670, %v1687
        %v1689 = vsel %vm1675, %v1686, %v1688
        %v1690 = vshll.u32 %v1650, 8
        %v1691 = vmul.u32.u64.compose %v1690, %v1689
        %v1692 = vextract.low.u32 %v1691
        %v1693 = vextract.high.u32 %v1691
        %v1694 = vmul.u32.u64.compose %v1690, %v1685
        %v1695 = vextract.low.u32 %v1694
        %v1696 = vextract.high.u32 %v1694
        %v1697 = vmul.u32 %v1690, %v1681
        %v1698 = vadd.s32 %v1693, %v1695
        %vm1699 = vc.u32 %v1693, %v1695
        %v1700 = vadd.s32 %v1696, 1
        %v1701 = vsel %vm1699, %v1700, %v1696
        %v1702 = vadd.s32 %v1697, %v1701
        %v1703 = vadd.s32 %v1702, 536870912
        %v1704 = vshrl.u32 %v1703, 30
        %v1705 = vshll.u32 %v1704, 30
        %v1706 = vsub.s32 %v1702, %v1705
        %vm1707 = vcmp.lt.s32.totalorder %v1706, 0
        %v1708 = vsub.s32 0, %v1706
        %v1709 = vsel %vm1707, %v1708, %v1706
        %v1710 = vclz %v1709
        %v1711 = vsub.s32 %v1710, 2
        %vm1712 = vcmp.gt.s32.totalorder 0, %v1711
        %v1713 = vsel %vm1712, 0, %v1711
        %v1714 = vsub.s32 32, %v1713
        %v1715 = vshll.u32 %v1706, %v1713
        %v1716 = vshrl.u32 %v1698, %v1714
        %v1717 = vor.u32 %v1715, %v1716
        %v1718 = vsub.s32 4294967266, %v1713
        %v1719 = vadd.s32 %v1718, 127
        %v1720 = vshll.u32 %v1719, 23
        %v1721 = vor.u32 4788187, %v1720
        %v1722 = vand.u32 2147483647, %v1721
        %v1724 = vcvt.s32.f32 %v1717
        %v1725 = vmul.f32 %v1724, %v1722
        %v1726 = vxor.u32 %v1725, 2147483648
        %v1727 = vsel %vm1644, %v1726, %v1725
        %v1728 = vsub.s32 4, %v1704
        %v1729 = vsel %vm1644, %v1728, %v1704
        %v1730 = vsel %vm1643, %v425, %v1727
        %v1731 = vsel %vm1643, 0, %v1729
        %v1732 = vcosq.f32.pop %v1730
        %v1733 = vsinq.f32.pop %v1730
        %vm1734 = vweird.f32 %v425
        %v1735 = vadd.s32 %v1731, 3
        %v1736 = vand.u32 %v1735, 3
        %vm1737 = vcmp.lt.s32.totalorder %v1736, 2
        %vm1738 = vcmp.eq.s32.totalorder %v1736, 0
        %v1739 = vxor.u32 %v1733, 2147483648
        %v1740 = vsel %vm1738, %v1732, %v1739
        %vm1741 = vcmp.eq.s32.totalorder %v1736, 2
        %v1742 = vxor.u32 %v1732, 2147483648
        %v1743 = vsel %vm1741, %v1742, %v1733
        %v1744 = vsel %vm1737, %v1740, %v1743
        %v1745 = vsel %vm1734, nan, %v1744
        %v1746 = vand.u32 2147483647, %v512
        %vm1747 = vcmp.le.f32.partialorder %v1746, 0.7853982
        %vm1748 = vcmp.lt.s32.totalorder %v512, 0
        %v1749 = vand.u32 %v512, 2139095040
        %v1750 = vshrl.u32 %v1749, 23
        %v1751 = vsub.s32 %v1750, 127
        %v1752 = vand.u32 2147483647, %v512
        %v1753 = vand.u32 %v1752, 8388607
        %v1754 = vor.u32 %v1753, 8388608
        %v1755 = vsub.s32 0, %v1754
        %v1756 = vadd.s32 %v1751, 1
        %vm1757 = vcmp.gt.s32.totalorder %v1756, 0
        %v1758 = vsel %vm1757, %v1756, 0
        %v1759 = vshrl.u32 %v1758, 5
        %v1760 = vand.u32 %v1758, 31
        %v1761 = vsub.s32 32, %v1760
        %v1762 = vshrl.u32 683565275, %v1761
        %v1763 = vshll.u32 683565275, %v1760
        %v1764 = vshrl.u32 2475754826, %v1761
        %v1765 = vor.u32 %v1763, %v1764
        %v1766 = vshll.u32 2475754826, %v1760
        %v1767 = vshrl.u32 2131351028, %v1761
        %v1768 = vor.u32 %v1766, %v1767
        %v1769 = vshll.u32 2131351028, %v1760
        %v1770 = vshrl.u32 2102212464, %v1761
        %v1771 = vor.u32 %v1769, %v1770
        %v1772 = vshll.u32 2102212464, %v1760
        %v1773 = vshrl.u32 920167782, %v1761
        %v1774 = vor.u32 %v1772, %v1773
        %v1775 = vshll.u32 920167782, %v1760
        %v1776 = vshrl.u32 1326507024, %v1761
        %v1777 = vor.u32 %v1775, %v1776
        %vm1778 = vcmp.lt.s32.totalorder %v1759, 1
        %vm1779 = vcmp.lt.s32.totalorder %v1759, 2
        %vm1780 = vcmp.lt.s32.totalorder %v1759, 3
        %vm1781 = vcmp.lt.s32.totalorder %v1759, 4
        %v1782 = vsel %vm1778, %v1762, %v1765
        %v1783 = vsel %vm1781, %v1771, 2102212464
        %v1784 = vsel %vm1780, %v1768, %v1783
        %v1785 = vsel %vm1779, %v1782, %v1784
        %v1786 = vsel %vm1778, %v1765, %v1768
        %v1787 = vsel %vm1781, %v1774, 920167782
        %v1788 = vsel %vm1780, %v1771, %v1787
        %v1789 = vsel %vm1779, %v1786, %v1788
        %v1790 = vsel %vm1778, %v1768, %v1771
        %v1791 = vsel %vm1781, %v1777, 1326507024
        %v1792 = vsel %vm1780, %v1774, %v1791
        %v1793 = vsel %vm1779, %v1790, %v1792
        %v1794 = vshll.u32 %v1754, 8
        %v1795 = vmul.u32.u64.compose %v1794, %v1793
        %v1796 = vextract.low.u32 %v1795
        %v1797 = vextract.high.u32 %v1795
        %v1798 = vmul.u32.u64.compose %v1794, %v1789
        %v1799 = vextract.low.u32 %v1798
        %v1800 = vextract.high.u32 %v1798
        %v1801 = vmul.u32 %v1794, %v1785
        %v1802 = vadd.s32 %v1797, %v1799
        %vm1803 = vc.u32 %v1797, %v1799
        %v1804 = vadd.s32 %v1800, 1
        %v1805 = vsel %vm1803, %v1804, %v1800
        %v1806 = vadd.s32 %v1801, %v1805
        %v1807 = vadd.s32 %v1806, 536870912
        %v1808 = vshrl.u32 %v1807, 30
        %v1809 = vshll.u32 %v1808, 30
        %v1810 = vsub.s32 %v1806, %v1809
        %vm1811 = vcmp.lt.s32.totalorder %v1810, 0
        %v1812 = vsub.s32 0, %v1810
        %v1813 = vsel %vm1811, %v1812, %v1810
        %v1814 = vclz %v1813
        %v1815 = vsub.s32 %v1814, 2
        %vm1816 = vcmp.gt.s32.totalorder 0, %v1815
        %v1817 = vsel %vm1816, 0, %v1815
        %v1818 = vsub.s32 32, %v1817
        %v1819 = vshll.u32 %v1810, %v1817
        %v1820 = vshrl.u32 %v1802, %v1818
        %v1821 = vor.u32 %v1819, %v1820
        %v1822 = vsub.s32 4294967266, %v1817
        %v1823 = vadd.s32 %v1822, 127
        %v1824 = vshll.u32 %v1823, 23
        %v1825 = vor.u32 4788187, %v1824
        %v1826 = vand.u32 2147483647, %v1825
        %v1828 = vcvt.s32.f32 %v1821
        %v1829 = vmul.f32 %v1828, %v1826
        %v1830 = vxor.u32 %v1829, 2147483648
        %v1831 = vsel %vm1748, %v1830, %v1829
        %v1832 = vsub.s32 4, %v1808
        %v1833 = vsel %vm1748, %v1832, %v1808
        %v1834 = vsel %vm1747, %v512, %v1831
        %v1835 = vsel %vm1747, 0, %v1833
        %v1836 = vcosq.f32.pop %v1834
        %v1837 = vsinq.f32.pop %v1834
        %vm1838 = vweird.f32 %v512
        %v1839 = vadd.s32 %v1835, 3
        %v1840 = vand.u32 %v1839, 3
        %vm1841 = vcmp.lt.s32.totalorder %v1840, 2
        %vm1842 = vcmp.eq.s32.totalorder %v1840, 0
        %v1843 = vxor.u32 %v1837, 2147483648
        %v1844 = vsel %vm1842, %v1836, %v1843
        %vm1845 = vcmp.eq.s32.totalorder %v1840, 2
        %v1846 = vxor.u32 %v1836, 2147483648
        %v1847 = vsel %vm1845, %v1846, %v1837
        %v1848 = vsel %vm1841, %v1844, %v1847
        %v1849 = vsel %vm1838, nan, %v1848
        %v1850 = vand.u32 2147483647, %v514
        %vm1851 = vcmp.le.f32.partialorder %v1850, 0.7853982
        %vm1852 = vcmp.lt.s32.totalorder %v514, 0
        %v1853 = vand.u32 %v514, 2139095040
        %v1854 = vshrl.u32 %v1853, 23
        %v1855 = vsub.s32 %v1854, 127
        %v1856 = vand.u32 2147483647, %v514
        %v1857 = vand.u32 %v1856, 8388607
        %v1858 = vor.u32 %v1857, 8388608
        %v1859 = vsub.s32 0, %v1858
        %v1860 = vadd.s32 %v1855, 1
        %vm1861 = vcmp.gt.s32.totalorder %v1860, 0
        %v1862 = vsel %vm1861, %v1860, 0
        %v1863 = vshrl.u32 %v1862, 5
        %v1864 = vand.u32 %v1862, 31
        %v1865 = vsub.s32 32, %v1864
        %v1866 = vshrl.u32 683565275, %v1865
        %v1867 = vshll.u32 683565275, %v1864
        %v1868 = vshrl.u32 2475754826, %v1865
        %v1869 = vor.u32 %v1867, %v1868
        %v1870 = vshll.u32 2475754826, %v1864
        %v1871 = vshrl.u32 2131351028, %v1865
        %v1872 = vor.u32 %v1870, %v1871
        %v1873 = vshll.u32 2131351028, %v1864
        %v1874 = vshrl.u32 2102212464, %v1865
        %v1875 = vor.u32 %v1873, %v1874
        %v1876 = vshll.u32 2102212464, %v1864
        %v1877 = vshrl.u32 920167782, %v1865
        %v1878 = vor.u32 %v1876, %v1877
        %v1879 = vshll.u32 920167782, %v1864
        %v1880 = vshrl.u32 1326507024, %v1865
        %v1881 = vor.u32 %v1879, %v1880
        %vm1882 = vcmp.lt.s32.totalorder %v1863, 1
        %vm1883 = vcmp.lt.s32.totalorder %v1863, 2
        %vm1884 = vcmp.lt.s32.totalorder %v1863, 3
        %vm1885 = vcmp.lt.s32.totalorder %v1863, 4
        %v1886 = vsel %vm1882, %v1866, %v1869
        %v1887 = vsel %vm1885, %v1875, 2102212464
        %v1888 = vsel %vm1884, %v1872, %v1887
        %v1889 = vsel %vm1883, %v1886, %v1888
        %v1890 = vsel %vm1882, %v1869, %v1872
        %v1891 = vsel %vm1885, %v1878, 920167782
        %v1892 = vsel %vm1884, %v1875, %v1891
        %v1893 = vsel %vm1883, %v1890, %v1892
        %v1894 = vsel %vm1882, %v1872, %v1875
        %v1895 = vsel %vm1885, %v1881, 1326507024
        %v1896 = vsel %vm1884, %v1878, %v1895
        %v1897 = vsel %vm1883, %v1894, %v1896
        %v1898 = vshll.u32 %v1858, 8
        %v1899 = vmul.u32.u64.compose %v1898, %v1897
        %v1900 = vextract.low.u32 %v1899
        %v1901 = vextract.high.u32 %v1899
        %v1902 = vmul.u32.u64.compose %v1898, %v1893
        %v1903 = vextract.low.u32 %v1902
        %v1904 = vextract.high.u32 %v1902
        %v1905 = vmul.u32 %v1898, %v1889
        %v1906 = vadd.s32 %v1901, %v1903
        %vm1907 = vc.u32 %v1901, %v1903
        %v1908 = vadd.s32 %v1904, 1
        %v1909 = vsel %vm1907, %v1908, %v1904
        %v1910 = vadd.s32 %v1905, %v1909
        %v1911 = vadd.s32 %v1910, 536870912
        %v1912 = vshrl.u32 %v1911, 30
        %v1913 = vshll.u32 %v1912, 30
        %v1914 = vsub.s32 %v1910, %v1913
        %vm1915 = vcmp.lt.s32.totalorder %v1914, 0
        %v1916 = vsub.s32 0, %v1914
        %v1917 = vsel %vm1915, %v1916, %v1914
        %v1918 = vclz %v1917
        %v1919 = vsub.s32 %v1918, 2
        %vm1920 = vcmp.gt.s32.totalorder 0, %v1919
        %v1921 = vsel %vm1920, 0, %v1919
        %v1922 = vsub.s32 32, %v1921
        %v1923 = vshll.u32 %v1914, %v1921
        %v1924 = vshrl.u32 %v1906, %v1922
        %v1925 = vor.u32 %v1923, %v1924
        %v1926 = vsub.s32 4294967266, %v1921
        %v1927 = vadd.s32 %v1926, 127
        %v1928 = vshll.u32 %v1927, 23
        %v1929 = vor.u32 4788187, %v1928
        %v1930 = vand.u32 2147483647, %v1929
        %v1932 = vcvt.s32.f32 %v1925
        %v1933 = vmul.f32 %v1932, %v1930
        %v1934 = vxor.u32 %v1933, 2147483648
        %v1935 = vsel %vm1852, %v1934, %v1933
        %v1936 = vsub.s32 4, %v1912
        %v1937 = vsel %vm1852, %v1936, %v1912
        %v1938 = vsel %vm1851, %v514, %v1935
        %v1939 = vsel %vm1851, 0, %v1937
        %v1940 = vcosq.f32.pop %v1938
        %v1941 = vsinq.f32.pop %v1938
        %vm1942 = vweird.f32 %v514
        %v1943 = vadd.s32 %v1939, 3
        %v1944 = vand.u32 %v1943, 3
        %vm1945 = vcmp.lt.s32.totalorder %v1944, 2
        %vm1946 = vcmp.eq.s32.totalorder %v1944, 0
        %v1947 = vxor.u32 %v1941, 2147483648
        %v1948 = vsel %vm1946, %v1940, %v1947
        %vm1949 = vcmp.eq.s32.totalorder %v1944, 2
        %v1950 = vxor.u32 %v1940, 2147483648
        %v1951 = vsel %vm1949, %v1950, %v1941
        %v1952 = vsel %vm1945, %v1948, %v1951
        %v1953 = vsel %vm1942, nan, %v1952
        %v1954 = vand.u32 2147483647, %v601
        %vm1955 = vcmp.le.f32.partialorder %v1954, 0.7853982
        %vm1956 = vcmp.lt.s32.totalorder %v601, 0
        %v1957 = vand.u32 %v601, 2139095040
        %v1958 = vshrl.u32 %v1957, 23
        %v1959 = vsub.s32 %v1958, 127
        %v1960 = vand.u32 2147483647, %v601
        %v1961 = vand.u32 %v1960, 8388607
        %v1962 = vor.u32 %v1961, 8388608
        %v1963 = vsub.s32 0, %v1962
        %v1964 = vadd.s32 %v1959, 1
        %vm1965 = vcmp.gt.s32.totalorder %v1964, 0
        %v1966 = vsel %vm1965, %v1964, 0
        %v1967 = vshrl.u32 %v1966, 5
        %v1968 = vand.u32 %v1966, 31
        %v1969 = vsub.s32 32, %v1968
        %v1970 = vshrl.u32 683565275, %v1969
        %v1971 = vshll.u32 683565275, %v1968
        %v1972 = vshrl.u32 2475754826, %v1969
        %v1973 = vor.u32 %v1971, %v1972
        %v1974 = vshll.u32 2475754826, %v1968
        %v1975 = vshrl.u32 2131351028, %v1969
        %v1976 = vor.u32 %v1974, %v1975
        %v1977 = vshll.u32 2131351028, %v1968
        %v1978 = vshrl.u32 2102212464, %v1969
        %v1979 = vor.u32 %v1977, %v1978
        %v1980 = vshll.u32 2102212464, %v1968
        %v1981 = vshrl.u32 920167782, %v1969
        %v1982 = vor.u32 %v1980, %v1981
        %v1983 = vshll.u32 920167782, %v1968
        %v1984 = vshrl.u32 1326507024, %v1969
        %v1985 = vor.u32 %v1983, %v1984
        %vm1986 = vcmp.lt.s32.totalorder %v1967, 1
        %vm1987 = vcmp.lt.s32.totalorder %v1967, 2
        %vm1988 = vcmp.lt.s32.totalorder %v1967, 3
        %vm1989 = vcmp.lt.s32.totalorder %v1967, 4
        %v1990 = vsel %vm1986, %v1970, %v1973
        %v1991 = vsel %vm1989, %v1979, 2102212464
        %v1992 = vsel %vm1988, %v1976, %v1991
        %v1993 = vsel %vm1987, %v1990, %v1992
        %v1994 = vsel %vm1986, %v1973, %v1976
        %v1995 = vsel %vm1989, %v1982, 920167782
        %v1996 = vsel %vm1988, %v1979, %v1995
        %v1997 = vsel %vm1987, %v1994, %v1996
        %v1998 = vsel %vm1986, %v1976, %v1979
        %v1999 = vsel %vm1989, %v1985, 1326507024
        %v2000 = vsel %vm1988, %v1982, %v1999
        %v2001 = vsel %vm1987, %v1998, %v2000
        %v2002 = vshll.u32 %v1962, 8
        %v2003 = vmul.u32.u64.compose %v2002, %v2001
        %v2004 = vextract.low.u32 %v2003
        %v2005 = vextract.high.u32 %v2003
        %v2006 = vmul.u32.u64.compose %v2002, %v1997
        %v2007 = vextract.low.u32 %v2006
        %v2008 = vextract.high.u32 %v2006
        %v2009 = vmul.u32 %v2002, %v1993
        %v2010 = vadd.s32 %v2005, %v2007
        %vm2011 = vc.u32 %v2005, %v2007
        %v2012 = vadd.s32 %v2008, 1
        %v2013 = vsel %vm2011, %v2012, %v2008
        %v2014 = vadd.s32 %v2009, %v2013
        %v2015 = vadd.s32 %v2014, 536870912
        %v2016 = vshrl.u32 %v2015, 30
        %v2017 = vshll.u32 %v2016, 30
        %v2018 = vsub.s32 %v2014, %v2017
        %vm2019 = vcmp.lt.s32.totalorder %v2018, 0
        %v2020 = vsub.s32 0, %v2018
        %v2021 = vsel %vm2019, %v2020, %v2018
        %v2022 = vclz %v2021
        %v2023 = vsub.s32 %v2022, 2
        %vm2024 = vcmp.gt.s32.totalorder 0, %v2023
        %v2025 = vsel %vm2024, 0, %v2023
        %v2026 = vsub.s32 32, %v2025
        %v2027 = vshll.u32 %v2018, %v2025
        %v2028 = vshrl.u32 %v2010, %v2026
        %v2029 = vor.u32 %v2027, %v2028
        %v2030 = vsub.s32 4294967266, %v2025
        %v2031 = vadd.s32 %v2030, 127
        %v2032 = vshll.u32 %v2031, 23
        %v2033 = vor.u32 4788187, %v2032
        %v2034 = vand.u32 2147483647, %v2033
        %v2036 = vcvt.s32.f32 %v2029
        %v2037 = vmul.f32 %v2036, %v2034
        %v2038 = vxor.u32 %v2037, 2147483648
        %v2039 = vsel %vm1956, %v2038, %v2037
        %v2040 = vsub.s32 4, %v2016
        %v2041 = vsel %vm1956, %v2040, %v2016
        %v2042 = vsel %vm1955, %v601, %v2039
        %v2043 = vsel %vm1955, 0, %v2041
        %v2044 = vcosq.f32.pop %v2042
        %v2045 = vsinq.f32.pop %v2042
        %vm2046 = vweird.f32 %v601
        %v2047 = vadd.s32 %v2043, 3
        %v2048 = vand.u32 %v2047, 3
        %vm2049 = vcmp.lt.s32.totalorder %v2048, 2
        %vm2050 = vcmp.eq.s32.totalorder %v2048, 0
        %v2051 = vxor.u32 %v2045, 2147483648
        %v2052 = vsel %vm2050, %v2044, %v2051
        %vm2053 = vcmp.eq.s32.totalorder %v2048, 2
        %v2054 = vxor.u32 %v2044, 2147483648
        %v2055 = vsel %vm2053, %v2054, %v2045
        %v2056 = vsel %vm2049, %v2052, %v2055
        %v2057 = vsel %vm2046, nan, %v2056
        %v2058 = vand.u32 2147483647, %v603
        %vm2059 = vcmp.le.f32.partialorder %v2058, 0.7853982
        %vm2060 = vcmp.lt.s32.totalorder %v603, 0
        %v2061 = vand.u32 %v603, 2139095040
        %v2062 = vshrl.u32 %v2061, 23
        %v2063 = vsub.s32 %v2062, 127
        %v2064 = vand.u32 2147483647, %v603
        %v2065 = vand.u32 %v2064, 8388607
        %v2066 = vor.u32 %v2065, 8388608
        %v2067 = vsub.s32 0, %v2066
        %v2068 = vadd.s32 %v2063, 1
        %vm2069 = vcmp.gt.s32.totalorder %v2068, 0
        %v2070 = vsel %vm2069, %v2068, 0
        %v2071 = vshrl.u32 %v2070, 5
        %v2072 = vand.u32 %v2070, 31
        %v2073 = vsub.s32 32, %v2072
        %v2074 = vshrl.u32 683565275, %v2073
        %v2075 = vshll.u32 683565275, %v2072
        %v2076 = vshrl.u32 2475754826, %v2073
        %v2077 = vor.u32 %v2075, %v2076
        %v2078 = vshll.u32 2475754826, %v2072
        %v2079 = vshrl.u32 2131351028, %v2073
        %v2080 = vor.u32 %v2078, %v2079
        %v2081 = vshll.u32 2131351028, %v2072
        %v2082 = vshrl.u32 2102212464, %v2073
        %v2083 = vor.u32 %v2081, %v2082
        %v2084 = vshll.u32 2102212464, %v2072
        %v2085 = vshrl.u32 920167782, %v2073
        %v2086 = vor.u32 %v2084, %v2085
        %v2087 = vshll.u32 920167782, %v2072
        %v2088 = vshrl.u32 1326507024, %v2073
        %v2089 = vor.u32 %v2087, %v2088
        %vm2090 = vcmp.lt.s32.totalorder %v2071, 1
        %vm2091 = vcmp.lt.s32.totalorder %v2071, 2
        %vm2092 = vcmp.lt.s32.totalorder %v2071, 3
        %vm2093 = vcmp.lt.s32.totalorder %v2071, 4
        %v2094 = vsel %vm2090, %v2074, %v2077
        %v2095 = vsel %vm2093, %v2083, 2102212464
        %v2096 = vsel %vm2092, %v2080, %v2095
        %v2097 = vsel %vm2091, %v2094, %v2096
        %v2098 = vsel %vm2090, %v2077, %v2080
        %v2099 = vsel %vm2093, %v2086, 920167782
        %v2100 = vsel %vm2092, %v2083, %v2099
        %v2101 = vsel %vm2091, %v2098, %v2100
        %v2102 = vsel %vm2090, %v2080, %v2083
        %v2103 = vsel %vm2093, %v2089, 1326507024
        %v2104 = vsel %vm2092, %v2086, %v2103
        %v2105 = vsel %vm2091, %v2102, %v2104
        %v2106 = vshll.u32 %v2066, 8
        %v2107 = vmul.u32.u64.compose %v2106, %v2105
        %v2108 = vextract.low.u32 %v2107
        %v2109 = vextract.high.u32 %v2107
        %v2110 = vmul.u32.u64.compose %v2106, %v2101
        %v2111 = vextract.low.u32 %v2110
        %v2112 = vextract.high.u32 %v2110
        %v2113 = vmul.u32 %v2106, %v2097
        %v2114 = vadd.s32 %v2109, %v2111
        %vm2115 = vc.u32 %v2109, %v2111
        %v2116 = vadd.s32 %v2112, 1
        %v2117 = vsel %vm2115, %v2116, %v2112
        %v2118 = vadd.s32 %v2113, %v2117
        %v2119 = vadd.s32 %v2118, 536870912
        %v2120 = vshrl.u32 %v2119, 30
        %v2121 = vshll.u32 %v2120, 30
        %v2122 = vsub.s32 %v2118, %v2121
        %vm2123 = vcmp.lt.s32.totalorder %v2122, 0
        %v2124 = vsub.s32 0, %v2122
        %v2125 = vsel %vm2123, %v2124, %v2122
        %v2126 = vclz %v2125
        %v2127 = vsub.s32 %v2126, 2
        %vm2128 = vcmp.gt.s32.totalorder 0, %v2127
        %v2129 = vsel %vm2128, 0, %v2127
        %v2130 = vsub.s32 32, %v2129
        %v2131 = vshll.u32 %v2122, %v2129
        %v2132 = vshrl.u32 %v2114, %v2130
        %v2133 = vor.u32 %v2131, %v2132
        %v2134 = vsub.s32 4294967266, %v2129
        %v2135 = vadd.s32 %v2134, 127
        %v2136 = vshll.u32 %v2135, 23
        %v2137 = vor.u32 4788187, %v2136
        %v2138 = vand.u32 2147483647, %v2137
        %v2140 = vcvt.s32.f32 %v2133
        %v2141 = vmul.f32 %v2140, %v2138
        %v2142 = vxor.u32 %v2141, 2147483648
        %v2143 = vsel %vm2060, %v2142, %v2141
        %v2144 = vsub.s32 4, %v2120
        %v2145 = vsel %vm2060, %v2144, %v2120
        %v2146 = vsel %vm2059, %v603, %v2143
        %v2147 = vsel %vm2059, 0, %v2145
        %v2148 = vcosq.f32.pop %v2146
        %v2149 = vsinq.f32.pop %v2146
        %vm2150 = vweird.f32 %v603
        %v2151 = vadd.s32 %v2147, 3
        %v2152 = vand.u32 %v2151, 3
        %vm2153 = vcmp.lt.s32.totalorder %v2152, 2
        %vm2154 = vcmp.eq.s32.totalorder %v2152, 0
        %v2155 = vxor.u32 %v2149, 2147483648
        %v2156 = vsel %vm2154, %v2148, %v2155
        %vm2157 = vcmp.eq.s32.totalorder %v2152, 2
        %v2158 = vxor.u32 %v2148, 2147483648
        %v2159 = vsel %vm2157, %v2158, %v2149
        %v2160 = vsel %vm2153, %v2156, %v2159
        %v2161 = vsel %vm2150, nan, %v2160
        %v2162 = vand.u32 2147483647, %v690
        %vm2163 = vcmp.le.f32.partialorder %v2162, 0.7853982
        %vm2164 = vcmp.lt.s32.totalorder %v690, 0
        %v2165 = vand.u32 %v690, 2139095040
        %v2166 = vshrl.u32 %v2165, 23
        %v2167 = vsub.s32 %v2166, 127
        %v2168 = vand.u32 2147483647, %v690
        %v2169 = vand.u32 %v2168, 8388607
        %v2170 = vor.u32 %v2169, 8388608
        %v2171 = vsub.s32 0, %v2170
        %v2172 = vadd.s32 %v2167, 1
        %vm2173 = vcmp.gt.s32.totalorder %v2172, 0
        %v2174 = vsel %vm2173, %v2172, 0
        %v2175 = vshrl.u32 %v2174, 5
        %v2176 = vand.u32 %v2174, 31
        %v2177 = vsub.s32 32, %v2176
        %v2178 = vshrl.u32 683565275, %v2177
        %v2179 = vshll.u32 683565275, %v2176
        %v2180 = vshrl.u32 2475754826, %v2177
        %v2181 = vor.u32 %v2179, %v2180
        %v2182 = vshll.u32 2475754826, %v2176
        %v2183 = vshrl.u32 2131351028, %v2177
        %v2184 = vor.u32 %v2182, %v2183
        %v2185 = vshll.u32 2131351028, %v2176
        %v2186 = vshrl.u32 2102212464, %v2177
        %v2187 = vor.u32 %v2185, %v2186
        %v2188 = vshll.u32 2102212464, %v2176
        %v2189 = vshrl.u32 920167782, %v2177
        %v2190 = vor.u32 %v2188, %v2189
        %v2191 = vshll.u32 920167782, %v2176
        %v2192 = vshrl.u32 1326507024, %v2177
        %v2193 = vor.u32 %v2191, %v2192
        %vm2194 = vcmp.lt.s32.totalorder %v2175, 1
        %vm2195 = vcmp.lt.s32.totalorder %v2175, 2
        %vm2196 = vcmp.lt.s32.totalorder %v2175, 3
        %vm2197 = vcmp.lt.s32.totalorder %v2175, 4
        %v2198 = vsel %vm2194, %v2178, %v2181
        %v2199 = vsel %vm2197, %v2187, 2102212464
        %v2200 = vsel %vm2196, %v2184, %v2199
        %v2201 = vsel %vm2195, %v2198, %v2200
        %v2202 = vsel %vm2194, %v2181, %v2184
        %v2203 = vsel %vm2197, %v2190, 920167782
        %v2204 = vsel %vm2196, %v2187, %v2203
        %v2205 = vsel %vm2195, %v2202, %v2204
        %v2206 = vsel %vm2194, %v2184, %v2187
        %v2207 = vsel %vm2197, %v2193, 1326507024
        %v2208 = vsel %vm2196, %v2190, %v2207
        %v2209 = vsel %vm2195, %v2206, %v2208
        %v2210 = vshll.u32 %v2170, 8
        %v2211 = vmul.u32.u64.compose %v2210, %v2209
        %v2212 = vextract.low.u32 %v2211
        %v2213 = vextract.high.u32 %v2211
        %v2214 = vmul.u32.u64.compose %v2210, %v2205
        %v2215 = vextract.low.u32 %v2214
        %v2216 = vextract.high.u32 %v2214
        %v2217 = vmul.u32 %v2210, %v2201
        %v2218 = vadd.s32 %v2213, %v2215
        %vm2219 = vc.u32 %v2213, %v2215
        %v2220 = vadd.s32 %v2216, 1
        %v2221 = vsel %vm2219, %v2220, %v2216
        %v2222 = vadd.s32 %v2217, %v2221
        %v2223 = vadd.s32 %v2222, 536870912
        %v2224 = vshrl.u32 %v2223, 30
        %v2225 = vshll.u32 %v2224, 30
        %v2226 = vsub.s32 %v2222, %v2225
        %vm2227 = vcmp.lt.s32.totalorder %v2226, 0
        %v2228 = vsub.s32 0, %v2226
        %v2229 = vsel %vm2227, %v2228, %v2226
        %v2230 = vclz %v2229
        %v2231 = vsub.s32 %v2230, 2
        %vm2232 = vcmp.gt.s32.totalorder 0, %v2231
        %v2233 = vsel %vm2232, 0, %v2231
        %v2234 = vsub.s32 32, %v2233
        %v2235 = vshll.u32 %v2226, %v2233
        %v2236 = vshrl.u32 %v2218, %v2234
        %v2237 = vor.u32 %v2235, %v2236
        %v2238 = vsub.s32 4294967266, %v2233
        %v2239 = vadd.s32 %v2238, 127
        %v2240 = vshll.u32 %v2239, 23
        %v2241 = vor.u32 4788187, %v2240
        %v2242 = vand.u32 2147483647, %v2241
        %v2244 = vcvt.s32.f32 %v2237
        %v2245 = vmul.f32 %v2244, %v2242
        %v2246 = vxor.u32 %v2245, 2147483648
        %v2247 = vsel %vm2164, %v2246, %v2245
        %v2248 = vsub.s32 4, %v2224
        %v2249 = vsel %vm2164, %v2248, %v2224
        %v2250 = vsel %vm2163, %v690, %v2247
        %v2251 = vsel %vm2163, 0, %v2249
        %v2252 = vcosq.f32.pop %v2250
        %v2253 = vsinq.f32.pop %v2250
        %vm2254 = vweird.f32 %v690
        %v2255 = vadd.s32 %v2251, 3
        %v2256 = vand.u32 %v2255, 3
        %vm2257 = vcmp.lt.s32.totalorder %v2256, 2
        %vm2258 = vcmp.eq.s32.totalorder %v2256, 0
        %v2259 = vxor.u32 %v2253, 2147483648
        %v2260 = vsel %vm2258, %v2252, %v2259
        %vm2261 = vcmp.eq.s32.totalorder %v2256, 2
        %v2262 = vxor.u32 %v2252, 2147483648
        %v2263 = vsel %vm2261, %v2262, %v2253
        %v2264 = vsel %vm2257, %v2260, %v2263
        %v2265 = vsel %vm2254, nan, %v2264
        %v2266 = vand.u32 2147483647, %v692
        %vm2267 = vcmp.le.f32.partialorder %v2266, 0.7853982
        %vm2268 = vcmp.lt.s32.totalorder %v692, 0
        %v2269 = vand.u32 %v692, 2139095040
        %v2270 = vshrl.u32 %v2269, 23
        %v2271 = vsub.s32 %v2270, 127
        %v2272 = vand.u32 2147483647, %v692
        %v2273 = vand.u32 %v2272, 8388607
        %v2274 = vor.u32 %v2273, 8388608
        %v2275 = vsub.s32 0, %v2274
        %v2276 = vadd.s32 %v2271, 1
        %vm2277 = vcmp.gt.s32.totalorder %v2276, 0
        %v2278 = vsel %vm2277, %v2276, 0
        %v2279 = vshrl.u32 %v2278, 5
        %v2280 = vand.u32 %v2278, 31
        %v2281 = vsub.s32 32, %v2280
        %v2282 = vshrl.u32 683565275, %v2281
        %v2283 = vshll.u32 683565275, %v2280
        %v2284 = vshrl.u32 2475754826, %v2281
        %v2285 = vor.u32 %v2283, %v2284
        %v2286 = vshll.u32 2475754826, %v2280
        %v2287 = vshrl.u32 2131351028, %v2281
        %v2288 = vor.u32 %v2286, %v2287
        %v2289 = vshll.u32 2131351028, %v2280
        %v2290 = vshrl.u32 2102212464, %v2281
        %v2291 = vor.u32 %v2289, %v2290
        %v2292 = vshll.u32 2102212464, %v2280
        %v2293 = vshrl.u32 920167782, %v2281
        %v2294 = vor.u32 %v2292, %v2293
        %v2295 = vshll.u32 920167782, %v2280
        %v2296 = vshrl.u32 1326507024, %v2281
        %v2297 = vor.u32 %v2295, %v2296
        %vm2298 = vcmp.lt.s32.totalorder %v2279, 1
        %vm2299 = vcmp.lt.s32.totalorder %v2279, 2
        %vm2300 = vcmp.lt.s32.totalorder %v2279, 3
        %vm2301 = vcmp.lt.s32.totalorder %v2279, 4
        %v2302 = vsel %vm2298, %v2282, %v2285
        %v2303 = vsel %vm2301, %v2291, 2102212464
        %v2304 = vsel %vm2300, %v2288, %v2303
        %v2305 = vsel %vm2299, %v2302, %v2304
        %v2306 = vsel %vm2298, %v2285, %v2288
        %v2307 = vsel %vm2301, %v2294, 920167782
        %v2308 = vsel %vm2300, %v2291, %v2307
        %v2309 = vsel %vm2299, %v2306, %v2308
        %v2310 = vsel %vm2298, %v2288, %v2291
        %v2311 = vsel %vm2301, %v2297, 1326507024
        %v2312 = vsel %vm2300, %v2294, %v2311
        %v2313 = vsel %vm2299, %v2310, %v2312
        %v2314 = vshll.u32 %v2274, 8
        %v2315 = vmul.u32.u64.compose %v2314, %v2313
        %v2316 = vextract.low.u32 %v2315
        %v2317 = vextract.high.u32 %v2315
        %v2318 = vmul.u32.u64.compose %v2314, %v2309
        %v2319 = vextract.low.u32 %v2318
        %v2320 = vextract.high.u32 %v2318
        %v2321 = vmul.u32 %v2314, %v2305
        %v2322 = vadd.s32 %v2317, %v2319
        %vm2323 = vc.u32 %v2317, %v2319
        %v2324 = vadd.s32 %v2320, 1
        %v2325 = vsel %vm2323, %v2324, %v2320
        %v2326 = vadd.s32 %v2321, %v2325
        %v2327 = vadd.s32 %v2326, 536870912
        %v2328 = vshrl.u32 %v2327, 30
        %v2329 = vshll.u32 %v2328, 30
        %v2330 = vsub.s32 %v2326, %v2329
        %vm2331 = vcmp.lt.s32.totalorder %v2330, 0
        %v2332 = vsub.s32 0, %v2330
        %v2333 = vsel %vm2331, %v2332, %v2330
        %v2334 = vclz %v2333
        %v2335 = vsub.s32 %v2334, 2
        %vm2336 = vcmp.gt.s32.totalorder 0, %v2335
        %v2337 = vsel %vm2336, 0, %v2335
        %v2338 = vsub.s32 32, %v2337
        %v2339 = vshll.u32 %v2330, %v2337
        %v2340 = vshrl.u32 %v2322, %v2338
        %v2341 = vor.u32 %v2339, %v2340
        %v2342 = vsub.s32 4294967266, %v2337
        %v2343 = vadd.s32 %v2342, 127
        %v2344 = vshll.u32 %v2343, 23
        %v2345 = vor.u32 4788187, %v2344
        %v2346 = vand.u32 2147483647, %v2345
        %v2348 = vcvt.s32.f32 %v2341
        %v2349 = vmul.f32 %v2348, %v2346
        %v2350 = vxor.u32 %v2349, 2147483648
        %v2351 = vsel %vm2268, %v2350, %v2349
        %v2352 = vsub.s32 4, %v2328
        %v2353 = vsel %vm2268, %v2352, %v2328
        %v2354 = vsel %vm2267, %v692, %v2351
        %v2355 = vsel %vm2267, 0, %v2353
        %v2356 = vcosq.f32.pop %v2354
        %v2357 = vsinq.f32.pop %v2354
        %vm2358 = vweird.f32 %v692
        %v2359 = vadd.s32 %v2355, 3
        %v2360 = vand.u32 %v2359, 3
        %vm2361 = vcmp.lt.s32.totalorder %v2360, 2
        %vm2362 = vcmp.eq.s32.totalorder %v2360, 0
        %v2363 = vxor.u32 %v2357, 2147483648
        %v2364 = vsel %vm2362, %v2356, %v2363
        %vm2365 = vcmp.eq.s32.totalorder %v2360, 2
        %v2366 = vxor.u32 %v2356, 2147483648
        %v2367 = vsel %vm2365, %v2366, %v2357
        %v2368 = vsel %vm2361, %v2364, %v2367
        %v2369 = vsel %vm2358, nan, %v2368
        %v2370 = vand.u32 2147483647, %v429
        %vm2371 = vcmp.le.f32.partialorder %v2370, 0.7853982
        %vm2372 = vcmp.lt.s32.totalorder %v429, 0
        %v2373 = vand.u32 %v429, 2139095040
        %v2374 = vshrl.u32 %v2373, 23
        %v2375 = vsub.s32 %v2374, 127
        %v2376 = vand.u32 2147483647, %v429
        %v2377 = vand.u32 %v2376, 8388607
        %v2378 = vor.u32 %v2377, 8388608
        %v2379 = vsub.s32 0, %v2378
        %v2380 = vadd.s32 %v2375, 1
        %vm2381 = vcmp.gt.s32.totalorder %v2380, 0
        %v2382 = vsel %vm2381, %v2380, 0
        %v2383 = vshrl.u32 %v2382, 5
        %v2384 = vand.u32 %v2382, 31
        %v2385 = vsub.s32 32, %v2384
        %v2386 = vshrl.u32 683565275, %v2385
        %v2387 = vshll.u32 683565275, %v2384
        %v2388 = vshrl.u32 2475754826, %v2385
        %v2389 = vor.u32 %v2387, %v2388
        %v2390 = vshll.u32 2475754826, %v2384
        %v2391 = vshrl.u32 2131351028, %v2385
        %v2392 = vor.u32 %v2390, %v2391
        %v2393 = vshll.u32 2131351028, %v2384
        %v2394 = vshrl.u32 2102212464, %v2385
        %v2395 = vor.u32 %v2393, %v2394
        %v2396 = vshll.u32 2102212464, %v2384
        %v2397 = vshrl.u32 920167782, %v2385
        %v2398 = vor.u32 %v2396, %v2397
        %v2399 = vshll.u32 920167782, %v2384
        %v2400 = vshrl.u32 1326507024, %v2385
        %v2401 = vor.u32 %v2399, %v2400
        %vm2402 = vcmp.lt.s32.totalorder %v2383, 1
        %vm2403 = vcmp.lt.s32.totalorder %v2383, 2
        %vm2404 = vcmp.lt.s32.totalorder %v2383, 3
        %vm2405 = vcmp.lt.s32.totalorder %v2383, 4
        %v2406 = vsel %vm2402, %v2386, %v2389
        %v2407 = vsel %vm2405, %v2395, 2102212464
        %v2408 = vsel %vm2404, %v2392, %v2407
        %v2409 = vsel %vm2403, %v2406, %v2408
        %v2410 = vsel %vm2402, %v2389, %v2392
        %v2411 = vsel %vm2405, %v2398, 920167782
        %v2412 = vsel %vm2404, %v2395, %v2411
        %v2413 = vsel %vm2403, %v2410, %v2412
        %v2414 = vsel %vm2402, %v2392, %v2395
        %v2415 = vsel %vm2405, %v2401, 1326507024
        %v2416 = vsel %vm2404, %v2398, %v2415
        %v2417 = vsel %vm2403, %v2414, %v2416
        %v2418 = vshll.u32 %v2378, 8
        %v2419 = vmul.u32.u64.compose %v2418, %v2417
        %v2420 = vextract.low.u32 %v2419
        %v2421 = vextract.high.u32 %v2419
        %v2422 = vmul.u32.u64.compose %v2418, %v2413
        %v2423 = vextract.low.u32 %v2422
        %v2424 = vextract.high.u32 %v2422
        %v2425 = vmul.u32 %v2418, %v2409
        %v2426 = vadd.s32 %v2421, %v2423
        %vm2427 = vc.u32 %v2421, %v2423
        %v2428 = vadd.s32 %v2424, 1
        %v2429 = vsel %vm2427, %v2428, %v2424
        %v2430 = vadd.s32 %v2425, %v2429
        %v2431 = vadd.s32 %v2430, 536870912
        %v2432 = vshrl.u32 %v2431, 30
        %v2433 = vshll.u32 %v2432, 30
        %v2434 = vsub.s32 %v2430, %v2433
        %vm2435 = vcmp.lt.s32.totalorder %v2434, 0
        %v2436 = vsub.s32 0, %v2434
        %v2437 = vsel %vm2435, %v2436, %v2434
        %v2438 = vclz %v2437
        %v2439 = vsub.s32 %v2438, 2
        %vm2440 = vcmp.gt.s32.totalorder 0, %v2439
        %v2441 = vsel %vm2440, 0, %v2439
        %v2442 = vsub.s32 32, %v2441
        %v2443 = vshll.u32 %v2434, %v2441
        %v2444 = vshrl.u32 %v2426, %v2442
        %v2445 = vor.u32 %v2443, %v2444
        %v2446 = vsub.s32 4294967266, %v2441
        %v2447 = vadd.s32 %v2446, 127
        %v2448 = vshll.u32 %v2447, 23
        %v2449 = vor.u32 4788187, %v2448
        %v2450 = vand.u32 2147483647, %v2449
        %v2452 = vcvt.s32.f32 %v2445
        %v2453 = vmul.f32 %v2452, %v2450
        %v2454 = vxor.u32 %v2453, 2147483648
        %v2455 = vsel %vm2372, %v2454, %v2453
        %v2456 = vsub.s32 4, %v2432
        %v2457 = vsel %vm2372, %v2456, %v2432
        %v2458 = vsel %vm2371, %v429, %v2455
        %v2459 = vsel %vm2371, 0, %v2457
        %v2460 = vcosq.f32.pop %v2458
        %v2461 = vsinq.f32.pop %v2458
        %vm2462 = vweird.f32 %v429
        %v2463 = vadd.s32 %v2459, 3
        %v2464 = vand.u32 %v2463, 3
        %vm2465 = vcmp.lt.s32.totalorder %v2464, 2
        %vm2466 = vcmp.eq.s32.totalorder %v2464, 0
        %v2467 = vxor.u32 %v2461, 2147483648
        %v2468 = vsel %vm2466, %v2460, %v2467
        %vm2469 = vcmp.eq.s32.totalorder %v2464, 2
        %v2470 = vxor.u32 %v2460, 2147483648
        %v2471 = vsel %vm2469, %v2470, %v2461
        %v2472 = vsel %vm2465, %v2468, %v2471
        %v2473 = vsel %vm2462, nan, %v2472
        %v2474 = vand.u32 2147483647, %v431
        %vm2475 = vcmp.le.f32.partialorder %v2474, 0.7853982
        %vm2476 = vcmp.lt.s32.totalorder %v431, 0
        %v2477 = vand.u32 %v431, 2139095040
        %v2478 = vshrl.u32 %v2477, 23
        %v2479 = vsub.s32 %v2478, 127
        %v2480 = vand.u32 2147483647, %v431
        %v2481 = vand.u32 %v2480, 8388607
        %v2482 = vor.u32 %v2481, 8388608
        %v2483 = vsub.s32 0, %v2482
        %v2484 = vadd.s32 %v2479, 1
        %vm2485 = vcmp.gt.s32.totalorder %v2484, 0
        %v2486 = vsel %vm2485, %v2484, 0
        %v2487 = vshrl.u32 %v2486, 5
        %v2488 = vand.u32 %v2486, 31
        %v2489 = vsub.s32 32, %v2488
        %v2490 = vshrl.u32 683565275, %v2489
        %v2491 = vshll.u32 683565275, %v2488
        %v2492 = vshrl.u32 2475754826, %v2489
        %v2493 = vor.u32 %v2491, %v2492
        %v2494 = vshll.u32 2475754826, %v2488
        %v2495 = vshrl.u32 2131351028, %v2489
        %v2496 = vor.u32 %v2494, %v2495
        %v2497 = vshll.u32 2131351028, %v2488
        %v2498 = vshrl.u32 2102212464, %v2489
        %v2499 = vor.u32 %v2497, %v2498
        %v2500 = vshll.u32 2102212464, %v2488
        %v2501 = vshrl.u32 920167782, %v2489
        %v2502 = vor.u32 %v2500, %v2501
        %v2503 = vshll.u32 920167782, %v2488
        %v2504 = vshrl.u32 1326507024, %v2489
        %v2505 = vor.u32 %v2503, %v2504
        %vm2506 = vcmp.lt.s32.totalorder %v2487, 1
        %vm2507 = vcmp.lt.s32.totalorder %v2487, 2
        %vm2508 = vcmp.lt.s32.totalorder %v2487, 3
        %vm2509 = vcmp.lt.s32.totalorder %v2487, 4
        %v2510 = vsel %vm2506, %v2490, %v2493
        %v2511 = vsel %vm2509, %v2499, 2102212464
        %v2512 = vsel %vm2508, %v2496, %v2511
        %v2513 = vsel %vm2507, %v2510, %v2512
        %v2514 = vsel %vm2506, %v2493, %v2496
        %v2515 = vsel %vm2509, %v2502, 920167782
        %v2516 = vsel %vm2508, %v2499, %v2515
        %v2517 = vsel %vm2507, %v2514, %v2516
        %v2518 = vsel %vm2506, %v2496, %v2499
        %v2519 = vsel %vm2509, %v2505, 1326507024
        %v2520 = vsel %vm2508, %v2502, %v2519
        %v2521 = vsel %vm2507, %v2518, %v2520
        %v2522 = vshll.u32 %v2482, 8
        %v2523 = vmul.u32.u64.compose %v2522, %v2521
        %v2524 = vextract.low.u32 %v2523
        %v2525 = vextract.high.u32 %v2523
        %v2526 = vmul.u32.u64.compose %v2522, %v2517
        %v2527 = vextract.low.u32 %v2526
        %v2528 = vextract.high.u32 %v2526
        %v2529 = vmul.u32 %v2522, %v2513
        %v2530 = vadd.s32 %v2525, %v2527
        %vm2531 = vc.u32 %v2525, %v2527
        %v2532 = vadd.s32 %v2528, 1
        %v2533 = vsel %vm2531, %v2532, %v2528
        %v2534 = vadd.s32 %v2529, %v2533
        %v2535 = vadd.s32 %v2534, 536870912
        %v2536 = vshrl.u32 %v2535, 30
        %v2537 = vshll.u32 %v2536, 30
        %v2538 = vsub.s32 %v2534, %v2537
        %vm2539 = vcmp.lt.s32.totalorder %v2538, 0
        %v2540 = vsub.s32 0, %v2538
        %v2541 = vsel %vm2539, %v2540, %v2538
        %v2542 = vclz %v2541
        %v2543 = vsub.s32 %v2542, 2
        %vm2544 = vcmp.gt.s32.totalorder 0, %v2543
        %v2545 = vsel %vm2544, 0, %v2543
        %v2546 = vsub.s32 32, %v2545
        %v2547 = vshll.u32 %v2538, %v2545
        %v2548 = vshrl.u32 %v2530, %v2546
        %v2549 = vor.u32 %v2547, %v2548
        %v2550 = vsub.s32 4294967266, %v2545
        %v2551 = vadd.s32 %v2550, 127
        %v2552 = vshll.u32 %v2551, 23
        %v2553 = vor.u32 4788187, %v2552
        %v2554 = vand.u32 2147483647, %v2553
        %v2556 = vcvt.s32.f32 %v2549
        %v2557 = vmul.f32 %v2556, %v2554
        %v2558 = vxor.u32 %v2557, 2147483648
        %v2559 = vsel %vm2476, %v2558, %v2557
        %v2560 = vsub.s32 4, %v2536
        %v2561 = vsel %vm2476, %v2560, %v2536
        %v2562 = vsel %vm2475, %v431, %v2559
        %v2563 = vsel %vm2475, 0, %v2561
        %v2564 = vcosq.f32.pop %v2562
        %v2565 = vsinq.f32.pop %v2562
        %vm2566 = vweird.f32 %v431
        %v2567 = vadd.s32 %v2563, 3
        %v2568 = vand.u32 %v2567, 3
        %vm2569 = vcmp.lt.s32.totalorder %v2568, 2
        %vm2570 = vcmp.eq.s32.totalorder %v2568, 0
        %v2571 = vxor.u32 %v2565, 2147483648
        %v2572 = vsel %vm2570, %v2564, %v2571
        %vm2573 = vcmp.eq.s32.totalorder %v2568, 2
        %v2574 = vxor.u32 %v2564, 2147483648
        %v2575 = vsel %vm2573, %v2574, %v2565
        %v2576 = vsel %vm2569, %v2572, %v2575
        %v2577 = vsel %vm2566, nan, %v2576
        %v2578 = vand.u32 2147483647, %v518
        %vm2579 = vcmp.le.f32.partialorder %v2578, 0.7853982
        %vm2580 = vcmp.lt.s32.totalorder %v518, 0
        %v2581 = vand.u32 %v518, 2139095040
        %v2582 = vshrl.u32 %v2581, 23
        %v2583 = vsub.s32 %v2582, 127
        %v2584 = vand.u32 2147483647, %v518
        %v2585 = vand.u32 %v2584, 8388607
        %v2586 = vor.u32 %v2585, 8388608
        %v2587 = vsub.s32 0, %v2586
        %v2588 = vadd.s32 %v2583, 1
        %vm2589 = vcmp.gt.s32.totalorder %v2588, 0
        %v2590 = vsel %vm2589, %v2588, 0
        %v2591 = vshrl.u32 %v2590, 5
        %v2592 = vand.u32 %v2590, 31
        %v2593 = vsub.s32 32, %v2592
        %v2594 = vshrl.u32 683565275, %v2593
        %v2595 = vshll.u32 683565275, %v2592
        %v2596 = vshrl.u32 2475754826, %v2593
        %v2597 = vor.u32 %v2595, %v2596
        %v2598 = vshll.u32 2475754826, %v2592
        %v2599 = vshrl.u32 2131351028, %v2593
        %v2600 = vor.u32 %v2598, %v2599
        %v2601 = vshll.u32 2131351028, %v2592
        %v2602 = vshrl.u32 2102212464, %v2593
        %v2603 = vor.u32 %v2601, %v2602
        %v2604 = vshll.u32 2102212464, %v2592
        %v2605 = vshrl.u32 920167782, %v2593
        %v2606 = vor.u32 %v2604, %v2605
        %v2607 = vshll.u32 920167782, %v2592
        %v2608 = vshrl.u32 1326507024, %v2593
        %v2609 = vor.u32 %v2607, %v2608
        %vm2610 = vcmp.lt.s32.totalorder %v2591, 1
        %vm2611 = vcmp.lt.s32.totalorder %v2591, 2
        %vm2612 = vcmp.lt.s32.totalorder %v2591, 3
        %vm2613 = vcmp.lt.s32.totalorder %v2591, 4
        %v2614 = vsel %vm2610, %v2594, %v2597
        %v2615 = vsel %vm2613, %v2603, 2102212464
        %v2616 = vsel %vm2612, %v2600, %v2615
        %v2617 = vsel %vm2611, %v2614, %v2616
        %v2618 = vsel %vm2610, %v2597, %v2600
        %v2619 = vsel %vm2613, %v2606, 920167782
        %v2620 = vsel %vm2612, %v2603, %v2619
        %v2621 = vsel %vm2611, %v2618, %v2620
        %v2622 = vsel %vm2610, %v2600, %v2603
        %v2623 = vsel %vm2613, %v2609, 1326507024
        %v2624 = vsel %vm2612, %v2606, %v2623
        %v2625 = vsel %vm2611, %v2622, %v2624
        %v2626 = vshll.u32 %v2586, 8
        %v2627 = vmul.u32.u64.compose %v2626, %v2625
        %v2628 = vextract.low.u32 %v2627
        %v2629 = vextract.high.u32 %v2627
        %v2630 = vmul.u32.u64.compose %v2626, %v2621
        %v2631 = vextract.low.u32 %v2630
        %v2632 = vextract.high.u32 %v2630
        %v2633 = vmul.u32 %v2626, %v2617
        %v2634 = vadd.s32 %v2629, %v2631
        %vm2635 = vc.u32 %v2629, %v2631
        %v2636 = vadd.s32 %v2632, 1
        %v2637 = vsel %vm2635, %v2636, %v2632
        %v2638 = vadd.s32 %v2633, %v2637
        %v2639 = vadd.s32 %v2638, 536870912
        %v2640 = vshrl.u32 %v2639, 30
        %v2641 = vshll.u32 %v2640, 30
        %v2642 = vsub.s32 %v2638, %v2641
        %vm2643 = vcmp.lt.s32.totalorder %v2642, 0
        %v2644 = vsub.s32 0, %v2642
        %v2645 = vsel %vm2643, %v2644, %v2642
        %v2646 = vclz %v2645
        %v2647 = vsub.s32 %v2646, 2
        %vm2648 = vcmp.gt.s32.totalorder 0, %v2647
        %v2649 = vsel %vm2648, 0, %v2647
        %v2650 = vsub.s32 32, %v2649
        %v2651 = vshll.u32 %v2642, %v2649
        %v2652 = vshrl.u32 %v2634, %v2650
        %v2653 = vor.u32 %v2651, %v2652
        %v2654 = vsub.s32 4294967266, %v2649
        %v2655 = vadd.s32 %v2654, 127
        %v2656 = vshll.u32 %v2655, 23
        %v2657 = vor.u32 4788187, %v2656
        %v2658 = vand.u32 2147483647, %v2657
        %v2660 = vcvt.s32.f32 %v2653
        %v2661 = vmul.f32 %v2660, %v2658
        %v2662 = vxor.u32 %v2661, 2147483648
        %v2663 = vsel %vm2580, %v2662, %v2661
        %v2664 = vsub.s32 4, %v2640
        %v2665 = vsel %vm2580, %v2664, %v2640
        %v2666 = vsel %vm2579, %v518, %v2663
        %v2667 = vsel %vm2579, 0, %v2665
        %v2668 = vcosq.f32.pop %v2666
        %v2669 = vsinq.f32.pop %v2666
        %vm2670 = vweird.f32 %v518
        %v2671 = vadd.s32 %v2667, 3
        %v2672 = vand.u32 %v2671, 3
        %vm2673 = vcmp.lt.s32.totalorder %v2672, 2
        %vm2674 = vcmp.eq.s32.totalorder %v2672, 0
        %v2675 = vxor.u32 %v2669, 2147483648
        %v2676 = vsel %vm2674, %v2668, %v2675
        %vm2677 = vcmp.eq.s32.totalorder %v2672, 2
        %v2678 = vxor.u32 %v2668, 2147483648
        %v2679 = vsel %vm2677, %v2678, %v2669
        %v2680 = vsel %vm2673, %v2676, %v2679
        %v2681 = vsel %vm2670, nan, %v2680
        %v2682 = vand.u32 2147483647, %v520
        %vm2683 = vcmp.le.f32.partialorder %v2682, 0.7853982
        %vm2684 = vcmp.lt.s32.totalorder %v520, 0
        %v2685 = vand.u32 %v520, 2139095040
        %v2686 = vshrl.u32 %v2685, 23
        %v2687 = vsub.s32 %v2686, 127
        %v2688 = vand.u32 2147483647, %v520
        %v2689 = vand.u32 %v2688, 8388607
        %v2690 = vor.u32 %v2689, 8388608
        %v2691 = vsub.s32 0, %v2690
        %v2692 = vadd.s32 %v2687, 1
        %vm2693 = vcmp.gt.s32.totalorder %v2692, 0
        %v2694 = vsel %vm2693, %v2692, 0
        %v2695 = vshrl.u32 %v2694, 5
        %v2696 = vand.u32 %v2694, 31
        %v2697 = vsub.s32 32, %v2696
        %v2698 = vshrl.u32 683565275, %v2697
        %v2699 = vshll.u32 683565275, %v2696
        %v2700 = vshrl.u32 2475754826, %v2697
        %v2701 = vor.u32 %v2699, %v2700
        %v2702 = vshll.u32 2475754826, %v2696
        %v2703 = vshrl.u32 2131351028, %v2697
        %v2704 = vor.u32 %v2702, %v2703
        %v2705 = vshll.u32 2131351028, %v2696
        %v2706 = vshrl.u32 2102212464, %v2697
        %v2707 = vor.u32 %v2705, %v2706
        %v2708 = vshll.u32 2102212464, %v2696
        %v2709 = vshrl.u32 920167782, %v2697
        %v2710 = vor.u32 %v2708, %v2709
        %v2711 = vshll.u32 920167782, %v2696
        %v2712 = vshrl.u32 1326507024, %v2697
        %v2713 = vor.u32 %v2711, %v2712
        %vm2714 = vcmp.lt.s32.totalorder %v2695, 1
        %vm2715 = vcmp.lt.s32.totalorder %v2695, 2
        %vm2716 = vcmp.lt.s32.totalorder %v2695, 3
        %vm2717 = vcmp.lt.s32.totalorder %v2695, 4
        %v2718 = vsel %vm2714, %v2698, %v2701
        %v2719 = vsel %vm2717, %v2707, 2102212464
        %v2720 = vsel %vm2716, %v2704, %v2719
        %v2721 = vsel %vm2715, %v2718, %v2720
        %v2722 = vsel %vm2714, %v2701, %v2704
        %v2723 = vsel %vm2717, %v2710, 920167782
        %v2724 = vsel %vm2716, %v2707, %v2723
        %v2725 = vsel %vm2715, %v2722, %v2724
        %v2726 = vsel %vm2714, %v2704, %v2707
        %v2727 = vsel %vm2717, %v2713, 1326507024
        %v2728 = vsel %vm2716, %v2710, %v2727
        %v2729 = vsel %vm2715, %v2726, %v2728
        %v2730 = vshll.u32 %v2690, 8
        %v2731 = vmul.u32.u64.compose %v2730, %v2729
        %v2732 = vextract.low.u32 %v2731
        %v2733 = vextract.high.u32 %v2731
        %v2734 = vmul.u32.u64.compose %v2730, %v2725
        %v2735 = vextract.low.u32 %v2734
        %v2736 = vextract.high.u32 %v2734
        %v2737 = vmul.u32 %v2730, %v2721
        %v2738 = vadd.s32 %v2733, %v2735
        %vm2739 = vc.u32 %v2733, %v2735
        %v2740 = vadd.s32 %v2736, 1
        %v2741 = vsel %vm2739, %v2740, %v2736
        %v2742 = vadd.s32 %v2737, %v2741
        %v2743 = vadd.s32 %v2742, 536870912
        %v2744 = vshrl.u32 %v2743, 30
        %v2745 = vshll.u32 %v2744, 30
        %v2746 = vsub.s32 %v2742, %v2745
        %vm2747 = vcmp.lt.s32.totalorder %v2746, 0
        %v2748 = vsub.s32 0, %v2746
        %v2749 = vsel %vm2747, %v2748, %v2746
        %v2750 = vclz %v2749
        %v2751 = vsub.s32 %v2750, 2
        %vm2752 = vcmp.gt.s32.totalorder 0, %v2751
        %v2753 = vsel %vm2752, 0, %v2751
        %v2754 = vsub.s32 32, %v2753
        %v2755 = vshll.u32 %v2746, %v2753
        %v2756 = vshrl.u32 %v2738, %v2754
        %v2757 = vor.u32 %v2755, %v2756
        %v2758 = vsub.s32 4294967266, %v2753
        %v2759 = vadd.s32 %v2758, 127
        %v2760 = vshll.u32 %v2759, 23
        %v2761 = vor.u32 4788187, %v2760
        %v2762 = vand.u32 2147483647, %v2761
        %v2764 = vcvt.s32.f32 %v2757
        %v2765 = vmul.f32 %v2764, %v2762
        %v2766 = vxor.u32 %v2765, 2147483648
        %v2767 = vsel %vm2684, %v2766, %v2765
        %v2768 = vsub.s32 4, %v2744
        %v2769 = vsel %vm2684, %v2768, %v2744
        %v2770 = vsel %vm2683, %v520, %v2767
        %v2771 = vsel %vm2683, 0, %v2769
        %v2772 = vcosq.f32.pop %v2770
        %v2773 = vsinq.f32.pop %v2770
        %vm2774 = vweird.f32 %v520
        %v2775 = vadd.s32 %v2771, 3
        %v2776 = vand.u32 %v2775, 3
        %vm2777 = vcmp.lt.s32.totalorder %v2776, 2
        %vm2778 = vcmp.eq.s32.totalorder %v2776, 0
        %v2779 = vxor.u32 %v2773, 2147483648
        %v2780 = vsel %vm2778, %v2772, %v2779
        %vm2781 = vcmp.eq.s32.totalorder %v2776, 2
        %v2782 = vxor.u32 %v2772, 2147483648
        %v2783 = vsel %vm2781, %v2782, %v2773
        %v2784 = vsel %vm2777, %v2780, %v2783
        %v2785 = vsel %vm2774, nan, %v2784
        %v2786 = vand.u32 2147483647, %v607
        %vm2787 = vcmp.le.f32.partialorder %v2786, 0.7853982
        %vm2788 = vcmp.lt.s32.totalorder %v607, 0
        %v2789 = vand.u32 %v607, 2139095040
        %v2790 = vshrl.u32 %v2789, 23
        %v2791 = vsub.s32 %v2790, 127
        %v2792 = vand.u32 2147483647, %v607
        %v2793 = vand.u32 %v2792, 8388607
        %v2794 = vor.u32 %v2793, 8388608
        %v2795 = vsub.s32 0, %v2794
        %v2796 = vadd.s32 %v2791, 1
        %vm2797 = vcmp.gt.s32.totalorder %v2796, 0
        %v2798 = vsel %vm2797, %v2796, 0
        %v2799 = vshrl.u32 %v2798, 5
        %v2800 = vand.u32 %v2798, 31
        %v2801 = vsub.s32 32, %v2800
        %v2802 = vshrl.u32 683565275, %v2801
        %v2803 = vshll.u32 683565275, %v2800
        %v2804 = vshrl.u32 2475754826, %v2801
        %v2805 = vor.u32 %v2803, %v2804
        %v2806 = vshll.u32 2475754826, %v2800
        %v2807 = vshrl.u32 2131351028, %v2801
        %v2808 = vor.u32 %v2806, %v2807
        %v2809 = vshll.u32 2131351028, %v2800
        %v2810 = vshrl.u32 2102212464, %v2801
        %v2811 = vor.u32 %v2809, %v2810
        %v2812 = vshll.u32 2102212464, %v2800
        %v2813 = vshrl.u32 920167782, %v2801
        %v2814 = vor.u32 %v2812, %v2813
        %v2815 = vshll.u32 920167782, %v2800
        %v2816 = vshrl.u32 1326507024, %v2801
        %v2817 = vor.u32 %v2815, %v2816
        %vm2818 = vcmp.lt.s32.totalorder %v2799, 1
        %vm2819 = vcmp.lt.s32.totalorder %v2799, 2
        %vm2820 = vcmp.lt.s32.totalorder %v2799, 3
        %vm2821 = vcmp.lt.s32.totalorder %v2799, 4
        %v2822 = vsel %vm2818, %v2802, %v2805
        %v2823 = vsel %vm2821, %v2811, 2102212464
        %v2824 = vsel %vm2820, %v2808, %v2823
        %v2825 = vsel %vm2819, %v2822, %v2824
        %v2826 = vsel %vm2818, %v2805, %v2808
        %v2827 = vsel %vm2821, %v2814, 920167782
        %v2828 = vsel %vm2820, %v2811, %v2827
        %v2829 = vsel %vm2819, %v2826, %v2828
        %v2830 = vsel %vm2818, %v2808, %v2811
        %v2831 = vsel %vm2821, %v2817, 1326507024
        %v2832 = vsel %vm2820, %v2814, %v2831
        %v2833 = vsel %vm2819, %v2830, %v2832
        %v2834 = vshll.u32 %v2794, 8
        %v2835 = vmul.u32.u64.compose %v2834, %v2833
        %v2836 = vextract.low.u32 %v2835
        %v2837 = vextract.high.u32 %v2835
        %v2838 = vmul.u32.u64.compose %v2834, %v2829
        %v2839 = vextract.low.u32 %v2838
        %v2840 = vextract.high.u32 %v2838
        %v2841 = vmul.u32 %v2834, %v2825
        %v2842 = vadd.s32 %v2837, %v2839
        %vm2843 = vc.u32 %v2837, %v2839
        %v2844 = vadd.s32 %v2840, 1
        %v2845 = vsel %vm2843, %v2844, %v2840
        %v2846 = vadd.s32 %v2841, %v2845
        %v2847 = vadd.s32 %v2846, 536870912
        %v2848 = vshrl.u32 %v2847, 30
        %v2849 = vshll.u32 %v2848, 30
        %v2850 = vsub.s32 %v2846, %v2849
        %vm2851 = vcmp.lt.s32.totalorder %v2850, 0
        %v2852 = vsub.s32 0, %v2850
        %v2853 = vsel %vm2851, %v2852, %v2850
        %v2854 = vclz %v2853
        %v2855 = vsub.s32 %v2854, 2
        %vm2856 = vcmp.gt.s32.totalorder 0, %v2855
        %v2857 = vsel %vm2856, 0, %v2855
        %v2858 = vsub.s32 32, %v2857
        %v2859 = vshll.u32 %v2850, %v2857
        %v2860 = vshrl.u32 %v2842, %v2858
        %v2861 = vor.u32 %v2859, %v2860
        %v2862 = vsub.s32 4294967266, %v2857
        %v2863 = vadd.s32 %v2862, 127
        %v2864 = vshll.u32 %v2863, 23
        %v2865 = vor.u32 4788187, %v2864
        %v2866 = vand.u32 2147483647, %v2865
        %v2868 = vcvt.s32.f32 %v2861
        %v2869 = vmul.f32 %v2868, %v2866
        %v2870 = vxor.u32 %v2869, 2147483648
        %v2871 = vsel %vm2788, %v2870, %v2869
        %v2872 = vsub.s32 4, %v2848
        %v2873 = vsel %vm2788, %v2872, %v2848
        %v2874 = vsel %vm2787, %v607, %v2871
        %v2875 = vsel %vm2787, 0, %v2873
        %v2876 = vcosq.f32.pop %v2874
        %v2877 = vsinq.f32.pop %v2874
        %vm2878 = vweird.f32 %v607
        %v2879 = vadd.s32 %v2875, 3
        %v2880 = vand.u32 %v2879, 3
        %vm2881 = vcmp.lt.s32.totalorder %v2880, 2
        %vm2882 = vcmp.eq.s32.totalorder %v2880, 0
        %v2883 = vxor.u32 %v2877, 2147483648
        %v2884 = vsel %vm2882, %v2876, %v2883
        %vm2885 = vcmp.eq.s32.totalorder %v2880, 2
        %v2886 = vxor.u32 %v2876, 2147483648
        %v2887 = vsel %vm2885, %v2886, %v2877
        %v2888 = vsel %vm2881, %v2884, %v2887
        %v2889 = vsel %vm2878, nan, %v2888
        %v2890 = vand.u32 2147483647, %v609
        %vm2891 = vcmp.le.f32.partialorder %v2890, 0.7853982
        %vm2892 = vcmp.lt.s32.totalorder %v609, 0
        %v2893 = vand.u32 %v609, 2139095040
        %v2894 = vshrl.u32 %v2893, 23
        %v2895 = vsub.s32 %v2894, 127
        %v2896 = vand.u32 2147483647, %v609
        %v2897 = vand.u32 %v2896, 8388607
        %v2898 = vor.u32 %v2897, 8388608
        %v2899 = vsub.s32 0, %v2898
        %v2900 = vadd.s32 %v2895, 1
        %vm2901 = vcmp.gt.s32.totalorder %v2900, 0
        %v2902 = vsel %vm2901, %v2900, 0
        %v2903 = vshrl.u32 %v2902, 5
        %v2904 = vand.u32 %v2902, 31
        %v2905 = vsub.s32 32, %v2904
        %v2906 = vshrl.u32 683565275, %v2905
        %v2907 = vshll.u32 683565275, %v2904
        %v2908 = vshrl.u32 2475754826, %v2905
        %v2909 = vor.u32 %v2907, %v2908
        %v2910 = vshll.u32 2475754826, %v2904
        %v2911 = vshrl.u32 2131351028, %v2905
        %v2912 = vor.u32 %v2910, %v2911
        %v2913 = vshll.u32 2131351028, %v2904
        %v2914 = vshrl.u32 2102212464, %v2905
        %v2915 = vor.u32 %v2913, %v2914
        %v2916 = vshll.u32 2102212464, %v2904
        %v2917 = vshrl.u32 920167782, %v2905
        %v2918 = vor.u32 %v2916, %v2917
        %v2919 = vshll.u32 920167782, %v2904
        %v2920 = vshrl.u32 1326507024, %v2905
        %v2921 = vor.u32 %v2919, %v2920
        %vm2922 = vcmp.lt.s32.totalorder %v2903, 1
        %vm2923 = vcmp.lt.s32.totalorder %v2903, 2
        %vm2924 = vcmp.lt.s32.totalorder %v2903, 3
        %vm2925 = vcmp.lt.s32.totalorder %v2903, 4
        %v2926 = vsel %vm2922, %v2906, %v2909
        %v2927 = vsel %vm2925, %v2915, 2102212464
        %v2928 = vsel %vm2924, %v2912, %v2927
        %v2929 = vsel %vm2923, %v2926, %v2928
        %v2930 = vsel %vm2922, %v2909, %v2912
        %v2931 = vsel %vm2925, %v2918, 920167782
        %v2932 = vsel %vm2924, %v2915, %v2931
        %v2933 = vsel %vm2923, %v2930, %v2932
        %v2934 = vsel %vm2922, %v2912, %v2915
        %v2935 = vsel %vm2925, %v2921, 1326507024
        %v2936 = vsel %vm2924, %v2918, %v2935
        %v2937 = vsel %vm2923, %v2934, %v2936
        %v2938 = vshll.u32 %v2898, 8
        %v2939 = vmul.u32.u64.compose %v2938, %v2937
        %v2940 = vextract.low.u32 %v2939
        %v2941 = vextract.high.u32 %v2939
        %v2942 = vmul.u32.u64.compose %v2938, %v2933
        %v2943 = vextract.low.u32 %v2942
        %v2944 = vextract.high.u32 %v2942
        %v2945 = vmul.u32 %v2938, %v2929
        %v2946 = vadd.s32 %v2941, %v2943
        %vm2947 = vc.u32 %v2941, %v2943
        %v2948 = vadd.s32 %v2944, 1
        %v2949 = vsel %vm2947, %v2948, %v2944
        %v2950 = vadd.s32 %v2945, %v2949
        %v2951 = vadd.s32 %v2950, 536870912
        %v2952 = vshrl.u32 %v2951, 30
        %v2953 = vshll.u32 %v2952, 30
        %v2954 = vsub.s32 %v2950, %v2953
        %vm2955 = vcmp.lt.s32.totalorder %v2954, 0
        %v2956 = vsub.s32 0, %v2954
        %v2957 = vsel %vm2955, %v2956, %v2954
        %v2958 = vclz %v2957
        %v2959 = vsub.s32 %v2958, 2
        %vm2960 = vcmp.gt.s32.totalorder 0, %v2959
        %v2961 = vsel %vm2960, 0, %v2959
        %v2962 = vsub.s32 32, %v2961
        %v2963 = vshll.u32 %v2954, %v2961
        %v2964 = vshrl.u32 %v2946, %v2962
        %v2965 = vor.u32 %v2963, %v2964
        %v2966 = vsub.s32 4294967266, %v2961
        %v2967 = vadd.s32 %v2966, 127
        %v2968 = vshll.u32 %v2967, 23
        %v2969 = vor.u32 4788187, %v2968
        %v2970 = vand.u32 2147483647, %v2969
        %v2972 = vcvt.s32.f32 %v2965
        %v2973 = vmul.f32 %v2972, %v2970
        %v2974 = vxor.u32 %v2973, 2147483648
        %v2975 = vsel %vm2892, %v2974, %v2973
        %v2976 = vsub.s32 4, %v2952
        %v2977 = vsel %vm2892, %v2976, %v2952
        %v2978 = vsel %vm2891, %v609, %v2975
        %v2979 = vsel %vm2891, 0, %v2977
        %v2980 = vcosq.f32.pop %v2978
        %v2981 = vsinq.f32.pop %v2978
        %vm2982 = vweird.f32 %v609
        %v2983 = vadd.s32 %v2979, 3
        %v2984 = vand.u32 %v2983, 3
        %vm2985 = vcmp.lt.s32.totalorder %v2984, 2
        %vm2986 = vcmp.eq.s32.totalorder %v2984, 0
        %v2987 = vxor.u32 %v2981, 2147483648
        %v2988 = vsel %vm2986, %v2980, %v2987
        %vm2989 = vcmp.eq.s32.totalorder %v2984, 2
        %v2990 = vxor.u32 %v2980, 2147483648
        %v2991 = vsel %vm2989, %v2990, %v2981
        %v2992 = vsel %vm2985, %v2988, %v2991
        %v2993 = vsel %vm2982, nan, %v2992
        %v2994 = vand.u32 2147483647, %v696
        %vm2995 = vcmp.le.f32.partialorder %v2994, 0.7853982
        %vm2996 = vcmp.lt.s32.totalorder %v696, 0
        %v2997 = vand.u32 %v696, 2139095040
        %v2998 = vshrl.u32 %v2997, 23
        %v2999 = vsub.s32 %v2998, 127
        %v3000 = vand.u32 2147483647, %v696
        %v3001 = vand.u32 %v3000, 8388607
        %v3002 = vor.u32 %v3001, 8388608
        %v3003 = vsub.s32 0, %v3002
        %v3004 = vadd.s32 %v2999, 1
        %vm3005 = vcmp.gt.s32.totalorder %v3004, 0
        %v3006 = vsel %vm3005, %v3004, 0
        %v3007 = vshrl.u32 %v3006, 5
        %v3008 = vand.u32 %v3006, 31
        %v3009 = vsub.s32 32, %v3008
        %v3010 = vshrl.u32 683565275, %v3009
        %v3011 = vshll.u32 683565275, %v3008
        %v3012 = vshrl.u32 2475754826, %v3009
        %v3013 = vor.u32 %v3011, %v3012
        %v3014 = vshll.u32 2475754826, %v3008
        %v3015 = vshrl.u32 2131351028, %v3009
        %v3016 = vor.u32 %v3014, %v3015
        %v3017 = vshll.u32 2131351028, %v3008
        %v3018 = vshrl.u32 2102212464, %v3009
        %v3019 = vor.u32 %v3017, %v3018
        %v3020 = vshll.u32 2102212464, %v3008
        %v3021 = vshrl.u32 920167782, %v3009
        %v3022 = vor.u32 %v3020, %v3021
        %v3023 = vshll.u32 920167782, %v3008
        %v3024 = vshrl.u32 1326507024, %v3009
        %v3025 = vor.u32 %v3023, %v3024
        %vm3026 = vcmp.lt.s32.totalorder %v3007, 1
        %vm3027 = vcmp.lt.s32.totalorder %v3007, 2
        %vm3028 = vcmp.lt.s32.totalorder %v3007, 3
        %vm3029 = vcmp.lt.s32.totalorder %v3007, 4
        %v3030 = vsel %vm3026, %v3010, %v3013
        %v3031 = vsel %vm3029, %v3019, 2102212464
        %v3032 = vsel %vm3028, %v3016, %v3031
        %v3033 = vsel %vm3027, %v3030, %v3032
        %v3034 = vsel %vm3026, %v3013, %v3016
        %v3035 = vsel %vm3029, %v3022, 920167782
        %v3036 = vsel %vm3028, %v3019, %v3035
        %v3037 = vsel %vm3027, %v3034, %v3036
        %v3038 = vsel %vm3026, %v3016, %v3019
        %v3039 = vsel %vm3029, %v3025, 1326507024
        %v3040 = vsel %vm3028, %v3022, %v3039
        %v3041 = vsel %vm3027, %v3038, %v3040
        %v3042 = vshll.u32 %v3002, 8
        %v3043 = vmul.u32.u64.compose %v3042, %v3041
        %v3044 = vextract.low.u32 %v3043
        %v3045 = vextract.high.u32 %v3043
        %v3046 = vmul.u32.u64.compose %v3042, %v3037
        %v3047 = vextract.low.u32 %v3046
        %v3048 = vextract.high.u32 %v3046
        %v3049 = vmul.u32 %v3042, %v3033
        %v3050 = vadd.s32 %v3045, %v3047
        %vm3051 = vc.u32 %v3045, %v3047
        %v3052 = vadd.s32 %v3048, 1
        %v3053 = vsel %vm3051, %v3052, %v3048
        %v3054 = vadd.s32 %v3049, %v3053
        %v3055 = vadd.s32 %v3054, 536870912
        %v3056 = vshrl.u32 %v3055, 30
        %v3057 = vshll.u32 %v3056, 30
        %v3058 = vsub.s32 %v3054, %v3057
        %vm3059 = vcmp.lt.s32.totalorder %v3058, 0
        %v3060 = vsub.s32 0, %v3058
        %v3061 = vsel %vm3059, %v3060, %v3058
        %v3062 = vclz %v3061
        %v3063 = vsub.s32 %v3062, 2
        %vm3064 = vcmp.gt.s32.totalorder 0, %v3063
        %v3065 = vsel %vm3064, 0, %v3063
        %v3066 = vsub.s32 32, %v3065
        %v3067 = vshll.u32 %v3058, %v3065
        %v3068 = vshrl.u32 %v3050, %v3066
        %v3069 = vor.u32 %v3067, %v3068
        %v3070 = vsub.s32 4294967266, %v3065
        %v3071 = vadd.s32 %v3070, 127
        %v3072 = vshll.u32 %v3071, 23
        %v3073 = vor.u32 4788187, %v3072
        %v3074 = vand.u32 2147483647, %v3073
        %v3076 = vcvt.s32.f32 %v3069
        %v3077 = vmul.f32 %v3076, %v3074
        %v3078 = vxor.u32 %v3077, 2147483648
        %v3079 = vsel %vm2996, %v3078, %v3077
        %v3080 = vsub.s32 4, %v3056
        %v3081 = vsel %vm2996, %v3080, %v3056
        %v3082 = vsel %vm2995, %v696, %v3079
        %v3083 = vsel %vm2995, 0, %v3081
        %v3084 = vcosq.f32.pop %v3082
        %v3085 = vsinq.f32.pop %v3082
        %vm3086 = vweird.f32 %v696
        %v3087 = vadd.s32 %v3083, 3
        %v3088 = vand.u32 %v3087, 3
        %vm3089 = vcmp.lt.s32.totalorder %v3088, 2
        %vm3090 = vcmp.eq.s32.totalorder %v3088, 0
        %v3091 = vxor.u32 %v3085, 2147483648
        %v3092 = vsel %vm3090, %v3084, %v3091
        %vm3093 = vcmp.eq.s32.totalorder %v3088, 2
        %v3094 = vxor.u32 %v3084, 2147483648
        %v3095 = vsel %vm3093, %v3094, %v3085
        %v3096 = vsel %vm3089, %v3092, %v3095
        %v3097 = vsel %vm3086, nan, %v3096
        %v3098 = vand.u32 2147483647, %v698
        %vm3099 = vcmp.le.f32.partialorder %v3098, 0.7853982
        %vm3100 = vcmp.lt.s32.totalorder %v698, 0
        %v3101 = vand.u32 %v698, 2139095040
        %v3102 = vshrl.u32 %v3101, 23
        %v3103 = vsub.s32 %v3102, 127
        %v3104 = vand.u32 2147483647, %v698
        %v3105 = vand.u32 %v3104, 8388607
        %v3106 = vor.u32 %v3105, 8388608
        %v3107 = vsub.s32 0, %v3106
        %v3108 = vadd.s32 %v3103, 1
        %vm3109 = vcmp.gt.s32.totalorder %v3108, 0
        %v3110 = vsel %vm3109, %v3108, 0
        %v3111 = vshrl.u32 %v3110, 5
        %v3112 = vand.u32 %v3110, 31
        %v3113 = vsub.s32 32, %v3112
        %v3114 = vshrl.u32 683565275, %v3113
        %v3115 = vshll.u32 683565275, %v3112
        %v3116 = vshrl.u32 2475754826, %v3113
        %v3117 = vor.u32 %v3115, %v3116
        %v3118 = vshll.u32 2475754826, %v3112
        %v3119 = vshrl.u32 2131351028, %v3113
        %v3120 = vor.u32 %v3118, %v3119
        %v3121 = vshll.u32 2131351028, %v3112
        %v3122 = vshrl.u32 2102212464, %v3113
        %v3123 = vor.u32 %v3121, %v3122
        %v3124 = vshll.u32 2102212464, %v3112
        %v3125 = vshrl.u32 920167782, %v3113
        %v3126 = vor.u32 %v3124, %v3125
        %v3127 = vshll.u32 920167782, %v3112
        %v3128 = vshrl.u32 1326507024, %v3113
        %v3129 = vor.u32 %v3127, %v3128
        %vm3130 = vcmp.lt.s32.totalorder %v3111, 1
        %vm3131 = vcmp.lt.s32.totalorder %v3111, 2
        %vm3132 = vcmp.lt.s32.totalorder %v3111, 3
        %vm3133 = vcmp.lt.s32.totalorder %v3111, 4
        %v3134 = vsel %vm3130, %v3114, %v3117
        %v3135 = vsel %vm3133, %v3123, 2102212464
        %v3136 = vsel %vm3132, %v3120, %v3135
        %v3137 = vsel %vm3131, %v3134, %v3136
        %v3138 = vsel %vm3130, %v3117, %v3120
        %v3139 = vsel %vm3133, %v3126, 920167782
        %v3140 = vsel %vm3132, %v3123, %v3139
        %v3141 = vsel %vm3131, %v3138, %v3140
        %v3142 = vsel %vm3130, %v3120, %v3123
        %v3143 = vsel %vm3133, %v3129, 1326507024
        %v3144 = vsel %vm3132, %v3126, %v3143
        %v3145 = vsel %vm3131, %v3142, %v3144
        %v3146 = vshll.u32 %v3106, 8
        %v3147 = vmul.u32.u64.compose %v3146, %v3145
        %v3148 = vextract.low.u32 %v3147
        %v3149 = vextract.high.u32 %v3147
        %v3150 = vmul.u32.u64.compose %v3146, %v3141
        %v3151 = vextract.low.u32 %v3150
        %v3152 = vextract.high.u32 %v3150
        %v3153 = vmul.u32 %v3146, %v3137
        %v3154 = vadd.s32 %v3149, %v3151
        %vm3155 = vc.u32 %v3149, %v3151
        %v3156 = vadd.s32 %v3152, 1
        %v3157 = vsel %vm3155, %v3156, %v3152
        %v3158 = vadd.s32 %v3153, %v3157
        %v3159 = vadd.s32 %v3158, 536870912
        %v3160 = vshrl.u32 %v3159, 30
        %v3161 = vshll.u32 %v3160, 30
        %v3162 = vsub.s32 %v3158, %v3161
        %vm3163 = vcmp.lt.s32.totalorder %v3162, 0
        %v3164 = vsub.s32 0, %v3162
        %v3165 = vsel %vm3163, %v3164, %v3162
        %v3166 = vclz %v3165
        %v3167 = vsub.s32 %v3166, 2
        %vm3168 = vcmp.gt.s32.totalorder 0, %v3167
        %v3169 = vsel %vm3168, 0, %v3167
        %v3170 = vsub.s32 32, %v3169
        %v3171 = vshll.u32 %v3162, %v3169
        %v3172 = vshrl.u32 %v3154, %v3170
        %v3173 = vor.u32 %v3171, %v3172
        %v3174 = vsub.s32 4294967266, %v3169
        %v3175 = vadd.s32 %v3174, 127
        %v3176 = vshll.u32 %v3175, 23
        %v3177 = vor.u32 4788187, %v3176
        %v3178 = vand.u32 2147483647, %v3177
        %v3180 = vcvt.s32.f32 %v3173
        %v3181 = vmul.f32 %v3180, %v3178
        %v3182 = vxor.u32 %v3181, 2147483648
        %v3183 = vsel %vm3100, %v3182, %v3181
        %v3184 = vsub.s32 4, %v3160
        %v3185 = vsel %vm3100, %v3184, %v3160
        %v3186 = vsel %vm3099, %v698, %v3183
        %v3187 = vsel %vm3099, 0, %v3185
        %v3188 = vcosq.f32.pop %v3186
        %v3189 = vsinq.f32.pop %v3186
        %vm3190 = vweird.f32 %v698
        %v3191 = vadd.s32 %v3187, 3
        %v3192 = vand.u32 %v3191, 3
        %vm3193 = vcmp.lt.s32.totalorder %v3192, 2
        %vm3194 = vcmp.eq.s32.totalorder %v3192, 0
        %v3195 = vxor.u32 %v3189, 2147483648
        %v3196 = vsel %vm3194, %v3188, %v3195
        %vm3197 = vcmp.eq.s32.totalorder %v3192, 2
        %v3198 = vxor.u32 %v3188, 2147483648
        %v3199 = vsel %vm3197, %v3198, %v3189
        %v3200 = vsel %vm3193, %v3196, %v3199
        %v3201 = vsel %vm3190, nan, %v3200
        %v3202 = vand.u32 2147483647, %v435
        %vm3203 = vcmp.le.f32.partialorder %v3202, 0.7853982
        %vm3204 = vcmp.lt.s32.totalorder %v435, 0
        %v3205 = vand.u32 %v435, 2139095040
        %v3206 = vshrl.u32 %v3205, 23
        %v3207 = vsub.s32 %v3206, 127
        %v3208 = vand.u32 2147483647, %v435
        %v3209 = vand.u32 %v3208, 8388607
        %v3210 = vor.u32 %v3209, 8388608
        %v3211 = vsub.s32 0, %v3210
        %v3212 = vadd.s32 %v3207, 1
        %vm3213 = vcmp.gt.s32.totalorder %v3212, 0
        %v3214 = vsel %vm3213, %v3212, 0
        %v3215 = vshrl.u32 %v3214, 5
        %v3216 = vand.u32 %v3214, 31
        %v3217 = vsub.s32 32, %v3216
        %v3218 = vshrl.u32 683565275, %v3217
        %v3219 = vshll.u32 683565275, %v3216
        %v3220 = vshrl.u32 2475754826, %v3217
        %v3221 = vor.u32 %v3219, %v3220
        %v3222 = vshll.u32 2475754826, %v3216
        %v3223 = vshrl.u32 2131351028, %v3217
        %v3224 = vor.u32 %v3222, %v3223
        %v3225 = vshll.u32 2131351028, %v3216
        %v3226 = vshrl.u32 2102212464, %v3217
        %v3227 = vor.u32 %v3225, %v3226
        %v3228 = vshll.u32 2102212464, %v3216
        %v3229 = vshrl.u32 920167782, %v3217
        %v3230 = vor.u32 %v3228, %v3229
        %v3231 = vshll.u32 920167782, %v3216
        %v3232 = vshrl.u32 1326507024, %v3217
        %v3233 = vor.u32 %v3231, %v3232
        %vm3234 = vcmp.lt.s32.totalorder %v3215, 1
        %vm3235 = vcmp.lt.s32.totalorder %v3215, 2
        %vm3236 = vcmp.lt.s32.totalorder %v3215, 3
        %vm3237 = vcmp.lt.s32.totalorder %v3215, 4
        %v3238 = vsel %vm3234, %v3218, %v3221
        %v3239 = vsel %vm3237, %v3227, 2102212464
        %v3240 = vsel %vm3236, %v3224, %v3239
        %v3241 = vsel %vm3235, %v3238, %v3240
        %v3242 = vsel %vm3234, %v3221, %v3224
        %v3243 = vsel %vm3237, %v3230, 920167782
        %v3244 = vsel %vm3236, %v3227, %v3243
        %v3245 = vsel %vm3235, %v3242, %v3244
        %v3246 = vsel %vm3234, %v3224, %v3227
        %v3247 = vsel %vm3237, %v3233, 1326507024
        %v3248 = vsel %vm3236, %v3230, %v3247
        %v3249 = vsel %vm3235, %v3246, %v3248
        %v3250 = vshll.u32 %v3210, 8
        %v3251 = vmul.u32.u64.compose %v3250, %v3249
        %v3252 = vextract.low.u32 %v3251
        %v3253 = vextract.high.u32 %v3251
        %v3254 = vmul.u32.u64.compose %v3250, %v3245
        %v3255 = vextract.low.u32 %v3254
        %v3256 = vextract.high.u32 %v3254
        %v3257 = vmul.u32 %v3250, %v3241
        %v3258 = vadd.s32 %v3253, %v3255
        %vm3259 = vc.u32 %v3253, %v3255
        %v3260 = vadd.s32 %v3256, 1
        %v3261 = vsel %vm3259, %v3260, %v3256
        %v3262 = vadd.s32 %v3257, %v3261
        %v3263 = vadd.s32 %v3262, 536870912
        %v3264 = vshrl.u32 %v3263, 30
        %v3265 = vshll.u32 %v3264, 30
        %v3266 = vsub.s32 %v3262, %v3265
        %vm3267 = vcmp.lt.s32.totalorder %v3266, 0
        %v3268 = vsub.s32 0, %v3266
        %v3269 = vsel %vm3267, %v3268, %v3266
        %v3270 = vclz %v3269
        %v3271 = vsub.s32 %v3270, 2
        %vm3272 = vcmp.gt.s32.totalorder 0, %v3271
        %v3273 = vsel %vm3272, 0, %v3271
        %v3274 = vsub.s32 32, %v3273
        %v3275 = vshll.u32 %v3266, %v3273
        %v3276 = vshrl.u32 %v3258, %v3274
        %v3277 = vor.u32 %v3275, %v3276
        %v3278 = vsub.s32 4294967266, %v3273
        %v3279 = vadd.s32 %v3278, 127
        %v3280 = vshll.u32 %v3279, 23
        %v3281 = vor.u32 4788187, %v3280
        %v3282 = vand.u32 2147483647, %v3281
        %v3284 = vcvt.s32.f32 %v3277
        %v3285 = vmul.f32 %v3284, %v3282
        %v3286 = vxor.u32 %v3285, 2147483648
        %v3287 = vsel %vm3204, %v3286, %v3285
        %v3288 = vsub.s32 4, %v3264
        %v3289 = vsel %vm3204, %v3288, %v3264
        %v3290 = vsel %vm3203, %v435, %v3287
        %v3291 = vsel %vm3203, 0, %v3289
        %v3292 = vcosq.f32.pop %v3290
        %v3293 = vsinq.f32.pop %v3290
        %vm3294 = vweird.f32 %v435
        %v3295 = vadd.s32 %v3291, 3
        %v3296 = vand.u32 %v3295, 3
        %vm3297 = vcmp.lt.s32.totalorder %v3296, 2
        %vm3298 = vcmp.eq.s32.totalorder %v3296, 0
        %v3299 = vxor.u32 %v3293, 2147483648
        %v3300 = vsel %vm3298, %v3292, %v3299
        %vm3301 = vcmp.eq.s32.totalorder %v3296, 2
        %v3302 = vxor.u32 %v3292, 2147483648
        %v3303 = vsel %vm3301, %v3302, %v3293
        %v3304 = vsel %vm3297, %v3300, %v3303
        %v3305 = vsel %vm3294, nan, %v3304
        %v3306 = vand.u32 2147483647, %v437
        %vm3307 = vcmp.le.f32.partialorder %v3306, 0.7853982
        %vm3308 = vcmp.lt.s32.totalorder %v437, 0
        %v3309 = vand.u32 %v437, 2139095040
        %v3310 = vshrl.u32 %v3309, 23
        %v3311 = vsub.s32 %v3310, 127
        %v3312 = vand.u32 2147483647, %v437
        %v3313 = vand.u32 %v3312, 8388607
        %v3314 = vor.u32 %v3313, 8388608
        %v3315 = vsub.s32 0, %v3314
        %v3316 = vadd.s32 %v3311, 1
        %vm3317 = vcmp.gt.s32.totalorder %v3316, 0
        %v3318 = vsel %vm3317, %v3316, 0
        %v3319 = vshrl.u32 %v3318, 5
        %v3320 = vand.u32 %v3318, 31
        %v3321 = vsub.s32 32, %v3320
        %v3322 = vshrl.u32 683565275, %v3321
        %v3323 = vshll.u32 683565275, %v3320
        %v3324 = vshrl.u32 2475754826, %v3321
        %v3325 = vor.u32 %v3323, %v3324
        %v3326 = vshll.u32 2475754826, %v3320
        %v3327 = vshrl.u32 2131351028, %v3321
        %v3328 = vor.u32 %v3326, %v3327
        %v3329 = vshll.u32 2131351028, %v3320
        %v3330 = vshrl.u32 2102212464, %v3321
        %v3331 = vor.u32 %v3329, %v3330
        %v3332 = vshll.u32 2102212464, %v3320
        %v3333 = vshrl.u32 920167782, %v3321
        %v3334 = vor.u32 %v3332, %v3333
        %v3335 = vshll.u32 920167782, %v3320
        %v3336 = vshrl.u32 1326507024, %v3321
        %v3337 = vor.u32 %v3335, %v3336
        %vm3338 = vcmp.lt.s32.totalorder %v3319, 1
        %vm3339 = vcmp.lt.s32.totalorder %v3319, 2
        %vm3340 = vcmp.lt.s32.totalorder %v3319, 3
        %vm3341 = vcmp.lt.s32.totalorder %v3319, 4
        %v3342 = vsel %vm3338, %v3322, %v3325
        %v3343 = vsel %vm3341, %v3331, 2102212464
        %v3344 = vsel %vm3340, %v3328, %v3343
        %v3345 = vsel %vm3339, %v3342, %v3344
        %v3346 = vsel %vm3338, %v3325, %v3328
        %v3347 = vsel %vm3341, %v3334, 920167782
        %v3348 = vsel %vm3340, %v3331, %v3347
        %v3349 = vsel %vm3339, %v3346, %v3348
        %v3350 = vsel %vm3338, %v3328, %v3331
        %v3351 = vsel %vm3341, %v3337, 1326507024
        %v3352 = vsel %vm3340, %v3334, %v3351
        %v3353 = vsel %vm3339, %v3350, %v3352
        %v3354 = vshll.u32 %v3314, 8
        %v3355 = vmul.u32.u64.compose %v3354, %v3353
        %v3356 = vextract.low.u32 %v3355
        %v3357 = vextract.high.u32 %v3355
        %v3358 = vmul.u32.u64.compose %v3354, %v3349
        %v3359 = vextract.low.u32 %v3358
        %v3360 = vextract.high.u32 %v3358
        %v3361 = vmul.u32 %v3354, %v3345
        %v3362 = vadd.s32 %v3357, %v3359
        %vm3363 = vc.u32 %v3357, %v3359
        %v3364 = vadd.s32 %v3360, 1
        %v3365 = vsel %vm3363, %v3364, %v3360
        %v3366 = vadd.s32 %v3361, %v3365
        %v3367 = vadd.s32 %v3366, 536870912
        %v3368 = vshrl.u32 %v3367, 30
        %v3369 = vshll.u32 %v3368, 30
        %v3370 = vsub.s32 %v3366, %v3369
        %vm3371 = vcmp.lt.s32.totalorder %v3370, 0
        %v3372 = vsub.s32 0, %v3370
        %v3373 = vsel %vm3371, %v3372, %v3370
        %v3374 = vclz %v3373
        %v3375 = vsub.s32 %v3374, 2
        %vm3376 = vcmp.gt.s32.totalorder 0, %v3375
        %v3377 = vsel %vm3376, 0, %v3375
        %v3378 = vsub.s32 32, %v3377
        %v3379 = vshll.u32 %v3370, %v3377
        %v3380 = vshrl.u32 %v3362, %v3378
        %v3381 = vor.u32 %v3379, %v3380
        %v3382 = vsub.s32 4294967266, %v3377
        %v3383 = vadd.s32 %v3382, 127
        %v3384 = vshll.u32 %v3383, 23
        %v3385 = vor.u32 4788187, %v3384
        %v3386 = vand.u32 2147483647, %v3385
        %v3388 = vcvt.s32.f32 %v3381
        %v3389 = vmul.f32 %v3388, %v3386
        %v3390 = vxor.u32 %v3389, 2147483648
        %v3391 = vsel %vm3308, %v3390, %v3389
        %v3392 = vsub.s32 4, %v3368
        %v3393 = vsel %vm3308, %v3392, %v3368
        %v3394 = vsel %vm3307, %v437, %v3391
        %v3395 = vsel %vm3307, 0, %v3393
        %v3396 = vcosq.f32.pop %v3394
        %v3397 = vsinq.f32.pop %v3394
        %vm3398 = vweird.f32 %v437
        %v3399 = vadd.s32 %v3395, 3
        %v3400 = vand.u32 %v3399, 3
        %vm3401 = vcmp.lt.s32.totalorder %v3400, 2
        %vm3402 = vcmp.eq.s32.totalorder %v3400, 0
        %v3403 = vxor.u32 %v3397, 2147483648
        %v3404 = vsel %vm3402, %v3396, %v3403
        %vm3405 = vcmp.eq.s32.totalorder %v3400, 2
        %v3406 = vxor.u32 %v3396, 2147483648
        %v3407 = vsel %vm3405, %v3406, %v3397
        %v3408 = vsel %vm3401, %v3404, %v3407
        %v3409 = vsel %vm3398, nan, %v3408
        %v3410 = vand.u32 2147483647, %v524
        %vm3411 = vcmp.le.f32.partialorder %v3410, 0.7853982
        %vm3412 = vcmp.lt.s32.totalorder %v524, 0
        %v3413 = vand.u32 %v524, 2139095040
        %v3414 = vshrl.u32 %v3413, 23
        %v3415 = vsub.s32 %v3414, 127
        %v3416 = vand.u32 2147483647, %v524
        %v3417 = vand.u32 %v3416, 8388607
        %v3418 = vor.u32 %v3417, 8388608
        %v3419 = vsub.s32 0, %v3418
        %v3420 = vadd.s32 %v3415, 1
        %vm3421 = vcmp.gt.s32.totalorder %v3420, 0
        %v3422 = vsel %vm3421, %v3420, 0
        %v3423 = vshrl.u32 %v3422, 5
        %v3424 = vand.u32 %v3422, 31
        %v3425 = vsub.s32 32, %v3424
        %v3426 = vshrl.u32 683565275, %v3425
        %v3427 = vshll.u32 683565275, %v3424
        %v3428 = vshrl.u32 2475754826, %v3425
        %v3429 = vor.u32 %v3427, %v3428
        %v3430 = vshll.u32 2475754826, %v3424
        %v3431 = vshrl.u32 2131351028, %v3425
        %v3432 = vor.u32 %v3430, %v3431
        %v3433 = vshll.u32 2131351028, %v3424
        %v3434 = vshrl.u32 2102212464, %v3425
        %v3435 = vor.u32 %v3433, %v3434
        %v3436 = vshll.u32 2102212464, %v3424
        %v3437 = vshrl.u32 920167782, %v3425
        %v3438 = vor.u32 %v3436, %v3437
        %v3439 = vshll.u32 920167782, %v3424
        %v3440 = vshrl.u32 1326507024, %v3425
        %v3441 = vor.u32 %v3439, %v3440
        %vm3442 = vcmp.lt.s32.totalorder %v3423, 1
        %vm3443 = vcmp.lt.s32.totalorder %v3423, 2
        %vm3444 = vcmp.lt.s32.totalorder %v3423, 3
        %vm3445 = vcmp.lt.s32.totalorder %v3423, 4
        %v3446 = vsel %vm3442, %v3426, %v3429
        %v3447 = vsel %vm3445, %v3435, 2102212464
        %v3448 = vsel %vm3444, %v3432, %v3447
        %v3449 = vsel %vm3443, %v3446, %v3448
        %v3450 = vsel %vm3442, %v3429, %v3432
        %v3451 = vsel %vm3445, %v3438, 920167782
        %v3452 = vsel %vm3444, %v3435, %v3451
        %v3453 = vsel %vm3443, %v3450, %v3452
        %v3454 = vsel %vm3442, %v3432, %v3435
        %v3455 = vsel %vm3445, %v3441, 1326507024
        %v3456 = vsel %vm3444, %v3438, %v3455
        %v3457 = vsel %vm3443, %v3454, %v3456
        %v3458 = vshll.u32 %v3418, 8
        %v3459 = vmul.u32.u64.compose %v3458, %v3457
        %v3460 = vextract.low.u32 %v3459
        %v3461 = vextract.high.u32 %v3459
        %v3462 = vmul.u32.u64.compose %v3458, %v3453
        %v3463 = vextract.low.u32 %v3462
        %v3464 = vextract.high.u32 %v3462
        %v3465 = vmul.u32 %v3458, %v3449
        %v3466 = vadd.s32 %v3461, %v3463
        %vm3467 = vc.u32 %v3461, %v3463
        %v3468 = vadd.s32 %v3464, 1
        %v3469 = vsel %vm3467, %v3468, %v3464
        %v3470 = vadd.s32 %v3465, %v3469
        %v3471 = vadd.s32 %v3470, 536870912
        %v3472 = vshrl.u32 %v3471, 30
        %v3473 = vshll.u32 %v3472, 30
        %v3474 = vsub.s32 %v3470, %v3473
        %vm3475 = vcmp.lt.s32.totalorder %v3474, 0
        %v3476 = vsub.s32 0, %v3474
        %v3477 = vsel %vm3475, %v3476, %v3474
        %v3478 = vclz %v3477
        %v3479 = vsub.s32 %v3478, 2
        %vm3480 = vcmp.gt.s32.totalorder 0, %v3479
        %v3481 = vsel %vm3480, 0, %v3479
        %v3482 = vsub.s32 32, %v3481
        %v3483 = vshll.u32 %v3474, %v3481
        %v3484 = vshrl.u32 %v3466, %v3482
        %v3485 = vor.u32 %v3483, %v3484
        %v3486 = vsub.s32 4294967266, %v3481
        %v3487 = vadd.s32 %v3486, 127
        %v3488 = vshll.u32 %v3487, 23
        %v3489 = vor.u32 4788187, %v3488
        %v3490 = vand.u32 2147483647, %v3489
        %v3492 = vcvt.s32.f32 %v3485
        %v3493 = vmul.f32 %v3492, %v3490
        %v3494 = vxor.u32 %v3493, 2147483648
        %v3495 = vsel %vm3412, %v3494, %v3493
        %v3496 = vsub.s32 4, %v3472
        %v3497 = vsel %vm3412, %v3496, %v3472
        %v3498 = vsel %vm3411, %v524, %v3495
        %v3499 = vsel %vm3411, 0, %v3497
        %v3500 = vcosq.f32.pop %v3498
        %v3501 = vsinq.f32.pop %v3498
        %vm3502 = vweird.f32 %v524
        %v3503 = vadd.s32 %v3499, 3
        %v3504 = vand.u32 %v3503, 3
        %vm3505 = vcmp.lt.s32.totalorder %v3504, 2
        %vm3506 = vcmp.eq.s32.totalorder %v3504, 0
        %v3507 = vxor.u32 %v3501, 2147483648
        %v3508 = vsel %vm3506, %v3500, %v3507
        %vm3509 = vcmp.eq.s32.totalorder %v3504, 2
        %v3510 = vxor.u32 %v3500, 2147483648
        %v3511 = vsel %vm3509, %v3510, %v3501
        %v3512 = vsel %vm3505, %v3508, %v3511
        %v3513 = vsel %vm3502, nan, %v3512
        %v3514 = vand.u32 2147483647, %v526
        %vm3515 = vcmp.le.f32.partialorder %v3514, 0.7853982
        %vm3516 = vcmp.lt.s32.totalorder %v526, 0
        %v3517 = vand.u32 %v526, 2139095040
        %v3518 = vshrl.u32 %v3517, 23
        %v3519 = vsub.s32 %v3518, 127
        %v3520 = vand.u32 2147483647, %v526
        %v3521 = vand.u32 %v3520, 8388607
        %v3522 = vor.u32 %v3521, 8388608
        %v3523 = vsub.s32 0, %v3522
        %v3524 = vadd.s32 %v3519, 1
        %vm3525 = vcmp.gt.s32.totalorder %v3524, 0
        %v3526 = vsel %vm3525, %v3524, 0
        %v3527 = vshrl.u32 %v3526, 5
        %v3528 = vand.u32 %v3526, 31
        %v3529 = vsub.s32 32, %v3528
        %v3530 = vshrl.u32 683565275, %v3529
        %v3531 = vshll.u32 683565275, %v3528
        %v3532 = vshrl.u32 2475754826, %v3529
        %v3533 = vor.u32 %v3531, %v3532
        %v3534 = vshll.u32 2475754826, %v3528
        %v3535 = vshrl.u32 2131351028, %v3529
        %v3536 = vor.u32 %v3534, %v3535
        %v3537 = vshll.u32 2131351028, %v3528
        %v3538 = vshrl.u32 2102212464, %v3529
        %v3539 = vor.u32 %v3537, %v3538
        %v3540 = vshll.u32 2102212464, %v3528
        %v3541 = vshrl.u32 920167782, %v3529
        %v3542 = vor.u32 %v3540, %v3541
        %v3543 = vshll.u32 920167782, %v3528
        %v3544 = vshrl.u32 1326507024, %v3529
        %v3545 = vor.u32 %v3543, %v3544
        %vm3546 = vcmp.lt.s32.totalorder %v3527, 1
        %vm3547 = vcmp.lt.s32.totalorder %v3527, 2
        %vm3548 = vcmp.lt.s32.totalorder %v3527, 3
        %vm3549 = vcmp.lt.s32.totalorder %v3527, 4
        %v3550 = vsel %vm3546, %v3530, %v3533
        %v3551 = vsel %vm3549, %v3539, 2102212464
        %v3552 = vsel %vm3548, %v3536, %v3551
        %v3553 = vsel %vm3547, %v3550, %v3552
        %v3554 = vsel %vm3546, %v3533, %v3536
        %v3555 = vsel %vm3549, %v3542, 920167782
        %v3556 = vsel %vm3548, %v3539, %v3555
        %v3557 = vsel %vm3547, %v3554, %v3556
        %v3558 = vsel %vm3546, %v3536, %v3539
        %v3559 = vsel %vm3549, %v3545, 1326507024
        %v3560 = vsel %vm3548, %v3542, %v3559
        %v3561 = vsel %vm3547, %v3558, %v3560
        %v3562 = vshll.u32 %v3522, 8
        %v3563 = vmul.u32.u64.compose %v3562, %v3561
        %v3564 = vextract.low.u32 %v3563
        %v3565 = vextract.high.u32 %v3563
        %v3566 = vmul.u32.u64.compose %v3562, %v3557
        %v3567 = vextract.low.u32 %v3566
        %v3568 = vextract.high.u32 %v3566
        %v3569 = vmul.u32 %v3562, %v3553
        %v3570 = vadd.s32 %v3565, %v3567
        %vm3571 = vc.u32 %v3565, %v3567
        %v3572 = vadd.s32 %v3568, 1
        %v3573 = vsel %vm3571, %v3572, %v3568
        %v3574 = vadd.s32 %v3569, %v3573
        %v3575 = vadd.s32 %v3574, 536870912
        %v3576 = vshrl.u32 %v3575, 30
        %v3577 = vshll.u32 %v3576, 30
        %v3578 = vsub.s32 %v3574, %v3577
        %vm3579 = vcmp.lt.s32.totalorder %v3578, 0
        %v3580 = vsub.s32 0, %v3578
        %v3581 = vsel %vm3579, %v3580, %v3578
        %v3582 = vclz %v3581
        %v3583 = vsub.s32 %v3582, 2
        %vm3584 = vcmp.gt.s32.totalorder 0, %v3583
        %v3585 = vsel %vm3584, 0, %v3583
        %v3586 = vsub.s32 32, %v3585
        %v3587 = vshll.u32 %v3578, %v3585
        %v3588 = vshrl.u32 %v3570, %v3586
        %v3589 = vor.u32 %v3587, %v3588
        %v3590 = vsub.s32 4294967266, %v3585
        %v3591 = vadd.s32 %v3590, 127
        %v3592 = vshll.u32 %v3591, 23
        %v3593 = vor.u32 4788187, %v3592
        %v3594 = vand.u32 2147483647, %v3593
        %v3596 = vcvt.s32.f32 %v3589
        %v3597 = vmul.f32 %v3596, %v3594
        %v3598 = vxor.u32 %v3597, 2147483648
        %v3599 = vsel %vm3516, %v3598, %v3597
        %v3600 = vsub.s32 4, %v3576
        %v3601 = vsel %vm3516, %v3600, %v3576
        %v3602 = vsel %vm3515, %v526, %v3599
        %v3603 = vsel %vm3515, 0, %v3601
        %v3604 = vcosq.f32.pop %v3602
        %v3605 = vsinq.f32.pop %v3602
        %vm3606 = vweird.f32 %v526
        %v3607 = vadd.s32 %v3603, 3
        %v3608 = vand.u32 %v3607, 3
        %vm3609 = vcmp.lt.s32.totalorder %v3608, 2
        %vm3610 = vcmp.eq.s32.totalorder %v3608, 0
        %v3611 = vxor.u32 %v3605, 2147483648
        %v3612 = vsel %vm3610, %v3604, %v3611
        %vm3613 = vcmp.eq.s32.totalorder %v3608, 2
        %v3614 = vxor.u32 %v3604, 2147483648
        %v3615 = vsel %vm3613, %v3614, %v3605
        %v3616 = vsel %vm3609, %v3612, %v3615
        %v3617 = vsel %vm3606, nan, %v3616
        %v3618 = vand.u32 2147483647, %v613
        %vm3619 = vcmp.le.f32.partialorder %v3618, 0.7853982
        %vm3620 = vcmp.lt.s32.totalorder %v613, 0
        %v3621 = vand.u32 %v613, 2139095040
        %v3622 = vshrl.u32 %v3621, 23
        %v3623 = vsub.s32 %v3622, 127
        %v3624 = vand.u32 2147483647, %v613
        %v3625 = vand.u32 %v3624, 8388607
        %v3626 = vor.u32 %v3625, 8388608
        %v3627 = vsub.s32 0, %v3626
        %v3628 = vadd.s32 %v3623, 1
        %vm3629 = vcmp.gt.s32.totalorder %v3628, 0
        %v3630 = vsel %vm3629, %v3628, 0
        %v3631 = vshrl.u32 %v3630, 5
        %v3632 = vand.u32 %v3630, 31
        %v3633 = vsub.s32 32, %v3632
        %v3634 = vshrl.u32 683565275, %v3633
        %v3635 = vshll.u32 683565275, %v3632
        %v3636 = vshrl.u32 2475754826, %v3633
        %v3637 = vor.u32 %v3635, %v3636
        %v3638 = vshll.u32 2475754826, %v3632
        %v3639 = vshrl.u32 2131351028, %v3633
        %v3640 = vor.u32 %v3638, %v3639
        %v3641 = vshll.u32 2131351028, %v3632
        %v3642 = vshrl.u32 2102212464, %v3633
        %v3643 = vor.u32 %v3641, %v3642
        %v3644 = vshll.u32 2102212464, %v3632
        %v3645 = vshrl.u32 920167782, %v3633
        %v3646 = vor.u32 %v3644, %v3645
        %v3647 = vshll.u32 920167782, %v3632
        %v3648 = vshrl.u32 1326507024, %v3633
        %v3649 = vor.u32 %v3647, %v3648
        %vm3650 = vcmp.lt.s32.totalorder %v3631, 1
        %vm3651 = vcmp.lt.s32.totalorder %v3631, 2
        %vm3652 = vcmp.lt.s32.totalorder %v3631, 3
        %vm3653 = vcmp.lt.s32.totalorder %v3631, 4
        %v3654 = vsel %vm3650, %v3634, %v3637
        %v3655 = vsel %vm3653, %v3643, 2102212464
        %v3656 = vsel %vm3652, %v3640, %v3655
        %v3657 = vsel %vm3651, %v3654, %v3656
        %v3658 = vsel %vm3650, %v3637, %v3640
        %v3659 = vsel %vm3653, %v3646, 920167782
        %v3660 = vsel %vm3652, %v3643, %v3659
        %v3661 = vsel %vm3651, %v3658, %v3660
        %v3662 = vsel %vm3650, %v3640, %v3643
        %v3663 = vsel %vm3653, %v3649, 1326507024
        %v3664 = vsel %vm3652, %v3646, %v3663
        %v3665 = vsel %vm3651, %v3662, %v3664
        %v3666 = vshll.u32 %v3626, 8
        %v3667 = vmul.u32.u64.compose %v3666, %v3665
        %v3668 = vextract.low.u32 %v3667
        %v3669 = vextract.high.u32 %v3667
        %v3670 = vmul.u32.u64.compose %v3666, %v3661
        %v3671 = vextract.low.u32 %v3670
        %v3672 = vextract.high.u32 %v3670
        %v3673 = vmul.u32 %v3666, %v3657
        %v3674 = vadd.s32 %v3669, %v3671
        %vm3675 = vc.u32 %v3669, %v3671
        %v3676 = vadd.s32 %v3672, 1
        %v3677 = vsel %vm3675, %v3676, %v3672
        %v3678 = vadd.s32 %v3673, %v3677
        %v3679 = vadd.s32 %v3678, 536870912
        %v3680 = vshrl.u32 %v3679, 30
        %v3681 = vshll.u32 %v3680, 30
        %v3682 = vsub.s32 %v3678, %v3681
        %vm3683 = vcmp.lt.s32.totalorder %v3682, 0
        %v3684 = vsub.s32 0, %v3682
        %v3685 = vsel %vm3683, %v3684, %v3682
        %v3686 = vclz %v3685
        %v3687 = vsub.s32 %v3686, 2
        %vm3688 = vcmp.gt.s32.totalorder 0, %v3687
        %v3689 = vsel %vm3688, 0, %v3687
        %v3690 = vsub.s32 32, %v3689
        %v3691 = vshll.u32 %v3682, %v3689
        %v3692 = vshrl.u32 %v3674, %v3690
        %v3693 = vor.u32 %v3691, %v3692
        %v3694 = vsub.s32 4294967266, %v3689
        %v3695 = vadd.s32 %v3694, 127
        %v3696 = vshll.u32 %v3695, 23
        %v3697 = vor.u32 4788187, %v3696
        %v3698 = vand.u32 2147483647, %v3697
        %v3700 = vcvt.s32.f32 %v3693
        %v3701 = vmul.f32 %v3700, %v3698
        %v3702 = vxor.u32 %v3701, 2147483648
        %v3703 = vsel %vm3620, %v3702, %v3701
        %v3704 = vsub.s32 4, %v3680
        %v3705 = vsel %vm3620, %v3704, %v3680
        %v3706 = vsel %vm3619, %v613, %v3703
        %v3707 = vsel %vm3619, 0, %v3705
        %v3708 = vcosq.f32.pop %v3706
        %v3709 = vsinq.f32.pop %v3706
        %vm3710 = vweird.f32 %v613
        %v3711 = vadd.s32 %v3707, 3
        %v3712 = vand.u32 %v3711, 3
        %vm3713 = vcmp.lt.s32.totalorder %v3712, 2
        %vm3714 = vcmp.eq.s32.totalorder %v3712, 0
        %v3715 = vxor.u32 %v3709, 2147483648
        %v3716 = vsel %vm3714, %v3708, %v3715
        %vm3717 = vcmp.eq.s32.totalorder %v3712, 2
        %v3718 = vxor.u32 %v3708, 2147483648
        %v3719 = vsel %vm3717, %v3718, %v3709
        %v3720 = vsel %vm3713, %v3716, %v3719
        %v3721 = vsel %vm3710, nan, %v3720
        %v3722 = vand.u32 2147483647, %v615
        %vm3723 = vcmp.le.f32.partialorder %v3722, 0.7853982
        %vm3724 = vcmp.lt.s32.totalorder %v615, 0
        %v3725 = vand.u32 %v615, 2139095040
        %v3726 = vshrl.u32 %v3725, 23
        %v3727 = vsub.s32 %v3726, 127
        %v3728 = vand.u32 2147483647, %v615
        %v3729 = vand.u32 %v3728, 8388607
        %v3730 = vor.u32 %v3729, 8388608
        %v3731 = vsub.s32 0, %v3730
        %v3732 = vadd.s32 %v3727, 1
        %vm3733 = vcmp.gt.s32.totalorder %v3732, 0
        %v3734 = vsel %vm3733, %v3732, 0
        %v3735 = vshrl.u32 %v3734, 5
        %v3736 = vand.u32 %v3734, 31
        %v3737 = vsub.s32 32, %v3736
        %v3738 = vshrl.u32 683565275, %v3737
        %v3739 = vshll.u32 683565275, %v3736
        %v3740 = vshrl.u32 2475754826, %v3737
        %v3741 = vor.u32 %v3739, %v3740
        %v3742 = vshll.u32 2475754826, %v3736
        %v3743 = vshrl.u32 2131351028, %v3737
        %v3744 = vor.u32 %v3742, %v3743
        %v3745 = vshll.u32 2131351028, %v3736
        %v3746 = vshrl.u32 2102212464, %v3737
        %v3747 = vor.u32 %v3745, %v3746
        %v3748 = vshll.u32 2102212464, %v3736
        %v3749 = vshrl.u32 920167782, %v3737
        %v3750 = vor.u32 %v3748, %v3749
        %v3751 = vshll.u32 920167782, %v3736
        %v3752 = vshrl.u32 1326507024, %v3737
        %v3753 = vor.u32 %v3751, %v3752
        %vm3754 = vcmp.lt.s32.totalorder %v3735, 1
        %vm3755 = vcmp.lt.s32.totalorder %v3735, 2
        %vm3756 = vcmp.lt.s32.totalorder %v3735, 3
        %vm3757 = vcmp.lt.s32.totalorder %v3735, 4
        %v3758 = vsel %vm3754, %v3738, %v3741
        %v3759 = vsel %vm3757, %v3747, 2102212464
        %v3760 = vsel %vm3756, %v3744, %v3759
        %v3761 = vsel %vm3755, %v3758, %v3760
        %v3762 = vsel %vm3754, %v3741, %v3744
        %v3763 = vsel %vm3757, %v3750, 920167782
        %v3764 = vsel %vm3756, %v3747, %v3763
        %v3765 = vsel %vm3755, %v3762, %v3764
        %v3766 = vsel %vm3754, %v3744, %v3747
        %v3767 = vsel %vm3757, %v3753, 1326507024
        %v3768 = vsel %vm3756, %v3750, %v3767
        %v3769 = vsel %vm3755, %v3766, %v3768
        %v3770 = vshll.u32 %v3730, 8
        %v3771 = vmul.u32.u64.compose %v3770, %v3769
        %v3772 = vextract.low.u32 %v3771
        %v3773 = vextract.high.u32 %v3771
        %v3774 = vmul.u32.u64.compose %v3770, %v3765
        %v3775 = vextract.low.u32 %v3774
        %v3776 = vextract.high.u32 %v3774
        %v3777 = vmul.u32 %v3770, %v3761
        %v3778 = vadd.s32 %v3773, %v3775
        %vm3779 = vc.u32 %v3773, %v3775
        %v3780 = vadd.s32 %v3776, 1
        %v3781 = vsel %vm3779, %v3780, %v3776
        %v3782 = vadd.s32 %v3777, %v3781
        %v3783 = vadd.s32 %v3782, 536870912
        %v3784 = vshrl.u32 %v3783, 30
        %v3785 = vshll.u32 %v3784, 30
        %v3786 = vsub.s32 %v3782, %v3785
        %vm3787 = vcmp.lt.s32.totalorder %v3786, 0
        %v3788 = vsub.s32 0, %v3786
        %v3789 = vsel %vm3787, %v3788, %v3786
        %v3790 = vclz %v3789
        %v3791 = vsub.s32 %v3790, 2
        %vm3792 = vcmp.gt.s32.totalorder 0, %v3791
        %v3793 = vsel %vm3792, 0, %v3791
        %v3794 = vsub.s32 32, %v3793
        %v3795 = vshll.u32 %v3786, %v3793
        %v3796 = vshrl.u32 %v3778, %v3794
        %v3797 = vor.u32 %v3795, %v3796
        %v3798 = vsub.s32 4294967266, %v3793
        %v3799 = vadd.s32 %v3798, 127
        %v3800 = vshll.u32 %v3799, 23
        %v3801 = vor.u32 4788187, %v3800
        %v3802 = vand.u32 2147483647, %v3801
        %v3804 = vcvt.s32.f32 %v3797
        %v3805 = vmul.f32 %v3804, %v3802
        %v3806 = vxor.u32 %v3805, 2147483648
        %v3807 = vsel %vm3724, %v3806, %v3805
        %v3808 = vsub.s32 4, %v3784
        %v3809 = vsel %vm3724, %v3808, %v3784
        %v3810 = vsel %vm3723, %v615, %v3807
        %v3811 = vsel %vm3723, 0, %v3809
        %v3812 = vcosq.f32.pop %v3810
        %v3813 = vsinq.f32.pop %v3810
        %vm3814 = vweird.f32 %v615
        %v3815 = vadd.s32 %v3811, 3
        %v3816 = vand.u32 %v3815, 3
        %vm3817 = vcmp.lt.s32.totalorder %v3816, 2
        %vm3818 = vcmp.eq.s32.totalorder %v3816, 0
        %v3819 = vxor.u32 %v3813, 2147483648
        %v3820 = vsel %vm3818, %v3812, %v3819
        %vm3821 = vcmp.eq.s32.totalorder %v3816, 2
        %v3822 = vxor.u32 %v3812, 2147483648
        %v3823 = vsel %vm3821, %v3822, %v3813
        %v3824 = vsel %vm3817, %v3820, %v3823
        %v3825 = vsel %vm3814, nan, %v3824
        %v3826 = vand.u32 2147483647, %v702
        %vm3827 = vcmp.le.f32.partialorder %v3826, 0.7853982
        %vm3828 = vcmp.lt.s32.totalorder %v702, 0
        %v3829 = vand.u32 %v702, 2139095040
        %v3830 = vshrl.u32 %v3829, 23
        %v3831 = vsub.s32 %v3830, 127
        %v3832 = vand.u32 2147483647, %v702
        %v3833 = vand.u32 %v3832, 8388607
        %v3834 = vor.u32 %v3833, 8388608
        %v3835 = vsub.s32 0, %v3834
        %v3836 = vadd.s32 %v3831, 1
        %vm3837 = vcmp.gt.s32.totalorder %v3836, 0
        %v3838 = vsel %vm3837, %v3836, 0
        %v3839 = vshrl.u32 %v3838, 5
        %v3840 = vand.u32 %v3838, 31
        %v3841 = vsub.s32 32, %v3840
        %v3842 = vshrl.u32 683565275, %v3841
        %v3843 = vshll.u32 683565275, %v3840
        %v3844 = vshrl.u32 2475754826, %v3841
        %v3845 = vor.u32 %v3843, %v3844
        %v3846 = vshll.u32 2475754826, %v3840
        %v3847 = vshrl.u32 2131351028, %v3841
        %v3848 = vor.u32 %v3846, %v3847
        %v3849 = vshll.u32 2131351028, %v3840
        %v3850 = vshrl.u32 2102212464, %v3841
        %v3851 = vor.u32 %v3849, %v3850
        %v3852 = vshll.u32 2102212464, %v3840
        %v3853 = vshrl.u32 920167782, %v3841
        %v3854 = vor.u32 %v3852, %v3853
        %v3855 = vshll.u32 920167782, %v3840
        %v3856 = vshrl.u32 1326507024, %v3841
        %v3857 = vor.u32 %v3855, %v3856
        %vm3858 = vcmp.lt.s32.totalorder %v3839, 1
        %vm3859 = vcmp.lt.s32.totalorder %v3839, 2
        %vm3860 = vcmp.lt.s32.totalorder %v3839, 3
        %vm3861 = vcmp.lt.s32.totalorder %v3839, 4
        %v3862 = vsel %vm3858, %v3842, %v3845
        %v3863 = vsel %vm3861, %v3851, 2102212464
        %v3864 = vsel %vm3860, %v3848, %v3863
        %v3865 = vsel %vm3859, %v3862, %v3864
        %v3866 = vsel %vm3858, %v3845, %v3848
        %v3867 = vsel %vm3861, %v3854, 920167782
        %v3868 = vsel %vm3860, %v3851, %v3867
        %v3869 = vsel %vm3859, %v3866, %v3868
        %v3870 = vsel %vm3858, %v3848, %v3851
        %v3871 = vsel %vm3861, %v3857, 1326507024
        %v3872 = vsel %vm3860, %v3854, %v3871
        %v3873 = vsel %vm3859, %v3870, %v3872
        %v3874 = vshll.u32 %v3834, 8
        %v3875 = vmul.u32.u64.compose %v3874, %v3873
        %v3876 = vextract.low.u32 %v3875
        %v3877 = vextract.high.u32 %v3875
        %v3878 = vmul.u32.u64.compose %v3874, %v3869
        %v3879 = vextract.low.u32 %v3878
        %v3880 = vextract.high.u32 %v3878
        %v3881 = vmul.u32 %v3874, %v3865
        %v3882 = vadd.s32 %v3877, %v3879
        %vm3883 = vc.u32 %v3877, %v3879
        %v3884 = vadd.s32 %v3880, 1
        %v3885 = vsel %vm3883, %v3884, %v3880
        %v3886 = vadd.s32 %v3881, %v3885
        %v3887 = vadd.s32 %v3886, 536870912
        %v3888 = vshrl.u32 %v3887, 30
        %v3889 = vshll.u32 %v3888, 30
        %v3890 = vsub.s32 %v3886, %v3889
        %vm3891 = vcmp.lt.s32.totalorder %v3890, 0
        %v3892 = vsub.s32 0, %v3890
        %v3893 = vsel %vm3891, %v3892, %v3890
        %v3894 = vclz %v3893
        %v3895 = vsub.s32 %v3894, 2
        %vm3896 = vcmp.gt.s32.totalorder 0, %v3895
        %v3897 = vsel %vm3896, 0, %v3895
        %v3898 = vsub.s32 32, %v3897
        %v3899 = vshll.u32 %v3890, %v3897
        %v3900 = vshrl.u32 %v3882, %v3898
        %v3901 = vor.u32 %v3899, %v3900
        %v3902 = vsub.s32 4294967266, %v3897
        %v3903 = vadd.s32 %v3902, 127
        %v3904 = vshll.u32 %v3903, 23
        %v3905 = vor.u32 4788187, %v3904
        %v3906 = vand.u32 2147483647, %v3905
        %v3908 = vcvt.s32.f32 %v3901
        %v3909 = vmul.f32 %v3908, %v3906
        %v3910 = vxor.u32 %v3909, 2147483648
        %v3911 = vsel %vm3828, %v3910, %v3909
        %v3912 = vsub.s32 4, %v3888
        %v3913 = vsel %vm3828, %v3912, %v3888
        %v3914 = vsel %vm3827, %v702, %v3911
        %v3915 = vsel %vm3827, 0, %v3913
        %v3916 = vcosq.f32.pop %v3914
        %v3917 = vsinq.f32.pop %v3914
        %vm3918 = vweird.f32 %v702
        %v3919 = vadd.s32 %v3915, 3
        %v3920 = vand.u32 %v3919, 3
        %vm3921 = vcmp.lt.s32.totalorder %v3920, 2
        %vm3922 = vcmp.eq.s32.totalorder %v3920, 0
        %v3923 = vxor.u32 %v3917, 2147483648
        %v3924 = vsel %vm3922, %v3916, %v3923
        %vm3925 = vcmp.eq.s32.totalorder %v3920, 2
        %v3926 = vxor.u32 %v3916, 2147483648
        %v3927 = vsel %vm3925, %v3926, %v3917
        %v3928 = vsel %vm3921, %v3924, %v3927
        %v3929 = vsel %vm3918, nan, %v3928
        %v3930 = vand.u32 2147483647, %v704
        %vm3931 = vcmp.le.f32.partialorder %v3930, 0.7853982
        %vm3932 = vcmp.lt.s32.totalorder %v704, 0
        %v3933 = vand.u32 %v704, 2139095040
        %v3934 = vshrl.u32 %v3933, 23
        %v3935 = vsub.s32 %v3934, 127
        %v3936 = vand.u32 2147483647, %v704
        %v3937 = vand.u32 %v3936, 8388607
        %v3938 = vor.u32 %v3937, 8388608
        %v3939 = vsub.s32 0, %v3938
        %v3940 = vadd.s32 %v3935, 1
        %vm3941 = vcmp.gt.s32.totalorder %v3940, 0
        %v3942 = vsel %vm3941, %v3940, 0
        %v3943 = vshrl.u32 %v3942, 5
        %v3944 = vand.u32 %v3942, 31
        %v3945 = vsub.s32 32, %v3944
        %v3946 = vshrl.u32 683565275, %v3945
        %v3947 = vshll.u32 683565275, %v3944
        %v3948 = vshrl.u32 2475754826, %v3945
        %v3949 = vor.u32 %v3947, %v3948
        %v3950 = vshll.u32 2475754826, %v3944
        %v3951 = vshrl.u32 2131351028, %v3945
        %v3952 = vor.u32 %v3950, %v3951
        %v3953 = vshll.u32 2131351028, %v3944
        %v3954 = vshrl.u32 2102212464, %v3945
        %v3955 = vor.u32 %v3953, %v3954
        %v3956 = vshll.u32 2102212464, %v3944
        %v3957 = vshrl.u32 920167782, %v3945
        %v3958 = vor.u32 %v3956, %v3957
        %v3959 = vshll.u32 920167782, %v3944
        %v3960 = vshrl.u32 1326507024, %v3945
        %v3961 = vor.u32 %v3959, %v3960
        %vm3962 = vcmp.lt.s32.totalorder %v3943, 1
        %vm3963 = vcmp.lt.s32.totalorder %v3943, 2
        %vm3964 = vcmp.lt.s32.totalorder %v3943, 3
        %vm3965 = vcmp.lt.s32.totalorder %v3943, 4
        %v3966 = vsel %vm3962, %v3946, %v3949
        %v3967 = vsel %vm3965, %v3955, 2102212464
        %v3968 = vsel %vm3964, %v3952, %v3967
        %v3969 = vsel %vm3963, %v3966, %v3968
        %v3970 = vsel %vm3962, %v3949, %v3952
        %v3971 = vsel %vm3965, %v3958, 920167782
        %v3972 = vsel %vm3964, %v3955, %v3971
        %v3973 = vsel %vm3963, %v3970, %v3972
        %v3974 = vsel %vm3962, %v3952, %v3955
        %v3975 = vsel %vm3965, %v3961, 1326507024
        %v3976 = vsel %vm3964, %v3958, %v3975
        %v3977 = vsel %vm3963, %v3974, %v3976
        %v3978 = vshll.u32 %v3938, 8
        %v3979 = vmul.u32.u64.compose %v3978, %v3977
        %v3980 = vextract.low.u32 %v3979
        %v3981 = vextract.high.u32 %v3979
        %v3982 = vmul.u32.u64.compose %v3978, %v3973
        %v3983 = vextract.low.u32 %v3982
        %v3984 = vextract.high.u32 %v3982
        %v3985 = vmul.u32 %v3978, %v3969
        %v3986 = vadd.s32 %v3981, %v3983
        %vm3987 = vc.u32 %v3981, %v3983
        %v3988 = vadd.s32 %v3984, 1
        %v3989 = vsel %vm3987, %v3988, %v3984
        %v3990 = vadd.s32 %v3985, %v3989
        %v3991 = vadd.s32 %v3990, 536870912
        %v3992 = vshrl.u32 %v3991, 30
        %v3993 = vshll.u32 %v3992, 30
        %v3994 = vsub.s32 %v3990, %v3993
        %vm3995 = vcmp.lt.s32.totalorder %v3994, 0
        %v3996 = vsub.s32 0, %v3994
        %v3997 = vsel %vm3995, %v3996, %v3994
        %v3998 = vclz %v3997
        %v3999 = vsub.s32 %v3998, 2
        %vm4000 = vcmp.gt.s32.totalorder 0, %v3999
        %v4001 = vsel %vm4000, 0, %v3999
        %v4002 = vsub.s32 32, %v4001
        %v4003 = vshll.u32 %v3994, %v4001
        %v4004 = vshrl.u32 %v3986, %v4002
        %v4005 = vor.u32 %v4003, %v4004
        %v4006 = vsub.s32 4294967266, %v4001
        %v4007 = vadd.s32 %v4006, 127
        %v4008 = vshll.u32 %v4007, 23
        %v4009 = vor.u32 4788187, %v4008
        %v4010 = vand.u32 2147483647, %v4009
        %v4012 = vcvt.s32.f32 %v4005
        %v4013 = vmul.f32 %v4012, %v4010
        %v4014 = vxor.u32 %v4013, 2147483648
        %v4015 = vsel %vm3932, %v4014, %v4013
        %v4016 = vsub.s32 4, %v3992
        %v4017 = vsel %vm3932, %v4016, %v3992
        %v4018 = vsel %vm3931, %v704, %v4015
        %v4019 = vsel %vm3931, 0, %v4017
        %v4020 = vcosq.f32.pop %v4018
        %v4021 = vsinq.f32.pop %v4018
        %vm4022 = vweird.f32 %v704
        %v4023 = vadd.s32 %v4019, 3
        %v4024 = vand.u32 %v4023, 3
        %vm4025 = vcmp.lt.s32.totalorder %v4024, 2
        %vm4026 = vcmp.eq.s32.totalorder %v4024, 0
        %v4027 = vxor.u32 %v4021, 2147483648
        %v4028 = vsel %vm4026, %v4020, %v4027
        %vm4029 = vcmp.eq.s32.totalorder %v4024, 2
        %v4030 = vxor.u32 %v4020, 2147483648
        %v4031 = vsel %vm4029, %v4030, %v4021
        %v4032 = vsel %vm4025, %v4028, %v4031
        %v4033 = vsel %vm4022, nan, %v4032
        %v4034 = vld [vmem:[%s3] sm:$0xff]
        %v4035 = vld [vmem:[%s3 + $0x8] sm:$0xff]
        %v4036 = vld [vmem:[%s3 + $0x10] sm:$0xff]
        %v4037 = vld [vmem:[%s3 + $0x18] sm:$0xff]
        %v4038 = vld [vmem:[%s4] sm:$0xff]
        %v4039 = vld [vmem:[%s4 + $0x8] sm:$0xff]
        %v4040 = vld [vmem:[%s4 + $0x10] sm:$0xff]
        %v4041 = vld [vmem:[%s4 + $0x18] sm:$0xff]
        %4043 = vset.pattern.permute.xlu0 0
        %4044 = vperm.xlu0 %4043, %v4038
        %v4045 = vpop.permute.xlu0 %4044
        %4048 = vset.pattern.permute.xlu0 0
        %4049 = vperm.xlu0 %4048, %v4039
        %v4050 = vpop.permute.xlu0 %4049
        %4053 = vset.pattern.permute.xlu0 0
        %4054 = vperm.xlu0 %4053, %v4040
        %v4055 = vpop.permute.xlu0 %4054
        %4058 = vset.pattern.permute.xlu0 0
        %4059 = vperm.xlu0 %4058, %v4041
        %v4060 = vpop.permute.xlu0 %4059
        %vm4062 = vcmask 261120
        %v4064 = vsel %vm4062, %v4034, 0
        %v4067 = vsel %vm4062, %v4035, 0
        %v4070 = vsel %vm4062, %v4036, 0
        %v4073 = vsel %vm4062, %v4037, 0
        %4075 = vmatprep.subr.mxu0 %v913
        %4076 = vmatpush1.msra.mxu0 %v809
        %4077 = vmatprep.subr.mxu0 %v1745
        %4078 = vmatpush1.msra.mxu0 %v1641
        %4079 = vmatprep.subr.mxu0 %v2577
        %4080 = vmatpush1.msra.mxu0 %v2473
        %4081 = vmatprep.subr.mxu0 %v3409
        %4082 = vmatpush1.msra.mxu0 %v3305
        %4083 = vmatprep.subr.mxu0 0.0
        %4084 = vmatpush1.msra.mxu0 0.0
        %4085 = vmatprep.subr.mxu0 0.0
        %4086 = vmatpush1.msra.mxu0 0.0
        %4087 = vmatprep.subr.mxu0 0.0
        %4088 = vmatpush1.msra.mxu0 0.0
        %4089 = vmatprep.subr.mxu0 0.0
        %4090 = vmatpush1.msra.mxu0 0.0
        %4091 = vmatprep.subr.mxu0 0.0
        %4092 = vmatpush1.msra.mxu0 0.0
        %4093 = vmatprep.subr.mxu0 0.0
        %4094 = vmatpush1.msra.mxu0 0.0
        %4095 = vmatprep.subr.mxu0 0.0
        %4096 = vmatpush1.msra.mxu0 0.0
        %4097 = vmatprep.subr.mxu0 0.0
        %4098 = vmatpush1.msra.mxu0 0.0
        %4099 = vmatprep.subr.mxu0 0.0
        %4100 = vmatpush1.msra.mxu0 0.0
        %4101 = vmatprep.subr.mxu0 0.0
        %4102 = vmatpush1.msra.mxu0 0.0
        %4103 = vmatprep.subr.mxu0 0.0
        %4104 = vmatpush1.msra.mxu0 0.0
        %4105 = vmatprep.subr.mxu0 0.0
        %4106 = vmatpush1.msra.mxu0 0.0
        %4107 = vmatprep.subr.mxu0 0.0
        %4108 = vmatpush1.msra.mxu0 0.0
        %4109 = vmatprep.subr.mxu0 0.0
        %4110 = vmatpush1.msra.mxu0 0.0
        %4111 = vmatprep.subr.mxu0 0.0
        %4112 = vmatpush1.msra.mxu0 0.0
        %4113 = vmatprep.subr.mxu0 0.0
        %4114 = vmatpush1.msra.mxu0 0.0
        %4115 = vmatprep.subr.mxu0 0.0
        %4116 = vmatpush1.msra.mxu0 0.0
        %4117 = vmatprep.subr.mxu0 0.0
        %4118 = vmatpush1.msra.mxu0 0.0
        %4119 = vmatprep.subr.mxu0 0.0
        %4120 = vmatpush1.msra.mxu0 0.0
        %4121 = vmatprep.subr.mxu0 0.0
        %4122 = vmatpush1.msra.mxu0 0.0
        %4123 = vmatprep.subr.mxu0 0.0
        %4124 = vmatpush1.msra.mxu0 0.0
        %4125 = vmatprep.subr.mxu0 0.0
        %4126 = vmatpush1.msra.mxu0 0.0
        %4127 = vmatprep.subr.mxu0 0.0
        %4128 = vmatpush1.msra.mxu0 0.0
        %4129 = vmatprep.subr.mxu0 0.0
        %4130 = vmatpush1.msra.mxu0 0.0
        %4131 = vmatprep.subr.mxu0 0.0
        %4132 = vmatpush1.msra.mxu0 0.0
        %4133 = vmatprep.subr.mxu0 0.0
        %4134 = vmatpush1.msra.mxu0 0.0
        %4135 = vmatprep.subr.mxu0 0.0
        %4136 = vmatpush1.msra.mxu0 0.0
        %4137 = vmatprep.subr.mxu0 0.0
        %4138 = vmatpush1.msra.mxu0 0.0
        %4139 = vmatprep.mubr.f32.mxu0 0.0
        %4140 = vmatmul.mubr.f32.gmra.mrb[0].mxu0 %v4064
        %v4141 = vpop.f32.mrb[0].mxu0
        %v4142 = vadd.f32 %v4045, %v4141
        %v4143 = vpop.f32.mrb[0].mxu0
        %v4144 = vadd.f32 %v4045, %v4143
        %4145 = vmatprep.mubr.f32.mxu0 0.0
        %4146 = vmatmul.mubr.f32.gmra.mrb[0].mxu0 %v4067
        %v4147 = vpop.f32.mrb[0].mxu0
        %v4148 = vadd.f32 %v4050, %v4147
        %v4149 = vpop.f32.mrb[0].mxu0
        %v4150 = vadd.f32 %v4050, %v4149
        %4151 = vmatprep.mubr.f32.mxu0 0.0
        %4152 = vmatmul.mubr.f32.gmra.mrb[0].mxu0 %v4070
        %v4153 = vpop.f32.mrb[0].mxu0
        %v4154 = vadd.f32 %v4055, %v4153
        %v4155 = vpop.f32.mrb[0].mxu0
        %v4156 = vadd.f32 %v4055, %v4155
        %4157 = vmatprep.mubr.f32.mxu0 0.0
        %4158 = vmatmul.mubr.f32.gmra.mrb[0].mxu0 %v4073
        %v4159 = vpop.f32.mrb[0].mxu0
        %v4160 = vadd.f32 %v4060, %v4159
        %v4161 = vpop.f32.mrb[0].mxu0
        %v4162 = vadd.f32 %v4060, %v4161
        %4163 = vdwg.mxu0
        %4164 = vmatprep.subr.mxu0 %v1121
        %4165 = vmatpush1.msra.mxu0 %v1017
        %4166 = vmatprep.subr.mxu0 %v1953
        %4167 = vmatpush1.msra.mxu0 %v1849
        %4168 = vmatprep.subr.mxu0 %v2785
        %4169 = vmatpush1.msra.mxu0 %v2681
        %4170 = vmatprep.subr.mxu0 %v3617
        %4171 = vmatpush1.msra.mxu0 %v3513
        %4172 = vmatprep.subr.mxu0 0.0
        %4173 = vmatpush1.msra.mxu0 0.0
        %4174 = vmatprep.subr.mxu0 0.0
        %4175 = vmatpush1.msra.mxu0 0.0
        %4176 = vmatprep.subr.mxu0 0.0
        %4177 = vmatpush1.msra.mxu0 0.0
        %4178 = vmatprep.subr.mxu0 0.0
        %4179 = vmatpush1.msra.mxu0 0.0
        %4180 = vmatprep.subr.mxu0 0.0
        %4181 = vmatpush1.msra.mxu0 0.0
        %4182 = vmatprep.subr.mxu0 0.0
        %4183 = vmatpush1.msra.mxu0 0.0
        %4184 = vmatprep.subr.mxu0 0.0
        %4185 = vmatpush1.msra.mxu0 0.0
        %4186 = vmatprep.subr.mxu0 0.0
        %4187 = vmatpush1.msra.mxu0 0.0
        %4188 = vmatprep.subr.mxu0 0.0
        %4189 = vmatpush1.msra.mxu0 0.0
        %4190 = vmatprep.subr.mxu0 0.0
        %4191 = vmatpush1.msra.mxu0 0.0
        %4192 = vmatprep.subr.mxu0 0.0
        %4193 = vmatpush1.msra.mxu0 0.0
        %4194 = vmatprep.subr.mxu0 0.0
        %4195 = vmatpush1.msra.mxu0 0.0
        %4196 = vmatprep.subr.mxu0 0.0
        %4197 = vmatpush1.msra.mxu0 0.0
        %4198 = vmatprep.subr.mxu0 0.0
        %4199 = vmatpush1.msra.mxu0 0.0
        %4200 = vmatprep.subr.mxu0 0.0
        %4201 = vmatpush1.msra.mxu0 0.0
        %4202 = vmatprep.subr.mxu0 0.0
        %4203 = vmatpush1.msra.mxu0 0.0
        %4204 = vmatprep.subr.mxu0 0.0
        %4205 = vmatpush1.msra.mxu0 0.0
        %4206 = vmatprep.subr.mxu0 0.0
        %4207 = vmatpush1.msra.mxu0 0.0
        %4208 = vmatprep.subr.mxu0 0.0
        %4209 = vmatpush1.msra.mxu0 0.0
        %4210 = vmatprep.subr.mxu0 0.0
        %4211 = vmatpush1.msra.mxu0 0.0
        %4212 = vmatprep.subr.mxu0 0.0
        %4213 = vmatpush1.msra.mxu0 0.0
        %4214 = vmatprep.subr.mxu0 0.0
        %4215 = vmatpush1.msra.mxu0 0.0
        %4216 = vmatprep.subr.mxu0 0.0
        %4217 = vmatpush1.msra.mxu0 0.0
        %4218 = vmatprep.subr.mxu0 0.0
        %4219 = vmatpush1.msra.mxu0 0.0
        %4220 = vmatprep.subr.mxu0 0.0
        %4221 = vmatpush1.msra.mxu0 0.0
        %4222 = vmatprep.subr.mxu0 0.0
        %4223 = vmatpush1.msra.mxu0 0.0
        %4224 = vmatprep.subr.mxu0 0.0
        %4225 = vmatpush1.msra.mxu0 0.0
        %4226 = vmatprep.subr.mxu0 0.0
        %4227 = vmatpush1.msra.mxu0 0.0
        %4228 = vmatprep.mubr.f32.mxu0 0.0
        %4229 = vmatmul.mubr.f32.gmra.mrb[0].mxu0 %v4064
        %v4230 = vpop.f32.mrb[0].mxu0
        %v4231 = vadd.f32 %v4045, %v4230
        %v4232 = vpop.f32.mrb[0].mxu0
        %v4233 = vadd.f32 %v4045, %v4232
        %4234 = vmatprep.mubr.f32.mxu0 0.0
        %4235 = vmatmul.mubr.f32.gmra.mrb[0].mxu0 %v4067
        %v4236 = vpop.f32.mrb[0].mxu0
        %v4237 = vadd.f32 %v4050, %v4236
        %v4238 = vpop.f32.mrb[0].mxu0
        %v4239 = vadd.f32 %v4050, %v4238
        %4240 = vmatprep.mubr.f32.mxu0 0.0
        %4241 = vmatmul.mubr.f32.gmra.mrb[0].mxu0 %v4070
        %v4242 = vpop.f32.mrb[0].mxu0
        %v4243 = vadd.f32 %v4055, %v4242
        %v4244 = vpop.f32.mrb[0].mxu0
        %v4245 = vadd.f32 %v4055, %v4244
        %4246 = vmatprep.mubr.f32.mxu0 0.0
        %4247 = vmatmul.mubr.f32.gmra.mrb[0].mxu0 %v4073
        %v4248 = vpop.f32.mrb[0].mxu0
        %v4249 = vadd.f32 %v4060, %v4248
        %v4250 = vpop.f32.mrb[0].mxu0
        %v4251 = vadd.f32 %v4060, %v4250
        %4252 = vdwg.mxu0
        %4253 = vmatprep.subr.mxu0 %v1329
        %4254 = vmatpush1.msra.mxu0 %v1225
        %4255 = vmatprep.subr.mxu0 %v2161
        %4256 = vmatpush1.msra.mxu0 %v2057
        %4257 = vmatprep.subr.mxu0 %v2993
        %4258 = vmatpush1.msra.mxu0 %v2889
        %4259 = vmatprep.subr.mxu0 %v3825
        %4260 = vmatpush1.msra.mxu0 %v3721
        %4261 = vmatprep.subr.mxu0 0.0
        %4262 = vmatpush1.msra.mxu0 0.0
        %4263 = vmatprep.subr.mxu0 0.0
        %4264 = vmatpush1.msra.mxu0 0.0
        %4265 = vmatprep.subr.mxu0 0.0
        %4266 = vmatpush1.msra.mxu0 0.0
        %4267 = vmatprep.subr.mxu0 0.0
        %4268 = vmatpush1.msra.mxu0 0.0
        %4269 = vmatprep.subr.mxu0 0.0
        %4270 = vmatpush1.msra.mxu0 0.0
        %4271 = vmatprep.subr.mxu0 0.0
        %4272 = vmatpush1.msra.mxu0 0.0
        %4273 = vmatprep.subr.mxu0 0.0
        %4274 = vmatpush1.msra.mxu0 0.0
        %4275 = vmatprep.subr.mxu0 0.0
        %4276 = vmatpush1.msra.mxu0 0.0
        %4277 = vmatprep.subr.mxu0 0.0
        %4278 = vmatpush1.msra.mxu0 0.0
        %4279 = vmatprep.subr.mxu0 0.0
        %4280 = vmatpush1.msra.mxu0 0.0
        %4281 = vmatprep.subr.mxu0 0.0
        %4282 = vmatpush1.msra.mxu0 0.0
        %4283 = vmatprep.subr.mxu0 0.0
        %4284 = vmatpush1.msra.mxu0 0.0
        %4285 = vmatprep.subr.mxu0 0.0
        %4286 = vmatpush1.msra.mxu0 0.0
        %4287 = vmatprep.subr.mxu0 0.0
        %4288 = vmatpush1.msra.mxu0 0.0
        %4289 = vmatprep.subr.mxu0 0.0
        %4290 = vmatpush1.msra.mxu0 0.0
        %4291 = vmatprep.subr.mxu0 0.0
        %4292 = vmatpush1.msra.mxu0 0.0
        %4293 = vmatprep.subr.mxu0 0.0
        %4294 = vmatpush1.msra.mxu0 0.0
        %4295 = vmatprep.subr.mxu0 0.0
        %4296 = vmatpush1.msra.mxu0 0.0
        %4297 = vmatprep.subr.mxu0 0.0
        %4298 = vmatpush1.msra.mxu0 0.0
        %4299 = vmatprep.subr.mxu0 0.0
        %4300 = vmatpush1.msra.mxu0 0.0
        %4301 = vmatprep.subr.mxu0 0.0
        %4302 = vmatpush1.msra.mxu0 0.0
        %4303 = vmatprep.subr.mxu0 0.0
        %4304 = vmatpush1.msra.mxu0 0.0
        %4305 = vmatprep.subr.mxu0 0.0
        %4306 = vmatpush1.msra.mxu0 0.0
        %4307 = vmatprep.subr.mxu0 0.0
        %4308 = vmatpush1.msra.mxu0 0.0
        %4309 = vmatprep.subr.mxu0 0.0
        %4310 = vmatpush1.msra.mxu0 0.0
        %4311 = vmatprep.subr.mxu0 0.0
        %4312 = vmatpush1.msra.mxu0 0.0
        %4313 = vmatprep.subr.mxu0 0.0
        %4314 = vmatpush1.msra.mxu0 0.0
        %4315 = vmatprep.subr.mxu0 0.0
        %4316 = vmatpush1.msra.mxu0 0.0
        %4317 = vmatprep.mubr.f32.mxu0 0.0
        %4318 = vmatmul.mubr.f32.gmra.mrb[0].mxu0 %v4064
        %v4319 = vpop.f32.mrb[0].mxu0
        %v4320 = vadd.f32 %v4045, %v4319
        %v4321 = vpop.f32.mrb[0].mxu0
        %v4322 = vadd.f32 %v4045, %v4321
        %4323 = vmatprep.mubr.f32.mxu0 0.0
        %4324 = vmatmul.mubr.f32.gmra.mrb[0].mxu0 %v4067
        %v4325 = vpop.f32.mrb[0].mxu0
        %v4326 = vadd.f32 %v4050, %v4325
        %v4327 = vpop.f32.mrb[0].mxu0
        %v4328 = vadd.f32 %v4050, %v4327
        %4329 = vmatprep.mubr.f32.mxu0 0.0
        %4330 = vmatmul.mubr.f32.gmra.mrb[0].mxu0 %v4070
        %v4331 = vpop.f32.mrb[0].mxu0
        %v4332 = vadd.f32 %v4055, %v4331
        %v4333 = vpop.f32.mrb[0].mxu0
        %v4334 = vadd.f32 %v4055, %v4333
        %4335 = vmatprep.mubr.f32.mxu0 0.0
        %4336 = vmatmul.mubr.f32.gmra.mrb[0].mxu0 %v4073
        %v4337 = vpop.f32.mrb[0].mxu0
        %v4338 = vadd.f32 %v4060, %v4337
        %v4339 = vpop.f32.mrb[0].mxu0
        %v4340 = vadd.f32 %v4060, %v4339
        %4341 = vdwg.mxu0
        %4342 = vmatprep.subr.mxu0 %v1537
        %4343 = vmatpush1.msra.mxu0 %v1433
        %4344 = vmatprep.subr.mxu0 %v2369
        %4345 = vmatpush1.msra.mxu0 %v2265
        %4346 = vmatprep.subr.mxu0 %v3201
        %4347 = vmatpush1.msra.mxu0 %v3097
        %4348 = vmatprep.subr.mxu0 %v4033
        %4349 = vmatpush1.msra.mxu0 %v3929
        %4350 = vmatprep.subr.mxu0 0.0
        %4351 = vmatpush1.msra.mxu0 0.0
        %4352 = vmatprep.subr.mxu0 0.0
        %4353 = vmatpush1.msra.mxu0 0.0
        %4354 = vmatprep.subr.mxu0 0.0
        %4355 = vmatpush1.msra.mxu0 0.0
        %4356 = vmatprep.subr.mxu0 0.0
        %4357 = vmatpush1.msra.mxu0 0.0
        %4358 = vmatprep.subr.mxu0 0.0
        %4359 = vmatpush1.msra.mxu0 0.0
        %4360 = vmatprep.subr.mxu0 0.0
        %4361 = vmatpush1.msra.mxu0 0.0
        %4362 = vmatprep.subr.mxu0 0.0
        %4363 = vmatpush1.msra.mxu0 0.0
        %4364 = vmatprep.subr.mxu0 0.0
        %4365 = vmatpush1.msra.mxu0 0.0
        %4366 = vmatprep.subr.mxu0 0.0
        %4367 = vmatpush1.msra.mxu0 0.0
        %4368 = vmatprep.subr.mxu0 0.0
        %4369 = vmatpush1.msra.mxu0 0.0
        %4370 = vmatprep.subr.mxu0 0.0
        %4371 = vmatpush1.msra.mxu0 0.0
        %4372 = vmatprep.subr.mxu0 0.0
        %4373 = vmatpush1.msra.mxu0 0.0
        %4374 = vmatprep.subr.mxu0 0.0
        %4375 = vmatpush1.msra.mxu0 0.0
        %4376 = vmatprep.subr.mxu0 0.0
        %4377 = vmatpush1.msra.mxu0 0.0
        %4378 = vmatprep.subr.mxu0 0.0
        %4379 = vmatpush1.msra.mxu0 0.0
        %4380 = vmatprep.subr.mxu0 0.0
        %4381 = vmatpush1.msra.mxu0 0.0
        %4382 = vmatprep.subr.mxu0 0.0
        %4383 = vmatpush1.msra.mxu0 0.0
        %4384 = vmatprep.subr.mxu0 0.0
        %4385 = vmatpush1.msra.mxu0 0.0
        %4386 = vmatprep.subr.mxu0 0.0
        %4387 = vmatpush1.msra.mxu0 0.0
        %4388 = vmatprep.subr.mxu0 0.0
        %4389 = vmatpush1.msra.mxu0 0.0
        %4390 = vmatprep.subr.mxu0 0.0
        %4391 = vmatpush1.msra.mxu0 0.0
        %4392 = vmatprep.subr.mxu0 0.0
        %4393 = vmatpush1.msra.mxu0 0.0
        %4394 = vmatprep.subr.mxu0 0.0
        %4395 = vmatpush1.msra.mxu0 0.0
        %4396 = vmatprep.subr.mxu0 0.0
        %4397 = vmatpush1.msra.mxu0 0.0
        %4398 = vmatprep.subr.mxu0 0.0
        %4399 = vmatpush1.msra.mxu0 0.0
        %4400 = vmatprep.subr.mxu0 0.0
        %4401 = vmatpush1.msra.mxu0 0.0
        %4402 = vmatprep.subr.mxu0 0.0
        %4403 = vmatpush1.msra.mxu0 0.0
        %4404 = vmatprep.subr.mxu0 0.0
        %4405 = vmatpush1.msra.mxu0 0.0
        %4406 = vmatprep.mubr.f32.mxu0 0.0
        %4407 = vmatmul.mubr.f32.gmra.mrb[0].mxu0 %v4064
        %v4408 = vpop.f32.mrb[0].mxu0
        %v4409 = vadd.f32 %v4045, %v4408
        %v4410 = vpop.f32.mrb[0].mxu0
        %v4411 = vadd.f32 %v4045, %v4410
        %4412 = vmatprep.mubr.f32.mxu0 0.0
        %4413 = vmatmul.mubr.f32.gmra.mrb[0].mxu0 %v4067
        %v4414 = vpop.f32.mrb[0].mxu0
        %v4415 = vadd.f32 %v4050, %v4414
        %v4416 = vpop.f32.mrb[0].mxu0
        %v4417 = vadd.f32 %v4050, %v4416
        %4418 = vmatprep.mubr.f32.mxu0 0.0
        %4419 = vmatmul.mubr.f32.gmra.mrb[0].mxu0 %v4070
        %v4420 = vpop.f32.mrb[0].mxu0
        %v4421 = vadd.f32 %v4055, %v4420
        %v4422 = vpop.f32.mrb[0].mxu0
        %v4423 = vadd.f32 %v4055, %v4422
        %4424 = vmatprep.mubr.f32.mxu0 0.0
        %4425 = vmatmul.mubr.f32.gmra.mrb[0].mxu0 %v4073
        %v4426 = vpop.f32.mrb[0].mxu0
        %v4427 = vadd.f32 %v4060, %v4426
        %v4428 = vpop.f32.mrb[0].mxu0
        %v4429 = vadd.f32 %v4060, %v4428
        %4430 = vdwg.mxu0
        %v4431 = vand.u32 2147483647, %v4142
        %vm4432 = vcmp.le.f32.partialorder %v4431, 0.7853982
        %vm4433 = vcmp.lt.s32.totalorder %v4142, 0
        %v4434 = vand.u32 %v4142, 2139095040
        %v4435 = vshrl.u32 %v4434, 23
        %v4436 = vsub.s32 %v4435, 127
        %v4437 = vand.u32 2147483647, %v4142
        %v4438 = vand.u32 %v4437, 8388607
        %v4439 = vor.u32 %v4438, 8388608
        %v4440 = vsub.s32 0, %v4439
        %v4441 = vadd.s32 %v4436, 1
        %vm4442 = vcmp.gt.s32.totalorder %v4441, 0
        %v4443 = vsel %vm4442, %v4441, 0
        %v4444 = vshrl.u32 %v4443, 5
        %v4445 = vand.u32 %v4443, 31
        %v4446 = vsub.s32 32, %v4445
        %v4447 = vshrl.u32 683565275, %v4446
        %v4448 = vshll.u32 683565275, %v4445
        %v4449 = vshrl.u32 2475754826, %v4446
        %v4450 = vor.u32 %v4448, %v4449
        %v4451 = vshll.u32 2475754826, %v4445
        %v4452 = vshrl.u32 2131351028, %v4446
        %v4453 = vor.u32 %v4451, %v4452
        %v4454 = vshll.u32 2131351028, %v4445
        %v4455 = vshrl.u32 2102212464, %v4446
        %v4456 = vor.u32 %v4454, %v4455
        %v4457 = vshll.u32 2102212464, %v4445
        %v4458 = vshrl.u32 920167782, %v4446
        %v4459 = vor.u32 %v4457, %v4458
        %v4460 = vshll.u32 920167782, %v4445
        %v4461 = vshrl.u32 1326507024, %v4446
        %v4462 = vor.u32 %v4460, %v4461
        %vm4463 = vcmp.lt.s32.totalorder %v4444, 1
        %vm4464 = vcmp.lt.s32.totalorder %v4444, 2
        %vm4465 = vcmp.lt.s32.totalorder %v4444, 3
        %vm4466 = vcmp.lt.s32.totalorder %v4444, 4
        %v4467 = vsel %vm4463, %v4447, %v4450
        %v4468 = vsel %vm4466, %v4456, 2102212464
        %v4469 = vsel %vm4465, %v4453, %v4468
        %v4470 = vsel %vm4464, %v4467, %v4469
        %v4471 = vsel %vm4463, %v4450, %v4453
        %v4472 = vsel %vm4466, %v4459, 920167782
        %v4473 = vsel %vm4465, %v4456, %v4472
        %v4474 = vsel %vm4464, %v4471, %v4473
        %v4475 = vsel %vm4463, %v4453, %v4456
        %v4476 = vsel %vm4466, %v4462, 1326507024
        %v4477 = vsel %vm4465, %v4459, %v4476
        %v4478 = vsel %vm4464, %v4475, %v4477
        %v4479 = vshll.u32 %v4439, 8
        %v4480 = vmul.u32.u64.compose %v4479, %v4478
        %v4481 = vextract.low.u32 %v4480
        %v4482 = vextract.high.u32 %v4480
        %v4483 = vmul.u32.u64.compose %v4479, %v4474
        %v4484 = vextract.low.u32 %v4483
        %v4485 = vextract.high.u32 %v4483
        %v4486 = vmul.u32 %v4479, %v4470
        %v4487 = vadd.s32 %v4482, %v4484
        %vm4488 = vc.u32 %v4482, %v4484
        %v4489 = vadd.s32 %v4485, 1
        %v4490 = vsel %vm4488, %v4489, %v4485
        %v4491 = vadd.s32 %v4486, %v4490
        %v4492 = vadd.s32 %v4491, 536870912
        %v4493 = vshrl.u32 %v4492, 30
        %v4494 = vshll.u32 %v4493, 30
        %v4495 = vsub.s32 %v4491, %v4494
        %vm4496 = vcmp.lt.s32.totalorder %v4495, 0
        %v4497 = vsub.s32 0, %v4495
        %v4498 = vsel %vm4496, %v4497, %v4495
        %v4499 = vclz %v4498
        %v4500 = vsub.s32 %v4499, 2
        %vm4501 = vcmp.gt.s32.totalorder 0, %v4500
        %v4502 = vsel %vm4501, 0, %v4500
        %v4503 = vsub.s32 32, %v4502
        %v4504 = vshll.u32 %v4495, %v4502
        %v4505 = vshrl.u32 %v4487, %v4503
        %v4506 = vor.u32 %v4504, %v4505
        %v4507 = vsub.s32 4294967266, %v4502
        %v4508 = vadd.s32 %v4507, 127
        %v4509 = vshll.u32 %v4508, 23
        %v4510 = vor.u32 4788187, %v4509
        %v4511 = vand.u32 2147483647, %v4510
        %v4513 = vcvt.s32.f32 %v4506
        %v4514 = vmul.f32 %v4513, %v4511
        %v4515 = vxor.u32 %v4514, 2147483648
        %v4516 = vsel %vm4433, %v4515, %v4514
        %v4517 = vsub.s32 4, %v4493
        %v4518 = vsel %vm4433, %v4517, %v4493
        %v4519 = vsel %vm4432, %v4142, %v4516
        %v4520 = vsel %vm4432, 0, %v4518
        %v4521 = vcosq.f32.pop %v4519
        %v4522 = vsinq.f32.pop %v4519
        %vm4523 = vweird.f32 %v4142
        %v4524 = vadd.s32 %v4520, 3
        %v4525 = vand.u32 %v4524, 3
        %vm4526 = vcmp.lt.s32.totalorder %v4525, 2
        %vm4527 = vcmp.eq.s32.totalorder %v4525, 0
        %v4528 = vxor.u32 %v4522, 2147483648
        %v4529 = vsel %vm4527, %v4521, %v4528
        %vm4530 = vcmp.eq.s32.totalorder %v4525, 2
        %v4531 = vxor.u32 %v4521, 2147483648
        %v4532 = vsel %vm4530, %v4531, %v4522
        %v4533 = vsel %vm4526, %v4529, %v4532
        %v4534 = vsel %vm4523, nan, %v4533
        %v4535 = vand.u32 2147483647, %v4144
        %vm4536 = vcmp.le.f32.partialorder %v4535, 0.7853982
        %vm4537 = vcmp.lt.s32.totalorder %v4144, 0
        %v4538 = vand.u32 %v4144, 2139095040
        %v4539 = vshrl.u32 %v4538, 23
        %v4540 = vsub.s32 %v4539, 127
        %v4541 = vand.u32 2147483647, %v4144
        %v4542 = vand.u32 %v4541, 8388607
        %v4543 = vor.u32 %v4542, 8388608
        %v4544 = vsub.s32 0, %v4543
        %v4545 = vadd.s32 %v4540, 1
        %vm4546 = vcmp.gt.s32.totalorder %v4545, 0
        %v4547 = vsel %vm4546, %v4545, 0
        %v4548 = vshrl.u32 %v4547, 5
        %v4549 = vand.u32 %v4547, 31
        %v4550 = vsub.s32 32, %v4549
        %v4551 = vshrl.u32 683565275, %v4550
        %v4552 = vshll.u32 683565275, %v4549
        %v4553 = vshrl.u32 2475754826, %v4550
        %v4554 = vor.u32 %v4552, %v4553
        %v4555 = vshll.u32 2475754826, %v4549
        %v4556 = vshrl.u32 2131351028, %v4550
        %v4557 = vor.u32 %v4555, %v4556
        %v4558 = vshll.u32 2131351028, %v4549
        %v4559 = vshrl.u32 2102212464, %v4550
        %v4560 = vor.u32 %v4558, %v4559
        %v4561 = vshll.u32 2102212464, %v4549
        %v4562 = vshrl.u32 920167782, %v4550
        %v4563 = vor.u32 %v4561, %v4562
        %v4564 = vshll.u32 920167782, %v4549
        %v4565 = vshrl.u32 1326507024, %v4550
        %v4566 = vor.u32 %v4564, %v4565
        %vm4567 = vcmp.lt.s32.totalorder %v4548, 1
        %vm4568 = vcmp.lt.s32.totalorder %v4548, 2
        %vm4569 = vcmp.lt.s32.totalorder %v4548, 3
        %vm4570 = vcmp.lt.s32.totalorder %v4548, 4
        %v4571 = vsel %vm4567, %v4551, %v4554
        %v4572 = vsel %vm4570, %v4560, 2102212464
        %v4573 = vsel %vm4569, %v4557, %v4572
        %v4574 = vsel %vm4568, %v4571, %v4573
        %v4575 = vsel %vm4567, %v4554, %v4557
        %v4576 = vsel %vm4570, %v4563, 920167782
        %v4577 = vsel %vm4569, %v4560, %v4576
        %v4578 = vsel %vm4568, %v4575, %v4577
        %v4579 = vsel %vm4567, %v4557, %v4560
        %v4580 = vsel %vm4570, %v4566, 1326507024
        %v4581 = vsel %vm4569, %v4563, %v4580
        %v4582 = vsel %vm4568, %v4579, %v4581
        %v4583 = vshll.u32 %v4543, 8
        %v4584 = vmul.u32.u64.compose %v4583, %v4582
        %v4585 = vextract.low.u32 %v4584
        %v4586 = vextract.high.u32 %v4584
        %v4587 = vmul.u32.u64.compose %v4583, %v4578
        %v4588 = vextract.low.u32 %v4587
        %v4589 = vextract.high.u32 %v4587
        %v4590 = vmul.u32 %v4583, %v4574
        %v4591 = vadd.s32 %v4586, %v4588
        %vm4592 = vc.u32 %v4586, %v4588
        %v4593 = vadd.s32 %v4589, 1
        %v4594 = vsel %vm4592, %v4593, %v4589
        %v4595 = vadd.s32 %v4590, %v4594
        %v4596 = vadd.s32 %v4595, 536870912
        %v4597 = vshrl.u32 %v4596, 30
        %v4598 = vshll.u32 %v4597, 30
        %v4599 = vsub.s32 %v4595, %v4598
        %vm4600 = vcmp.lt.s32.totalorder %v4599, 0
        %v4601 = vsub.s32 0, %v4599
        %v4602 = vsel %vm4600, %v4601, %v4599
        %v4603 = vclz %v4602
        %v4604 = vsub.s32 %v4603, 2
        %vm4605 = vcmp.gt.s32.totalorder 0, %v4604
        %v4606 = vsel %vm4605, 0, %v4604
        %v4607 = vsub.s32 32, %v4606
        %v4608 = vshll.u32 %v4599, %v4606
        %v4609 = vshrl.u32 %v4591, %v4607
        %v4610 = vor.u32 %v4608, %v4609
        %v4611 = vsub.s32 4294967266, %v4606
        %v4612 = vadd.s32 %v4611, 127
        %v4613 = vshll.u32 %v4612, 23
        %v4614 = vor.u32 4788187, %v4613
        %v4615 = vand.u32 2147483647, %v4614
        %v4617 = vcvt.s32.f32 %v4610
        %v4618 = vmul.f32 %v4617, %v4615
        %v4619 = vxor.u32 %v4618, 2147483648
        %v4620 = vsel %vm4537, %v4619, %v4618
        %v4621 = vsub.s32 4, %v4597
        %v4622 = vsel %vm4537, %v4621, %v4597
        %v4623 = vsel %vm4536, %v4144, %v4620
        %v4624 = vsel %vm4536, 0, %v4622
        %v4625 = vcosq.f32.pop %v4623
        %v4626 = vsinq.f32.pop %v4623
        %vm4627 = vweird.f32 %v4144
        %v4628 = vadd.s32 %v4624, 3
        %v4629 = vand.u32 %v4628, 3
        %vm4630 = vcmp.lt.s32.totalorder %v4629, 2
        %vm4631 = vcmp.eq.s32.totalorder %v4629, 0
        %v4632 = vxor.u32 %v4626, 2147483648
        %v4633 = vsel %vm4631, %v4625, %v4632
        %vm4634 = vcmp.eq.s32.totalorder %v4629, 2
        %v4635 = vxor.u32 %v4625, 2147483648
        %v4636 = vsel %vm4634, %v4635, %v4626
        %v4637 = vsel %vm4630, %v4633, %v4636
        %v4638 = vsel %vm4627, nan, %v4637
        %v4639 = vand.u32 2147483647, %v4231
        %vm4640 = vcmp.le.f32.partialorder %v4639, 0.7853982
        %vm4641 = vcmp.lt.s32.totalorder %v4231, 0
        %v4642 = vand.u32 %v4231, 2139095040
        %v4643 = vshrl.u32 %v4642, 23
        %v4644 = vsub.s32 %v4643, 127
        %v4645 = vand.u32 2147483647, %v4231
        %v4646 = vand.u32 %v4645, 8388607
        %v4647 = vor.u32 %v4646, 8388608
        %v4648 = vsub.s32 0, %v4647
        %v4649 = vadd.s32 %v4644, 1
        %vm4650 = vcmp.gt.s32.totalorder %v4649, 0
        %v4651 = vsel %vm4650, %v4649, 0
        %v4652 = vshrl.u32 %v4651, 5
        %v4653 = vand.u32 %v4651, 31
        %v4654 = vsub.s32 32, %v4653
        %v4655 = vshrl.u32 683565275, %v4654
        %v4656 = vshll.u32 683565275, %v4653
        %v4657 = vshrl.u32 2475754826, %v4654
        %v4658 = vor.u32 %v4656, %v4657
        %v4659 = vshll.u32 2475754826, %v4653
        %v4660 = vshrl.u32 2131351028, %v4654
        %v4661 = vor.u32 %v4659, %v4660
        %v4662 = vshll.u32 2131351028, %v4653
        %v4663 = vshrl.u32 2102212464, %v4654
        %v4664 = vor.u32 %v4662, %v4663
        %v4665 = vshll.u32 2102212464, %v4653
        %v4666 = vshrl.u32 920167782, %v4654
        %v4667 = vor.u32 %v4665, %v4666
        %v4668 = vshll.u32 920167782, %v4653
        %v4669 = vshrl.u32 1326507024, %v4654
        %v4670 = vor.u32 %v4668, %v4669
        %vm4671 = vcmp.lt.s32.totalorder %v4652, 1
        %vm4672 = vcmp.lt.s32.totalorder %v4652, 2
        %vm4673 = vcmp.lt.s32.totalorder %v4652, 3
        %vm4674 = vcmp.lt.s32.totalorder %v4652, 4
        %v4675 = vsel %vm4671, %v4655, %v4658
        %v4676 = vsel %vm4674, %v4664, 2102212464
        %v4677 = vsel %vm4673, %v4661, %v4676
        %v4678 = vsel %vm4672, %v4675, %v4677
        %v4679 = vsel %vm4671, %v4658, %v4661
        %v4680 = vsel %vm4674, %v4667, 920167782
        %v4681 = vsel %vm4673, %v4664, %v4680
        %v4682 = vsel %vm4672, %v4679, %v4681
        %v4683 = vsel %vm4671, %v4661, %v4664
        %v4684 = vsel %vm4674, %v4670, 1326507024
        %v4685 = vsel %vm4673, %v4667, %v4684
        %v4686 = vsel %vm4672, %v4683, %v4685
        %v4687 = vshll.u32 %v4647, 8
        %v4688 = vmul.u32.u64.compose %v4687, %v4686
        %v4689 = vextract.low.u32 %v4688
        %v4690 = vextract.high.u32 %v4688
        %v4691 = vmul.u32.u64.compose %v4687, %v4682
        %v4692 = vextract.low.u32 %v4691
        %v4693 = vextract.high.u32 %v4691
        %v4694 = vmul.u32 %v4687, %v4678
        %v4695 = vadd.s32 %v4690, %v4692
        %vm4696 = vc.u32 %v4690, %v4692
        %v4697 = vadd.s32 %v4693, 1
        %v4698 = vsel %vm4696, %v4697, %v4693
        %v4699 = vadd.s32 %v4694, %v4698
        %v4700 = vadd.s32 %v4699, 536870912
        %v4701 = vshrl.u32 %v4700, 30
        %v4702 = vshll.u32 %v4701, 30
        %v4703 = vsub.s32 %v4699, %v4702
        %vm4704 = vcmp.lt.s32.totalorder %v4703, 0
        %v4705 = vsub.s32 0, %v4703
        %v4706 = vsel %vm4704, %v4705, %v4703
        %v4707 = vclz %v4706
        %v4708 = vsub.s32 %v4707, 2
        %vm4709 = vcmp.gt.s32.totalorder 0, %v4708
        %v4710 = vsel %vm4709, 0, %v4708
        %v4711 = vsub.s32 32, %v4710
        %v4712 = vshll.u32 %v4703, %v4710
        %v4713 = vshrl.u32 %v4695, %v4711
        %v4714 = vor.u32 %v4712, %v4713
        %v4715 = vsub.s32 4294967266, %v4710
        %v4716 = vadd.s32 %v4715, 127
        %v4717 = vshll.u32 %v4716, 23
        %v4718 = vor.u32 4788187, %v4717
        %v4719 = vand.u32 2147483647, %v4718
        %v4721 = vcvt.s32.f32 %v4714
        %v4722 = vmul.f32 %v4721, %v4719
        %v4723 = vxor.u32 %v4722, 2147483648
        %v4724 = vsel %vm4641, %v4723, %v4722
        %v4725 = vsub.s32 4, %v4701
        %v4726 = vsel %vm4641, %v4725, %v4701
        %v4727 = vsel %vm4640, %v4231, %v4724
        %v4728 = vsel %vm4640, 0, %v4726
        %v4729 = vcosq.f32.pop %v4727
        %v4730 = vsinq.f32.pop %v4727
        %vm4731 = vweird.f32 %v4231
        %v4732 = vadd.s32 %v4728, 3
        %v4733 = vand.u32 %v4732, 3
        %vm4734 = vcmp.lt.s32.totalorder %v4733, 2
        %vm4735 = vcmp.eq.s32.totalorder %v4733, 0
        %v4736 = vxor.u32 %v4730, 2147483648
        %v4737 = vsel %vm4735, %v4729, %v4736
        %vm4738 = vcmp.eq.s32.totalorder %v4733, 2
        %v4739 = vxor.u32 %v4729, 2147483648
        %v4740 = vsel %vm4738, %v4739, %v4730
        %v4741 = vsel %vm4734, %v4737, %v4740
        %v4742 = vsel %vm4731, nan, %v4741
        %v4743 = vand.u32 2147483647, %v4233
        %vm4744 = vcmp.le.f32.partialorder %v4743, 0.7853982
        %vm4745 = vcmp.lt.s32.totalorder %v4233, 0
        %v4746 = vand.u32 %v4233, 2139095040
        %v4747 = vshrl.u32 %v4746, 23
        %v4748 = vsub.s32 %v4747, 127
        %v4749 = vand.u32 2147483647, %v4233
        %v4750 = vand.u32 %v4749, 8388607
        %v4751 = vor.u32 %v4750, 8388608
        %v4752 = vsub.s32 0, %v4751
        %v4753 = vadd.s32 %v4748, 1
        %vm4754 = vcmp.gt.s32.totalorder %v4753, 0
        %v4755 = vsel %vm4754, %v4753, 0
        %v4756 = vshrl.u32 %v4755, 5
        %v4757 = vand.u32 %v4755, 31
        %v4758 = vsub.s32 32, %v4757
        %v4759 = vshrl.u32 683565275, %v4758
        %v4760 = vshll.u32 683565275, %v4757
        %v4761 = vshrl.u32 2475754826, %v4758
        %v4762 = vor.u32 %v4760, %v4761
        %v4763 = vshll.u32 2475754826, %v4757
        %v4764 = vshrl.u32 2131351028, %v4758
        %v4765 = vor.u32 %v4763, %v4764
        %v4766 = vshll.u32 2131351028, %v4757
        %v4767 = vshrl.u32 2102212464, %v4758
        %v4768 = vor.u32 %v4766, %v4767
        %v4769 = vshll.u32 2102212464, %v4757
        %v4770 = vshrl.u32 920167782, %v4758
        %v4771 = vor.u32 %v4769, %v4770
        %v4772 = vshll.u32 920167782, %v4757
        %v4773 = vshrl.u32 1326507024, %v4758
        %v4774 = vor.u32 %v4772, %v4773
        %vm4775 = vcmp.lt.s32.totalorder %v4756, 1
        %vm4776 = vcmp.lt.s32.totalorder %v4756, 2
        %vm4777 = vcmp.lt.s32.totalorder %v4756, 3
        %vm4778 = vcmp.lt.s32.totalorder %v4756, 4
        %v4779 = vsel %vm4775, %v4759, %v4762
        %v4780 = vsel %vm4778, %v4768, 2102212464
        %v4781 = vsel %vm4777, %v4765, %v4780
        %v4782 = vsel %vm4776, %v4779, %v4781
        %v4783 = vsel %vm4775, %v4762, %v4765
        %v4784 = vsel %vm4778, %v4771, 920167782
        %v4785 = vsel %vm4777, %v4768, %v4784
        %v4786 = vsel %vm4776, %v4783, %v4785
        %v4787 = vsel %vm4775, %v4765, %v4768
        %v4788 = vsel %vm4778, %v4774, 1326507024
        %v4789 = vsel %vm4777, %v4771, %v4788
        %v4790 = vsel %vm4776, %v4787, %v4789
        %v4791 = vshll.u32 %v4751, 8
        %v4792 = vmul.u32.u64.compose %v4791, %v4790
        %v4793 = vextract.low.u32 %v4792
        %v4794 = vextract.high.u32 %v4792
        %v4795 = vmul.u32.u64.compose %v4791, %v4786
        %v4796 = vextract.low.u32 %v4795
        %v4797 = vextract.high.u32 %v4795
        %v4798 = vmul.u32 %v4791, %v4782
        %v4799 = vadd.s32 %v4794, %v4796
        %vm4800 = vc.u32 %v4794, %v4796
        %v4801 = vadd.s32 %v4797, 1
        %v4802 = vsel %vm4800, %v4801, %v4797
        %v4803 = vadd.s32 %v4798, %v4802
        %v4804 = vadd.s32 %v4803, 536870912
        %v4805 = vshrl.u32 %v4804, 30
        %v4806 = vshll.u32 %v4805, 30
        %v4807 = vsub.s32 %v4803, %v4806
        %vm4808 = vcmp.lt.s32.totalorder %v4807, 0
        %v4809 = vsub.s32 0, %v4807
        %v4810 = vsel %vm4808, %v4809, %v4807
        %v4811 = vclz %v4810
        %v4812 = vsub.s32 %v4811, 2
        %vm4813 = vcmp.gt.s32.totalorder 0, %v4812
        %v4814 = vsel %vm4813, 0, %v4812
        %v4815 = vsub.s32 32, %v4814
        %v4816 = vshll.u32 %v4807, %v4814
        %v4817 = vshrl.u32 %v4799, %v4815
        %v4818 = vor.u32 %v4816, %v4817
        %v4819 = vsub.s32 4294967266, %v4814
        %v4820 = vadd.s32 %v4819, 127
        %v4821 = vshll.u32 %v4820, 23
        %v4822 = vor.u32 4788187, %v4821
        %v4823 = vand.u32 2147483647, %v4822
        %v4825 = vcvt.s32.f32 %v4818
        %v4826 = vmul.f32 %v4825, %v4823
        %v4827 = vxor.u32 %v4826, 2147483648
        %v4828 = vsel %vm4745, %v4827, %v4826
        %v4829 = vsub.s32 4, %v4805
        %v4830 = vsel %vm4745, %v4829, %v4805
        %v4831 = vsel %vm4744, %v4233, %v4828
        %v4832 = vsel %vm4744, 0, %v4830
        %v4833 = vcosq.f32.pop %v4831
        %v4834 = vsinq.f32.pop %v4831
        %vm4835 = vweird.f32 %v4233
        %v4836 = vadd.s32 %v4832, 3
        %v4837 = vand.u32 %v4836, 3
        %vm4838 = vcmp.lt.s32.totalorder %v4837, 2
        %vm4839 = vcmp.eq.s32.totalorder %v4837, 0
        %v4840 = vxor.u32 %v4834, 2147483648
        %v4841 = vsel %vm4839, %v4833, %v4840
        %vm4842 = vcmp.eq.s32.totalorder %v4837, 2
        %v4843 = vxor.u32 %v4833, 2147483648
        %v4844 = vsel %vm4842, %v4843, %v4834
        %v4845 = vsel %vm4838, %v4841, %v4844
        %v4846 = vsel %vm4835, nan, %v4845
        %v4847 = vand.u32 2147483647, %v4320
        %vm4848 = vcmp.le.f32.partialorder %v4847, 0.7853982
        %vm4849 = vcmp.lt.s32.totalorder %v4320, 0
        %v4850 = vand.u32 %v4320, 2139095040
        %v4851 = vshrl.u32 %v4850, 23
        %v4852 = vsub.s32 %v4851, 127
        %v4853 = vand.u32 2147483647, %v4320
        %v4854 = vand.u32 %v4853, 8388607
        %v4855 = vor.u32 %v4854, 8388608
        %v4856 = vsub.s32 0, %v4855
        %v4857 = vadd.s32 %v4852, 1
        %vm4858 = vcmp.gt.s32.totalorder %v4857, 0
        %v4859 = vsel %vm4858, %v4857, 0
        %v4860 = vshrl.u32 %v4859, 5
        %v4861 = vand.u32 %v4859, 31
        %v4862 = vsub.s32 32, %v4861
        %v4863 = vshrl.u32 683565275, %v4862
        %v4864 = vshll.u32 683565275, %v4861
        %v4865 = vshrl.u32 2475754826, %v4862
        %v4866 = vor.u32 %v4864, %v4865
        %v4867 = vshll.u32 2475754826, %v4861
        %v4868 = vshrl.u32 2131351028, %v4862
        %v4869 = vor.u32 %v4867, %v4868
        %v4870 = vshll.u32 2131351028, %v4861
        %v4871 = vshrl.u32 2102212464, %v4862
        %v4872 = vor.u32 %v4870, %v4871
        %v4873 = vshll.u32 2102212464, %v4861
        %v4874 = vshrl.u32 920167782, %v4862
        %v4875 = vor.u32 %v4873, %v4874
        %v4876 = vshll.u32 920167782, %v4861
        %v4877 = vshrl.u32 1326507024, %v4862
        %v4878 = vor.u32 %v4876, %v4877
        %vm4879 = vcmp.lt.s32.totalorder %v4860, 1
        %vm4880 = vcmp.lt.s32.totalorder %v4860, 2
        %vm4881 = vcmp.lt.s32.totalorder %v4860, 3
        %vm4882 = vcmp.lt.s32.totalorder %v4860, 4
        %v4883 = vsel %vm4879, %v4863, %v4866
        %v4884 = vsel %vm4882, %v4872, 2102212464
        %v4885 = vsel %vm4881, %v4869, %v4884
        %v4886 = vsel %vm4880, %v4883, %v4885
        %v4887 = vsel %vm4879, %v4866, %v4869
        %v4888 = vsel %vm4882, %v4875, 920167782
        %v4889 = vsel %vm4881, %v4872, %v4888
        %v4890 = vsel %vm4880, %v4887, %v4889
        %v4891 = vsel %vm4879, %v4869, %v4872
        %v4892 = vsel %vm4882, %v4878, 1326507024
        %v4893 = vsel %vm4881, %v4875, %v4892
        %v4894 = vsel %vm4880, %v4891, %v4893
        %v4895 = vshll.u32 %v4855, 8
        %v4896 = vmul.u32.u64.compose %v4895, %v4894
        %v4897 = vextract.low.u32 %v4896
        %v4898 = vextract.high.u32 %v4896
        %v4899 = vmul.u32.u64.compose %v4895, %v4890
        %v4900 = vextract.low.u32 %v4899
        %v4901 = vextract.high.u32 %v4899
        %v4902 = vmul.u32 %v4895, %v4886
        %v4903 = vadd.s32 %v4898, %v4900
        %vm4904 = vc.u32 %v4898, %v4900
        %v4905 = vadd.s32 %v4901, 1
        %v4906 = vsel %vm4904, %v4905, %v4901
        %v4907 = vadd.s32 %v4902, %v4906
        %v4908 = vadd.s32 %v4907, 536870912
        %v4909 = vshrl.u32 %v4908, 30
        %v4910 = vshll.u32 %v4909, 30
        %v4911 = vsub.s32 %v4907, %v4910
        %vm4912 = vcmp.lt.s32.totalorder %v4911, 0
        %v4913 = vsub.s32 0, %v4911
        %v4914 = vsel %vm4912, %v4913, %v4911
        %v4915 = vclz %v4914
        %v4916 = vsub.s32 %v4915, 2
        %vm4917 = vcmp.gt.s32.totalorder 0, %v4916
        %v4918 = vsel %vm4917, 0, %v4916
        %v4919 = vsub.s32 32, %v4918
        %v4920 = vshll.u32 %v4911, %v4918
        %v4921 = vshrl.u32 %v4903, %v4919
        %v4922 = vor.u32 %v4920, %v4921
        %v4923 = vsub.s32 4294967266, %v4918
        %v4924 = vadd.s32 %v4923, 127
        %v4925 = vshll.u32 %v4924, 23
        %v4926 = vor.u32 4788187, %v4925
        %v4927 = vand.u32 2147483647, %v4926
        %v4929 = vcvt.s32.f32 %v4922
        %v4930 = vmul.f32 %v4929, %v4927
        %v4931 = vxor.u32 %v4930, 2147483648
        %v4932 = vsel %vm4849, %v4931, %v4930
        %v4933 = vsub.s32 4, %v4909
        %v4934 = vsel %vm4849, %v4933, %v4909
        %v4935 = vsel %vm4848, %v4320, %v4932
        %v4936 = vsel %vm4848, 0, %v4934
        %v4937 = vcosq.f32.pop %v4935
        %v4938 = vsinq.f32.pop %v4935
        %vm4939 = vweird.f32 %v4320
        %v4940 = vadd.s32 %v4936, 3
        %v4941 = vand.u32 %v4940, 3
        %vm4942 = vcmp.lt.s32.totalorder %v4941, 2
        %vm4943 = vcmp.eq.s32.totalorder %v4941, 0
        %v4944 = vxor.u32 %v4938, 2147483648
        %v4945 = vsel %vm4943, %v4937, %v4944
        %vm4946 = vcmp.eq.s32.totalorder %v4941, 2
        %v4947 = vxor.u32 %v4937, 2147483648
        %v4948 = vsel %vm4946, %v4947, %v4938
        %v4949 = vsel %vm4942, %v4945, %v4948
        %v4950 = vsel %vm4939, nan, %v4949
        %v4951 = vand.u32 2147483647, %v4322
        %vm4952 = vcmp.le.f32.partialorder %v4951, 0.7853982
        %vm4953 = vcmp.lt.s32.totalorder %v4322, 0
        %v4954 = vand.u32 %v4322, 2139095040
        %v4955 = vshrl.u32 %v4954, 23
        %v4956 = vsub.s32 %v4955, 127
        %v4957 = vand.u32 2147483647, %v4322
        %v4958 = vand.u32 %v4957, 8388607
        %v4959 = vor.u32 %v4958, 8388608
        %v4960 = vsub.s32 0, %v4959
        %v4961 = vadd.s32 %v4956, 1
        %vm4962 = vcmp.gt.s32.totalorder %v4961, 0
        %v4963 = vsel %vm4962, %v4961, 0
        %v4964 = vshrl.u32 %v4963, 5
        %v4965 = vand.u32 %v4963, 31
        %v4966 = vsub.s32 32, %v4965
        %v4967 = vshrl.u32 683565275, %v4966
        %v4968 = vshll.u32 683565275, %v4965
        %v4969 = vshrl.u32 2475754826, %v4966
        %v4970 = vor.u32 %v4968, %v4969
        %v4971 = vshll.u32 2475754826, %v4965
        %v4972 = vshrl.u32 2131351028, %v4966
        %v4973 = vor.u32 %v4971, %v4972
        %v4974 = vshll.u32 2131351028, %v4965
        %v4975 = vshrl.u32 2102212464, %v4966
        %v4976 = vor.u32 %v4974, %v4975
        %v4977 = vshll.u32 2102212464, %v4965
        %v4978 = vshrl.u32 920167782, %v4966
        %v4979 = vor.u32 %v4977, %v4978
        %v4980 = vshll.u32 920167782, %v4965
        %v4981 = vshrl.u32 1326507024, %v4966
        %v4982 = vor.u32 %v4980, %v4981
        %vm4983 = vcmp.lt.s32.totalorder %v4964, 1
        %vm4984 = vcmp.lt.s32.totalorder %v4964, 2
        %vm4985 = vcmp.lt.s32.totalorder %v4964, 3
        %vm4986 = vcmp.lt.s32.totalorder %v4964, 4
        %v4987 = vsel %vm4983, %v4967, %v4970
        %v4988 = vsel %vm4986, %v4976, 2102212464
        %v4989 = vsel %vm4985, %v4973, %v4988
        %v4990 = vsel %vm4984, %v4987, %v4989
        %v4991 = vsel %vm4983, %v4970, %v4973
        %v4992 = vsel %vm4986, %v4979, 920167782
        %v4993 = vsel %vm4985, %v4976, %v4992
        %v4994 = vsel %vm4984, %v4991, %v4993
        %v4995 = vsel %vm4983, %v4973, %v4976
        %v4996 = vsel %vm4986, %v4982, 1326507024
        %v4997 = vsel %vm4985, %v4979, %v4996
        %v4998 = vsel %vm4984, %v4995, %v4997
        %v4999 = vshll.u32 %v4959, 8
        %v5000 = vmul.u32.u64.compose %v4999, %v4998
        %v5001 = vextract.low.u32 %v5000
        %v5002 = vextract.high.u32 %v5000
        %v5003 = vmul.u32.u64.compose %v4999, %v4994
        %v5004 = vextract.low.u32 %v5003
        %v5005 = vextract.high.u32 %v5003
        %v5006 = vmul.u32 %v4999, %v4990
        %v5007 = vadd.s32 %v5002, %v5004
        %vm5008 = vc.u32 %v5002, %v5004
        %v5009 = vadd.s32 %v5005, 1
        %v5010 = vsel %vm5008, %v5009, %v5005
        %v5011 = vadd.s32 %v5006, %v5010
        %v5012 = vadd.s32 %v5011, 536870912
        %v5013 = vshrl.u32 %v5012, 30
        %v5014 = vshll.u32 %v5013, 30
        %v5015 = vsub.s32 %v5011, %v5014
        %vm5016 = vcmp.lt.s32.totalorder %v5015, 0
        %v5017 = vsub.s32 0, %v5015
        %v5018 = vsel %vm5016, %v5017, %v5015
        %v5019 = vclz %v5018
        %v5020 = vsub.s32 %v5019, 2
        %vm5021 = vcmp.gt.s32.totalorder 0, %v5020
        %v5022 = vsel %vm5021, 0, %v5020
        %v5023 = vsub.s32 32, %v5022
        %v5024 = vshll.u32 %v5015, %v5022
        %v5025 = vshrl.u32 %v5007, %v5023
        %v5026 = vor.u32 %v5024, %v5025
        %v5027 = vsub.s32 4294967266, %v5022
        %v5028 = vadd.s32 %v5027, 127
        %v5029 = vshll.u32 %v5028, 23
        %v5030 = vor.u32 4788187, %v5029
        %v5031 = vand.u32 2147483647, %v5030
        %v5033 = vcvt.s32.f32 %v5026
        %v5034 = vmul.f32 %v5033, %v5031
        %v5035 = vxor.u32 %v5034, 2147483648
        %v5036 = vsel %vm4953, %v5035, %v5034
        %v5037 = vsub.s32 4, %v5013
        %v5038 = vsel %vm4953, %v5037, %v5013
        %v5039 = vsel %vm4952, %v4322, %v5036
        %v5040 = vsel %vm4952, 0, %v5038
        %v5041 = vcosq.f32.pop %v5039
        %v5042 = vsinq.f32.pop %v5039
        %vm5043 = vweird.f32 %v4322
        %v5044 = vadd.s32 %v5040, 3
        %v5045 = vand.u32 %v5044, 3
        %vm5046 = vcmp.lt.s32.totalorder %v5045, 2
        %vm5047 = vcmp.eq.s32.totalorder %v5045, 0
        %v5048 = vxor.u32 %v5042, 2147483648
        %v5049 = vsel %vm5047, %v5041, %v5048
        %vm5050 = vcmp.eq.s32.totalorder %v5045, 2
        %v5051 = vxor.u32 %v5041, 2147483648
        %v5052 = vsel %vm5050, %v5051, %v5042
        %v5053 = vsel %vm5046, %v5049, %v5052
        %v5054 = vsel %vm5043, nan, %v5053
        %v5055 = vand.u32 2147483647, %v4409
        %vm5056 = vcmp.le.f32.partialorder %v5055, 0.7853982
        %vm5057 = vcmp.lt.s32.totalorder %v4409, 0
        %v5058 = vand.u32 %v4409, 2139095040
        %v5059 = vshrl.u32 %v5058, 23
        %v5060 = vsub.s32 %v5059, 127
        %v5061 = vand.u32 2147483647, %v4409
        %v5062 = vand.u32 %v5061, 8388607
        %v5063 = vor.u32 %v5062, 8388608
        %v5064 = vsub.s32 0, %v5063
        %v5065 = vadd.s32 %v5060, 1
        %vm5066 = vcmp.gt.s32.totalorder %v5065, 0
        %v5067 = vsel %vm5066, %v5065, 0
        %v5068 = vshrl.u32 %v5067, 5
        %v5069 = vand.u32 %v5067, 31
        %v5070 = vsub.s32 32, %v5069
        %v5071 = vshrl.u32 683565275, %v5070
        %v5072 = vshll.u32 683565275, %v5069
        %v5073 = vshrl.u32 2475754826, %v5070
        %v5074 = vor.u32 %v5072, %v5073
        %v5075 = vshll.u32 2475754826, %v5069
        %v5076 = vshrl.u32 2131351028, %v5070
        %v5077 = vor.u32 %v5075, %v5076
        %v5078 = vshll.u32 2131351028, %v5069
        %v5079 = vshrl.u32 2102212464, %v5070
        %v5080 = vor.u32 %v5078, %v5079
        %v5081 = vshll.u32 2102212464, %v5069
        %v5082 = vshrl.u32 920167782, %v5070
        %v5083 = vor.u32 %v5081, %v5082
        %v5084 = vshll.u32 920167782, %v5069
        %v5085 = vshrl.u32 1326507024, %v5070
        %v5086 = vor.u32 %v5084, %v5085
        %vm5087 = vcmp.lt.s32.totalorder %v5068, 1
        %vm5088 = vcmp.lt.s32.totalorder %v5068, 2
        %vm5089 = vcmp.lt.s32.totalorder %v5068, 3
        %vm5090 = vcmp.lt.s32.totalorder %v5068, 4
        %v5091 = vsel %vm5087, %v5071, %v5074
        %v5092 = vsel %vm5090, %v5080, 2102212464
        %v5093 = vsel %vm5089, %v5077, %v5092
        %v5094 = vsel %vm5088, %v5091, %v5093
        %v5095 = vsel %vm5087, %v5074, %v5077
        %v5096 = vsel %vm5090, %v5083, 920167782
        %v5097 = vsel %vm5089, %v5080, %v5096
        %v5098 = vsel %vm5088, %v5095, %v5097
        %v5099 = vsel %vm5087, %v5077, %v5080
        %v5100 = vsel %vm5090, %v5086, 1326507024
        %v5101 = vsel %vm5089, %v5083, %v5100
        %v5102 = vsel %vm5088, %v5099, %v5101
        %v5103 = vshll.u32 %v5063, 8
        %v5104 = vmul.u32.u64.compose %v5103, %v5102
        %v5105 = vextract.low.u32 %v5104
        %v5106 = vextract.high.u32 %v5104
        %v5107 = vmul.u32.u64.compose %v5103, %v5098
        %v5108 = vextract.low.u32 %v5107
        %v5109 = vextract.high.u32 %v5107
        %v5110 = vmul.u32 %v5103, %v5094
        %v5111 = vadd.s32 %v5106, %v5108
        %vm5112 = vc.u32 %v5106, %v5108
        %v5113 = vadd.s32 %v5109, 1
        %v5114 = vsel %vm5112, %v5113, %v5109
        %v5115 = vadd.s32 %v5110, %v5114
        %v5116 = vadd.s32 %v5115, 536870912
        %v5117 = vshrl.u32 %v5116, 30
        %v5118 = vshll.u32 %v5117, 30
        %v5119 = vsub.s32 %v5115, %v5118
        %vm5120 = vcmp.lt.s32.totalorder %v5119, 0
        %v5121 = vsub.s32 0, %v5119
        %v5122 = vsel %vm5120, %v5121, %v5119
        %v5123 = vclz %v5122
        %v5124 = vsub.s32 %v5123, 2
        %vm5125 = vcmp.gt.s32.totalorder 0, %v5124
        %v5126 = vsel %vm5125, 0, %v5124
        %v5127 = vsub.s32 32, %v5126
        %v5128 = vshll.u32 %v5119, %v5126
        %v5129 = vshrl.u32 %v5111, %v5127
        %v5130 = vor.u32 %v5128, %v5129
        %v5131 = vsub.s32 4294967266, %v5126
        %v5132 = vadd.s32 %v5131, 127
        %v5133 = vshll.u32 %v5132, 23
        %v5134 = vor.u32 4788187, %v5133
        %v5135 = vand.u32 2147483647, %v5134
        %v5137 = vcvt.s32.f32 %v5130
        %v5138 = vmul.f32 %v5137, %v5135
        %v5139 = vxor.u32 %v5138, 2147483648
        %v5140 = vsel %vm5057, %v5139, %v5138
        %v5141 = vsub.s32 4, %v5117
        %v5142 = vsel %vm5057, %v5141, %v5117
        %v5143 = vsel %vm5056, %v4409, %v5140
        %v5144 = vsel %vm5056, 0, %v5142
        %v5145 = vcosq.f32.pop %v5143
        %v5146 = vsinq.f32.pop %v5143
        %vm5147 = vweird.f32 %v4409
        %v5148 = vadd.s32 %v5144, 3
        %v5149 = vand.u32 %v5148, 3
        %vm5150 = vcmp.lt.s32.totalorder %v5149, 2
        %vm5151 = vcmp.eq.s32.totalorder %v5149, 0
        %v5152 = vxor.u32 %v5146, 2147483648
        %v5153 = vsel %vm5151, %v5145, %v5152
        %vm5154 = vcmp.eq.s32.totalorder %v5149, 2
        %v5155 = vxor.u32 %v5145, 2147483648
        %v5156 = vsel %vm5154, %v5155, %v5146
        %v5157 = vsel %vm5150, %v5153, %v5156
        %v5158 = vsel %vm5147, nan, %v5157
        %v5159 = vand.u32 2147483647, %v4411
        %vm5160 = vcmp.le.f32.partialorder %v5159, 0.7853982
        %vm5161 = vcmp.lt.s32.totalorder %v4411, 0
        %v5162 = vand.u32 %v4411, 2139095040
        %v5163 = vshrl.u32 %v5162, 23
        %v5164 = vsub.s32 %v5163, 127
        %v5165 = vand.u32 2147483647, %v4411
        %v5166 = vand.u32 %v5165, 8388607
        %v5167 = vor.u32 %v5166, 8388608
        %v5168 = vsub.s32 0, %v5167
        %v5169 = vadd.s32 %v5164, 1
        %vm5170 = vcmp.gt.s32.totalorder %v5169, 0
        %v5171 = vsel %vm5170, %v5169, 0
        %v5172 = vshrl.u32 %v5171, 5
        %v5173 = vand.u32 %v5171, 31
        %v5174 = vsub.s32 32, %v5173
        %v5175 = vshrl.u32 683565275, %v5174
        %v5176 = vshll.u32 683565275, %v5173
        %v5177 = vshrl.u32 2475754826, %v5174
        %v5178 = vor.u32 %v5176, %v5177
        %v5179 = vshll.u32 2475754826, %v5173
        %v5180 = vshrl.u32 2131351028, %v5174
        %v5181 = vor.u32 %v5179, %v5180
        %v5182 = vshll.u32 2131351028, %v5173
        %v5183 = vshrl.u32 2102212464, %v5174
        %v5184 = vor.u32 %v5182, %v5183
        %v5185 = vshll.u32 2102212464, %v5173
        %v5186 = vshrl.u32 920167782, %v5174
        %v5187 = vor.u32 %v5185, %v5186
        %v5188 = vshll.u32 920167782, %v5173
        %v5189 = vshrl.u32 1326507024, %v5174
        %v5190 = vor.u32 %v5188, %v5189
        %vm5191 = vcmp.lt.s32.totalorder %v5172, 1
        %vm5192 = vcmp.lt.s32.totalorder %v5172, 2
        %vm5193 = vcmp.lt.s32.totalorder %v5172, 3
        %vm5194 = vcmp.lt.s32.totalorder %v5172, 4
        %v5195 = vsel %vm5191, %v5175, %v5178
        %v5196 = vsel %vm5194, %v5184, 2102212464
        %v5197 = vsel %vm5193, %v5181, %v5196
        %v5198 = vsel %vm5192, %v5195, %v5197
        %v5199 = vsel %vm5191, %v5178, %v5181
        %v5200 = vsel %vm5194, %v5187, 920167782
        %v5201 = vsel %vm5193, %v5184, %v5200
        %v5202 = vsel %vm5192, %v5199, %v5201
        %v5203 = vsel %vm5191, %v5181, %v5184
        %v5204 = vsel %vm5194, %v5190, 1326507024
        %v5205 = vsel %vm5193, %v5187, %v5204
        %v5206 = vsel %vm5192, %v5203, %v5205
        %v5207 = vshll.u32 %v5167, 8
        %v5208 = vmul.u32.u64.compose %v5207, %v5206
        %v5209 = vextract.low.u32 %v5208
        %v5210 = vextract.high.u32 %v5208
        %v5211 = vmul.u32.u64.compose %v5207, %v5202
        %v5212 = vextract.low.u32 %v5211
        %v5213 = vextract.high.u32 %v5211
        %v5214 = vmul.u32 %v5207, %v5198
        %v5215 = vadd.s32 %v5210, %v5212
        %vm5216 = vc.u32 %v5210, %v5212
        %v5217 = vadd.s32 %v5213, 1
        %v5218 = vsel %vm5216, %v5217, %v5213
        %v5219 = vadd.s32 %v5214, %v5218
        %v5220 = vadd.s32 %v5219, 536870912
        %v5221 = vshrl.u32 %v5220, 30
        %v5222 = vshll.u32 %v5221, 30
        %v5223 = vsub.s32 %v5219, %v5222
        %vm5224 = vcmp.lt.s32.totalorder %v5223, 0
        %v5225 = vsub.s32 0, %v5223
        %v5226 = vsel %vm5224, %v5225, %v5223
        %v5227 = vclz %v5226
        %v5228 = vsub.s32 %v5227, 2
        %vm5229 = vcmp.gt.s32.totalorder 0, %v5228
        %v5230 = vsel %vm5229, 0, %v5228
        %v5231 = vsub.s32 32, %v5230
        %v5232 = vshll.u32 %v5223, %v5230
        %v5233 = vshrl.u32 %v5215, %v5231
        %v5234 = vor.u32 %v5232, %v5233
        %v5235 = vsub.s32 4294967266, %v5230
        %v5236 = vadd.s32 %v5235, 127
        %v5237 = vshll.u32 %v5236, 23
        %v5238 = vor.u32 4788187, %v5237
        %v5239 = vand.u32 2147483647, %v5238
        %v5241 = vcvt.s32.f32 %v5234
        %v5242 = vmul.f32 %v5241, %v5239
        %v5243 = vxor.u32 %v5242, 2147483648
        %v5244 = vsel %vm5161, %v5243, %v5242
        %v5245 = vsub.s32 4, %v5221
        %v5246 = vsel %vm5161, %v5245, %v5221
        %v5247 = vsel %vm5160, %v4411, %v5244
        %v5248 = vsel %vm5160, 0, %v5246
        %v5249 = vcosq.f32.pop %v5247
        %v5250 = vsinq.f32.pop %v5247
        %vm5251 = vweird.f32 %v4411
        %v5252 = vadd.s32 %v5248, 3
        %v5253 = vand.u32 %v5252, 3
        %vm5254 = vcmp.lt.s32.totalorder %v5253, 2
        %vm5255 = vcmp.eq.s32.totalorder %v5253, 0
        %v5256 = vxor.u32 %v5250, 2147483648
        %v5257 = vsel %vm5255, %v5249, %v5256
        %vm5258 = vcmp.eq.s32.totalorder %v5253, 2
        %v5259 = vxor.u32 %v5249, 2147483648
        %v5260 = vsel %vm5258, %v5259, %v5250
        %v5261 = vsel %vm5254, %v5257, %v5260
        %v5262 = vsel %vm5251, nan, %v5261
        %v5263 = vand.u32 2147483647, %v4148
        %vm5264 = vcmp.le.f32.partialorder %v5263, 0.7853982
        %vm5265 = vcmp.lt.s32.totalorder %v4148, 0
        %v5266 = vand.u32 %v4148, 2139095040
        %v5267 = vshrl.u32 %v5266, 23
        %v5268 = vsub.s32 %v5267, 127
        %v5269 = vand.u32 2147483647, %v4148
        %v5270 = vand.u32 %v5269, 8388607
        %v5271 = vor.u32 %v5270, 8388608
        %v5272 = vsub.s32 0, %v5271
        %v5273 = vadd.s32 %v5268, 1
        %vm5274 = vcmp.gt.s32.totalorder %v5273, 0
        %v5275 = vsel %vm5274, %v5273, 0
        %v5276 = vshrl.u32 %v5275, 5
        %v5277 = vand.u32 %v5275, 31
        %v5278 = vsub.s32 32, %v5277
        %v5279 = vshrl.u32 683565275, %v5278
        %v5280 = vshll.u32 683565275, %v5277
        %v5281 = vshrl.u32 2475754826, %v5278
        %v5282 = vor.u32 %v5280, %v5281
        %v5283 = vshll.u32 2475754826, %v5277
        %v5284 = vshrl.u32 2131351028, %v5278
        %v5285 = vor.u32 %v5283, %v5284
        %v5286 = vshll.u32 2131351028, %v5277
        %v5287 = vshrl.u32 2102212464, %v5278
        %v5288 = vor.u32 %v5286, %v5287
        %v5289 = vshll.u32 2102212464, %v5277
        %v5290 = vshrl.u32 920167782, %v5278
        %v5291 = vor.u32 %v5289, %v5290
        %v5292 = vshll.u32 920167782, %v5277
        %v5293 = vshrl.u32 1326507024, %v5278
        %v5294 = vor.u32 %v5292, %v5293
        %vm5295 = vcmp.lt.s32.totalorder %v5276, 1
        %vm5296 = vcmp.lt.s32.totalorder %v5276, 2
        %vm5297 = vcmp.lt.s32.totalorder %v5276, 3
        %vm5298 = vcmp.lt.s32.totalorder %v5276, 4
        %v5299 = vsel %vm5295, %v5279, %v5282
        %v5300 = vsel %vm5298, %v5288, 2102212464
        %v5301 = vsel %vm5297, %v5285, %v5300
        %v5302 = vsel %vm5296, %v5299, %v5301
        %v5303 = vsel %vm5295, %v5282, %v5285
        %v5304 = vsel %vm5298, %v5291, 920167782
        %v5305 = vsel %vm5297, %v5288, %v5304
        %v5306 = vsel %vm5296, %v5303, %v5305
        %v5307 = vsel %vm5295, %v5285, %v5288
        %v5308 = vsel %vm5298, %v5294, 1326507024
        %v5309 = vsel %vm5297, %v5291, %v5308
        %v5310 = vsel %vm5296, %v5307, %v5309
        %v5311 = vshll.u32 %v5271, 8
        %v5312 = vmul.u32.u64.compose %v5311, %v5310
        %v5313 = vextract.low.u32 %v5312
        %v5314 = vextract.high.u32 %v5312
        %v5315 = vmul.u32.u64.compose %v5311, %v5306
        %v5316 = vextract.low.u32 %v5315
        %v5317 = vextract.high.u32 %v5315
        %v5318 = vmul.u32 %v5311, %v5302
        %v5319 = vadd.s32 %v5314, %v5316
        %vm5320 = vc.u32 %v5314, %v5316
        %v5321 = vadd.s32 %v5317, 1
        %v5322 = vsel %vm5320, %v5321, %v5317
        %v5323 = vadd.s32 %v5318, %v5322
        %v5324 = vadd.s32 %v5323, 536870912
        %v5325 = vshrl.u32 %v5324, 30
        %v5326 = vshll.u32 %v5325, 30
        %v5327 = vsub.s32 %v5323, %v5326
        %vm5328 = vcmp.lt.s32.totalorder %v5327, 0
        %v5329 = vsub.s32 0, %v5327
        %v5330 = vsel %vm5328, %v5329, %v5327
        %v5331 = vclz %v5330
        %v5332 = vsub.s32 %v5331, 2
        %vm5333 = vcmp.gt.s32.totalorder 0, %v5332
        %v5334 = vsel %vm5333, 0, %v5332
        %v5335 = vsub.s32 32, %v5334
        %v5336 = vshll.u32 %v5327, %v5334
        %v5337 = vshrl.u32 %v5319, %v5335
        %v5338 = vor.u32 %v5336, %v5337
        %v5339 = vsub.s32 4294967266, %v5334
        %v5340 = vadd.s32 %v5339, 127
        %v5341 = vshll.u32 %v5340, 23
        %v5342 = vor.u32 4788187, %v5341
        %v5343 = vand.u32 2147483647, %v5342
        %v5345 = vcvt.s32.f32 %v5338
        %v5346 = vmul.f32 %v5345, %v5343
        %v5347 = vxor.u32 %v5346, 2147483648
        %v5348 = vsel %vm5265, %v5347, %v5346
        %v5349 = vsub.s32 4, %v5325
        %v5350 = vsel %vm5265, %v5349, %v5325
        %v5351 = vsel %vm5264, %v4148, %v5348
        %v5352 = vsel %vm5264, 0, %v5350
        %v5353 = vcosq.f32.pop %v5351
        %v5354 = vsinq.f32.pop %v5351
        %vm5355 = vweird.f32 %v4148
        %v5356 = vadd.s32 %v5352, 3
        %v5357 = vand.u32 %v5356, 3
        %vm5358 = vcmp.lt.s32.totalorder %v5357, 2
        %vm5359 = vcmp.eq.s32.totalorder %v5357, 0
        %v5360 = vxor.u32 %v5354, 2147483648
        %v5361 = vsel %vm5359, %v5353, %v5360
        %vm5362 = vcmp.eq.s32.totalorder %v5357, 2
        %v5363 = vxor.u32 %v5353, 2147483648
        %v5364 = vsel %vm5362, %v5363, %v5354
        %v5365 = vsel %vm5358, %v5361, %v5364
        %v5366 = vsel %vm5355, nan, %v5365
        %v5367 = vand.u32 2147483647, %v4150
        %vm5368 = vcmp.le.f32.partialorder %v5367, 0.7853982
        %vm5369 = vcmp.lt.s32.totalorder %v4150, 0
        %v5370 = vand.u32 %v4150, 2139095040
        %v5371 = vshrl.u32 %v5370, 23
        %v5372 = vsub.s32 %v5371, 127
        %v5373 = vand.u32 2147483647, %v4150
        %v5374 = vand.u32 %v5373, 8388607
        %v5375 = vor.u32 %v5374, 8388608
        %v5376 = vsub.s32 0, %v5375
        %v5377 = vadd.s32 %v5372, 1
        %vm5378 = vcmp.gt.s32.totalorder %v5377, 0
        %v5379 = vsel %vm5378, %v5377, 0
        %v5380 = vshrl.u32 %v5379, 5
        %v5381 = vand.u32 %v5379, 31
        %v5382 = vsub.s32 32, %v5381
        %v5383 = vshrl.u32 683565275, %v5382
        %v5384 = vshll.u32 683565275, %v5381
        %v5385 = vshrl.u32 2475754826, %v5382
        %v5386 = vor.u32 %v5384, %v5385
        %v5387 = vshll.u32 2475754826, %v5381
        %v5388 = vshrl.u32 2131351028, %v5382
        %v5389 = vor.u32 %v5387, %v5388
        %v5390 = vshll.u32 2131351028, %v5381
        %v5391 = vshrl.u32 2102212464, %v5382
        %v5392 = vor.u32 %v5390, %v5391
        %v5393 = vshll.u32 2102212464, %v5381
        %v5394 = vshrl.u32 920167782, %v5382
        %v5395 = vor.u32 %v5393, %v5394
        %v5396 = vshll.u32 920167782, %v5381
        %v5397 = vshrl.u32 1326507024, %v5382
        %v5398 = vor.u32 %v5396, %v5397
        %vm5399 = vcmp.lt.s32.totalorder %v5380, 1
        %vm5400 = vcmp.lt.s32.totalorder %v5380, 2
        %vm5401 = vcmp.lt.s32.totalorder %v5380, 3
        %vm5402 = vcmp.lt.s32.totalorder %v5380, 4
        %v5403 = vsel %vm5399, %v5383, %v5386
        %v5404 = vsel %vm5402, %v5392, 2102212464
        %v5405 = vsel %vm5401, %v5389, %v5404
        %v5406 = vsel %vm5400, %v5403, %v5405
        %v5407 = vsel %vm5399, %v5386, %v5389
        %v5408 = vsel %vm5402, %v5395, 920167782
        %v5409 = vsel %vm5401, %v5392, %v5408
        %v5410 = vsel %vm5400, %v5407, %v5409
        %v5411 = vsel %vm5399, %v5389, %v5392
        %v5412 = vsel %vm5402, %v5398, 1326507024
        %v5413 = vsel %vm5401, %v5395, %v5412
        %v5414 = vsel %vm5400, %v5411, %v5413
        %v5415 = vshll.u32 %v5375, 8
        %v5416 = vmul.u32.u64.compose %v5415, %v5414
        %v5417 = vextract.low.u32 %v5416
        %v5418 = vextract.high.u32 %v5416
        %v5419 = vmul.u32.u64.compose %v5415, %v5410
        %v5420 = vextract.low.u32 %v5419
        %v5421 = vextract.high.u32 %v5419
        %v5422 = vmul.u32 %v5415, %v5406
        %v5423 = vadd.s32 %v5418, %v5420
        %vm5424 = vc.u32 %v5418, %v5420
        %v5425 = vadd.s32 %v5421, 1
        %v5426 = vsel %vm5424, %v5425, %v5421
        %v5427 = vadd.s32 %v5422, %v5426
        %v5428 = vadd.s32 %v5427, 536870912
        %v5429 = vshrl.u32 %v5428, 30
        %v5430 = vshll.u32 %v5429, 30
        %v5431 = vsub.s32 %v5427, %v5430
        %vm5432 = vcmp.lt.s32.totalorder %v5431, 0
        %v5433 = vsub.s32 0, %v5431
        %v5434 = vsel %vm5432, %v5433, %v5431
        %v5435 = vclz %v5434
        %v5436 = vsub.s32 %v5435, 2
        %vm5437 = vcmp.gt.s32.totalorder 0, %v5436
        %v5438 = vsel %vm5437, 0, %v5436
        %v5439 = vsub.s32 32, %v5438
        %v5440 = vshll.u32 %v5431, %v5438
        %v5441 = vshrl.u32 %v5423, %v5439
        %v5442 = vor.u32 %v5440, %v5441
        %v5443 = vsub.s32 4294967266, %v5438
        %v5444 = vadd.s32 %v5443, 127
        %v5445 = vshll.u32 %v5444, 23
        %v5446 = vor.u32 4788187, %v5445
        %v5447 = vand.u32 2147483647, %v5446
        %v5449 = vcvt.s32.f32 %v5442
        %v5450 = vmul.f32 %v5449, %v5447
        %v5451 = vxor.u32 %v5450, 2147483648
        %v5452 = vsel %vm5369, %v5451, %v5450
        %v5453 = vsub.s32 4, %v5429
        %v5454 = vsel %vm5369, %v5453, %v5429
        %v5455 = vsel %vm5368, %v4150, %v5452
        %v5456 = vsel %vm5368, 0, %v5454
        %v5457 = vcosq.f32.pop %v5455
        %v5458 = vsinq.f32.pop %v5455
        %vm5459 = vweird.f32 %v4150
        %v5460 = vadd.s32 %v5456, 3
        %v5461 = vand.u32 %v5460, 3
        %vm5462 = vcmp.lt.s32.totalorder %v5461, 2
        %vm5463 = vcmp.eq.s32.totalorder %v5461, 0
        %v5464 = vxor.u32 %v5458, 2147483648
        %v5465 = vsel %vm5463, %v5457, %v5464
        %vm5466 = vcmp.eq.s32.totalorder %v5461, 2
        %v5467 = vxor.u32 %v5457, 2147483648
        %v5468 = vsel %vm5466, %v5467, %v5458
        %v5469 = vsel %vm5462, %v5465, %v5468
        %v5470 = vsel %vm5459, nan, %v5469
        %v5471 = vand.u32 2147483647, %v4237
        %vm5472 = vcmp.le.f32.partialorder %v5471, 0.7853982
        %vm5473 = vcmp.lt.s32.totalorder %v4237, 0
        %v5474 = vand.u32 %v4237, 2139095040
        %v5475 = vshrl.u32 %v5474, 23
        %v5476 = vsub.s32 %v5475, 127
        %v5477 = vand.u32 2147483647, %v4237
        %v5478 = vand.u32 %v5477, 8388607
        %v5479 = vor.u32 %v5478, 8388608
        %v5480 = vsub.s32 0, %v5479
        %v5481 = vadd.s32 %v5476, 1
        %vm5482 = vcmp.gt.s32.totalorder %v5481, 0
        %v5483 = vsel %vm5482, %v5481, 0
        %v5484 = vshrl.u32 %v5483, 5
        %v5485 = vand.u32 %v5483, 31
        %v5486 = vsub.s32 32, %v5485
        %v5487 = vshrl.u32 683565275, %v5486
        %v5488 = vshll.u32 683565275, %v5485
        %v5489 = vshrl.u32 2475754826, %v5486
        %v5490 = vor.u32 %v5488, %v5489
        %v5491 = vshll.u32 2475754826, %v5485
        %v5492 = vshrl.u32 2131351028, %v5486
        %v5493 = vor.u32 %v5491, %v5492
        %v5494 = vshll.u32 2131351028, %v5485
        %v5495 = vshrl.u32 2102212464, %v5486
        %v5496 = vor.u32 %v5494, %v5495
        %v5497 = vshll.u32 2102212464, %v5485
        %v5498 = vshrl.u32 920167782, %v5486
        %v5499 = vor.u32 %v5497, %v5498
        %v5500 = vshll.u32 920167782, %v5485
        %v5501 = vshrl.u32 1326507024, %v5486
        %v5502 = vor.u32 %v5500, %v5501
        %vm5503 = vcmp.lt.s32.totalorder %v5484, 1
        %vm5504 = vcmp.lt.s32.totalorder %v5484, 2
        %vm5505 = vcmp.lt.s32.totalorder %v5484, 3
        %vm5506 = vcmp.lt.s32.totalorder %v5484, 4
        %v5507 = vsel %vm5503, %v5487, %v5490
        %v5508 = vsel %vm5506, %v5496, 2102212464
        %v5509 = vsel %vm5505, %v5493, %v5508
        %v5510 = vsel %vm5504, %v5507, %v5509
        %v5511 = vsel %vm5503, %v5490, %v5493
        %v5512 = vsel %vm5506, %v5499, 920167782
        %v5513 = vsel %vm5505, %v5496, %v5512
        %v5514 = vsel %vm5504, %v5511, %v5513
        %v5515 = vsel %vm5503, %v5493, %v5496
        %v5516 = vsel %vm5506, %v5502, 1326507024
        %v5517 = vsel %vm5505, %v5499, %v5516
        %v5518 = vsel %vm5504, %v5515, %v5517
        %v5519 = vshll.u32 %v5479, 8
        %v5520 = vmul.u32.u64.compose %v5519, %v5518
        %v5521 = vextract.low.u32 %v5520
        %v5522 = vextract.high.u32 %v5520
        %v5523 = vmul.u32.u64.compose %v5519, %v5514
        %v5524 = vextract.low.u32 %v5523
        %v5525 = vextract.high.u32 %v5523
        %v5526 = vmul.u32 %v5519, %v5510
        %v5527 = vadd.s32 %v5522, %v5524
        %vm5528 = vc.u32 %v5522, %v5524
        %v5529 = vadd.s32 %v5525, 1
        %v5530 = vsel %vm5528, %v5529, %v5525
        %v5531 = vadd.s32 %v5526, %v5530
        %v5532 = vadd.s32 %v5531, 536870912
        %v5533 = vshrl.u32 %v5532, 30
        %v5534 = vshll.u32 %v5533, 30
        %v5535 = vsub.s32 %v5531, %v5534
        %vm5536 = vcmp.lt.s32.totalorder %v5535, 0
        %v5537 = vsub.s32 0, %v5535
        %v5538 = vsel %vm5536, %v5537, %v5535
        %v5539 = vclz %v5538
        %v5540 = vsub.s32 %v5539, 2
        %vm5541 = vcmp.gt.s32.totalorder 0, %v5540
        %v5542 = vsel %vm5541, 0, %v5540
        %v5543 = vsub.s32 32, %v5542
        %v5544 = vshll.u32 %v5535, %v5542
        %v5545 = vshrl.u32 %v5527, %v5543
        %v5546 = vor.u32 %v5544, %v5545
        %v5547 = vsub.s32 4294967266, %v5542
        %v5548 = vadd.s32 %v5547, 127
        %v5549 = vshll.u32 %v5548, 23
        %v5550 = vor.u32 4788187, %v5549
        %v5551 = vand.u32 2147483647, %v5550
        %v5553 = vcvt.s32.f32 %v5546
        %v5554 = vmul.f32 %v5553, %v5551
        %v5555 = vxor.u32 %v5554, 2147483648
        %v5556 = vsel %vm5473, %v5555, %v5554
        %v5557 = vsub.s32 4, %v5533
        %v5558 = vsel %vm5473, %v5557, %v5533
        %v5559 = vsel %vm5472, %v4237, %v5556
        %v5560 = vsel %vm5472, 0, %v5558
        %v5561 = vcosq.f32.pop %v5559
        %v5562 = vsinq.f32.pop %v5559
        %vm5563 = vweird.f32 %v4237
        %v5564 = vadd.s32 %v5560, 3
        %v5565 = vand.u32 %v5564, 3
        %vm5566 = vcmp.lt.s32.totalorder %v5565, 2
        %vm5567 = vcmp.eq.s32.totalorder %v5565, 0
        %v5568 = vxor.u32 %v5562, 2147483648
        %v5569 = vsel %vm5567, %v5561, %v5568
        %vm5570 = vcmp.eq.s32.totalorder %v5565, 2
        %v5571 = vxor.u32 %v5561, 2147483648
        %v5572 = vsel %vm5570, %v5571, %v5562
        %v5573 = vsel %vm5566, %v5569, %v5572
        %v5574 = vsel %vm5563, nan, %v5573
        %v5575 = vand.u32 2147483647, %v4239
        %vm5576 = vcmp.le.f32.partialorder %v5575, 0.7853982
        %vm5577 = vcmp.lt.s32.totalorder %v4239, 0
        %v5578 = vand.u32 %v4239, 2139095040
        %v5579 = vshrl.u32 %v5578, 23
        %v5580 = vsub.s32 %v5579, 127
        %v5581 = vand.u32 2147483647, %v4239
        %v5582 = vand.u32 %v5581, 8388607
        %v5583 = vor.u32 %v5582, 8388608
        %v5584 = vsub.s32 0, %v5583
        %v5585 = vadd.s32 %v5580, 1
        %vm5586 = vcmp.gt.s32.totalorder %v5585, 0
        %v5587 = vsel %vm5586, %v5585, 0
        %v5588 = vshrl.u32 %v5587, 5
        %v5589 = vand.u32 %v5587, 31
        %v5590 = vsub.s32 32, %v5589
        %v5591 = vshrl.u32 683565275, %v5590
        %v5592 = vshll.u32 683565275, %v5589
        %v5593 = vshrl.u32 2475754826, %v5590
        %v5594 = vor.u32 %v5592, %v5593
        %v5595 = vshll.u32 2475754826, %v5589
        %v5596 = vshrl.u32 2131351028, %v5590
        %v5597 = vor.u32 %v5595, %v5596
        %v5598 = vshll.u32 2131351028, %v5589
        %v5599 = vshrl.u32 2102212464, %v5590
        %v5600 = vor.u32 %v5598, %v5599
        %v5601 = vshll.u32 2102212464, %v5589
        %v5602 = vshrl.u32 920167782, %v5590
        %v5603 = vor.u32 %v5601, %v5602
        %v5604 = vshll.u32 920167782, %v5589
        %v5605 = vshrl.u32 1326507024, %v5590
        %v5606 = vor.u32 %v5604, %v5605
        %vm5607 = vcmp.lt.s32.totalorder %v5588, 1
        %vm5608 = vcmp.lt.s32.totalorder %v5588, 2
        %vm5609 = vcmp.lt.s32.totalorder %v5588, 3
        %vm5610 = vcmp.lt.s32.totalorder %v5588, 4
        %v5611 = vsel %vm5607, %v5591, %v5594
        %v5612 = vsel %vm5610, %v5600, 2102212464
        %v5613 = vsel %vm5609, %v5597, %v5612
        %v5614 = vsel %vm5608, %v5611, %v5613
        %v5615 = vsel %vm5607, %v5594, %v5597
        %v5616 = vsel %vm5610, %v5603, 920167782
        %v5617 = vsel %vm5609, %v5600, %v5616
        %v5618 = vsel %vm5608, %v5615, %v5617
        %v5619 = vsel %vm5607, %v5597, %v5600
        %v5620 = vsel %vm5610, %v5606, 1326507024
        %v5621 = vsel %vm5609, %v5603, %v5620
        %v5622 = vsel %vm5608, %v5619, %v5621
        %v5623 = vshll.u32 %v5583, 8
        %v5624 = vmul.u32.u64.compose %v5623, %v5622
        %v5625 = vextract.low.u32 %v5624
        %v5626 = vextract.high.u32 %v5624
        %v5627 = vmul.u32.u64.compose %v5623, %v5618
        %v5628 = vextract.low.u32 %v5627
        %v5629 = vextract.high.u32 %v5627
        %v5630 = vmul.u32 %v5623, %v5614
        %v5631 = vadd.s32 %v5626, %v5628
        %vm5632 = vc.u32 %v5626, %v5628
        %v5633 = vadd.s32 %v5629, 1
        %v5634 = vsel %vm5632, %v5633, %v5629
        %v5635 = vadd.s32 %v5630, %v5634
        %v5636 = vadd.s32 %v5635, 536870912
        %v5637 = vshrl.u32 %v5636, 30
        %v5638 = vshll.u32 %v5637, 30
        %v5639 = vsub.s32 %v5635, %v5638
        %vm5640 = vcmp.lt.s32.totalorder %v5639, 0
        %v5641 = vsub.s32 0, %v5639
        %v5642 = vsel %vm5640, %v5641, %v5639
        %v5643 = vclz %v5642
        %v5644 = vsub.s32 %v5643, 2
        %vm5645 = vcmp.gt.s32.totalorder 0, %v5644
        %v5646 = vsel %vm5645, 0, %v5644
        %v5647 = vsub.s32 32, %v5646
        %v5648 = vshll.u32 %v5639, %v5646
        %v5649 = vshrl.u32 %v5631, %v5647
        %v5650 = vor.u32 %v5648, %v5649
        %v5651 = vsub.s32 4294967266, %v5646
        %v5652 = vadd.s32 %v5651, 127
        %v5653 = vshll.u32 %v5652, 23
        %v5654 = vor.u32 4788187, %v5653
        %v5655 = vand.u32 2147483647, %v5654
        %v5657 = vcvt.s32.f32 %v5650
        %v5658 = vmul.f32 %v5657, %v5655
        %v5659 = vxor.u32 %v5658, 2147483648
        %v5660 = vsel %vm5577, %v5659, %v5658
        %v5661 = vsub.s32 4, %v5637
        %v5662 = vsel %vm5577, %v5661, %v5637
        %v5663 = vsel %vm5576, %v4239, %v5660
        %v5664 = vsel %vm5576, 0, %v5662
        %v5665 = vcosq.f32.pop %v5663
        %v5666 = vsinq.f32.pop %v5663
        %vm5667 = vweird.f32 %v4239
        %v5668 = vadd.s32 %v5664, 3
        %v5669 = vand.u32 %v5668, 3
        %vm5670 = vcmp.lt.s32.totalorder %v5669, 2
        %vm5671 = vcmp.eq.s32.totalorder %v5669, 0
        %v5672 = vxor.u32 %v5666, 2147483648
        %v5673 = vsel %vm5671, %v5665, %v5672
        %vm5674 = vcmp.eq.s32.totalorder %v5669, 2
        %v5675 = vxor.u32 %v5665, 2147483648
        %v5676 = vsel %vm5674, %v5675, %v5666
        %v5677 = vsel %vm5670, %v5673, %v5676
        %v5678 = vsel %vm5667, nan, %v5677
        %v5679 = vand.u32 2147483647, %v4326
        %vm5680 = vcmp.le.f32.partialorder %v5679, 0.7853982
        %vm5681 = vcmp.lt.s32.totalorder %v4326, 0
        %v5682 = vand.u32 %v4326, 2139095040
        %v5683 = vshrl.u32 %v5682, 23
        %v5684 = vsub.s32 %v5683, 127
        %v5685 = vand.u32 2147483647, %v4326
        %v5686 = vand.u32 %v5685, 8388607
        %v5687 = vor.u32 %v5686, 8388608
        %v5688 = vsub.s32 0, %v5687
        %v5689 = vadd.s32 %v5684, 1
        %vm5690 = vcmp.gt.s32.totalorder %v5689, 0
        %v5691 = vsel %vm5690, %v5689, 0
        %v5692 = vshrl.u32 %v5691, 5
        %v5693 = vand.u32 %v5691, 31
        %v5694 = vsub.s32 32, %v5693
        %v5695 = vshrl.u32 683565275, %v5694
        %v5696 = vshll.u32 683565275, %v5693
        %v5697 = vshrl.u32 2475754826, %v5694
        %v5698 = vor.u32 %v5696, %v5697
        %v5699 = vshll.u32 2475754826, %v5693
        %v5700 = vshrl.u32 2131351028, %v5694
        %v5701 = vor.u32 %v5699, %v5700
        %v5702 = vshll.u32 2131351028, %v5693
        %v5703 = vshrl.u32 2102212464, %v5694
        %v5704 = vor.u32 %v5702, %v5703
        %v5705 = vshll.u32 2102212464, %v5693
        %v5706 = vshrl.u32 920167782, %v5694
        %v5707 = vor.u32 %v5705, %v5706
        %v5708 = vshll.u32 920167782, %v5693
        %v5709 = vshrl.u32 1326507024, %v5694
        %v5710 = vor.u32 %v5708, %v5709
        %vm5711 = vcmp.lt.s32.totalorder %v5692, 1
        %vm5712 = vcmp.lt.s32.totalorder %v5692, 2
        %vm5713 = vcmp.lt.s32.totalorder %v5692, 3
        %vm5714 = vcmp.lt.s32.totalorder %v5692, 4
        %v5715 = vsel %vm5711, %v5695, %v5698
        %v5716 = vsel %vm5714, %v5704, 2102212464
        %v5717 = vsel %vm5713, %v5701, %v5716
        %v5718 = vsel %vm5712, %v5715, %v5717
        %v5719 = vsel %vm5711, %v5698, %v5701
        %v5720 = vsel %vm5714, %v5707, 920167782
        %v5721 = vsel %vm5713, %v5704, %v5720
        %v5722 = vsel %vm5712, %v5719, %v5721
        %v5723 = vsel %vm5711, %v5701, %v5704
        %v5724 = vsel %vm5714, %v5710, 1326507024
        %v5725 = vsel %vm5713, %v5707, %v5724
        %v5726 = vsel %vm5712, %v5723, %v5725
        %v5727 = vshll.u32 %v5687, 8
        %v5728 = vmul.u32.u64.compose %v5727, %v5726
        %v5729 = vextract.low.u32 %v5728
        %v5730 = vextract.high.u32 %v5728
        %v5731 = vmul.u32.u64.compose %v5727, %v5722
        %v5732 = vextract.low.u32 %v5731
        %v5733 = vextract.high.u32 %v5731
        %v5734 = vmul.u32 %v5727, %v5718
        %v5735 = vadd.s32 %v5730, %v5732
        %vm5736 = vc.u32 %v5730, %v5732
        %v5737 = vadd.s32 %v5733, 1
        %v5738 = vsel %vm5736, %v5737, %v5733
        %v5739 = vadd.s32 %v5734, %v5738
        %v5740 = vadd.s32 %v5739, 536870912
        %v5741 = vshrl.u32 %v5740, 30
        %v5742 = vshll.u32 %v5741, 30
        %v5743 = vsub.s32 %v5739, %v5742
        %vm5744 = vcmp.lt.s32.totalorder %v5743, 0
        %v5745 = vsub.s32 0, %v5743
        %v5746 = vsel %vm5744, %v5745, %v5743
        %v5747 = vclz %v5746
        %v5748 = vsub.s32 %v5747, 2
        %vm5749 = vcmp.gt.s32.totalorder 0, %v5748
        %v5750 = vsel %vm5749, 0, %v5748
        %v5751 = vsub.s32 32, %v5750
        %v5752 = vshll.u32 %v5743, %v5750
        %v5753 = vshrl.u32 %v5735, %v5751
        %v5754 = vor.u32 %v5752, %v5753
        %v5755 = vsub.s32 4294967266, %v5750
        %v5756 = vadd.s32 %v5755, 127
        %v5757 = vshll.u32 %v5756, 23
        %v5758 = vor.u32 4788187, %v5757
        %v5759 = vand.u32 2147483647, %v5758
        %v5761 = vcvt.s32.f32 %v5754
        %v5762 = vmul.f32 %v5761, %v5759
        %v5763 = vxor.u32 %v5762, 2147483648
        %v5764 = vsel %vm5681, %v5763, %v5762
        %v5765 = vsub.s32 4, %v5741
        %v5766 = vsel %vm5681, %v5765, %v5741
        %v5767 = vsel %vm5680, %v4326, %v5764
        %v5768 = vsel %vm5680, 0, %v5766
        %v5769 = vcosq.f32.pop %v5767
        %v5770 = vsinq.f32.pop %v5767
        %vm5771 = vweird.f32 %v4326
        %v5772 = vadd.s32 %v5768, 3
        %v5773 = vand.u32 %v5772, 3
        %vm5774 = vcmp.lt.s32.totalorder %v5773, 2
        %vm5775 = vcmp.eq.s32.totalorder %v5773, 0
        %v5776 = vxor.u32 %v5770, 2147483648
        %v5777 = vsel %vm5775, %v5769, %v5776
        %vm5778 = vcmp.eq.s32.totalorder %v5773, 2
        %v5779 = vxor.u32 %v5769, 2147483648
        %v5780 = vsel %vm5778, %v5779, %v5770
        %v5781 = vsel %vm5774, %v5777, %v5780
        %v5782 = vsel %vm5771, nan, %v5781
        %v5783 = vand.u32 2147483647, %v4328
        %vm5784 = vcmp.le.f32.partialorder %v5783, 0.7853982
        %vm5785 = vcmp.lt.s32.totalorder %v4328, 0
        %v5786 = vand.u32 %v4328, 2139095040
        %v5787 = vshrl.u32 %v5786, 23
        %v5788 = vsub.s32 %v5787, 127
        %v5789 = vand.u32 2147483647, %v4328
        %v5790 = vand.u32 %v5789, 8388607
        %v5791 = vor.u32 %v5790, 8388608
        %v5792 = vsub.s32 0, %v5791
        %v5793 = vadd.s32 %v5788, 1
        %vm5794 = vcmp.gt.s32.totalorder %v5793, 0
        %v5795 = vsel %vm5794, %v5793, 0
        %v5796 = vshrl.u32 %v5795, 5
        %v5797 = vand.u32 %v5795, 31
        %v5798 = vsub.s32 32, %v5797
        %v5799 = vshrl.u32 683565275, %v5798
        %v5800 = vshll.u32 683565275, %v5797
        %v5801 = vshrl.u32 2475754826, %v5798
        %v5802 = vor.u32 %v5800, %v5801
        %v5803 = vshll.u32 2475754826, %v5797
        %v5804 = vshrl.u32 2131351028, %v5798
        %v5805 = vor.u32 %v5803, %v5804
        %v5806 = vshll.u32 2131351028, %v5797
        %v5807 = vshrl.u32 2102212464, %v5798
        %v5808 = vor.u32 %v5806, %v5807
        %v5809 = vshll.u32 2102212464, %v5797
        %v5810 = vshrl.u32 920167782, %v5798
        %v5811 = vor.u32 %v5809, %v5810
        %v5812 = vshll.u32 920167782, %v5797
        %v5813 = vshrl.u32 1326507024, %v5798
        %v5814 = vor.u32 %v5812, %v5813
        %vm5815 = vcmp.lt.s32.totalorder %v5796, 1
        %vm5816 = vcmp.lt.s32.totalorder %v5796, 2
        %vm5817 = vcmp.lt.s32.totalorder %v5796, 3
        %vm5818 = vcmp.lt.s32.totalorder %v5796, 4
        %v5819 = vsel %vm5815, %v5799, %v5802
        %v5820 = vsel %vm5818, %v5808, 2102212464
        %v5821 = vsel %vm5817, %v5805, %v5820
        %v5822 = vsel %vm5816, %v5819, %v5821
        %v5823 = vsel %vm5815, %v5802, %v5805
        %v5824 = vsel %vm5818, %v5811, 920167782
        %v5825 = vsel %vm5817, %v5808, %v5824
        %v5826 = vsel %vm5816, %v5823, %v5825
        %v5827 = vsel %vm5815, %v5805, %v5808
        %v5828 = vsel %vm5818, %v5814, 1326507024
        %v5829 = vsel %vm5817, %v5811, %v5828
        %v5830 = vsel %vm5816, %v5827, %v5829
        %v5831 = vshll.u32 %v5791, 8
        %v5832 = vmul.u32.u64.compose %v5831, %v5830
        %v5833 = vextract.low.u32 %v5832
        %v5834 = vextract.high.u32 %v5832
        %v5835 = vmul.u32.u64.compose %v5831, %v5826
        %v5836 = vextract.low.u32 %v5835
        %v5837 = vextract.high.u32 %v5835
        %v5838 = vmul.u32 %v5831, %v5822
        %v5839 = vadd.s32 %v5834, %v5836
        %vm5840 = vc.u32 %v5834, %v5836
        %v5841 = vadd.s32 %v5837, 1
        %v5842 = vsel %vm5840, %v5841, %v5837
        %v5843 = vadd.s32 %v5838, %v5842
        %v5844 = vadd.s32 %v5843, 536870912
        %v5845 = vshrl.u32 %v5844, 30
        %v5846 = vshll.u32 %v5845, 30
        %v5847 = vsub.s32 %v5843, %v5846
        %vm5848 = vcmp.lt.s32.totalorder %v5847, 0
        %v5849 = vsub.s32 0, %v5847
        %v5850 = vsel %vm5848, %v5849, %v5847
        %v5851 = vclz %v5850
        %v5852 = vsub.s32 %v5851, 2
        %vm5853 = vcmp.gt.s32.totalorder 0, %v5852
        %v5854 = vsel %vm5853, 0, %v5852
        %v5855 = vsub.s32 32, %v5854
        %v5856 = vshll.u32 %v5847, %v5854
        %v5857 = vshrl.u32 %v5839, %v5855
        %v5858 = vor.u32 %v5856, %v5857
        %v5859 = vsub.s32 4294967266, %v5854
        %v5860 = vadd.s32 %v5859, 127
        %v5861 = vshll.u32 %v5860, 23
        %v5862 = vor.u32 4788187, %v5861
        %v5863 = vand.u32 2147483647, %v5862
        %v5865 = vcvt.s32.f32 %v5858
        %v5866 = vmul.f32 %v5865, %v5863
        %v5867 = vxor.u32 %v5866, 2147483648
        %v5868 = vsel %vm5785, %v5867, %v5866
        %v5869 = vsub.s32 4, %v5845
        %v5870 = vsel %vm5785, %v5869, %v5845
        %v5871 = vsel %vm5784, %v4328, %v5868
        %v5872 = vsel %vm5784, 0, %v5870
        %v5873 = vcosq.f32.pop %v5871
        %v5874 = vsinq.f32.pop %v5871
        %vm5875 = vweird.f32 %v4328
        %v5876 = vadd.s32 %v5872, 3
        %v5877 = vand.u32 %v5876, 3
        %vm5878 = vcmp.lt.s32.totalorder %v5877, 2
        %vm5879 = vcmp.eq.s32.totalorder %v5877, 0
        %v5880 = vxor.u32 %v5874, 2147483648
        %v5881 = vsel %vm5879, %v5873, %v5880
        %vm5882 = vcmp.eq.s32.totalorder %v5877, 2
        %v5883 = vxor.u32 %v5873, 2147483648
        %v5884 = vsel %vm5882, %v5883, %v5874
        %v5885 = vsel %vm5878, %v5881, %v5884
        %v5886 = vsel %vm5875, nan, %v5885
        %v5887 = vand.u32 2147483647, %v4415
        %vm5888 = vcmp.le.f32.partialorder %v5887, 0.7853982
        %vm5889 = vcmp.lt.s32.totalorder %v4415, 0
        %v5890 = vand.u32 %v4415, 2139095040
        %v5891 = vshrl.u32 %v5890, 23
        %v5892 = vsub.s32 %v5891, 127
        %v5893 = vand.u32 2147483647, %v4415
        %v5894 = vand.u32 %v5893, 8388607
        %v5895 = vor.u32 %v5894, 8388608
        %v5896 = vsub.s32 0, %v5895
        %v5897 = vadd.s32 %v5892, 1
        %vm5898 = vcmp.gt.s32.totalorder %v5897, 0
        %v5899 = vsel %vm5898, %v5897, 0
        %v5900 = vshrl.u32 %v5899, 5
        %v5901 = vand.u32 %v5899, 31
        %v5902 = vsub.s32 32, %v5901
        %v5903 = vshrl.u32 683565275, %v5902
        %v5904 = vshll.u32 683565275, %v5901
        %v5905 = vshrl.u32 2475754826, %v5902
        %v5906 = vor.u32 %v5904, %v5905
        %v5907 = vshll.u32 2475754826, %v5901
        %v5908 = vshrl.u32 2131351028, %v5902
        %v5909 = vor.u32 %v5907, %v5908
        %v5910 = vshll.u32 2131351028, %v5901
        %v5911 = vshrl.u32 2102212464, %v5902
        %v5912 = vor.u32 %v5910, %v5911
        %v5913 = vshll.u32 2102212464, %v5901
        %v5914 = vshrl.u32 920167782, %v5902
        %v5915 = vor.u32 %v5913, %v5914
        %v5916 = vshll.u32 920167782, %v5901
        %v5917 = vshrl.u32 1326507024, %v5902
        %v5918 = vor.u32 %v5916, %v5917
        %vm5919 = vcmp.lt.s32.totalorder %v5900, 1
        %vm5920 = vcmp.lt.s32.totalorder %v5900, 2
        %vm5921 = vcmp.lt.s32.totalorder %v5900, 3
        %vm5922 = vcmp.lt.s32.totalorder %v5900, 4
        %v5923 = vsel %vm5919, %v5903, %v5906
        %v5924 = vsel %vm5922, %v5912, 2102212464
        %v5925 = vsel %vm5921, %v5909, %v5924
        %v5926 = vsel %vm5920, %v5923, %v5925
        %v5927 = vsel %vm5919, %v5906, %v5909
        %v5928 = vsel %vm5922, %v5915, 920167782
        %v5929 = vsel %vm5921, %v5912, %v5928
        %v5930 = vsel %vm5920, %v5927, %v5929
        %v5931 = vsel %vm5919, %v5909, %v5912
        %v5932 = vsel %vm5922, %v5918, 1326507024
        %v5933 = vsel %vm5921, %v5915, %v5932
        %v5934 = vsel %vm5920, %v5931, %v5933
        %v5935 = vshll.u32 %v5895, 8
        %v5936 = vmul.u32.u64.compose %v5935, %v5934
        %v5937 = vextract.low.u32 %v5936
        %v5938 = vextract.high.u32 %v5936
        %v5939 = vmul.u32.u64.compose %v5935, %v5930
        %v5940 = vextract.low.u32 %v5939
        %v5941 = vextract.high.u32 %v5939
        %v5942 = vmul.u32 %v5935, %v5926
        %v5943 = vadd.s32 %v5938, %v5940
        %vm5944 = vc.u32 %v5938, %v5940
        %v5945 = vadd.s32 %v5941, 1
        %v5946 = vsel %vm5944, %v5945, %v5941
        %v5947 = vadd.s32 %v5942, %v5946
        %v5948 = vadd.s32 %v5947, 536870912
        %v5949 = vshrl.u32 %v5948, 30
        %v5950 = vshll.u32 %v5949, 30
        %v5951 = vsub.s32 %v5947, %v5950
        %vm5952 = vcmp.lt.s32.totalorder %v5951, 0
        %v5953 = vsub.s32 0, %v5951
        %v5954 = vsel %vm5952, %v5953, %v5951
        %v5955 = vclz %v5954
        %v5956 = vsub.s32 %v5955, 2
        %vm5957 = vcmp.gt.s32.totalorder 0, %v5956
        %v5958 = vsel %vm5957, 0, %v5956
        %v5959 = vsub.s32 32, %v5958
        %v5960 = vshll.u32 %v5951, %v5958
        %v5961 = vshrl.u32 %v5943, %v5959
        %v5962 = vor.u32 %v5960, %v5961
        %v5963 = vsub.s32 4294967266, %v5958
        %v5964 = vadd.s32 %v5963, 127
        %v5965 = vshll.u32 %v5964, 23
        %v5966 = vor.u32 4788187, %v5965
        %v5967 = vand.u32 2147483647, %v5966
        %v5969 = vcvt.s32.f32 %v5962
        %v5970 = vmul.f32 %v5969, %v5967
        %v5971 = vxor.u32 %v5970, 2147483648
        %v5972 = vsel %vm5889, %v5971, %v5970
        %v5973 = vsub.s32 4, %v5949
        %v5974 = vsel %vm5889, %v5973, %v5949
        %v5975 = vsel %vm5888, %v4415, %v5972
        %v5976 = vsel %vm5888, 0, %v5974
        %v5977 = vcosq.f32.pop %v5975
        %v5978 = vsinq.f32.pop %v5975
        %vm5979 = vweird.f32 %v4415
        %v5980 = vadd.s32 %v5976, 3
        %v5981 = vand.u32 %v5980, 3
        %vm5982 = vcmp.lt.s32.totalorder %v5981, 2
        %vm5983 = vcmp.eq.s32.totalorder %v5981, 0
        %v5984 = vxor.u32 %v5978, 2147483648
        %v5985 = vsel %vm5983, %v5977, %v5984
        %vm5986 = vcmp.eq.s32.totalorder %v5981, 2
        %v5987 = vxor.u32 %v5977, 2147483648
        %v5988 = vsel %vm5986, %v5987, %v5978
        %v5989 = vsel %vm5982, %v5985, %v5988
        %v5990 = vsel %vm5979, nan, %v5989
        %v5991 = vand.u32 2147483647, %v4417
        %vm5992 = vcmp.le.f32.partialorder %v5991, 0.7853982
        %vm5993 = vcmp.lt.s32.totalorder %v4417, 0
        %v5994 = vand.u32 %v4417, 2139095040
        %v5995 = vshrl.u32 %v5994, 23
        %v5996 = vsub.s32 %v5995, 127
        %v5997 = vand.u32 2147483647, %v4417
        %v5998 = vand.u32 %v5997, 8388607
        %v5999 = vor.u32 %v5998, 8388608
        %v6000 = vsub.s32 0, %v5999
        %v6001 = vadd.s32 %v5996, 1
        %vm6002 = vcmp.gt.s32.totalorder %v6001, 0
        %v6003 = vsel %vm6002, %v6001, 0
        %v6004 = vshrl.u32 %v6003, 5
        %v6005 = vand.u32 %v6003, 31
        %v6006 = vsub.s32 32, %v6005
        %v6007 = vshrl.u32 683565275, %v6006
        %v6008 = vshll.u32 683565275, %v6005
        %v6009 = vshrl.u32 2475754826, %v6006
        %v6010 = vor.u32 %v6008, %v6009
        %v6011 = vshll.u32 2475754826, %v6005
        %v6012 = vshrl.u32 2131351028, %v6006
        %v6013 = vor.u32 %v6011, %v6012
        %v6014 = vshll.u32 2131351028, %v6005
        %v6015 = vshrl.u32 2102212464, %v6006
        %v6016 = vor.u32 %v6014, %v6015
        %v6017 = vshll.u32 2102212464, %v6005
        %v6018 = vshrl.u32 920167782, %v6006
        %v6019 = vor.u32 %v6017, %v6018
        %v6020 = vshll.u32 920167782, %v6005
        %v6021 = vshrl.u32 1326507024, %v6006
        %v6022 = vor.u32 %v6020, %v6021
        %vm6023 = vcmp.lt.s32.totalorder %v6004, 1
        %vm6024 = vcmp.lt.s32.totalorder %v6004, 2
        %vm6025 = vcmp.lt.s32.totalorder %v6004, 3
        %vm6026 = vcmp.lt.s32.totalorder %v6004, 4
        %v6027 = vsel %vm6023, %v6007, %v6010
        %v6028 = vsel %vm6026, %v6016, 2102212464
        %v6029 = vsel %vm6025, %v6013, %v6028
        %v6030 = vsel %vm6024, %v6027, %v6029
        %v6031 = vsel %vm6023, %v6010, %v6013
        %v6032 = vsel %vm6026, %v6019, 920167782
        %v6033 = vsel %vm6025, %v6016, %v6032
        %v6034 = vsel %vm6024, %v6031, %v6033
        %v6035 = vsel %vm6023, %v6013, %v6016
        %v6036 = vsel %vm6026, %v6022, 1326507024
        %v6037 = vsel %vm6025, %v6019, %v6036
        %v6038 = vsel %vm6024, %v6035, %v6037
        %v6039 = vshll.u32 %v5999, 8
        %v6040 = vmul.u32.u64.compose %v6039, %v6038
        %v6041 = vextract.low.u32 %v6040
        %v6042 = vextract.high.u32 %v6040
        %v6043 = vmul.u32.u64.compose %v6039, %v6034
        %v6044 = vextract.low.u32 %v6043
        %v6045 = vextract.high.u32 %v6043
        %v6046 = vmul.u32 %v6039, %v6030
        %v6047 = vadd.s32 %v6042, %v6044
        %vm6048 = vc.u32 %v6042, %v6044
        %v6049 = vadd.s32 %v6045, 1
        %v6050 = vsel %vm6048, %v6049, %v6045
        %v6051 = vadd.s32 %v6046, %v6050
        %v6052 = vadd.s32 %v6051, 536870912
        %v6053 = vshrl.u32 %v6052, 30
        %v6054 = vshll.u32 %v6053, 30
        %v6055 = vsub.s32 %v6051, %v6054
        %vm6056 = vcmp.lt.s32.totalorder %v6055, 0
        %v6057 = vsub.s32 0, %v6055
        %v6058 = vsel %vm6056, %v6057, %v6055
        %v6059 = vclz %v6058
        %v6060 = vsub.s32 %v6059, 2
        %vm6061 = vcmp.gt.s32.totalorder 0, %v6060
        %v6062 = vsel %vm6061, 0, %v6060
        %v6063 = vsub.s32 32, %v6062
        %v6064 = vshll.u32 %v6055, %v6062
        %v6065 = vshrl.u32 %v6047, %v6063
        %v6066 = vor.u32 %v6064, %v6065
        %v6067 = vsub.s32 4294967266, %v6062
        %v6068 = vadd.s32 %v6067, 127
        %v6069 = vshll.u32 %v6068, 23
        %v6070 = vor.u32 4788187, %v6069
        %v6071 = vand.u32 2147483647, %v6070
        %v6073 = vcvt.s32.f32 %v6066
        %v6074 = vmul.f32 %v6073, %v6071
        %v6075 = vxor.u32 %v6074, 2147483648
        %v6076 = vsel %vm5993, %v6075, %v6074
        %v6077 = vsub.s32 4, %v6053
        %v6078 = vsel %vm5993, %v6077, %v6053
        %v6079 = vsel %vm5992, %v4417, %v6076
        %v6080 = vsel %vm5992, 0, %v6078
        %v6081 = vcosq.f32.pop %v6079
        %v6082 = vsinq.f32.pop %v6079
        %vm6083 = vweird.f32 %v4417
        %v6084 = vadd.s32 %v6080, 3
        %v6085 = vand.u32 %v6084, 3
        %vm6086 = vcmp.lt.s32.totalorder %v6085, 2
        %vm6087 = vcmp.eq.s32.totalorder %v6085, 0
        %v6088 = vxor.u32 %v6082, 2147483648
        %v6089 = vsel %vm6087, %v6081, %v6088
        %vm6090 = vcmp.eq.s32.totalorder %v6085, 2
        %v6091 = vxor.u32 %v6081, 2147483648
        %v6092 = vsel %vm6090, %v6091, %v6082
        %v6093 = vsel %vm6086, %v6089, %v6092
        %v6094 = vsel %vm6083, nan, %v6093
        %v6095 = vand.u32 2147483647, %v4154
        %vm6096 = vcmp.le.f32.partialorder %v6095, 0.7853982
        %vm6097 = vcmp.lt.s32.totalorder %v4154, 0
        %v6098 = vand.u32 %v4154, 2139095040
        %v6099 = vshrl.u32 %v6098, 23
        %v6100 = vsub.s32 %v6099, 127
        %v6101 = vand.u32 2147483647, %v4154
        %v6102 = vand.u32 %v6101, 8388607
        %v6103 = vor.u32 %v6102, 8388608
        %v6104 = vsub.s32 0, %v6103
        %v6105 = vadd.s32 %v6100, 1
        %vm6106 = vcmp.gt.s32.totalorder %v6105, 0
        %v6107 = vsel %vm6106, %v6105, 0
        %v6108 = vshrl.u32 %v6107, 5
        %v6109 = vand.u32 %v6107, 31
        %v6110 = vsub.s32 32, %v6109
        %v6111 = vshrl.u32 683565275, %v6110
        %v6112 = vshll.u32 683565275, %v6109
        %v6113 = vshrl.u32 2475754826, %v6110
        %v6114 = vor.u32 %v6112, %v6113
        %v6115 = vshll.u32 2475754826, %v6109
        %v6116 = vshrl.u32 2131351028, %v6110
        %v6117 = vor.u32 %v6115, %v6116
        %v6118 = vshll.u32 2131351028, %v6109
        %v6119 = vshrl.u32 2102212464, %v6110
        %v6120 = vor.u32 %v6118, %v6119
        %v6121 = vshll.u32 2102212464, %v6109
        %v6122 = vshrl.u32 920167782, %v6110
        %v6123 = vor.u32 %v6121, %v6122
        %v6124 = vshll.u32 920167782, %v6109
        %v6125 = vshrl.u32 1326507024, %v6110
        %v6126 = vor.u32 %v6124, %v6125
        %vm6127 = vcmp.lt.s32.totalorder %v6108, 1
        %vm6128 = vcmp.lt.s32.totalorder %v6108, 2
        %vm6129 = vcmp.lt.s32.totalorder %v6108, 3
        %vm6130 = vcmp.lt.s32.totalorder %v6108, 4
        %v6131 = vsel %vm6127, %v6111, %v6114
        %v6132 = vsel %vm6130, %v6120, 2102212464
        %v6133 = vsel %vm6129, %v6117, %v6132
        %v6134 = vsel %vm6128, %v6131, %v6133
        %v6135 = vsel %vm6127, %v6114, %v6117
        %v6136 = vsel %vm6130, %v6123, 920167782
        %v6137 = vsel %vm6129, %v6120, %v6136
        %v6138 = vsel %vm6128, %v6135, %v6137
        %v6139 = vsel %vm6127, %v6117, %v6120
        %v6140 = vsel %vm6130, %v6126, 1326507024
        %v6141 = vsel %vm6129, %v6123, %v6140
        %v6142 = vsel %vm6128, %v6139, %v6141
        %v6143 = vshll.u32 %v6103, 8
        %v6144 = vmul.u32.u64.compose %v6143, %v6142
        %v6145 = vextract.low.u32 %v6144
        %v6146 = vextract.high.u32 %v6144
        %v6147 = vmul.u32.u64.compose %v6143, %v6138
        %v6148 = vextract.low.u32 %v6147
        %v6149 = vextract.high.u32 %v6147
        %v6150 = vmul.u32 %v6143, %v6134
        %v6151 = vadd.s32 %v6146, %v6148
        %vm6152 = vc.u32 %v6146, %v6148
        %v6153 = vadd.s32 %v6149, 1
        %v6154 = vsel %vm6152, %v6153, %v6149
        %v6155 = vadd.s32 %v6150, %v6154
        %v6156 = vadd.s32 %v6155, 536870912
        %v6157 = vshrl.u32 %v6156, 30
        %v6158 = vshll.u32 %v6157, 30
        %v6159 = vsub.s32 %v6155, %v6158
        %vm6160 = vcmp.lt.s32.totalorder %v6159, 0
        %v6161 = vsub.s32 0, %v6159
        %v6162 = vsel %vm6160, %v6161, %v6159
        %v6163 = vclz %v6162
        %v6164 = vsub.s32 %v6163, 2
        %vm6165 = vcmp.gt.s32.totalorder 0, %v6164
        %v6166 = vsel %vm6165, 0, %v6164
        %v6167 = vsub.s32 32, %v6166
        %v6168 = vshll.u32 %v6159, %v6166
        %v6169 = vshrl.u32 %v6151, %v6167
        %v6170 = vor.u32 %v6168, %v6169
        %v6171 = vsub.s32 4294967266, %v6166
        %v6172 = vadd.s32 %v6171, 127
        %v6173 = vshll.u32 %v6172, 23
        %v6174 = vor.u32 4788187, %v6173
        %v6175 = vand.u32 2147483647, %v6174
        %v6177 = vcvt.s32.f32 %v6170
        %v6178 = vmul.f32 %v6177, %v6175
        %v6179 = vxor.u32 %v6178, 2147483648
        %v6180 = vsel %vm6097, %v6179, %v6178
        %v6181 = vsub.s32 4, %v6157
        %v6182 = vsel %vm6097, %v6181, %v6157
        %v6183 = vsel %vm6096, %v4154, %v6180
        %v6184 = vsel %vm6096, 0, %v6182
        %v6185 = vcosq.f32.pop %v6183
        %v6186 = vsinq.f32.pop %v6183
        %vm6187 = vweird.f32 %v4154
        %v6188 = vadd.s32 %v6184, 3
        %v6189 = vand.u32 %v6188, 3
        %vm6190 = vcmp.lt.s32.totalorder %v6189, 2
        %vm6191 = vcmp.eq.s32.totalorder %v6189, 0
        %v6192 = vxor.u32 %v6186, 2147483648
        %v6193 = vsel %vm6191, %v6185, %v6192
        %vm6194 = vcmp.eq.s32.totalorder %v6189, 2
        %v6195 = vxor.u32 %v6185, 2147483648
        %v6196 = vsel %vm6194, %v6195, %v6186
        %v6197 = vsel %vm6190, %v6193, %v6196
        %v6198 = vsel %vm6187, nan, %v6197
        %v6199 = vand.u32 2147483647, %v4156
        %vm6200 = vcmp.le.f32.partialorder %v6199, 0.7853982
        %vm6201 = vcmp.lt.s32.totalorder %v4156, 0
        %v6202 = vand.u32 %v4156, 2139095040
        %v6203 = vshrl.u32 %v6202, 23
        %v6204 = vsub.s32 %v6203, 127
        %v6205 = vand.u32 2147483647, %v4156
        %v6206 = vand.u32 %v6205, 8388607
        %v6207 = vor.u32 %v6206, 8388608
        %v6208 = vsub.s32 0, %v6207
        %v6209 = vadd.s32 %v6204, 1
        %vm6210 = vcmp.gt.s32.totalorder %v6209, 0
        %v6211 = vsel %vm6210, %v6209, 0
        %v6212 = vshrl.u32 %v6211, 5
        %v6213 = vand.u32 %v6211, 31
        %v6214 = vsub.s32 32, %v6213
        %v6215 = vshrl.u32 683565275, %v6214
        %v6216 = vshll.u32 683565275, %v6213
        %v6217 = vshrl.u32 2475754826, %v6214
        %v6218 = vor.u32 %v6216, %v6217
        %v6219 = vshll.u32 2475754826, %v6213
        %v6220 = vshrl.u32 2131351028, %v6214
        %v6221 = vor.u32 %v6219, %v6220
        %v6222 = vshll.u32 2131351028, %v6213
        %v6223 = vshrl.u32 2102212464, %v6214
        %v6224 = vor.u32 %v6222, %v6223
        %v6225 = vshll.u32 2102212464, %v6213
        %v6226 = vshrl.u32 920167782, %v6214
        %v6227 = vor.u32 %v6225, %v6226
        %v6228 = vshll.u32 920167782, %v6213
        %v6229 = vshrl.u32 1326507024, %v6214
        %v6230 = vor.u32 %v6228, %v6229
        %vm6231 = vcmp.lt.s32.totalorder %v6212, 1
        %vm6232 = vcmp.lt.s32.totalorder %v6212, 2
        %vm6233 = vcmp.lt.s32.totalorder %v6212, 3
        %vm6234 = vcmp.lt.s32.totalorder %v6212, 4
        %v6235 = vsel %vm6231, %v6215, %v6218
        %v6236 = vsel %vm6234, %v6224, 2102212464
        %v6237 = vsel %vm6233, %v6221, %v6236
        %v6238 = vsel %vm6232, %v6235, %v6237
        %v6239 = vsel %vm6231, %v6218, %v6221
        %v6240 = vsel %vm6234, %v6227, 920167782
        %v6241 = vsel %vm6233, %v6224, %v6240
        %v6242 = vsel %vm6232, %v6239, %v6241
        %v6243 = vsel %vm6231, %v6221, %v6224
        %v6244 = vsel %vm6234, %v6230, 1326507024
        %v6245 = vsel %vm6233, %v6227, %v6244
        %v6246 = vsel %vm6232, %v6243, %v6245
        %v6247 = vshll.u32 %v6207, 8
        %v6248 = vmul.u32.u64.compose %v6247, %v6246
        %v6249 = vextract.low.u32 %v6248
        %v6250 = vextract.high.u32 %v6248
        %v6251 = vmul.u32.u64.compose %v6247, %v6242
        %v6252 = vextract.low.u32 %v6251
        %v6253 = vextract.high.u32 %v6251
        %v6254 = vmul.u32 %v6247, %v6238
        %v6255 = vadd.s32 %v6250, %v6252
        %vm6256 = vc.u32 %v6250, %v6252
        %v6257 = vadd.s32 %v6253, 1
        %v6258 = vsel %vm6256, %v6257, %v6253
        %v6259 = vadd.s32 %v6254, %v6258
        %v6260 = vadd.s32 %v6259, 536870912
        %v6261 = vshrl.u32 %v6260, 30
        %v6262 = vshll.u32 %v6261, 30
        %v6263 = vsub.s32 %v6259, %v6262
        %vm6264 = vcmp.lt.s32.totalorder %v6263, 0
        %v6265 = vsub.s32 0, %v6263
        %v6266 = vsel %vm6264, %v6265, %v6263
        %v6267 = vclz %v6266
        %v6268 = vsub.s32 %v6267, 2
        %vm6269 = vcmp.gt.s32.totalorder 0, %v6268
        %v6270 = vsel %vm6269, 0, %v6268
        %v6271 = vsub.s32 32, %v6270
        %v6272 = vshll.u32 %v6263, %v6270
        %v6273 = vshrl.u32 %v6255, %v6271
        %v6274 = vor.u32 %v6272, %v6273
        %v6275 = vsub.s32 4294967266, %v6270
        %v6276 = vadd.s32 %v6275, 127
        %v6277 = vshll.u32 %v6276, 23
        %v6278 = vor.u32 4788187, %v6277
        %v6279 = vand.u32 2147483647, %v6278
        %v6281 = vcvt.s32.f32 %v6274
        %v6282 = vmul.f32 %v6281, %v6279
        %v6283 = vxor.u32 %v6282, 2147483648
        %v6284 = vsel %vm6201, %v6283, %v6282
        %v6285 = vsub.s32 4, %v6261
        %v6286 = vsel %vm6201, %v6285, %v6261
        %v6287 = vsel %vm6200, %v4156, %v6284
        %v6288 = vsel %vm6200, 0, %v6286
        %v6289 = vcosq.f32.pop %v6287
        %v6290 = vsinq.f32.pop %v6287
        %vm6291 = vweird.f32 %v4156
        %v6292 = vadd.s32 %v6288, 3
        %v6293 = vand.u32 %v6292, 3
        %vm6294 = vcmp.lt.s32.totalorder %v6293, 2
        %vm6295 = vcmp.eq.s32.totalorder %v6293, 0
        %v6296 = vxor.u32 %v6290, 2147483648
        %v6297 = vsel %vm6295, %v6289, %v6296
        %vm6298 = vcmp.eq.s32.totalorder %v6293, 2
        %v6299 = vxor.u32 %v6289, 2147483648
        %v6300 = vsel %vm6298, %v6299, %v6290
        %v6301 = vsel %vm6294, %v6297, %v6300
        %v6302 = vsel %vm6291, nan, %v6301
        %v6303 = vand.u32 2147483647, %v4243
        %vm6304 = vcmp.le.f32.partialorder %v6303, 0.7853982
        %vm6305 = vcmp.lt.s32.totalorder %v4243, 0
        %v6306 = vand.u32 %v4243, 2139095040
        %v6307 = vshrl.u32 %v6306, 23
        %v6308 = vsub.s32 %v6307, 127
        %v6309 = vand.u32 2147483647, %v4243
        %v6310 = vand.u32 %v6309, 8388607
        %v6311 = vor.u32 %v6310, 8388608
        %v6312 = vsub.s32 0, %v6311
        %v6313 = vadd.s32 %v6308, 1
        %vm6314 = vcmp.gt.s32.totalorder %v6313, 0
        %v6315 = vsel %vm6314, %v6313, 0
        %v6316 = vshrl.u32 %v6315, 5
        %v6317 = vand.u32 %v6315, 31
        %v6318 = vsub.s32 32, %v6317
        %v6319 = vshrl.u32 683565275, %v6318
        %v6320 = vshll.u32 683565275, %v6317
        %v6321 = vshrl.u32 2475754826, %v6318
        %v6322 = vor.u32 %v6320, %v6321
        %v6323 = vshll.u32 2475754826, %v6317
        %v6324 = vshrl.u32 2131351028, %v6318
        %v6325 = vor.u32 %v6323, %v6324
        %v6326 = vshll.u32 2131351028, %v6317
        %v6327 = vshrl.u32 2102212464, %v6318
        %v6328 = vor.u32 %v6326, %v6327
        %v6329 = vshll.u32 2102212464, %v6317
        %v6330 = vshrl.u32 920167782, %v6318
        %v6331 = vor.u32 %v6329, %v6330
        %v6332 = vshll.u32 920167782, %v6317
        %v6333 = vshrl.u32 1326507024, %v6318
        %v6334 = vor.u32 %v6332, %v6333
        %vm6335 = vcmp.lt.s32.totalorder %v6316, 1
        %vm6336 = vcmp.lt.s32.totalorder %v6316, 2
        %vm6337 = vcmp.lt.s32.totalorder %v6316, 3
        %vm6338 = vcmp.lt.s32.totalorder %v6316, 4
        %v6339 = vsel %vm6335, %v6319, %v6322
        %v6340 = vsel %vm6338, %v6328, 2102212464
        %v6341 = vsel %vm6337, %v6325, %v6340
        %v6342 = vsel %vm6336, %v6339, %v6341
        %v6343 = vsel %vm6335, %v6322, %v6325
        %v6344 = vsel %vm6338, %v6331, 920167782
        %v6345 = vsel %vm6337, %v6328, %v6344
        %v6346 = vsel %vm6336, %v6343, %v6345
        %v6347 = vsel %vm6335, %v6325, %v6328
        %v6348 = vsel %vm6338, %v6334, 1326507024
        %v6349 = vsel %vm6337, %v6331, %v6348
        %v6350 = vsel %vm6336, %v6347, %v6349
        %v6351 = vshll.u32 %v6311, 8
        %v6352 = vmul.u32.u64.compose %v6351, %v6350
        %v6353 = vextract.low.u32 %v6352
        %v6354 = vextract.high.u32 %v6352
        %v6355 = vmul.u32.u64.compose %v6351, %v6346
        %v6356 = vextract.low.u32 %v6355
        %v6357 = vextract.high.u32 %v6355
        %v6358 = vmul.u32 %v6351, %v6342
        %v6359 = vadd.s32 %v6354, %v6356
        %vm6360 = vc.u32 %v6354, %v6356
        %v6361 = vadd.s32 %v6357, 1
        %v6362 = vsel %vm6360, %v6361, %v6357
        %v6363 = vadd.s32 %v6358, %v6362
        %v6364 = vadd.s32 %v6363, 536870912
        %v6365 = vshrl.u32 %v6364, 30
        %v6366 = vshll.u32 %v6365, 30
        %v6367 = vsub.s32 %v6363, %v6366
        %vm6368 = vcmp.lt.s32.totalorder %v6367, 0
        %v6369 = vsub.s32 0, %v6367
        %v6370 = vsel %vm6368, %v6369, %v6367
        %v6371 = vclz %v6370
        %v6372 = vsub.s32 %v6371, 2
        %vm6373 = vcmp.gt.s32.totalorder 0, %v6372
        %v6374 = vsel %vm6373, 0, %v6372
        %v6375 = vsub.s32 32, %v6374
        %v6376 = vshll.u32 %v6367, %v6374
        %v6377 = vshrl.u32 %v6359, %v6375
        %v6378 = vor.u32 %v6376, %v6377
        %v6379 = vsub.s32 4294967266, %v6374
        %v6380 = vadd.s32 %v6379, 127
        %v6381 = vshll.u32 %v6380, 23
        %v6382 = vor.u32 4788187, %v6381
        %v6383 = vand.u32 2147483647, %v6382
        %v6385 = vcvt.s32.f32 %v6378
        %v6386 = vmul.f32 %v6385, %v6383
        %v6387 = vxor.u32 %v6386, 2147483648
        %v6388 = vsel %vm6305, %v6387, %v6386
        %v6389 = vsub.s32 4, %v6365
        %v6390 = vsel %vm6305, %v6389, %v6365
        %v6391 = vsel %vm6304, %v4243, %v6388
        %v6392 = vsel %vm6304, 0, %v6390
        %v6393 = vcosq.f32.pop %v6391
        %v6394 = vsinq.f32.pop %v6391
        %vm6395 = vweird.f32 %v4243
        %v6396 = vadd.s32 %v6392, 3
        %v6397 = vand.u32 %v6396, 3
        %vm6398 = vcmp.lt.s32.totalorder %v6397, 2
        %vm6399 = vcmp.eq.s32.totalorder %v6397, 0
        %v6400 = vxor.u32 %v6394, 2147483648
        %v6401 = vsel %vm6399, %v6393, %v6400
        %vm6402 = vcmp.eq.s32.totalorder %v6397, 2
        %v6403 = vxor.u32 %v6393, 2147483648
        %v6404 = vsel %vm6402, %v6403, %v6394
        %v6405 = vsel %vm6398, %v6401, %v6404
        %v6406 = vsel %vm6395, nan, %v6405
        %v6407 = vand.u32 2147483647, %v4245
        %vm6408 = vcmp.le.f32.partialorder %v6407, 0.7853982
        %vm6409 = vcmp.lt.s32.totalorder %v4245, 0
        %v6410 = vand.u32 %v4245, 2139095040
        %v6411 = vshrl.u32 %v6410, 23
        %v6412 = vsub.s32 %v6411, 127
        %v6413 = vand.u32 2147483647, %v4245
        %v6414 = vand.u32 %v6413, 8388607
        %v6415 = vor.u32 %v6414, 8388608
        %v6416 = vsub.s32 0, %v6415
        %v6417 = vadd.s32 %v6412, 1
        %vm6418 = vcmp.gt.s32.totalorder %v6417, 0
        %v6419 = vsel %vm6418, %v6417, 0
        %v6420 = vshrl.u32 %v6419, 5
        %v6421 = vand.u32 %v6419, 31
        %v6422 = vsub.s32 32, %v6421
        %v6423 = vshrl.u32 683565275, %v6422
        %v6424 = vshll.u32 683565275, %v6421
        %v6425 = vshrl.u32 2475754826, %v6422
        %v6426 = vor.u32 %v6424, %v6425
        %v6427 = vshll.u32 2475754826, %v6421
        %v6428 = vshrl.u32 2131351028, %v6422
        %v6429 = vor.u32 %v6427, %v6428
        %v6430 = vshll.u32 2131351028, %v6421
        %v6431 = vshrl.u32 2102212464, %v6422
        %v6432 = vor.u32 %v6430, %v6431
        %v6433 = vshll.u32 2102212464, %v6421
        %v6434 = vshrl.u32 920167782, %v6422
        %v6435 = vor.u32 %v6433, %v6434
        %v6436 = vshll.u32 920167782, %v6421
        %v6437 = vshrl.u32 1326507024, %v6422
        %v6438 = vor.u32 %v6436, %v6437
        %vm6439 = vcmp.lt.s32.totalorder %v6420, 1
        %vm6440 = vcmp.lt.s32.totalorder %v6420, 2
        %vm6441 = vcmp.lt.s32.totalorder %v6420, 3
        %vm6442 = vcmp.lt.s32.totalorder %v6420, 4
        %v6443 = vsel %vm6439, %v6423, %v6426
        %v6444 = vsel %vm6442, %v6432, 2102212464
        %v6445 = vsel %vm6441, %v6429, %v6444
        %v6446 = vsel %vm6440, %v6443, %v6445
        %v6447 = vsel %vm6439, %v6426, %v6429
        %v6448 = vsel %vm6442, %v6435, 920167782
        %v6449 = vsel %vm6441, %v6432, %v6448
        %v6450 = vsel %vm6440, %v6447, %v6449
        %v6451 = vsel %vm6439, %v6429, %v6432
        %v6452 = vsel %vm6442, %v6438, 1326507024
        %v6453 = vsel %vm6441, %v6435, %v6452
        %v6454 = vsel %vm6440, %v6451, %v6453
        %v6455 = vshll.u32 %v6415, 8
        %v6456 = vmul.u32.u64.compose %v6455, %v6454
        %v6457 = vextract.low.u32 %v6456
        %v6458 = vextract.high.u32 %v6456
        %v6459 = vmul.u32.u64.compose %v6455, %v6450
        %v6460 = vextract.low.u32 %v6459
        %v6461 = vextract.high.u32 %v6459
        %v6462 = vmul.u32 %v6455, %v6446
        %v6463 = vadd.s32 %v6458, %v6460
        %vm6464 = vc.u32 %v6458, %v6460
        %v6465 = vadd.s32 %v6461, 1
        %v6466 = vsel %vm6464, %v6465, %v6461
        %v6467 = vadd.s32 %v6462, %v6466
        %v6468 = vadd.s32 %v6467, 536870912
        %v6469 = vshrl.u32 %v6468, 30
        %v6470 = vshll.u32 %v6469, 30
        %v6471 = vsub.s32 %v6467, %v6470
        %vm6472 = vcmp.lt.s32.totalorder %v6471, 0
        %v6473 = vsub.s32 0, %v6471
        %v6474 = vsel %vm6472, %v6473, %v6471
        %v6475 = vclz %v6474
        %v6476 = vsub.s32 %v6475, 2
        %vm6477 = vcmp.gt.s32.totalorder 0, %v6476
        %v6478 = vsel %vm6477, 0, %v6476
        %v6479 = vsub.s32 32, %v6478
        %v6480 = vshll.u32 %v6471, %v6478
        %v6481 = vshrl.u32 %v6463, %v6479
        %v6482 = vor.u32 %v6480, %v6481
        %v6483 = vsub.s32 4294967266, %v6478
        %v6484 = vadd.s32 %v6483, 127
        %v6485 = vshll.u32 %v6484, 23
        %v6486 = vor.u32 4788187, %v6485
        %v6487 = vand.u32 2147483647, %v6486
        %v6489 = vcvt.s32.f32 %v6482
        %v6490 = vmul.f32 %v6489, %v6487
        %v6491 = vxor.u32 %v6490, 2147483648
        %v6492 = vsel %vm6409, %v6491, %v6490
        %v6493 = vsub.s32 4, %v6469
        %v6494 = vsel %vm6409, %v6493, %v6469
        %v6495 = vsel %vm6408, %v4245, %v6492
        %v6496 = vsel %vm6408, 0, %v6494
        %v6497 = vcosq.f32.pop %v6495
        %v6498 = vsinq.f32.pop %v6495
        %vm6499 = vweird.f32 %v4245
        %v6500 = vadd.s32 %v6496, 3
        %v6501 = vand.u32 %v6500, 3
        %vm6502 = vcmp.lt.s32.totalorder %v6501, 2
        %vm6503 = vcmp.eq.s32.totalorder %v6501, 0
        %v6504 = vxor.u32 %v6498, 2147483648
        %v6505 = vsel %vm6503, %v6497, %v6504
        %vm6506 = vcmp.eq.s32.totalorder %v6501, 2
        %v6507 = vxor.u32 %v6497, 2147483648
        %v6508 = vsel %vm6506, %v6507, %v6498
        %v6509 = vsel %vm6502, %v6505, %v6508
        %v6510 = vsel %vm6499, nan, %v6509
        %v6511 = vand.u32 2147483647, %v4332
        %vm6512 = vcmp.le.f32.partialorder %v6511, 0.7853982
        %vm6513 = vcmp.lt.s32.totalorder %v4332, 0
        %v6514 = vand.u32 %v4332, 2139095040
        %v6515 = vshrl.u32 %v6514, 23
        %v6516 = vsub.s32 %v6515, 127
        %v6517 = vand.u32 2147483647, %v4332
        %v6518 = vand.u32 %v6517, 8388607
        %v6519 = vor.u32 %v6518, 8388608
        %v6520 = vsub.s32 0, %v6519
        %v6521 = vadd.s32 %v6516, 1
        %vm6522 = vcmp.gt.s32.totalorder %v6521, 0
        %v6523 = vsel %vm6522, %v6521, 0
        %v6524 = vshrl.u32 %v6523, 5
        %v6525 = vand.u32 %v6523, 31
        %v6526 = vsub.s32 32, %v6525
        %v6527 = vshrl.u32 683565275, %v6526
        %v6528 = vshll.u32 683565275, %v6525
        %v6529 = vshrl.u32 2475754826, %v6526
        %v6530 = vor.u32 %v6528, %v6529
        %v6531 = vshll.u32 2475754826, %v6525
        %v6532 = vshrl.u32 2131351028, %v6526
        %v6533 = vor.u32 %v6531, %v6532
        %v6534 = vshll.u32 2131351028, %v6525
        %v6535 = vshrl.u32 2102212464, %v6526
        %v6536 = vor.u32 %v6534, %v6535
        %v6537 = vshll.u32 2102212464, %v6525
        %v6538 = vshrl.u32 920167782, %v6526
        %v6539 = vor.u32 %v6537, %v6538
        %v6540 = vshll.u32 920167782, %v6525
        %v6541 = vshrl.u32 1326507024, %v6526
        %v6542 = vor.u32 %v6540, %v6541
        %vm6543 = vcmp.lt.s32.totalorder %v6524, 1
        %vm6544 = vcmp.lt.s32.totalorder %v6524, 2
        %vm6545 = vcmp.lt.s32.totalorder %v6524, 3
        %vm6546 = vcmp.lt.s32.totalorder %v6524, 4
        %v6547 = vsel %vm6543, %v6527, %v6530
        %v6548 = vsel %vm6546, %v6536, 2102212464
        %v6549 = vsel %vm6545, %v6533, %v6548
        %v6550 = vsel %vm6544, %v6547, %v6549
        %v6551 = vsel %vm6543, %v6530, %v6533
        %v6552 = vsel %vm6546, %v6539, 920167782
        %v6553 = vsel %vm6545, %v6536, %v6552
        %v6554 = vsel %vm6544, %v6551, %v6553
        %v6555 = vsel %vm6543, %v6533, %v6536
        %v6556 = vsel %vm6546, %v6542, 1326507024
        %v6557 = vsel %vm6545, %v6539, %v6556
        %v6558 = vsel %vm6544, %v6555, %v6557
        %v6559 = vshll.u32 %v6519, 8
        %v6560 = vmul.u32.u64.compose %v6559, %v6558
        %v6561 = vextract.low.u32 %v6560
        %v6562 = vextract.high.u32 %v6560
        %v6563 = vmul.u32.u64.compose %v6559, %v6554
        %v6564 = vextract.low.u32 %v6563
        %v6565 = vextract.high.u32 %v6563
        %v6566 = vmul.u32 %v6559, %v6550
        %v6567 = vadd.s32 %v6562, %v6564
        %vm6568 = vc.u32 %v6562, %v6564
        %v6569 = vadd.s32 %v6565, 1
        %v6570 = vsel %vm6568, %v6569, %v6565
        %v6571 = vadd.s32 %v6566, %v6570
        %v6572 = vadd.s32 %v6571, 536870912
        %v6573 = vshrl.u32 %v6572, 30
        %v6574 = vshll.u32 %v6573, 30
        %v6575 = vsub.s32 %v6571, %v6574
        %vm6576 = vcmp.lt.s32.totalorder %v6575, 0
        %v6577 = vsub.s32 0, %v6575
        %v6578 = vsel %vm6576, %v6577, %v6575
        %v6579 = vclz %v6578
        %v6580 = vsub.s32 %v6579, 2
        %vm6581 = vcmp.gt.s32.totalorder 0, %v6580
        %v6582 = vsel %vm6581, 0, %v6580
        %v6583 = vsub.s32 32, %v6582
        %v6584 = vshll.u32 %v6575, %v6582
        %v6585 = vshrl.u32 %v6567, %v6583
        %v6586 = vor.u32 %v6584, %v6585
        %v6587 = vsub.s32 4294967266, %v6582
        %v6588 = vadd.s32 %v6587, 127
        %v6589 = vshll.u32 %v6588, 23
        %v6590 = vor.u32 4788187, %v6589
        %v6591 = vand.u32 2147483647, %v6590
        %v6593 = vcvt.s32.f32 %v6586
        %v6594 = vmul.f32 %v6593, %v6591
        %v6595 = vxor.u32 %v6594, 2147483648
        %v6596 = vsel %vm6513, %v6595, %v6594
        %v6597 = vsub.s32 4, %v6573
        %v6598 = vsel %vm6513, %v6597, %v6573
        %v6599 = vsel %vm6512, %v4332, %v6596
        %v6600 = vsel %vm6512, 0, %v6598
        %v6601 = vcosq.f32.pop %v6599
        %v6602 = vsinq.f32.pop %v6599
        %vm6603 = vweird.f32 %v4332
        %v6604 = vadd.s32 %v6600, 3
        %v6605 = vand.u32 %v6604, 3
        %vm6606 = vcmp.lt.s32.totalorder %v6605, 2
        %vm6607 = vcmp.eq.s32.totalorder %v6605, 0
        %v6608 = vxor.u32 %v6602, 2147483648
        %v6609 = vsel %vm6607, %v6601, %v6608
        %vm6610 = vcmp.eq.s32.totalorder %v6605, 2
        %v6611 = vxor.u32 %v6601, 2147483648
        %v6612 = vsel %vm6610, %v6611, %v6602
        %v6613 = vsel %vm6606, %v6609, %v6612
        %v6614 = vsel %vm6603, nan, %v6613
        %v6615 = vand.u32 2147483647, %v4334
        %vm6616 = vcmp.le.f32.partialorder %v6615, 0.7853982
        %vm6617 = vcmp.lt.s32.totalorder %v4334, 0
        %v6618 = vand.u32 %v4334, 2139095040
        %v6619 = vshrl.u32 %v6618, 23
        %v6620 = vsub.s32 %v6619, 127
        %v6621 = vand.u32 2147483647, %v4334
        %v6622 = vand.u32 %v6621, 8388607
        %v6623 = vor.u32 %v6622, 8388608
        %v6624 = vsub.s32 0, %v6623
        %v6625 = vadd.s32 %v6620, 1
        %vm6626 = vcmp.gt.s32.totalorder %v6625, 0
        %v6627 = vsel %vm6626, %v6625, 0
        %v6628 = vshrl.u32 %v6627, 5
        %v6629 = vand.u32 %v6627, 31
        %v6630 = vsub.s32 32, %v6629
        %v6631 = vshrl.u32 683565275, %v6630
        %v6632 = vshll.u32 683565275, %v6629
        %v6633 = vshrl.u32 2475754826, %v6630
        %v6634 = vor.u32 %v6632, %v6633
        %v6635 = vshll.u32 2475754826, %v6629
        %v6636 = vshrl.u32 2131351028, %v6630
        %v6637 = vor.u32 %v6635, %v6636
        %v6638 = vshll.u32 2131351028, %v6629
        %v6639 = vshrl.u32 2102212464, %v6630
        %v6640 = vor.u32 %v6638, %v6639
        %v6641 = vshll.u32 2102212464, %v6629
        %v6642 = vshrl.u32 920167782, %v6630
        %v6643 = vor.u32 %v6641, %v6642
        %v6644 = vshll.u32 920167782, %v6629
        %v6645 = vshrl.u32 1326507024, %v6630
        %v6646 = vor.u32 %v6644, %v6645
        %vm6647 = vcmp.lt.s32.totalorder %v6628, 1
        %vm6648 = vcmp.lt.s32.totalorder %v6628, 2
        %vm6649 = vcmp.lt.s32.totalorder %v6628, 3
        %vm6650 = vcmp.lt.s32.totalorder %v6628, 4
        %v6651 = vsel %vm6647, %v6631, %v6634
        %v6652 = vsel %vm6650, %v6640, 2102212464
        %v6653 = vsel %vm6649, %v6637, %v6652
        %v6654 = vsel %vm6648, %v6651, %v6653
        %v6655 = vsel %vm6647, %v6634, %v6637
        %v6656 = vsel %vm6650, %v6643, 920167782
        %v6657 = vsel %vm6649, %v6640, %v6656
        %v6658 = vsel %vm6648, %v6655, %v6657
        %v6659 = vsel %vm6647, %v6637, %v6640
        %v6660 = vsel %vm6650, %v6646, 1326507024
        %v6661 = vsel %vm6649, %v6643, %v6660
        %v6662 = vsel %vm6648, %v6659, %v6661
        %v6663 = vshll.u32 %v6623, 8
        %v6664 = vmul.u32.u64.compose %v6663, %v6662
        %v6665 = vextract.low.u32 %v6664
        %v6666 = vextract.high.u32 %v6664
        %v6667 = vmul.u32.u64.compose %v6663, %v6658
        %v6668 = vextract.low.u32 %v6667
        %v6669 = vextract.high.u32 %v6667
        %v6670 = vmul.u32 %v6663, %v6654
        %v6671 = vadd.s32 %v6666, %v6668
        %vm6672 = vc.u32 %v6666, %v6668
        %v6673 = vadd.s32 %v6669, 1
        %v6674 = vsel %vm6672, %v6673, %v6669
        %v6675 = vadd.s32 %v6670, %v6674
        %v6676 = vadd.s32 %v6675, 536870912
        %v6677 = vshrl.u32 %v6676, 30
        %v6678 = vshll.u32 %v6677, 30
        %v6679 = vsub.s32 %v6675, %v6678
        %vm6680 = vcmp.lt.s32.totalorder %v6679, 0
        %v6681 = vsub.s32 0, %v6679
        %v6682 = vsel %vm6680, %v6681, %v6679
        %v6683 = vclz %v6682
        %v6684 = vsub.s32 %v6683, 2
        %vm6685 = vcmp.gt.s32.totalorder 0, %v6684
        %v6686 = vsel %vm6685, 0, %v6684
        %v6687 = vsub.s32 32, %v6686
        %v6688 = vshll.u32 %v6679, %v6686
        %v6689 = vshrl.u32 %v6671, %v6687
        %v6690 = vor.u32 %v6688, %v6689
        %v6691 = vsub.s32 4294967266, %v6686
        %v6692 = vadd.s32 %v6691, 127
        %v6693 = vshll.u32 %v6692, 23
        %v6694 = vor.u32 4788187, %v6693
        %v6695 = vand.u32 2147483647, %v6694
        %v6697 = vcvt.s32.f32 %v6690
        %v6698 = vmul.f32 %v6697, %v6695
        %v6699 = vxor.u32 %v6698, 2147483648
        %v6700 = vsel %vm6617, %v6699, %v6698
        %v6701 = vsub.s32 4, %v6677
        %v6702 = vsel %vm6617, %v6701, %v6677
        %v6703 = vsel %vm6616, %v4334, %v6700
        %v6704 = vsel %vm6616, 0, %v6702
        %v6705 = vcosq.f32.pop %v6703
        %v6706 = vsinq.f32.pop %v6703
        %vm6707 = vweird.f32 %v4334
        %v6708 = vadd.s32 %v6704, 3
        %v6709 = vand.u32 %v6708, 3
        %vm6710 = vcmp.lt.s32.totalorder %v6709, 2
        %vm6711 = vcmp.eq.s32.totalorder %v6709, 0
        %v6712 = vxor.u32 %v6706, 2147483648
        %v6713 = vsel %vm6711, %v6705, %v6712
        %vm6714 = vcmp.eq.s32.totalorder %v6709, 2
        %v6715 = vxor.u32 %v6705, 2147483648
        %v6716 = vsel %vm6714, %v6715, %v6706
        %v6717 = vsel %vm6710, %v6713, %v6716
        %v6718 = vsel %vm6707, nan, %v6717
        %v6719 = vand.u32 2147483647, %v4421
        %vm6720 = vcmp.le.f32.partialorder %v6719, 0.7853982
        %vm6721 = vcmp.lt.s32.totalorder %v4421, 0
        %v6722 = vand.u32 %v4421, 2139095040
        %v6723 = vshrl.u32 %v6722, 23
        %v6724 = vsub.s32 %v6723, 127
        %v6725 = vand.u32 2147483647, %v4421
        %v6726 = vand.u32 %v6725, 8388607
        %v6727 = vor.u32 %v6726, 8388608
        %v6728 = vsub.s32 0, %v6727
        %v6729 = vadd.s32 %v6724, 1
        %vm6730 = vcmp.gt.s32.totalorder %v6729, 0
        %v6731 = vsel %vm6730, %v6729, 0
        %v6732 = vshrl.u32 %v6731, 5
        %v6733 = vand.u32 %v6731, 31
        %v6734 = vsub.s32 32, %v6733
        %v6735 = vshrl.u32 683565275, %v6734
        %v6736 = vshll.u32 683565275, %v6733
        %v6737 = vshrl.u32 2475754826, %v6734
        %v6738 = vor.u32 %v6736, %v6737
        %v6739 = vshll.u32 2475754826, %v6733
        %v6740 = vshrl.u32 2131351028, %v6734
        %v6741 = vor.u32 %v6739, %v6740
        %v6742 = vshll.u32 2131351028, %v6733
        %v6743 = vshrl.u32 2102212464, %v6734
        %v6744 = vor.u32 %v6742, %v6743
        %v6745 = vshll.u32 2102212464, %v6733
        %v6746 = vshrl.u32 920167782, %v6734
        %v6747 = vor.u32 %v6745, %v6746
        %v6748 = vshll.u32 920167782, %v6733
        %v6749 = vshrl.u32 1326507024, %v6734
        %v6750 = vor.u32 %v6748, %v6749
        %vm6751 = vcmp.lt.s32.totalorder %v6732, 1
        %vm6752 = vcmp.lt.s32.totalorder %v6732, 2
        %vm6753 = vcmp.lt.s32.totalorder %v6732, 3
        %vm6754 = vcmp.lt.s32.totalorder %v6732, 4
        %v6755 = vsel %vm6751, %v6735, %v6738
        %v6756 = vsel %vm6754, %v6744, 2102212464
        %v6757 = vsel %vm6753, %v6741, %v6756
        %v6758 = vsel %vm6752, %v6755, %v6757
        %v6759 = vsel %vm6751, %v6738, %v6741
        %v6760 = vsel %vm6754, %v6747, 920167782
        %v6761 = vsel %vm6753, %v6744, %v6760
        %v6762 = vsel %vm6752, %v6759, %v6761
        %v6763 = vsel %vm6751, %v6741, %v6744
        %v6764 = vsel %vm6754, %v6750, 1326507024
        %v6765 = vsel %vm6753, %v6747, %v6764
        %v6766 = vsel %vm6752, %v6763, %v6765
        %v6767 = vshll.u32 %v6727, 8
        %v6768 = vmul.u32.u64.compose %v6767, %v6766
        %v6769 = vextract.low.u32 %v6768
        %v6770 = vextract.high.u32 %v6768
        %v6771 = vmul.u32.u64.compose %v6767, %v6762
        %v6772 = vextract.low.u32 %v6771
        %v6773 = vextract.high.u32 %v6771
        %v6774 = vmul.u32 %v6767, %v6758
        %v6775 = vadd.s32 %v6770, %v6772
        %vm6776 = vc.u32 %v6770, %v6772
        %v6777 = vadd.s32 %v6773, 1
        %v6778 = vsel %vm6776, %v6777, %v6773
        %v6779 = vadd.s32 %v6774, %v6778
        %v6780 = vadd.s32 %v6779, 536870912
        %v6781 = vshrl.u32 %v6780, 30
        %v6782 = vshll.u32 %v6781, 30
        %v6783 = vsub.s32 %v6779, %v6782
        %vm6784 = vcmp.lt.s32.totalorder %v6783, 0
        %v6785 = vsub.s32 0, %v6783
        %v6786 = vsel %vm6784, %v6785, %v6783
        %v6787 = vclz %v6786
        %v6788 = vsub.s32 %v6787, 2
        %vm6789 = vcmp.gt.s32.totalorder 0, %v6788
        %v6790 = vsel %vm6789, 0, %v6788
        %v6791 = vsub.s32 32, %v6790
        %v6792 = vshll.u32 %v6783, %v6790
        %v6793 = vshrl.u32 %v6775, %v6791
        %v6794 = vor.u32 %v6792, %v6793
        %v6795 = vsub.s32 4294967266, %v6790
        %v6796 = vadd.s32 %v6795, 127
        %v6797 = vshll.u32 %v6796, 23
        %v6798 = vor.u32 4788187, %v6797
        %v6799 = vand.u32 2147483647, %v6798
        %v6801 = vcvt.s32.f32 %v6794
        %v6802 = vmul.f32 %v6801, %v6799
        %v6803 = vxor.u32 %v6802, 2147483648
        %v6804 = vsel %vm6721, %v6803, %v6802
        %v6805 = vsub.s32 4, %v6781
        %v6806 = vsel %vm6721, %v6805, %v6781
        %v6807 = vsel %vm6720, %v4421, %v6804
        %v6808 = vsel %vm6720, 0, %v6806
        %v6809 = vcosq.f32.pop %v6807
        %v6810 = vsinq.f32.pop %v6807
        %vm6811 = vweird.f32 %v4421
        %v6812 = vadd.s32 %v6808, 3
        %v6813 = vand.u32 %v6812, 3
        %vm6814 = vcmp.lt.s32.totalorder %v6813, 2
        %vm6815 = vcmp.eq.s32.totalorder %v6813, 0
        %v6816 = vxor.u32 %v6810, 2147483648
        %v6817 = vsel %vm6815, %v6809, %v6816
        %vm6818 = vcmp.eq.s32.totalorder %v6813, 2
        %v6819 = vxor.u32 %v6809, 2147483648
        %v6820 = vsel %vm6818, %v6819, %v6810
        %v6821 = vsel %vm6814, %v6817, %v6820
        %v6822 = vsel %vm6811, nan, %v6821
        %v6823 = vand.u32 2147483647, %v4423
        %vm6824 = vcmp.le.f32.partialorder %v6823, 0.7853982
        %vm6825 = vcmp.lt.s32.totalorder %v4423, 0
        %v6826 = vand.u32 %v4423, 2139095040
        %v6827 = vshrl.u32 %v6826, 23
        %v6828 = vsub.s32 %v6827, 127
        %v6829 = vand.u32 2147483647, %v4423
        %v6830 = vand.u32 %v6829, 8388607
        %v6831 = vor.u32 %v6830, 8388608
        %v6832 = vsub.s32 0, %v6831
        %v6833 = vadd.s32 %v6828, 1
        %vm6834 = vcmp.gt.s32.totalorder %v6833, 0
        %v6835 = vsel %vm6834, %v6833, 0
        %v6836 = vshrl.u32 %v6835, 5
        %v6837 = vand.u32 %v6835, 31
        %v6838 = vsub.s32 32, %v6837
        %v6839 = vshrl.u32 683565275, %v6838
        %v6840 = vshll.u32 683565275, %v6837
        %v6841 = vshrl.u32 2475754826, %v6838
        %v6842 = vor.u32 %v6840, %v6841
        %v6843 = vshll.u32 2475754826, %v6837
        %v6844 = vshrl.u32 2131351028, %v6838
        %v6845 = vor.u32 %v6843, %v6844
        %v6846 = vshll.u32 2131351028, %v6837
        %v6847 = vshrl.u32 2102212464, %v6838
        %v6848 = vor.u32 %v6846, %v6847
        %v6849 = vshll.u32 2102212464, %v6837
        %v6850 = vshrl.u32 920167782, %v6838
        %v6851 = vor.u32 %v6849, %v6850
        %v6852 = vshll.u32 920167782, %v6837
        %v6853 = vshrl.u32 1326507024, %v6838
        %v6854 = vor.u32 %v6852, %v6853
        %vm6855 = vcmp.lt.s32.totalorder %v6836, 1
        %vm6856 = vcmp.lt.s32.totalorder %v6836, 2
        %vm6857 = vcmp.lt.s32.totalorder %v6836, 3
        %vm6858 = vcmp.lt.s32.totalorder %v6836, 4
        %v6859 = vsel %vm6855, %v6839, %v6842
        %v6860 = vsel %vm6858, %v6848, 2102212464
        %v6861 = vsel %vm6857, %v6845, %v6860
        %v6862 = vsel %vm6856, %v6859, %v6861
        %v6863 = vsel %vm6855, %v6842, %v6845
        %v6864 = vsel %vm6858, %v6851, 920167782
        %v6865 = vsel %vm6857, %v6848, %v6864
        %v6866 = vsel %vm6856, %v6863, %v6865
        %v6867 = vsel %vm6855, %v6845, %v6848
        %v6868 = vsel %vm6858, %v6854, 1326507024
        %v6869 = vsel %vm6857, %v6851, %v6868
        %v6870 = vsel %vm6856, %v6867, %v6869
        %v6871 = vshll.u32 %v6831, 8
        %v6872 = vmul.u32.u64.compose %v6871, %v6870
        %v6873 = vextract.low.u32 %v6872
        %v6874 = vextract.high.u32 %v6872
        %v6875 = vmul.u32.u64.compose %v6871, %v6866
        %v6876 = vextract.low.u32 %v6875
        %v6877 = vextract.high.u32 %v6875
        %v6878 = vmul.u32 %v6871, %v6862
        %v6879 = vadd.s32 %v6874, %v6876
        %vm6880 = vc.u32 %v6874, %v6876
        %v6881 = vadd.s32 %v6877, 1
        %v6882 = vsel %vm6880, %v6881, %v6877
        %v6883 = vadd.s32 %v6878, %v6882
        %v6884 = vadd.s32 %v6883, 536870912
        %v6885 = vshrl.u32 %v6884, 30
        %v6886 = vshll.u32 %v6885, 30
        %v6887 = vsub.s32 %v6883, %v6886
        %vm6888 = vcmp.lt.s32.totalorder %v6887, 0
        %v6889 = vsub.s32 0, %v6887
        %v6890 = vsel %vm6888, %v6889, %v6887
        %v6891 = vclz %v6890
        %v6892 = vsub.s32 %v6891, 2
        %vm6893 = vcmp.gt.s32.totalorder 0, %v6892
        %v6894 = vsel %vm6893, 0, %v6892
        %v6895 = vsub.s32 32, %v6894
        %v6896 = vshll.u32 %v6887, %v6894
        %v6897 = vshrl.u32 %v6879, %v6895
        %v6898 = vor.u32 %v6896, %v6897
        %v6899 = vsub.s32 4294967266, %v6894
        %v6900 = vadd.s32 %v6899, 127
        %v6901 = vshll.u32 %v6900, 23
        %v6902 = vor.u32 4788187, %v6901
        %v6903 = vand.u32 2147483647, %v6902
        %v6905 = vcvt.s32.f32 %v6898
        %v6906 = vmul.f32 %v6905, %v6903
        %v6907 = vxor.u32 %v6906, 2147483648
        %v6908 = vsel %vm6825, %v6907, %v6906
        %v6909 = vsub.s32 4, %v6885
        %v6910 = vsel %vm6825, %v6909, %v6885
        %v6911 = vsel %vm6824, %v4423, %v6908
        %v6912 = vsel %vm6824, 0, %v6910
        %v6913 = vcosq.f32.pop %v6911
        %v6914 = vsinq.f32.pop %v6911
        %vm6915 = vweird.f32 %v4423
        %v6916 = vadd.s32 %v6912, 3
        %v6917 = vand.u32 %v6916, 3
        %vm6918 = vcmp.lt.s32.totalorder %v6917, 2
        %vm6919 = vcmp.eq.s32.totalorder %v6917, 0
        %v6920 = vxor.u32 %v6914, 2147483648
        %v6921 = vsel %vm6919, %v6913, %v6920
        %vm6922 = vcmp.eq.s32.totalorder %v6917, 2
        %v6923 = vxor.u32 %v6913, 2147483648
        %v6924 = vsel %vm6922, %v6923, %v6914
        %v6925 = vsel %vm6918, %v6921, %v6924
        %v6926 = vsel %vm6915, nan, %v6925
        %v6927 = vand.u32 2147483647, %v4160
        %vm6928 = vcmp.le.f32.partialorder %v6927, 0.7853982
        %vm6929 = vcmp.lt.s32.totalorder %v4160, 0
        %v6930 = vand.u32 %v4160, 2139095040
        %v6931 = vshrl.u32 %v6930, 23
        %v6932 = vsub.s32 %v6931, 127
        %v6933 = vand.u32 2147483647, %v4160
        %v6934 = vand.u32 %v6933, 8388607
        %v6935 = vor.u32 %v6934, 8388608
        %v6936 = vsub.s32 0, %v6935
        %v6937 = vadd.s32 %v6932, 1
        %vm6938 = vcmp.gt.s32.totalorder %v6937, 0
        %v6939 = vsel %vm6938, %v6937, 0
        %v6940 = vshrl.u32 %v6939, 5
        %v6941 = vand.u32 %v6939, 31
        %v6942 = vsub.s32 32, %v6941
        %v6943 = vshrl.u32 683565275, %v6942
        %v6944 = vshll.u32 683565275, %v6941
        %v6945 = vshrl.u32 2475754826, %v6942
        %v6946 = vor.u32 %v6944, %v6945
        %v6947 = vshll.u32 2475754826, %v6941
        %v6948 = vshrl.u32 2131351028, %v6942
        %v6949 = vor.u32 %v6947, %v6948
        %v6950 = vshll.u32 2131351028, %v6941
        %v6951 = vshrl.u32 2102212464, %v6942
        %v6952 = vor.u32 %v6950, %v6951
        %v6953 = vshll.u32 2102212464, %v6941
        %v6954 = vshrl.u32 920167782, %v6942
        %v6955 = vor.u32 %v6953, %v6954
        %v6956 = vshll.u32 920167782, %v6941
        %v6957 = vshrl.u32 1326507024, %v6942
        %v6958 = vor.u32 %v6956, %v6957
        %vm6959 = vcmp.lt.s32.totalorder %v6940, 1
        %vm6960 = vcmp.lt.s32.totalorder %v6940, 2
        %vm6961 = vcmp.lt.s32.totalorder %v6940, 3
        %vm6962 = vcmp.lt.s32.totalorder %v6940, 4
        %v6963 = vsel %vm6959, %v6943, %v6946
        %v6964 = vsel %vm6962, %v6952, 2102212464
        %v6965 = vsel %vm6961, %v6949, %v6964
        %v6966 = vsel %vm6960, %v6963, %v6965
        %v6967 = vsel %vm6959, %v6946, %v6949
        %v6968 = vsel %vm6962, %v6955, 920167782
        %v6969 = vsel %vm6961, %v6952, %v6968
        %v6970 = vsel %vm6960, %v6967, %v6969
        %v6971 = vsel %vm6959, %v6949, %v6952
        %v6972 = vsel %vm6962, %v6958, 1326507024
        %v6973 = vsel %vm6961, %v6955, %v6972
        %v6974 = vsel %vm6960, %v6971, %v6973
        %v6975 = vshll.u32 %v6935, 8
        %v6976 = vmul.u32.u64.compose %v6975, %v6974
        %v6977 = vextract.low.u32 %v6976
        %v6978 = vextract.high.u32 %v6976
        %v6979 = vmul.u32.u64.compose %v6975, %v6970
        %v6980 = vextract.low.u32 %v6979
        %v6981 = vextract.high.u32 %v6979
        %v6982 = vmul.u32 %v6975, %v6966
        %v6983 = vadd.s32 %v6978, %v6980
        %vm6984 = vc.u32 %v6978, %v6980
        %v6985 = vadd.s32 %v6981, 1
        %v6986 = vsel %vm6984, %v6985, %v6981
        %v6987 = vadd.s32 %v6982, %v6986
        %v6988 = vadd.s32 %v6987, 536870912
        %v6989 = vshrl.u32 %v6988, 30
        %v6990 = vshll.u32 %v6989, 30
        %v6991 = vsub.s32 %v6987, %v6990
        %vm6992 = vcmp.lt.s32.totalorder %v6991, 0
        %v6993 = vsub.s32 0, %v6991
        %v6994 = vsel %vm6992, %v6993, %v6991
        %v6995 = vclz %v6994
        %v6996 = vsub.s32 %v6995, 2
        %vm6997 = vcmp.gt.s32.totalorder 0, %v6996
        %v6998 = vsel %vm6997, 0, %v6996
        %v6999 = vsub.s32 32, %v6998
        %v7000 = vshll.u32 %v6991, %v6998
        %v7001 = vshrl.u32 %v6983, %v6999
        %v7002 = vor.u32 %v7000, %v7001
        %v7003 = vsub.s32 4294967266, %v6998
        %v7004 = vadd.s32 %v7003, 127
        %v7005 = vshll.u32 %v7004, 23
        %v7006 = vor.u32 4788187, %v7005
        %v7007 = vand.u32 2147483647, %v7006
        %v7009 = vcvt.s32.f32 %v7002
        %v7010 = vmul.f32 %v7009, %v7007
        %v7011 = vxor.u32 %v7010, 2147483648
        %v7012 = vsel %vm6929, %v7011, %v7010
        %v7013 = vsub.s32 4, %v6989
        %v7014 = vsel %vm6929, %v7013, %v6989
        %v7015 = vsel %vm6928, %v4160, %v7012
        %v7016 = vsel %vm6928, 0, %v7014
        %v7017 = vcosq.f32.pop %v7015
        %v7018 = vsinq.f32.pop %v7015
        %vm7019 = vweird.f32 %v4160
        %v7020 = vadd.s32 %v7016, 3
        %v7021 = vand.u32 %v7020, 3
        %vm7022 = vcmp.lt.s32.totalorder %v7021, 2
        %vm7023 = vcmp.eq.s32.totalorder %v7021, 0
        %v7024 = vxor.u32 %v7018, 2147483648
        %v7025 = vsel %vm7023, %v7017, %v7024
        %vm7026 = vcmp.eq.s32.totalorder %v7021, 2
        %v7027 = vxor.u32 %v7017, 2147483648
        %v7028 = vsel %vm7026, %v7027, %v7018
        %v7029 = vsel %vm7022, %v7025, %v7028
        %v7030 = vsel %vm7019, nan, %v7029
        %v7031 = vand.u32 2147483647, %v4162
        %vm7032 = vcmp.le.f32.partialorder %v7031, 0.7853982
        %vm7033 = vcmp.lt.s32.totalorder %v4162, 0
        %v7034 = vand.u32 %v4162, 2139095040
        %v7035 = vshrl.u32 %v7034, 23
        %v7036 = vsub.s32 %v7035, 127
        %v7037 = vand.u32 2147483647, %v4162
        %v7038 = vand.u32 %v7037, 8388607
        %v7039 = vor.u32 %v7038, 8388608
        %v7040 = vsub.s32 0, %v7039
        %v7041 = vadd.s32 %v7036, 1
        %vm7042 = vcmp.gt.s32.totalorder %v7041, 0
        %v7043 = vsel %vm7042, %v7041, 0
        %v7044 = vshrl.u32 %v7043, 5
        %v7045 = vand.u32 %v7043, 31
        %v7046 = vsub.s32 32, %v7045
        %v7047 = vshrl.u32 683565275, %v7046
        %v7048 = vshll.u32 683565275, %v7045
        %v7049 = vshrl.u32 2475754826, %v7046
        %v7050 = vor.u32 %v7048, %v7049
        %v7051 = vshll.u32 2475754826, %v7045
        %v7052 = vshrl.u32 2131351028, %v7046
        %v7053 = vor.u32 %v7051, %v7052
        %v7054 = vshll.u32 2131351028, %v7045
        %v7055 = vshrl.u32 2102212464, %v7046
        %v7056 = vor.u32 %v7054, %v7055
        %v7057 = vshll.u32 2102212464, %v7045
        %v7058 = vshrl.u32 920167782, %v7046
        %v7059 = vor.u32 %v7057, %v7058
        %v7060 = vshll.u32 920167782, %v7045
        %v7061 = vshrl.u32 1326507024, %v7046
        %v7062 = vor.u32 %v7060, %v7061
        %vm7063 = vcmp.lt.s32.totalorder %v7044, 1
        %vm7064 = vcmp.lt.s32.totalorder %v7044, 2
        %vm7065 = vcmp.lt.s32.totalorder %v7044, 3
        %vm7066 = vcmp.lt.s32.totalorder %v7044, 4
        %v7067 = vsel %vm7063, %v7047, %v7050
        %v7068 = vsel %vm7066, %v7056, 2102212464
        %v7069 = vsel %vm7065, %v7053, %v7068
        %v7070 = vsel %vm7064, %v7067, %v7069
        %v7071 = vsel %vm7063, %v7050, %v7053
        %v7072 = vsel %vm7066, %v7059, 920167782
        %v7073 = vsel %vm7065, %v7056, %v7072
        %v7074 = vsel %vm7064, %v7071, %v7073
        %v7075 = vsel %vm7063, %v7053, %v7056
        %v7076 = vsel %vm7066, %v7062, 1326507024
        %v7077 = vsel %vm7065, %v7059, %v7076
        %v7078 = vsel %vm7064, %v7075, %v7077
        %v7079 = vshll.u32 %v7039, 8
        %v7080 = vmul.u32.u64.compose %v7079, %v7078
        %v7081 = vextract.low.u32 %v7080
        %v7082 = vextract.high.u32 %v7080
        %v7083 = vmul.u32.u64.compose %v7079, %v7074
        %v7084 = vextract.low.u32 %v7083
        %v7085 = vextract.high.u32 %v7083
        %v7086 = vmul.u32 %v7079, %v7070
        %v7087 = vadd.s32 %v7082, %v7084
        %vm7088 = vc.u32 %v7082, %v7084
        %v7089 = vadd.s32 %v7085, 1
        %v7090 = vsel %vm7088, %v7089, %v7085
        %v7091 = vadd.s32 %v7086, %v7090
        %v7092 = vadd.s32 %v7091, 536870912
        %v7093 = vshrl.u32 %v7092, 30
        %v7094 = vshll.u32 %v7093, 30
        %v7095 = vsub.s32 %v7091, %v7094
        %vm7096 = vcmp.lt.s32.totalorder %v7095, 0
        %v7097 = vsub.s32 0, %v7095
        %v7098 = vsel %vm7096, %v7097, %v7095
        %v7099 = vclz %v7098
        %v7100 = vsub.s32 %v7099, 2
        %vm7101 = vcmp.gt.s32.totalorder 0, %v7100
        %v7102 = vsel %vm7101, 0, %v7100
        %v7103 = vsub.s32 32, %v7102
        %v7104 = vshll.u32 %v7095, %v7102
        %v7105 = vshrl.u32 %v7087, %v7103
        %v7106 = vor.u32 %v7104, %v7105
        %v7107 = vsub.s32 4294967266, %v7102
        %v7108 = vadd.s32 %v7107, 127
        %v7109 = vshll.u32 %v7108, 23
        %v7110 = vor.u32 4788187, %v7109
        %v7111 = vand.u32 2147483647, %v7110
        %v7113 = vcvt.s32.f32 %v7106
        %v7114 = vmul.f32 %v7113, %v7111
        %v7115 = vxor.u32 %v7114, 2147483648
        %v7116 = vsel %vm7033, %v7115, %v7114
        %v7117 = vsub.s32 4, %v7093
        %v7118 = vsel %vm7033, %v7117, %v7093
        %v7119 = vsel %vm7032, %v4162, %v7116
        %v7120 = vsel %vm7032, 0, %v7118
        %v7121 = vcosq.f32.pop %v7119
        %v7122 = vsinq.f32.pop %v7119
        %vm7123 = vweird.f32 %v4162
        %v7124 = vadd.s32 %v7120, 3
        %v7125 = vand.u32 %v7124, 3
        %vm7126 = vcmp.lt.s32.totalorder %v7125, 2
        %vm7127 = vcmp.eq.s32.totalorder %v7125, 0
        %v7128 = vxor.u32 %v7122, 2147483648
        %v7129 = vsel %vm7127, %v7121, %v7128
        %vm7130 = vcmp.eq.s32.totalorder %v7125, 2
        %v7131 = vxor.u32 %v7121, 2147483648
        %v7132 = vsel %vm7130, %v7131, %v7122
        %v7133 = vsel %vm7126, %v7129, %v7132
        %v7134 = vsel %vm7123, nan, %v7133
        %v7135 = vand.u32 2147483647, %v4249
        %vm7136 = vcmp.le.f32.partialorder %v7135, 0.7853982
        %vm7137 = vcmp.lt.s32.totalorder %v4249, 0
        %v7138 = vand.u32 %v4249, 2139095040
        %v7139 = vshrl.u32 %v7138, 23
        %v7140 = vsub.s32 %v7139, 127
        %v7141 = vand.u32 2147483647, %v4249
        %v7142 = vand.u32 %v7141, 8388607
        %v7143 = vor.u32 %v7142, 8388608
        %v7144 = vsub.s32 0, %v7143
        %v7145 = vadd.s32 %v7140, 1
        %vm7146 = vcmp.gt.s32.totalorder %v7145, 0
        %v7147 = vsel %vm7146, %v7145, 0
        %v7148 = vshrl.u32 %v7147, 5
        %v7149 = vand.u32 %v7147, 31
        %v7150 = vsub.s32 32, %v7149
        %v7151 = vshrl.u32 683565275, %v7150
        %v7152 = vshll.u32 683565275, %v7149
        %v7153 = vshrl.u32 2475754826, %v7150
        %v7154 = vor.u32 %v7152, %v7153
        %v7155 = vshll.u32 2475754826, %v7149
        %v7156 = vshrl.u32 2131351028, %v7150
        %v7157 = vor.u32 %v7155, %v7156
        %v7158 = vshll.u32 2131351028, %v7149
        %v7159 = vshrl.u32 2102212464, %v7150
        %v7160 = vor.u32 %v7158, %v7159
        %v7161 = vshll.u32 2102212464, %v7149
        %v7162 = vshrl.u32 920167782, %v7150
        %v7163 = vor.u32 %v7161, %v7162
        %v7164 = vshll.u32 920167782, %v7149
        %v7165 = vshrl.u32 1326507024, %v7150
        %v7166 = vor.u32 %v7164, %v7165
        %vm7167 = vcmp.lt.s32.totalorder %v7148, 1
        %vm7168 = vcmp.lt.s32.totalorder %v7148, 2
        %vm7169 = vcmp.lt.s32.totalorder %v7148, 3
        %vm7170 = vcmp.lt.s32.totalorder %v7148, 4
        %v7171 = vsel %vm7167, %v7151, %v7154
        %v7172 = vsel %vm7170, %v7160, 2102212464
        %v7173 = vsel %vm7169, %v7157, %v7172
        %v7174 = vsel %vm7168, %v7171, %v7173
        %v7175 = vsel %vm7167, %v7154, %v7157
        %v7176 = vsel %vm7170, %v7163, 920167782
        %v7177 = vsel %vm7169, %v7160, %v7176
        %v7178 = vsel %vm7168, %v7175, %v7177
        %v7179 = vsel %vm7167, %v7157, %v7160
        %v7180 = vsel %vm7170, %v7166, 1326507024
        %v7181 = vsel %vm7169, %v7163, %v7180
        %v7182 = vsel %vm7168, %v7179, %v7181
        %v7183 = vshll.u32 %v7143, 8
        %v7184 = vmul.u32.u64.compose %v7183, %v7182
        %v7185 = vextract.low.u32 %v7184
        %v7186 = vextract.high.u32 %v7184
        %v7187 = vmul.u32.u64.compose %v7183, %v7178
        %v7188 = vextract.low.u32 %v7187
        %v7189 = vextract.high.u32 %v7187
        %v7190 = vmul.u32 %v7183, %v7174
        %v7191 = vadd.s32 %v7186, %v7188
        %vm7192 = vc.u32 %v7186, %v7188
        %v7193 = vadd.s32 %v7189, 1
        %v7194 = vsel %vm7192, %v7193, %v7189
        %v7195 = vadd.s32 %v7190, %v7194
        %v7196 = vadd.s32 %v7195, 536870912
        %v7197 = vshrl.u32 %v7196, 30
        %v7198 = vshll.u32 %v7197, 30
        %v7199 = vsub.s32 %v7195, %v7198
        %vm7200 = vcmp.lt.s32.totalorder %v7199, 0
        %v7201 = vsub.s32 0, %v7199
        %v7202 = vsel %vm7200, %v7201, %v7199
        %v7203 = vclz %v7202
        %v7204 = vsub.s32 %v7203, 2
        %vm7205 = vcmp.gt.s32.totalorder 0, %v7204
        %v7206 = vsel %vm7205, 0, %v7204
        %v7207 = vsub.s32 32, %v7206
        %v7208 = vshll.u32 %v7199, %v7206
        %v7209 = vshrl.u32 %v7191, %v7207
        %v7210 = vor.u32 %v7208, %v7209
        %v7211 = vsub.s32 4294967266, %v7206
        %v7212 = vadd.s32 %v7211, 127
        %v7213 = vshll.u32 %v7212, 23
        %v7214 = vor.u32 4788187, %v7213
        %v7215 = vand.u32 2147483647, %v7214
        %v7217 = vcvt.s32.f32 %v7210
        %v7218 = vmul.f32 %v7217, %v7215
        %v7219 = vxor.u32 %v7218, 2147483648
        %v7220 = vsel %vm7137, %v7219, %v7218
        %v7221 = vsub.s32 4, %v7197
        %v7222 = vsel %vm7137, %v7221, %v7197
        %v7223 = vsel %vm7136, %v4249, %v7220
        %v7224 = vsel %vm7136, 0, %v7222
        %v7225 = vcosq.f32.pop %v7223
        %v7226 = vsinq.f32.pop %v7223
        %vm7227 = vweird.f32 %v4249
        %v7228 = vadd.s32 %v7224, 3
        %v7229 = vand.u32 %v7228, 3
        %vm7230 = vcmp.lt.s32.totalorder %v7229, 2
        %vm7231 = vcmp.eq.s32.totalorder %v7229, 0
        %v7232 = vxor.u32 %v7226, 2147483648
        %v7233 = vsel %vm7231, %v7225, %v7232
        %vm7234 = vcmp.eq.s32.totalorder %v7229, 2
        %v7235 = vxor.u32 %v7225, 2147483648
        %v7236 = vsel %vm7234, %v7235, %v7226
        %v7237 = vsel %vm7230, %v7233, %v7236
        %v7238 = vsel %vm7227, nan, %v7237
        %v7239 = vand.u32 2147483647, %v4251
        %vm7240 = vcmp.le.f32.partialorder %v7239, 0.7853982
        %vm7241 = vcmp.lt.s32.totalorder %v4251, 0
        %v7242 = vand.u32 %v4251, 2139095040
        %v7243 = vshrl.u32 %v7242, 23
        %v7244 = vsub.s32 %v7243, 127
        %v7245 = vand.u32 2147483647, %v4251
        %v7246 = vand.u32 %v7245, 8388607
        %v7247 = vor.u32 %v7246, 8388608
        %v7248 = vsub.s32 0, %v7247
        %v7249 = vadd.s32 %v7244, 1
        %vm7250 = vcmp.gt.s32.totalorder %v7249, 0
        %v7251 = vsel %vm7250, %v7249, 0
        %v7252 = vshrl.u32 %v7251, 5
        %v7253 = vand.u32 %v7251, 31
        %v7254 = vsub.s32 32, %v7253
        %v7255 = vshrl.u32 683565275, %v7254
        %v7256 = vshll.u32 683565275, %v7253
        %v7257 = vshrl.u32 2475754826, %v7254
        %v7258 = vor.u32 %v7256, %v7257
        %v7259 = vshll.u32 2475754826, %v7253
        %v7260 = vshrl.u32 2131351028, %v7254
        %v7261 = vor.u32 %v7259, %v7260
        %v7262 = vshll.u32 2131351028, %v7253
        %v7263 = vshrl.u32 2102212464, %v7254
        %v7264 = vor.u32 %v7262, %v7263
        %v7265 = vshll.u32 2102212464, %v7253
        %v7266 = vshrl.u32 920167782, %v7254
        %v7267 = vor.u32 %v7265, %v7266
        %v7268 = vshll.u32 920167782, %v7253
        %v7269 = vshrl.u32 1326507024, %v7254
        %v7270 = vor.u32 %v7268, %v7269
        %vm7271 = vcmp.lt.s32.totalorder %v7252, 1
        %vm7272 = vcmp.lt.s32.totalorder %v7252, 2
        %vm7273 = vcmp.lt.s32.totalorder %v7252, 3
        %vm7274 = vcmp.lt.s32.totalorder %v7252, 4
        %v7275 = vsel %vm7271, %v7255, %v7258
        %v7276 = vsel %vm7274, %v7264, 2102212464
        %v7277 = vsel %vm7273, %v7261, %v7276
        %v7278 = vsel %vm7272, %v7275, %v7277
        %v7279 = vsel %vm7271, %v7258, %v7261
        %v7280 = vsel %vm7274, %v7267, 920167782
        %v7281 = vsel %vm7273, %v7264, %v7280
        %v7282 = vsel %vm7272, %v7279, %v7281
        %v7283 = vsel %vm7271, %v7261, %v7264
        %v7284 = vsel %vm7274, %v7270, 1326507024
        %v7285 = vsel %vm7273, %v7267, %v7284
        %v7286 = vsel %vm7272, %v7283, %v7285
        %v7287 = vshll.u32 %v7247, 8
        %v7288 = vmul.u32.u64.compose %v7287, %v7286
        %v7289 = vextract.low.u32 %v7288
        %v7290 = vextract.high.u32 %v7288
        %v7291 = vmul.u32.u64.compose %v7287, %v7282
        %v7292 = vextract.low.u32 %v7291
        %v7293 = vextract.high.u32 %v7291
        %v7294 = vmul.u32 %v7287, %v7278
        %v7295 = vadd.s32 %v7290, %v7292
        %vm7296 = vc.u32 %v7290, %v7292
        %v7297 = vadd.s32 %v7293, 1
        %v7298 = vsel %vm7296, %v7297, %v7293
        %v7299 = vadd.s32 %v7294, %v7298
        %v7300 = vadd.s32 %v7299, 536870912
        %v7301 = vshrl.u32 %v7300, 30
        %v7302 = vshll.u32 %v7301, 30
        %v7303 = vsub.s32 %v7299, %v7302
        %vm7304 = vcmp.lt.s32.totalorder %v7303, 0
        %v7305 = vsub.s32 0, %v7303
        %v7306 = vsel %vm7304, %v7305, %v7303
        %v7307 = vclz %v7306
        %v7308 = vsub.s32 %v7307, 2
        %vm7309 = vcmp.gt.s32.totalorder 0, %v7308
        %v7310 = vsel %vm7309, 0, %v7308
        %v7311 = vsub.s32 32, %v7310
        %v7312 = vshll.u32 %v7303, %v7310
        %v7313 = vshrl.u32 %v7295, %v7311
        %v7314 = vor.u32 %v7312, %v7313
        %v7315 = vsub.s32 4294967266, %v7310
        %v7316 = vadd.s32 %v7315, 127
        %v7317 = vshll.u32 %v7316, 23
        %v7318 = vor.u32 4788187, %v7317
        %v7319 = vand.u32 2147483647, %v7318
        %v7321 = vcvt.s32.f32 %v7314
        %v7322 = vmul.f32 %v7321, %v7319
        %v7323 = vxor.u32 %v7322, 2147483648
        %v7324 = vsel %vm7241, %v7323, %v7322
        %v7325 = vsub.s32 4, %v7301
        %v7326 = vsel %vm7241, %v7325, %v7301
        %v7327 = vsel %vm7240, %v4251, %v7324
        %v7328 = vsel %vm7240, 0, %v7326
        %v7329 = vcosq.f32.pop %v7327
        %v7330 = vsinq.f32.pop %v7327
        %vm7331 = vweird.f32 %v4251
        %v7332 = vadd.s32 %v7328, 3
        %v7333 = vand.u32 %v7332, 3
        %vm7334 = vcmp.lt.s32.totalorder %v7333, 2
        %vm7335 = vcmp.eq.s32.totalorder %v7333, 0
        %v7336 = vxor.u32 %v7330, 2147483648
        %v7337 = vsel %vm7335, %v7329, %v7336
        %vm7338 = vcmp.eq.s32.totalorder %v7333, 2
        %v7339 = vxor.u32 %v7329, 2147483648
        %v7340 = vsel %vm7338, %v7339, %v7330
        %v7341 = vsel %vm7334, %v7337, %v7340
        %v7342 = vsel %vm7331, nan, %v7341
        %v7343 = vand.u32 2147483647, %v4338
        %vm7344 = vcmp.le.f32.partialorder %v7343, 0.7853982
        %vm7345 = vcmp.lt.s32.totalorder %v4338, 0
        %v7346 = vand.u32 %v4338, 2139095040
        %v7347 = vshrl.u32 %v7346, 23
        %v7348 = vsub.s32 %v7347, 127
        %v7349 = vand.u32 2147483647, %v4338
        %v7350 = vand.u32 %v7349, 8388607
        %v7351 = vor.u32 %v7350, 8388608
        %v7352 = vsub.s32 0, %v7351
        %v7353 = vadd.s32 %v7348, 1
        %vm7354 = vcmp.gt.s32.totalorder %v7353, 0
        %v7355 = vsel %vm7354, %v7353, 0
        %v7356 = vshrl.u32 %v7355, 5
        %v7357 = vand.u32 %v7355, 31
        %v7358 = vsub.s32 32, %v7357
        %v7359 = vshrl.u32 683565275, %v7358
        %v7360 = vshll.u32 683565275, %v7357
        %v7361 = vshrl.u32 2475754826, %v7358
        %v7362 = vor.u32 %v7360, %v7361
        %v7363 = vshll.u32 2475754826, %v7357
        %v7364 = vshrl.u32 2131351028, %v7358
        %v7365 = vor.u32 %v7363, %v7364
        %v7366 = vshll.u32 2131351028, %v7357
        %v7367 = vshrl.u32 2102212464, %v7358
        %v7368 = vor.u32 %v7366, %v7367
        %v7369 = vshll.u32 2102212464, %v7357
        %v7370 = vshrl.u32 920167782, %v7358
        %v7371 = vor.u32 %v7369, %v7370
        %v7372 = vshll.u32 920167782, %v7357
        %v7373 = vshrl.u32 1326507024, %v7358
        %v7374 = vor.u32 %v7372, %v7373
        %vm7375 = vcmp.lt.s32.totalorder %v7356, 1
        %vm7376 = vcmp.lt.s32.totalorder %v7356, 2
        %vm7377 = vcmp.lt.s32.totalorder %v7356, 3
        %vm7378 = vcmp.lt.s32.totalorder %v7356, 4
        %v7379 = vsel %vm7375, %v7359, %v7362
        %v7380 = vsel %vm7378, %v7368, 2102212464
        %v7381 = vsel %vm7377, %v7365, %v7380
        %v7382 = vsel %vm7376, %v7379, %v7381
        %v7383 = vsel %vm7375, %v7362, %v7365
        %v7384 = vsel %vm7378, %v7371, 920167782
        %v7385 = vsel %vm7377, %v7368, %v7384
        %v7386 = vsel %vm7376, %v7383, %v7385
        %v7387 = vsel %vm7375, %v7365, %v7368
        %v7388 = vsel %vm7378, %v7374, 1326507024
        %v7389 = vsel %vm7377, %v7371, %v7388
        %v7390 = vsel %vm7376, %v7387, %v7389
        %v7391 = vshll.u32 %v7351, 8
        %v7392 = vmul.u32.u64.compose %v7391, %v7390
        %v7393 = vextract.low.u32 %v7392
        %v7394 = vextract.high.u32 %v7392
        %v7395 = vmul.u32.u64.compose %v7391, %v7386
        %v7396 = vextract.low.u32 %v7395
        %v7397 = vextract.high.u32 %v7395
        %v7398 = vmul.u32 %v7391, %v7382
        %v7399 = vadd.s32 %v7394, %v7396
        %vm7400 = vc.u32 %v7394, %v7396
        %v7401 = vadd.s32 %v7397, 1
        %v7402 = vsel %vm7400, %v7401, %v7397
        %v7403 = vadd.s32 %v7398, %v7402
        %v7404 = vadd.s32 %v7403, 536870912
        %v7405 = vshrl.u32 %v7404, 30
        %v7406 = vshll.u32 %v7405, 30
        %v7407 = vsub.s32 %v7403, %v7406
        %vm7408 = vcmp.lt.s32.totalorder %v7407, 0
        %v7409 = vsub.s32 0, %v7407
        %v7410 = vsel %vm7408, %v7409, %v7407
        %v7411 = vclz %v7410
        %v7412 = vsub.s32 %v7411, 2
        %vm7413 = vcmp.gt.s32.totalorder 0, %v7412
        %v7414 = vsel %vm7413, 0, %v7412
        %v7415 = vsub.s32 32, %v7414
        %v7416 = vshll.u32 %v7407, %v7414
        %v7417 = vshrl.u32 %v7399, %v7415
        %v7418 = vor.u32 %v7416, %v7417
        %v7419 = vsub.s32 4294967266, %v7414
        %v7420 = vadd.s32 %v7419, 127
        %v7421 = vshll.u32 %v7420, 23
        %v7422 = vor.u32 4788187, %v7421
        %v7423 = vand.u32 2147483647, %v7422
        %v7425 = vcvt.s32.f32 %v7418
        %v7426 = vmul.f32 %v7425, %v7423
        %v7427 = vxor.u32 %v7426, 2147483648
        %v7428 = vsel %vm7345, %v7427, %v7426
        %v7429 = vsub.s32 4, %v7405
        %v7430 = vsel %vm7345, %v7429, %v7405
        %v7431 = vsel %vm7344, %v4338, %v7428
        %v7432 = vsel %vm7344, 0, %v7430
        %v7433 = vcosq.f32.pop %v7431
        %v7434 = vsinq.f32.pop %v7431
        %vm7435 = vweird.f32 %v4338
        %v7436 = vadd.s32 %v7432, 3
        %v7437 = vand.u32 %v7436, 3
        %vm7438 = vcmp.lt.s32.totalorder %v7437, 2
        %vm7439 = vcmp.eq.s32.totalorder %v7437, 0
        %v7440 = vxor.u32 %v7434, 2147483648
        %v7441 = vsel %vm7439, %v7433, %v7440
        %vm7442 = vcmp.eq.s32.totalorder %v7437, 2
        %v7443 = vxor.u32 %v7433, 2147483648
        %v7444 = vsel %vm7442, %v7443, %v7434
        %v7445 = vsel %vm7438, %v7441, %v7444
        %v7446 = vsel %vm7435, nan, %v7445
        %v7447 = vand.u32 2147483647, %v4340
        %vm7448 = vcmp.le.f32.partialorder %v7447, 0.7853982
        %vm7449 = vcmp.lt.s32.totalorder %v4340, 0
        %v7450 = vand.u32 %v4340, 2139095040
        %v7451 = vshrl.u32 %v7450, 23
        %v7452 = vsub.s32 %v7451, 127
        %v7453 = vand.u32 2147483647, %v4340
        %v7454 = vand.u32 %v7453, 8388607
        %v7455 = vor.u32 %v7454, 8388608
        %v7456 = vsub.s32 0, %v7455
        %v7457 = vadd.s32 %v7452, 1
        %vm7458 = vcmp.gt.s32.totalorder %v7457, 0
        %v7459 = vsel %vm7458, %v7457, 0
        %v7460 = vshrl.u32 %v7459, 5
        %v7461 = vand.u32 %v7459, 31
        %v7462 = vsub.s32 32, %v7461
        %v7463 = vshrl.u32 683565275, %v7462
        %v7464 = vshll.u32 683565275, %v7461
        %v7465 = vshrl.u32 2475754826, %v7462
        %v7466 = vor.u32 %v7464, %v7465
        %v7467 = vshll.u32 2475754826, %v7461
        %v7468 = vshrl.u32 2131351028, %v7462
        %v7469 = vor.u32 %v7467, %v7468
        %v7470 = vshll.u32 2131351028, %v7461
        %v7471 = vshrl.u32 2102212464, %v7462
        %v7472 = vor.u32 %v7470, %v7471
        %v7473 = vshll.u32 2102212464, %v7461
        %v7474 = vshrl.u32 920167782, %v7462
        %v7475 = vor.u32 %v7473, %v7474
        %v7476 = vshll.u32 920167782, %v7461
        %v7477 = vshrl.u32 1326507024, %v7462
        %v7478 = vor.u32 %v7476, %v7477
        %vm7479 = vcmp.lt.s32.totalorder %v7460, 1
        %vm7480 = vcmp.lt.s32.totalorder %v7460, 2
        %vm7481 = vcmp.lt.s32.totalorder %v7460, 3
        %vm7482 = vcmp.lt.s32.totalorder %v7460, 4
        %v7483 = vsel %vm7479, %v7463, %v7466
        %v7484 = vsel %vm7482, %v7472, 2102212464
        %v7485 = vsel %vm7481, %v7469, %v7484
        %v7486 = vsel %vm7480, %v7483, %v7485
        %v7487 = vsel %vm7479, %v7466, %v7469
        %v7488 = vsel %vm7482, %v7475, 920167782
        %v7489 = vsel %vm7481, %v7472, %v7488
        %v7490 = vsel %vm7480, %v7487, %v7489
        %v7491 = vsel %vm7479, %v7469, %v7472
        %v7492 = vsel %vm7482, %v7478, 1326507024
        %v7493 = vsel %vm7481, %v7475, %v7492
        %v7494 = vsel %vm7480, %v7491, %v7493
        %v7495 = vshll.u32 %v7455, 8
        %v7496 = vmul.u32.u64.compose %v7495, %v7494
        %v7497 = vextract.low.u32 %v7496
        %v7498 = vextract.high.u32 %v7496
        %v7499 = vmul.u32.u64.compose %v7495, %v7490
        %v7500 = vextract.low.u32 %v7499
        %v7501 = vextract.high.u32 %v7499
        %v7502 = vmul.u32 %v7495, %v7486
        %v7503 = vadd.s32 %v7498, %v7500
        %vm7504 = vc.u32 %v7498, %v7500
        %v7505 = vadd.s32 %v7501, 1
        %v7506 = vsel %vm7504, %v7505, %v7501
        %v7507 = vadd.s32 %v7502, %v7506
        %v7508 = vadd.s32 %v7507, 536870912
        %v7509 = vshrl.u32 %v7508, 30
        %v7510 = vshll.u32 %v7509, 30
        %v7511 = vsub.s32 %v7507, %v7510
        %vm7512 = vcmp.lt.s32.totalorder %v7511, 0
        %v7513 = vsub.s32 0, %v7511
        %v7514 = vsel %vm7512, %v7513, %v7511
        %v7515 = vclz %v7514
        %v7516 = vsub.s32 %v7515, 2
        %vm7517 = vcmp.gt.s32.totalorder 0, %v7516
        %v7518 = vsel %vm7517, 0, %v7516
        %v7519 = vsub.s32 32, %v7518
        %v7520 = vshll.u32 %v7511, %v7518
        %v7521 = vshrl.u32 %v7503, %v7519
        %v7522 = vor.u32 %v7520, %v7521
        %v7523 = vsub.s32 4294967266, %v7518
        %v7524 = vadd.s32 %v7523, 127
        %v7525 = vshll.u32 %v7524, 23
        %v7526 = vor.u32 4788187, %v7525
        %v7527 = vand.u32 2147483647, %v7526
        %v7529 = vcvt.s32.f32 %v7522
        %v7530 = vmul.f32 %v7529, %v7527
        %v7531 = vxor.u32 %v7530, 2147483648
        %v7532 = vsel %vm7449, %v7531, %v7530
        %v7533 = vsub.s32 4, %v7509
        %v7534 = vsel %vm7449, %v7533, %v7509
        %v7535 = vsel %vm7448, %v4340, %v7532
        %v7536 = vsel %vm7448, 0, %v7534
        %v7537 = vcosq.f32.pop %v7535
        %v7538 = vsinq.f32.pop %v7535
        %vm7539 = vweird.f32 %v4340
        %v7540 = vadd.s32 %v7536, 3
        %v7541 = vand.u32 %v7540, 3
        %vm7542 = vcmp.lt.s32.totalorder %v7541, 2
        %vm7543 = vcmp.eq.s32.totalorder %v7541, 0
        %v7544 = vxor.u32 %v7538, 2147483648
        %v7545 = vsel %vm7543, %v7537, %v7544
        %vm7546 = vcmp.eq.s32.totalorder %v7541, 2
        %v7547 = vxor.u32 %v7537, 2147483648
        %v7548 = vsel %vm7546, %v7547, %v7538
        %v7549 = vsel %vm7542, %v7545, %v7548
        %v7550 = vsel %vm7539, nan, %v7549
        %v7551 = vand.u32 2147483647, %v4427
        %vm7552 = vcmp.le.f32.partialorder %v7551, 0.7853982
        %vm7553 = vcmp.lt.s32.totalorder %v4427, 0
        %v7554 = vand.u32 %v4427, 2139095040
        %v7555 = vshrl.u32 %v7554, 23
        %v7556 = vsub.s32 %v7555, 127
        %v7557 = vand.u32 2147483647, %v4427
        %v7558 = vand.u32 %v7557, 8388607
        %v7559 = vor.u32 %v7558, 8388608
        %v7560 = vsub.s32 0, %v7559
        %v7561 = vadd.s32 %v7556, 1
        %vm7562 = vcmp.gt.s32.totalorder %v7561, 0
        %v7563 = vsel %vm7562, %v7561, 0
        %v7564 = vshrl.u32 %v7563, 5
        %v7565 = vand.u32 %v7563, 31
        %v7566 = vsub.s32 32, %v7565
        %v7567 = vshrl.u32 683565275, %v7566
        %v7568 = vshll.u32 683565275, %v7565
        %v7569 = vshrl.u32 2475754826, %v7566
        %v7570 = vor.u32 %v7568, %v7569
        %v7571 = vshll.u32 2475754826, %v7565
        %v7572 = vshrl.u32 2131351028, %v7566
        %v7573 = vor.u32 %v7571, %v7572
        %v7574 = vshll.u32 2131351028, %v7565
        %v7575 = vshrl.u32 2102212464, %v7566
        %v7576 = vor.u32 %v7574, %v7575
        %v7577 = vshll.u32 2102212464, %v7565
        %v7578 = vshrl.u32 920167782, %v7566
        %v7579 = vor.u32 %v7577, %v7578
        %v7580 = vshll.u32 920167782, %v7565
        %v7581 = vshrl.u32 1326507024, %v7566
        %v7582 = vor.u32 %v7580, %v7581
        %vm7583 = vcmp.lt.s32.totalorder %v7564, 1
        %vm7584 = vcmp.lt.s32.totalorder %v7564, 2
        %vm7585 = vcmp.lt.s32.totalorder %v7564, 3
        %vm7586 = vcmp.lt.s32.totalorder %v7564, 4
        %v7587 = vsel %vm7583, %v7567, %v7570
        %v7588 = vsel %vm7586, %v7576, 2102212464
        %v7589 = vsel %vm7585, %v7573, %v7588
        %v7590 = vsel %vm7584, %v7587, %v7589
        %v7591 = vsel %vm7583, %v7570, %v7573
        %v7592 = vsel %vm7586, %v7579, 920167782
        %v7593 = vsel %vm7585, %v7576, %v7592
        %v7594 = vsel %vm7584, %v7591, %v7593
        %v7595 = vsel %vm7583, %v7573, %v7576
        %v7596 = vsel %vm7586, %v7582, 1326507024
        %v7597 = vsel %vm7585, %v7579, %v7596
        %v7598 = vsel %vm7584, %v7595, %v7597
        %v7599 = vshll.u32 %v7559, 8
        %v7600 = vmul.u32.u64.compose %v7599, %v7598
        %v7601 = vextract.low.u32 %v7600
        %v7602 = vextract.high.u32 %v7600
        %v7603 = vmul.u32.u64.compose %v7599, %v7594
        %v7604 = vextract.low.u32 %v7603
        %v7605 = vextract.high.u32 %v7603
        %v7606 = vmul.u32 %v7599, %v7590
        %v7607 = vadd.s32 %v7602, %v7604
        %vm7608 = vc.u32 %v7602, %v7604
        %v7609 = vadd.s32 %v7605, 1
        %v7610 = vsel %vm7608, %v7609, %v7605
        %v7611 = vadd.s32 %v7606, %v7610
        %v7612 = vadd.s32 %v7611, 536870912
        %v7613 = vshrl.u32 %v7612, 30
        %v7614 = vshll.u32 %v7613, 30
        %v7615 = vsub.s32 %v7611, %v7614
        %vm7616 = vcmp.lt.s32.totalorder %v7615, 0
        %v7617 = vsub.s32 0, %v7615
        %v7618 = vsel %vm7616, %v7617, %v7615
        %v7619 = vclz %v7618
        %v7620 = vsub.s32 %v7619, 2
        %vm7621 = vcmp.gt.s32.totalorder 0, %v7620
        %v7622 = vsel %vm7621, 0, %v7620
        %v7623 = vsub.s32 32, %v7622
        %v7624 = vshll.u32 %v7615, %v7622
        %v7625 = vshrl.u32 %v7607, %v7623
        %v7626 = vor.u32 %v7624, %v7625
        %v7627 = vsub.s32 4294967266, %v7622
        %v7628 = vadd.s32 %v7627, 127
        %v7629 = vshll.u32 %v7628, 23
        %v7630 = vor.u32 4788187, %v7629
        %v7631 = vand.u32 2147483647, %v7630
        %v7633 = vcvt.s32.f32 %v7626
        %v7634 = vmul.f32 %v7633, %v7631
        %v7635 = vxor.u32 %v7634, 2147483648
        %v7636 = vsel %vm7553, %v7635, %v7634
        %v7637 = vsub.s32 4, %v7613
        %v7638 = vsel %vm7553, %v7637, %v7613
        %v7639 = vsel %vm7552, %v4427, %v7636
        %v7640 = vsel %vm7552, 0, %v7638
        %v7641 = vcosq.f32.pop %v7639
        %v7642 = vsinq.f32.pop %v7639
        %vm7643 = vweird.f32 %v4427
        %v7644 = vadd.s32 %v7640, 3
        %v7645 = vand.u32 %v7644, 3
        %vm7646 = vcmp.lt.s32.totalorder %v7645, 2
        %vm7647 = vcmp.eq.s32.totalorder %v7645, 0
        %v7648 = vxor.u32 %v7642, 2147483648
        %v7649 = vsel %vm7647, %v7641, %v7648
        %vm7650 = vcmp.eq.s32.totalorder %v7645, 2
        %v7651 = vxor.u32 %v7641, 2147483648
        %v7652 = vsel %vm7650, %v7651, %v7642
        %v7653 = vsel %vm7646, %v7649, %v7652
        %v7654 = vsel %vm7643, nan, %v7653
        %v7655 = vand.u32 2147483647, %v4429
        %vm7656 = vcmp.le.f32.partialorder %v7655, 0.7853982
        %vm7657 = vcmp.lt.s32.totalorder %v4429, 0
        %v7658 = vand.u32 %v4429, 2139095040
        %v7659 = vshrl.u32 %v7658, 23
        %v7660 = vsub.s32 %v7659, 127
        %v7661 = vand.u32 2147483647, %v4429
        %v7662 = vand.u32 %v7661, 8388607
        %v7663 = vor.u32 %v7662, 8388608
        %v7664 = vsub.s32 0, %v7663
        %v7665 = vadd.s32 %v7660, 1
        %vm7666 = vcmp.gt.s32.totalorder %v7665, 0
        %v7667 = vsel %vm7666, %v7665, 0
        %v7668 = vshrl.u32 %v7667, 5
        %v7669 = vand.u32 %v7667, 31
        %v7670 = vsub.s32 32, %v7669
        %v7671 = vshrl.u32 683565275, %v7670
        %v7672 = vshll.u32 683565275, %v7669
        %v7673 = vshrl.u32 2475754826, %v7670
        %v7674 = vor.u32 %v7672, %v7673
        %v7675 = vshll.u32 2475754826, %v7669
        %v7676 = vshrl.u32 2131351028, %v7670
        %v7677 = vor.u32 %v7675, %v7676
        %v7678 = vshll.u32 2131351028, %v7669
        %v7679 = vshrl.u32 2102212464, %v7670
        %v7680 = vor.u32 %v7678, %v7679
        %v7681 = vshll.u32 2102212464, %v7669
        %v7682 = vshrl.u32 920167782, %v7670
        %v7683 = vor.u32 %v7681, %v7682
        %v7684 = vshll.u32 920167782, %v7669
        %v7685 = vshrl.u32 1326507024, %v7670
        %v7686 = vor.u32 %v7684, %v7685
        %vm7687 = vcmp.lt.s32.totalorder %v7668, 1
        %vm7688 = vcmp.lt.s32.totalorder %v7668, 2
        %vm7689 = vcmp.lt.s32.totalorder %v7668, 3
        %vm7690 = vcmp.lt.s32.totalorder %v7668, 4
        %v7691 = vsel %vm7687, %v7671, %v7674
        %v7692 = vsel %vm7690, %v7680, 2102212464
        %v7693 = vsel %vm7689, %v7677, %v7692
        %v7694 = vsel %vm7688, %v7691, %v7693
        %v7695 = vsel %vm7687, %v7674, %v7677
        %v7696 = vsel %vm7690, %v7683, 920167782
        %v7697 = vsel %vm7689, %v7680, %v7696
        %v7698 = vsel %vm7688, %v7695, %v7697
        %v7699 = vsel %vm7687, %v7677, %v7680
        %v7700 = vsel %vm7690, %v7686, 1326507024
        %v7701 = vsel %vm7689, %v7683, %v7700
        %v7702 = vsel %vm7688, %v7699, %v7701
        %v7703 = vshll.u32 %v7663, 8
        %v7704 = vmul.u32.u64.compose %v7703, %v7702
        %v7705 = vextract.low.u32 %v7704
        %v7706 = vextract.high.u32 %v7704
        %v7707 = vmul.u32.u64.compose %v7703, %v7698
        %v7708 = vextract.low.u32 %v7707
        %v7709 = vextract.high.u32 %v7707
        %v7710 = vmul.u32 %v7703, %v7694
        %v7711 = vadd.s32 %v7706, %v7708
        %vm7712 = vc.u32 %v7706, %v7708
        %v7713 = vadd.s32 %v7709, 1
        %v7714 = vsel %vm7712, %v7713, %v7709
        %v7715 = vadd.s32 %v7710, %v7714
        %v7716 = vadd.s32 %v7715, 536870912
        %v7717 = vshrl.u32 %v7716, 30
        %v7718 = vshll.u32 %v7717, 30
        %v7719 = vsub.s32 %v7715, %v7718
        %vm7720 = vcmp.lt.s32.totalorder %v7719, 0
        %v7721 = vsub.s32 0, %v7719
        %v7722 = vsel %vm7720, %v7721, %v7719
        %v7723 = vclz %v7722
        %v7724 = vsub.s32 %v7723, 2
        %vm7725 = vcmp.gt.s32.totalorder 0, %v7724
        %v7726 = vsel %vm7725, 0, %v7724
        %v7727 = vsub.s32 32, %v7726
        %v7728 = vshll.u32 %v7719, %v7726
        %v7729 = vshrl.u32 %v7711, %v7727
        %v7730 = vor.u32 %v7728, %v7729
        %v7731 = vsub.s32 4294967266, %v7726
        %v7732 = vadd.s32 %v7731, 127
        %v7733 = vshll.u32 %v7732, 23
        %v7734 = vor.u32 4788187, %v7733
        %v7735 = vand.u32 2147483647, %v7734
        %v7737 = vcvt.s32.f32 %v7730
        %v7738 = vmul.f32 %v7737, %v7735
        %v7739 = vxor.u32 %v7738, 2147483648
        %v7740 = vsel %vm7657, %v7739, %v7738
        %v7741 = vsub.s32 4, %v7717
        %v7742 = vsel %vm7657, %v7741, %v7717
        %v7743 = vsel %vm7656, %v4429, %v7740
        %v7744 = vsel %vm7656, 0, %v7742
        %v7745 = vcosq.f32.pop %v7743
        %v7746 = vsinq.f32.pop %v7743
        %vm7747 = vweird.f32 %v4429
        %v7748 = vadd.s32 %v7744, 3
        %v7749 = vand.u32 %v7748, 3
        %vm7750 = vcmp.lt.s32.totalorder %v7749, 2
        %vm7751 = vcmp.eq.s32.totalorder %v7749, 0
        %v7752 = vxor.u32 %v7746, 2147483648
        %v7753 = vsel %vm7751, %v7745, %v7752
        %vm7754 = vcmp.eq.s32.totalorder %v7749, 2
        %v7755 = vxor.u32 %v7745, 2147483648
        %v7756 = vsel %vm7754, %v7755, %v7746
        %v7757 = vsel %vm7750, %v7753, %v7756
        %v7758 = vsel %vm7747, nan, %v7757
        %v7759 = vld [vmem:[%s5] sm:$0x7]
        %v7760 = vld [vmem:[%s6] sm:$0x7]
        %7762 = vset.pattern.permute.xlu0 0
        %7763 = vperm.xlu0 %7762, %v7760
        %v7764 = vpop.permute.xlu0 %7763
        %v7767 = vsel %vm4062, %v7759, 0
        %7769 = vmatprep.subr.mxu0 %v4638
        %7770 = vmatpush1.msra.mxu0 %v4534
        %7771 = vmatprep.subr.mxu0 %v5470
        %7772 = vmatpush1.msra.mxu0 %v5366
        %7773 = vmatprep.subr.mxu0 %v6302
        %7774 = vmatpush1.msra.mxu0 %v6198
        %7775 = vmatprep.subr.mxu0 %v7134
        %7776 = vmatpush1.msra.mxu0 %v7030
        %7777 = vmatprep.subr.mxu0 0.0
        %7778 = vmatpush1.msra.mxu0 0.0
        %7779 = vmatprep.subr.mxu0 0.0
        %7780 = vmatpush1.msra.mxu0 0.0
        %7781 = vmatprep.subr.mxu0 0.0
        %7782 = vmatpush1.msra.mxu0 0.0
        %7783 = vmatprep.subr.mxu0 0.0
        %7784 = vmatpush1.msra.mxu0 0.0
        %7785 = vmatprep.subr.mxu0 0.0
        %7786 = vmatpush1.msra.mxu0 0.0
        %7787 = vmatprep.subr.mxu0 0.0
        %7788 = vmatpush1.msra.mxu0 0.0
        %7789 = vmatprep.subr.mxu0 0.0
        %7790 = vmatpush1.msra.mxu0 0.0
        %7791 = vmatprep.subr.mxu0 0.0
        %7792 = vmatpush1.msra.mxu0 0.0
        %7793 = vmatprep.subr.mxu0 0.0
        %7794 = vmatpush1.msra.mxu0 0.0
        %7795 = vmatprep.subr.mxu0 0.0
        %7796 = vmatpush1.msra.mxu0 0.0
        %7797 = vmatprep.subr.mxu0 0.0
        %7798 = vmatpush1.msra.mxu0 0.0
        %7799 = vmatprep.subr.mxu0 0.0
        %7800 = vmatpush1.msra.mxu0 0.0
        %7801 = vmatprep.subr.mxu0 0.0
        %7802 = vmatpush1.msra.mxu0 0.0
        %7803 = vmatprep.subr.mxu0 0.0
        %7804 = vmatpush1.msra.mxu0 0.0
        %7805 = vmatprep.subr.mxu0 0.0
        %7806 = vmatpush1.msra.mxu0 0.0
        %7807 = vmatprep.subr.mxu0 0.0
        %7808 = vmatpush1.msra.mxu0 0.0
        %7809 = vmatprep.subr.mxu0 0.0
        %7810 = vmatpush1.msra.mxu0 0.0
        %7811 = vmatprep.subr.mxu0 0.0
        %7812 = vmatpush1.msra.mxu0 0.0
        %7813 = vmatprep.subr.mxu0 0.0
        %7814 = vmatpush1.msra.mxu0 0.0
        %7815 = vmatprep.subr.mxu0 0.0
        %7816 = vmatpush1.msra.mxu0 0.0
        %7817 = vmatprep.subr.mxu0 0.0
        %7818 = vmatpush1.msra.mxu0 0.0
        %7819 = vmatprep.subr.mxu0 0.0
        %7820 = vmatpush1.msra.mxu0 0.0
        %7821 = vmatprep.subr.mxu0 0.0
        %7822 = vmatpush1.msra.mxu0 0.0
        %7823 = vmatprep.subr.mxu0 0.0
        %7824 = vmatpush1.msra.mxu0 0.0
        %7825 = vmatprep.subr.mxu0 0.0
        %7826 = vmatpush1.msra.mxu0 0.0
        %7827 = vmatprep.subr.mxu0 0.0
        %7828 = vmatpush1.msra.mxu0 0.0
        %7829 = vmatprep.subr.mxu0 0.0
        %7830 = vmatpush1.msra.mxu0 0.0
        %7831 = vmatprep.subr.mxu0 0.0
        %7832 = vmatpush1.msra.mxu0 0.0
        %7833 = vmatprep.mubr.f32.mxu0 0.0
        %7834 = vmatmul.mubr.f32.gmra.mrb[0].mxu0 %v7767
        %v7835 = vpop.f32.mrb[0].mxu0
        %v7836 = vadd.f32 %v7764, %v7835
        %v7837 = vpop.f32.mrb[0].mxu0
        %v7838 = vadd.f32 %v7764, %v7837
        %7839 = vdwg.mxu0
        %7840 = vmatprep.subr.mxu0 %v4846
        %7841 = vmatpush1.msra.mxu0 %v4742
        %7842 = vmatprep.subr.mxu0 %v5678
        %7843 = vmatpush1.msra.mxu0 %v5574
        %7844 = vmatprep.subr.mxu0 %v6510
        %7845 = vmatpush1.msra.mxu0 %v6406
        %7846 = vmatprep.subr.mxu0 %v7342
        %7847 = vmatpush1.msra.mxu0 %v7238
        %7848 = vmatprep.subr.mxu0 0.0
        %7849 = vmatpush1.msra.mxu0 0.0
        %7850 = vmatprep.subr.mxu0 0.0
        %7851 = vmatpush1.msra.mxu0 0.0
        %7852 = vmatprep.subr.mxu0 0.0
        %7853 = vmatpush1.msra.mxu0 0.0
        %7854 = vmatprep.subr.mxu0 0.0
        %7855 = vmatpush1.msra.mxu0 0.0
        %7856 = vmatprep.subr.mxu0 0.0
        %7857 = vmatpush1.msra.mxu0 0.0
        %7858 = vmatprep.subr.mxu0 0.0
        %7859 = vmatpush1.msra.mxu0 0.0
        %7860 = vmatprep.subr.mxu0 0.0
        %7861 = vmatpush1.msra.mxu0 0.0
        %7862 = vmatprep.subr.mxu0 0.0
        %7863 = vmatpush1.msra.mxu0 0.0
        %7864 = vmatprep.subr.mxu0 0.0
        %7865 = vmatpush1.msra.mxu0 0.0
        %7866 = vmatprep.subr.mxu0 0.0
        %7867 = vmatpush1.msra.mxu0 0.0
        %7868 = vmatprep.subr.mxu0 0.0
        %7869 = vmatpush1.msra.mxu0 0.0
        %7870 = vmatprep.subr.mxu0 0.0
        %7871 = vmatpush1.msra.mxu0 0.0
        %7872 = vmatprep.subr.mxu0 0.0
        %7873 = vmatpush1.msra.mxu0 0.0
        %7874 = vmatprep.subr.mxu0 0.0
        %7875 = vmatpush1.msra.mxu0 0.0
        %7876 = vmatprep.subr.mxu0 0.0
        %7877 = vmatpush1.msra.mxu0 0.0
        %7878 = vmatprep.subr.mxu0 0.0
        %7879 = vmatpush1.msra.mxu0 0.0
        %7880 = vmatprep.subr.mxu0 0.0
        %7881 = vmatpush1.msra.mxu0 0.0
        %7882 = vmatprep.subr.mxu0 0.0
        %7883 = vmatpush1.msra.mxu0 0.0
        %7884 = vmatprep.subr.mxu0 0.0
        %7885 = vmatpush1.msra.mxu0 0.0
        %7886 = vmatprep.subr.mxu0 0.0
        %7887 = vmatpush1.msra.mxu0 0.0
        %7888 = vmatprep.subr.mxu0 0.0
        %7889 = vmatpush1.msra.mxu0 0.0
        %7890 = vmatprep.subr.mxu0 0.0
        %7891 = vmatpush1.msra.mxu0 0.0
        %7892 = vmatprep.subr.mxu0 0.0
        %7893 = vmatpush1.msra.mxu0 0.0
        %7894 = vmatprep.subr.mxu0 0.0
        %7895 = vmatpush1.msra.mxu0 0.0
        %7896 = vmatprep.subr.mxu0 0.0
        %7897 = vmatpush1.msra.mxu0 0.0
        %7898 = vmatprep.subr.mxu0 0.0
        %7899 = vmatpush1.msra.mxu0 0.0
        %7900 = vmatprep.subr.mxu0 0.0
        %7901 = vmatpush1.msra.mxu0 0.0
        %7902 = vmatprep.subr.mxu0 0.0
        %7903 = vmatpush1.msra.mxu0 0.0
        %7904 = vmatprep.mubr.f32.mxu0 0.0
        %7905 = vmatmul.mubr.f32.gmra.mrb[0].mxu0 %v7767
        %v7906 = vpop.f32.mrb[0].mxu0
        %v7907 = vadd.f32 %v7764, %v7906
        %v7908 = vpop.f32.mrb[0].mxu0
        %v7909 = vadd.f32 %v7764, %v7908
        %7910 = vdwg.mxu0
        %7911 = vmatprep.subr.mxu0 %v5054
        %7912 = vmatpush1.msra.mxu0 %v4950
        %7913 = vmatprep.subr.mxu0 %v5886
        %7914 = vmatpush1.msra.mxu0 %v5782
        %7915 = vmatprep.subr.mxu0 %v6718
        %7916 = vmatpush1.msra.mxu0 %v6614
        %7917 = vmatprep.subr.mxu0 %v7550
        %7918 = vmatpush1.msra.mxu0 %v7446
        %7919 = vmatprep.subr.mxu0 0.0
        %7920 = vmatpush1.msra.mxu0 0.0
        %7921 = vmatprep.subr.mxu0 0.0
        %7922 = vmatpush1.msra.mxu0 0.0
        %7923 = vmatprep.subr.mxu0 0.0
        %7924 = vmatpush1.msra.mxu0 0.0
        %7925 = vmatprep.subr.mxu0 0.0
        %7926 = vmatpush1.msra.mxu0 0.0
        %7927 = vmatprep.subr.mxu0 0.0
        %7928 = vmatpush1.msra.mxu0 0.0
        %7929 = vmatprep.subr.mxu0 0.0
        %7930 = vmatpush1.msra.mxu0 0.0
        %7931 = vmatprep.subr.mxu0 0.0
        %7932 = vmatpush1.msra.mxu0 0.0
        %7933 = vmatprep.subr.mxu0 0.0
        %7934 = vmatpush1.msra.mxu0 0.0
        %7935 = vmatprep.subr.mxu0 0.0
        %7936 = vmatpush1.msra.mxu0 0.0
        %7937 = vmatprep.subr.mxu0 0.0
        %7938 = vmatpush1.msra.mxu0 0.0
        %7939 = vmatprep.subr.mxu0 0.0
        %7940 = vmatpush1.msra.mxu0 0.0
        %7941 = vmatprep.subr.mxu0 0.0
        %7942 = vmatpush1.msra.mxu0 0.0
        %7943 = vmatprep.subr.mxu0 0.0
        %7944 = vmatpush1.msra.mxu0 0.0
        %7945 = vmatprep.subr.mxu0 0.0
        %7946 = vmatpush1.msra.mxu0 0.0
        %7947 = vmatprep.subr.mxu0 0.0
        %7948 = vmatpush1.msra.mxu0 0.0
        %7949 = vmatprep.subr.mxu0 0.0
        %7950 = vmatpush1.msra.mxu0 0.0
        %7951 = vmatprep.subr.mxu0 0.0
        %7952 = vmatpush1.msra.mxu0 0.0
        %7953 = vmatprep.subr.mxu0 0.0
        %7954 = vmatpush1.msra.mxu0 0.0
        %7955 = vmatprep.subr.mxu0 0.0
        %7956 = vmatpush1.msra.mxu0 0.0
        %7957 = vmatprep.subr.mxu0 0.0
        %7958 = vmatpush1.msra.mxu0 0.0
        %7959 = vmatprep.subr.mxu0 0.0
        %7960 = vmatpush1.msra.mxu0 0.0
        %7961 = vmatprep.subr.mxu0 0.0
        %7962 = vmatpush1.msra.mxu0 0.0
        %7963 = vmatprep.subr.mxu0 0.0
        %7964 = vmatpush1.msra.mxu0 0.0
        %7965 = vmatprep.subr.mxu0 0.0
        %7966 = vmatpush1.msra.mxu0 0.0
        %7967 = vmatprep.subr.mxu0 0.0
        %7968 = vmatpush1.msra.mxu0 0.0
        %7969 = vmatprep.subr.mxu0 0.0
        %7970 = vmatpush1.msra.mxu0 0.0
        %7971 = vmatprep.subr.mxu0 0.0
        %7972 = vmatpush1.msra.mxu0 0.0
        %7973 = vmatprep.subr.mxu0 0.0
        %7974 = vmatpush1.msra.mxu0 0.0
        %7975 = vmatprep.mubr.f32.mxu0 0.0
        %7976 = vmatmul.mubr.f32.gmra.mrb[0].mxu0 %v7767
        %v7977 = vpop.f32.mrb[0].mxu0
        %v7978 = vadd.f32 %v7764, %v7977
        %v7979 = vpop.f32.mrb[0].mxu0
        %v7980 = vadd.f32 %v7764, %v7979
        %7981 = vdwg.mxu0
        %7982 = vmatprep.subr.mxu0 %v5262
        %7983 = vmatpush1.msra.mxu0 %v5158
        %7984 = vmatprep.subr.mxu0 %v6094
        %7985 = vmatpush1.msra.mxu0 %v5990
        %7986 = vmatprep.subr.mxu0 %v6926
        %7987 = vmatpush1.msra.mxu0 %v6822
        %7988 = vmatprep.subr.mxu0 %v7758
        %7989 = vmatpush1.msra.mxu0 %v7654
        %7990 = vmatprep.subr.mxu0 0.0
        %7991 = vmatpush1.msra.mxu0 0.0
        %7992 = vmatprep.subr.mxu0 0.0
        %7993 = vmatpush1.msra.mxu0 0.0
        %7994 = vmatprep.subr.mxu0 0.0
        %7995 = vmatpush1.msra.mxu0 0.0
        %7996 = vmatprep.subr.mxu0 0.0
        %7997 = vmatpush1.msra.mxu0 0.0
        %7998 = vmatprep.subr.mxu0 0.0
        %7999 = vmatpush1.msra.mxu0 0.0
        %8000 = vmatprep.subr.mxu0 0.0
        %8001 = vmatpush1.msra.mxu0 0.0
        %8002 = vmatprep.subr.mxu0 0.0
        %8003 = vmatpush1.msra.mxu0 0.0
        %8004 = vmatprep.subr.mxu0 0.0
        %8005 = vmatpush1.msra.mxu0 0.0
        %8006 = vmatprep.subr.mxu0 0.0
        %8007 = vmatpush1.msra.mxu0 0.0
        %8008 = vmatprep.subr.mxu0 0.0
        %8009 = vmatpush1.msra.mxu0 0.0
        %8010 = vmatprep.subr.mxu0 0.0
        %8011 = vmatpush1.msra.mxu0 0.0
        %8012 = vmatprep.subr.mxu0 0.0
        %8013 = vmatpush1.msra.mxu0 0.0
        %8014 = vmatprep.subr.mxu0 0.0
        %8015 = vmatpush1.msra.mxu0 0.0
        %8016 = vmatprep.subr.mxu0 0.0
        %8017 = vmatpush1.msra.mxu0 0.0
        %8018 = vmatprep.subr.mxu0 0.0
        %8019 = vmatpush1.msra.mxu0 0.0
        %8020 = vmatprep.subr.mxu0 0.0
        %8021 = vmatpush1.msra.mxu0 0.0
        %8022 = vmatprep.subr.mxu0 0.0
        %8023 = vmatpush1.msra.mxu0 0.0
        %8024 = vmatprep.subr.mxu0 0.0
        %8025 = vmatpush1.msra.mxu0 0.0
        %8026 = vmatprep.subr.mxu0 0.0
        %8027 = vmatpush1.msra.mxu0 0.0
        %8028 = vmatprep.subr.mxu0 0.0
        %8029 = vmatpush1.msra.mxu0 0.0
        %8030 = vmatprep.subr.mxu0 0.0
        %8031 = vmatpush1.msra.mxu0 0.0
        %8032 = vmatprep.subr.mxu0 0.0
        %8033 = vmatpush1.msra.mxu0 0.0
        %8034 = vmatprep.subr.mxu0 0.0
        %8035 = vmatpush1.msra.mxu0 0.0
        %8036 = vmatprep.subr.mxu0 0.0
        %8037 = vmatpush1.msra.mxu0 0.0
        %8038 = vmatprep.subr.mxu0 0.0
        %8039 = vmatpush1.msra.mxu0 0.0
        %8040 = vmatprep.subr.mxu0 0.0
        %8041 = vmatpush1.msra.mxu0 0.0
        %8042 = vmatprep.subr.mxu0 0.0
        %8043 = vmatpush1.msra.mxu0 0.0
        %8044 = vmatprep.subr.mxu0 0.0
        %8045 = vmatpush1.msra.mxu0 0.0
        %8046 = vmatprep.mubr.f32.mxu0 0.0
        %8047 = vmatmul.mubr.f32.gmra.mrb[0].mxu0 %v7767
        %v8048 = vpop.f32.mrb[0].mxu0
        %v8049 = vadd.f32 %v7764, %v8048
        %v8050 = vpop.f32.mrb[0].mxu0
        %v8051 = vadd.f32 %v7764, %v8050
        %8052 = vdwg.mxu0
        %v8061 = vcombine.low %v7836, %v7838
        %v8062 = vcombine.low %v7907, %v7909
        %v8063 = vcombine.low %v7978, %v7980
        %v8064 = vcombine.low %v8049, %v8051
        %8069 = vst [vmem:[%s272] sm:$0x77] %v8061
        %8070 = vst [vmem:[%s272 + $0x8] sm:$0x77] %v8062
        %8071 = vst [vmem:[%s272 + $0x10] sm:$0x77] %v8063
        %8072 = vst [vmem:[%s272 + $0x18] sm:$0x77] %v8064
        %s8073 = sand.u32 %s181, 1
        %s8074 = scalar_lea.sflag [#allocation3], %s8073
        %s8075 = sand.u32 %s181, 1
        %s8076 = smul.addr %s8075, 32
        %s8077 = scalar_lea.vmem [#allocation2], %s8076
        // Predicated region
        $region49: #{tpu_custom_call.1} parent=47 // pred_check
          %p8078 = pneg %p191
        $region50: #{tpu_custom_call.1} parent=47 // pred_check_branch
          %8080 = sbr.rel (%p8078) target = $region52
        $region51: #{tpu_custom_call.1} parent=47 // pred_region
          %s8081 = smul.u32 8, %s21
          %s8083 = ssub.s32 512, 512
          %8084 = vsyncadd %s8074, %s8083
          %s8085 = smul.addr %s8081, 64
          %s8086 = scalar_lea.hbm %s7, %s8085
          %s8088 = sshll.u32 %s8077, 4
          %s8089 = int_to_ptr.vmem [resolvable:$true] %s8088
          %8091 = dma.vmem_to_hbm [thread:$0]  %s8089, 512, %s8086, %s8074
        $region52: #{tpu_custom_call.1} parent=47 // pred_fallthru
          _
      $region48: #{tpu_custom_call.1} parent=5 // pred_fallthru
        _
      %p8092 = scmp.le.s32.totalorder 2, %s16
      // Predicated region
      $region53: #{tpu_custom_call.1} parent=5 // pred_check
        %p8093 = pneg %p8092
      $region54: #{tpu_custom_call.1} parent=5 // pred_check_branch
        %8095 = sbr.rel (%p8093) target = $region56
      $region55: #{tpu_custom_call.1} parent=5 // pred_region
        %s8096 = ssub.s32 %s16, 2
        // Predicated region
        $region57: #{tpu_custom_call.1} parent=55 // pred_check
          %p8097 = pneg %p197
        $region58: #{tpu_custom_call.1} parent=55 // pred_check_branch
          %8099 = sbr.rel (%p8097) target = $region60
        $region59: #{tpu_custom_call.1} parent=55 // pred_region
          %s8100 = sand.u32 %s182, 1
          %s8101 = scalar_lea.sflag [#allocation3], %s8100
          %s8102 = sand.u32 %s182, 1
          %s8103 = smul.addr %s8102, 32
          %s8104 = scalar_lea.vmem [#allocation2], %s8103
          %8105 = dma.done %s8101, 512
        $region60: #{tpu_custom_call.1} parent=55 // pred_fallthru
          _
      $region56: #{tpu_custom_call.1} parent=5 // pred_fallthru
        _
    $region6: #{tpu_custom_call.1} parent=1 // loop_footer
      %s20 = sadd.s32 1, %s16
    $region7: #{tpu_custom_call.1} parent=1 // loop_footer_branch
      %15 = sbr.rel target = $region3
    $region8: #{tpu_custom_call.1} parent=1 // loop_exit
      _
    %8106 = vsyncpa [#allocation3], 1
    %s8107 = scalar_lea.sflag [#allocation3], 1
    %8108 = vsyncpa %s8107, 1

</llo_original>
